<compile_context>
chip_gen: v5e
topology: v5e:2x2
jax: 0.10.0
libtpu: 0.0.40
codegen_flags: <defaults>
</compile_context>

<pallas_src>
import functools
import math

import jax
import jax.numpy as jnp
from jax.experimental import pallas as pl
from jax.experimental.pallas import tpu as pltpu


# ----------------------------------------------------------------------------
# Pallas kernels
# ----------------------------------------------------------------------------
def _conv_kernel(*refs, relu, has_res, has_proj):
    """out = maybe_relu( scale*(W@A) + bias [+ res] [+ sc_scale*(Wsc@Xs) + sc_bias] )

    Shapes (per grid step):
      W:(Cout,K) bf16   A:(K,TM) bf16   scale/bias:(Cout,1) f32
      res:(Cout,TM) f32   Wsc:(Cout,Cin) bf16   Xs:(Cin,TM) bf16   O:(Cout,TM) f32
    """
    wm_ref, a_ref, scale_ref, bias_ref = refs[:4]
    pos = 4
    if has_res:
        res_ref = refs[pos]
        pos += 1
    if has_proj:
        wsc_ref, xs_ref, sscale_ref, sbias_ref = refs[pos:pos + 4]
        pos += 4
    o_ref = refs[pos]

    acc = jnp.dot(wm_ref[...], a_ref[...], preferred_element_type=jnp.float32)
    out = acc * scale_ref[...] + bias_ref[...]
    if has_res:
        out = out + res_ref[...]
    if has_proj:
        acc2 = jnp.dot(wsc_ref[...], xs_ref[...], preferred_element_type=jnp.float32)
        out = out + acc2 * sscale_ref[...] + sbias_ref[...]
    if relu:
        out = jnp.maximum(out, 0.0)
    o_ref[...] = out.astype(o_ref.dtype)


def _pool_linear_kernel(x_ref, w_ref, b_ref, o_ref):
    # x: (C, N, HW) f32 -> global mean over HW -> (C, N); logits^T = W @ pooled + b
    pooled = jnp.mean(x_ref[...], axis=-1)                          # (C, N)
    out = jnp.dot(w_ref[...], pooled, preferred_element_type=jnp.float32) + b_ref[...]
    o_ref[...] = out.astype(o_ref.dtype)


# ----------------------------------------------------------------------------
# Pallas wrappers
# ----------------------------------------------------------------------------
_TM_DEFAULT = 256  # lane-tile along M; multiple of 128


def _round_up(x, m):
    return ((x + m - 1) // m) * m


def _pad_cols(x, mp):
    m = x.shape[-1]
    if m == mp:
        return x
    return jnp.pad(x, ((0, 0), (0, mp - m)))


def fused_conv(cols, wmat, scale, bias, res=None, proj=None, relu=True, tm=_TM_DEFAULT):
    """O = maybe_relu(scale*(wmat@cols)+bias [+res] [+proj]);  returns (Cout, M) f32."""
    K, M = cols.shape
    Cout = wmat.shape[0]

    # Pad K to a sublane multiple (only triggers for the first conv, K=27 -> 32).
    if K % 8:
        kp = _round_up(K, 8)
        wmat = jnp.pad(wmat, ((0, 0), (0, kp - K)))
        cols = jnp.pad(cols, ((0, kp - K), (0, 0)))
        K = kp

    TM = min(tm, _round_up(M, 128))
    Mp = _round_up(M, TM)
    grid_m = Mp // TM
    cols_p = _pad_cols(cols, Mp)

    operands = [wmat, cols_p, scale, bias]
    in_specs = [
        pl.BlockSpec((Cout, K), lambda i: (0, 0)),   # weights: VMEM-resident
        pl.BlockSpec((K, TM), lambda i: (0, i)),
        pl.BlockSpec((Cout, 1), lambda i: (0, 0)),
        pl.BlockSpec((Cout, 1), lambda i: (0, 0)),
    ]
    has_res = res is not None
    has_proj = proj is not None

    flops = 2 * Cout * K * Mp
    bytes_acc = (wmat.size * 2 + cols_p.size * 2 + scale.size * 4 + bias.size * 4
                 + Cout * Mp * 4)

    if has_res:
        res_p = _pad_cols(res.astype(jnp.float32), Mp)
        operands.append(res_p)
        in_specs.append(pl.BlockSpec((Cout, TM), lambda i: (0, i)))
        bytes_acc += res_p.size * 4
    if has_proj:
        wsc, xs, sscale, sbias = proj
        Cin = wsc.shape[1]
        xs_p = _pad_cols(xs, Mp)
        operands += [wsc, xs_p, sscale, sbias]
        in_specs += [
            pl.BlockSpec((Cout, Cin), lambda i: (0, 0)),
            pl.BlockSpec((Cin, TM), lambda i: (0, i)),
            pl.BlockSpec((Cout, 1), lambda i: (0, 0)),
            pl.BlockSpec((Cout, 1), lambda i: (0, 0)),
        ]
        flops += 2 * Cout * Cin * Mp
        bytes_acc += wsc.size * 2 + xs_p.size * 2 + sscale.size * 4 + sbias.size * 4

    kernel = functools.partial(_conv_kernel, relu=relu, has_res=has_res, has_proj=has_proj)
    out = pl.pallas_call(
        kernel,
        out_shape=jax.ShapeDtypeStruct((Cout, Mp), jnp.float32),
        grid=(grid_m,),
        in_specs=in_specs,
        out_specs=pl.BlockSpec((Cout, TM), lambda i: (0, i)),
        compiler_params=pltpu.CompilerParams(
            dimension_semantics=("parallel",),
            vmem_limit_bytes=32 * 1024 * 1024),
        cost_estimate=pl.CostEstimate(flops=int(flops), transcendentals=0,
                                      bytes_accessed=int(bytes_acc)),
    )(*operands)
    return out[:, :M]


def pool_linear(x_cnl, w, b):
    """x:(C,N,HW) f32, w:(num_class,C) f32, b:(num_class,1) -> logits^T (num_class,N)."""
    C, N, L = x_cnl.shape
    nc = w.shape[0]
    return pl.pallas_call(
        _pool_linear_kernel,
        out_shape=jax.ShapeDtypeStruct((nc, N), jnp.float32),
        grid=(1,),
        in_specs=[
            pl.BlockSpec((C, N, L), lambda i: (0, 0, 0)),
            pl.BlockSpec((nc, C), lambda i: (0, 0)),
            pl.BlockSpec((nc, 1), lambda i: (0, 0)),
        ],
        out_specs=pl.BlockSpec((nc, N), lambda i: (0, 0)),
        compiler_params=pltpu.CompilerParams(dimension_semantics=("arbitrary",)),
    )(x_cnl, w, b)


# ----------------------------------------------------------------------------
# Plain-JAX glue: channels-first im2col, block wiring
# ----------------------------------------------------------------------------
def im2col_3x3_cf(x, stride):
    """x:(C,N,H,W), pad=1, k=3 -> cols:(9*C, N*Ho*Wo) with row order (kh, kw, cin)."""
    C, N, H, W = x.shape
    xp = jnp.pad(x, ((0, 0), (0, 0), (1, 1), (1, 1)))
    Ho = (H + 2 - 3) // stride + 1
    Wo = (W + 2 - 3) // stride + 1
    taps = []
    for i in range(3):
        for j in range(3):
            taps.append(xp[:, :, i:i + stride * Ho:stride, j:j + stride * Wo:stride])
    cols = jnp.concatenate(taps, axis=0)                 # (9C, N, Ho, Wo)
    return cols.reshape(9 * C, N * Ho * Wo), (N, Ho, Wo)


def conv3x3_bn(x_cf, wmat, scale, bias, stride=1, relu=True, res=None, proj=None):
    """x:(Cin,N,H,W) f32 -> (Cout,N,Ho,Wo) f32 through the fused Pallas kernel."""
    cols, (N, Ho, Wo) = im2col_3x3_cf(x_cf.astype(jnp.bfloat16), stride)
    Cout = wmat.shape[0]
    out = fused_conv(cols, wmat, scale, bias, res=res, proj=proj, relu=relu)
    return out.reshape(Cout, N, Ho, Wo)


def basic_block(x, p):
    stride = p['stride']
    w1, s1, b1 = p['c1']
    y = conv3x3_bn(x, w1, s1, b1, stride=stride, relu=True)

    w2, s2, b2 = p['c2']
    C = x.shape[0]
    if 'sc' in p:
        # Downsampling block: fuse the 1x1 projection shortcut (conv+BN+bias) into the
        # second conv's kernel (extra small matmul on the strided input).
        wsc, ssc, bsc = p['sc']
        xs = x[:, :, ::stride, ::stride]                 # (Cin, N, Ho, Wo)
        Cin, N, Ho, Wo = xs.shape
        proj = (wsc, xs.reshape(Cin, N * Ho * Wo).astype(jnp.bfloat16), ssc, bsc)
        y = conv3x3_bn(y, w2, s2, b2, stride=1, relu=True, proj=proj)
    else:
        # Identity shortcut fused as a residual operand (no zero-residual dummy).
        res = x.reshape(C, -1)                           # (Cout, N*H*W) f32
        y = conv3x3_bn(y, w2, s2, b2, stride=1, relu=True, res=res)
    return y


def resnet18_forward(x_nchw, prep):
    # NCHW -> channels-first flat layout (C, N, H, W)
    x = jnp.transpose(x_nchw, (1, 0, 2, 3)).astype(jnp.float32)
    w1, s1, b1 = prep['conv1']
    x = conv3x3_bn(x, w1, s1, b1, stride=1, relu=True)
    for blk in prep['layer1'] + prep['layer2'] + prep['layer3']:
        x = basic_block(x, blk)
    C, N, H, W = x.shape
    logits_t = pool_linear(x.reshape(C, N, H * W), prep['linear_w'], prep['linear_b'])
    return logits_t.T                                    # (N, num_class)


# ----------------------------------------------------------------------------
# Parameter prep: fold BN, re-layout weights for the MXU (done once, hoisted)
# ----------------------------------------------------------------------------
def bn_fold(bn, conv_bias=None, eps=1e-5):
    gamma, beta, mean, var = bn
    scale = gamma / jnp.sqrt(var + eps)
    b = conv_bias if conv_bias is not None else jnp.zeros_like(mean)
    bias = beta + scale * (b - mean)
    return scale, bias


def _prep_conv3(w, bn):
    Cout = w.shape[0]
    scale, bias = bn_fold(bn)
    wmat = jnp.transpose(w, (0, 2, 3, 1)).reshape(Cout, -1).astype(jnp.bfloat16)
    return (wmat, scale.reshape(Cout, 1).astype(jnp.float32),
            bias.reshape(Cout, 1).astype(jnp.float32))


def _prep_block(b):
    d = {'stride': b['stride'],
         'c1': _prep_conv3(b['w1'], b['bn1']),
         'c2': _prep_conv3(b['w2'], b['bn2'])}
    if 'w_sc' in b:
        Cout, Cin = b['w_sc'].shape[:2]
        scale, bias = bn_fold(b['bn_sc'], conv_bias=b['b_sc'])
        d['sc'] = (b['w_sc'].reshape(Cout, Cin).astype(jnp.bfloat16),
                   scale.reshape(Cout, 1).astype(jnp.float32),
                   bias.reshape(Cout, 1).astype(jnp.float32))
    return d


def prepare_params(params):
    return {
        'conv1': _prep_conv3(params['conv1_w'], params['bn1']),
        'layer1': [_prep_block(b) for b in params['layer1']],
        'layer2': [_prep_block(b) for b in params['layer2']],
        'layer3': [_prep_block(b) for b in params['layer3']],
        'linear_w': params['linear_w'].astype(jnp.float32),            # (num_class, 64)
        'linear_b': params['linear_b'].reshape(-1, 1).astype(jnp.float32),
    }


# ----------------------------------------------------------------------------
# Deterministic synthetic parameters (match the PyTorch module's shapes)
# ----------------------------------------------------------------------------
def init_params(key, num_class=10):
    keys = iter(jax.random.split(key, 256))

    def conv_w(cout, cin, k):
        fan = cin * k * k
        return jax.random.normal(next(keys), (cout, cin, k, k), jnp.float32) / math.sqrt(fan)

    def bn(c):
        gamma = jax.random.uniform(next(keys), (c,), jnp.float32, 0.5, 1.5)
        beta = jax.random.normal(next(keys), (c,), jnp.float32) * 0.1
        mean = jax.random.normal(next(keys), (c,), jnp.float32) * 0.1
        var = jax.random.uniform(next(keys), (c,), jnp.float32, 0.5, 1.5)
        return (gamma, beta, mean, var)

    def block(cin, cout, stride):
        p = {'stride': stride,
             'w1': conv_w(cout, cin, 3), 'bn1': bn(cout),
             'w2': conv_w(cout, cout, 3), 'bn2': bn(cout)}
        if stride != 1 or cin != cout:
            p['w_sc'] = conv_w(cout, cin, 1)
            p['b_sc'] = jax.random.normal(next(keys), (cout,), jnp.float32) * 0.1
            p['bn_sc'] = bn(cout)
        return p

    return {
        'conv1_w': conv_w(16, 3, 3), 'bn1': bn(16),
        'layer1': [block(16, 16, 1), block(16, 16, 1)],
        'layer2': [block(16, 32, 2), block(32, 32, 1)],
        'layer3': [block(32, 64, 2), block(64, 64, 1)],
        'linear_w': jax.random.normal(next(keys), (num_class, 64), jnp.float32) / math.sqrt(64.0),
        'linear_b': jax.random.normal(next(keys), (num_class,), jnp.float32) * 0.1,
    }


if __name__ == "__main__":
    key = jax.random.PRNGKey(0)
    k_in, k_par = jax.random.split(key)
    # small CIFAR-like input: batch=2, 3 channels, 16x16 spatial (NCHW like PyTorch)
    x = jax.random.normal(k_in, (2, 3, 16, 16), jnp.float32)
    raw_params = init_params(k_par, num_class=10)

    # TODO(synk): BatchNorm implemented in inference mode (folded running stats);
    # PyTorch train-mode forward would use per-batch statistics.
    prep = prepare_params(raw_params)   # hoisted: BN folding + bf16 MXU-ready weights
    fwd = jax.jit(lambda inp: resnet18_forward(inp, prep))
    logits = fwd(x)
    jax.block_until_ready(logits)
    assert logits.shape == (2, 10) and logits.dtype == jnp.float32
    print("KERNEL_OK")
</pallas_src>

<mosaic_0001>
module attributes {stable_mosaic.version = 11 : i64} {
  func.func @_conv_kernel(%arg0: i32, %arg1: memref<16x32xbf16, #tpu.memory_space<vmem>>, %arg2: memref<32x256xbf16, #tpu.memory_space<vmem>>, %arg3: memref<16x1xf32, #tpu.memory_space<vmem>>, %arg4: memref<16x1xf32, #tpu.memory_space<vmem>>, %arg5: memref<16x256xf32, #tpu.memory_space<vmem>>) attributes {dimension_semantics = [#tpu.dimension_semantics<parallel>], iteration_bounds = array<i64: 2>, scalar_prefetch = 0 : i64, scratch_operands = 0 : i64, tpu.core_type = #tpu.core_type<tc>, window_params = [{pipeline_mode = #tpu.pipeline_mode<synchronous>, transform_indices = @transform_0, window_bounds = array<i64: 16, 32>}, {transform_indices = @transform_1, window_bounds = array<i64: 32, 256>}, {pipeline_mode = #tpu.pipeline_mode<synchronous>, transform_indices = @transform_2, window_bounds = array<i64: 16, 1>}, {pipeline_mode = #tpu.pipeline_mode<synchronous>, transform_indices = @transform_3, window_bounds = array<i64: 16, 1>}, {transform_indices = @transform_4, window_bounds = array<i64: 16, 256>}]} {
    %c0 = arith.constant 0 : index
    %c0_0 = arith.constant 0 : index
    %0 = vector.load %arg1[%c0, %c0_0] : memref<16x32xbf16, #tpu.memory_space<vmem>>, vector<16x32xbf16>
    %c0_1 = arith.constant 0 : index
    %c0_2 = arith.constant 0 : index
    %1 = vector.load %arg2[%c0_1, %c0_2] : memref<32x256xbf16, #tpu.memory_space<vmem>>, vector<32x256xbf16>
    %cst = arith.constant dense<0.000000e+00> : vector<16x256xf32>
    %2 = tpu.matmul %0, %1, %cst {dimension_numbers = #tpu.dot_dimension_numbers<[1], [0], [0], [1], [0, 0, 1, 1], [], []>} : vector<16x32xbf16>, vector<32x256xbf16>, vector<16x256xf32> -> vector<16x256xf32>
    %c0_3 = arith.constant 0 : index
    %c0_4 = arith.constant 0 : index
    %3 = vector.load %arg3[%c0_3, %c0_4] : memref<16x1xf32, #tpu.memory_space<vmem>>, vector<16x1xf32>
    %4 = vector.broadcast %3 : vector<16x1xf32> to vector<16x256xf32>
    %5 = arith.mulf %2, %4 : vector<16x256xf32>
    %c0_5 = arith.constant 0 : index
    %c0_6 = arith.constant 0 : index
    %6 = vector.load %arg4[%c0_5, %c0_6] : memref<16x1xf32, #tpu.memory_space<vmem>>, vector<16x1xf32>
    %7 = vector.broadcast %6 : vector<16x1xf32> to vector<16x256xf32>
    %8 = arith.addf %5, %7 : vector<16x256xf32>
    %cst_7 = arith.constant 0.000000e+00 : f32
    %9 = vector.broadcast %cst_7 : f32 to vector<16x256xf32>
    %10 = arith.maximumf %8, %9 : vector<16x256xf32>
    %c0_8 = arith.constant 0 : index
    %c0_9 = arith.constant 0 : index
    %11 = vector.load %arg5[%c0_8, %c0_9] : memref<16x256xf32, #tpu.memory_space<vmem>>, vector<16x256xf32>
    tpu.vector_store %arg5[%c0_8, %c0_9], %10 {strides = array<i32>} : memref<16x256xf32, #tpu.memory_space<vmem>>, vector<16x256xf32>,
    return
  }
  func.func @transform_0(%arg0: i32) -> (i32, i32) {
    %c0_i32 = arith.constant 0 : i32
    %c0_i32_0 = arith.constant 0 : i32
    %c0_i32_1 = arith.constant 0 : i32
    return %c0_i32, %c0_i32_0 : i32, i32
  }
  func.func @transform_1(%arg0: i32) -> (i32, i32) {
    %c0_i32 = arith.constant 0 : i32
    %c0_i32_0 = arith.constant 0 : i32
    return %c0_i32, %arg0 : i32, i32
  }
  func.func @transform_2(%arg0: i32) -> (i32, i32) {
    %c0_i32 = arith.constant 0 : i32
    %c0_i32_0 = arith.constant 0 : i32
    %c0_i32_1 = arith.constant 0 : i32
    return %c0_i32, %c0_i32_0 : i32, i32
  }
  func.func @transform_3(%arg0: i32) -> (i32, i32) {
    %c0_i32 = arith.constant 0 : i32
    %c0_i32_0 = arith.constant 0 : i32
    %c0_i32_1 = arith.constant 0 : i32
    return %c0_i32, %c0_i32_0 : i32, i32
  }
  func.func @transform_4(%arg0: i32) -> (i32, i32) {
    %c0_i32 = arith.constant 0 : i32
    %c0_i32_0 = arith.constant 0 : i32
    return %c0_i32, %arg0 : i32, i32
  }
}

module attributes {stable_mosaic.version = 11 : i64} {
  func.func @_conv_kernel(%arg0: i32, %arg1: memref<16x144xbf16, #tpu.memory_space<vmem>>, %arg2: memref<144x256xbf16, #tpu.memory_space<vmem>>, %arg3: memref<16x1xf32, #tpu.memory_space<vmem>>, %arg4: memref<16x1xf32, #tpu.memory_space<vmem>>, %arg5: memref<16x256xf32, #tpu.memory_space<vmem>>) attributes {dimension_semantics = [#tpu.dimension_semantics<parallel>], iteration_bounds = array<i64: 2>, scalar_prefetch = 0 : i64, scratch_operands = 0 : i64, tpu.core_type = #tpu.core_type<tc>, window_params = [{pipeline_mode = #tpu.pipeline_mode<synchronous>, transform_indices = @transform_0, window_bounds = array<i64: 16, 144>}, {transform_indices = @transform_1, window_bounds = array<i64: 144, 256>}, {pipeline_mode = #tpu.pipeline_mode<synchronous>, transform_indices = @transform_2, window_bounds = array<i64: 16, 1>}, {pipeline_mode = #tpu.pipeline_mode<synchronous>, transform_indices = @transform_3, window_bounds = array<i64: 16, 1>}, {transform_indices = @transform_4, window_bounds = array<i64: 16, 256>}]} {
    %c0 = arith.constant 0 : index
    %c0_0 = arith.constant 0 : index
    %0 = vector.load %arg1[%c0, %c0_0] : memref<16x144xbf16, #tpu.memory_space<vmem>>, vector<16x144xbf16>
    %c0_1 = arith.constant 0 : index
    %c0_2 = arith.constant 0 : index
    %1 = vector.load %arg2[%c0_1, %c0_2] : memref<144x256xbf16, #tpu.memory_space<vmem>>, vector<144x256xbf16>
    %cst = arith.constant dense<0.000000e+00> : vector<16x256xf32>
    %2 = tpu.matmul %0, %1, %cst {dimension_numbers = #tpu.dot_dimension_numbers<[1], [0], [0], [1], [0, 0, 1, 1], [], []>} : vector<16x144xbf16>, vector<144x256xbf16>, vector<16x256xf32> -> vector<16x256xf32>
    %c0_3 = arith.constant 0 : index
    %c0_4 = arith.constant 0 : index
    %3 = vector.load %arg3[%c0_3, %c0_4] : memref<16x1xf32, #tpu.memory_space<vmem>>, vector<16x1xf32>
    %4 = vector.broadcast %3 : vector<16x1xf32> to vector<16x256xf32>
    %5 = arith.mulf %2, %4 : vector<16x256xf32>
    %c0_5 = arith.constant 0 : index
    %c0_6 = arith.constant 0 : index
    %6 = vector.load %arg4[%c0_5, %c0_6] : memref<16x1xf32, #tpu.memory_space<vmem>>, vector<16x1xf32>
    %7 = vector.broadcast %6 : vector<16x1xf32> to vector<16x256xf32>
    %8 = arith.addf %5, %7 : vector<16x256xf32>
    %cst_7 = arith.constant 0.000000e+00 : f32
    %9 = vector.broadcast %cst_7 : f32 to vector<16x256xf32>
    %10 = arith.maximumf %8, %9 : vector<16x256xf32>
    %c0_8 = arith.constant 0 : index
    %c0_9 = arith.constant 0 : index
    %11 = vector.load %arg5[%c0_8, %c0_9] : memref<16x256xf32, #tpu.memory_space<vmem>>, vector<16x256xf32>
    tpu.vector_store %arg5[%c0_8, %c0_9], %10 {strides = array<i32>} : memref<16x256xf32, #tpu.memory_space<vmem>>, vector<16x256xf32>,
    return
  }
  func.func @transform_0(%arg0: i32) -> (i32, i32) {
    %c0_i32 = arith.constant 0 : i32
    %c0_i32_0 = arith.constant 0 : i32
    %c0_i32_1 = arith.constant 0 : i32
    return %c0_i32, %c0_i32_0 : i32, i32
  }
  func.func @transform_1(%arg0: i32) -> (i32, i32) {
    %c0_i32 = arith.constant 0 : i32
    %c0_i32_0 = arith.constant 0 : i32
    return %c0_i32, %arg0 : i32, i32
  }
  func.func @transform_2(%arg0: i32) -> (i32, i32) {
    %c0_i32 = arith.constant 0 : i32
    %c0_i32_0 = arith.constant 0 : i32
    %c0_i32_1 = arith.constant 0 : i32
    return %c0_i32, %c0_i32_0 : i32, i32
  }
  func.func @transform_3(%arg0: i32) -> (i32, i32) {
    %c0_i32 = arith.constant 0 : i32
    %c0_i32_0 = arith.constant 0 : i32
    %c0_i32_1 = arith.constant 0 : i32
    return %c0_i32, %c0_i32_0 : i32, i32
  }
  func.func @transform_4(%arg0: i32) -> (i32, i32) {
    %c0_i32 = arith.constant 0 : i32
    %c0_i32_0 = arith.constant 0 : i32
    return %c0_i32, %arg0 : i32, i32
  }
}

module attributes {stable_mosaic.version = 11 : i64} {
  func.func @_conv_kernel(%arg0: i32, %arg1: memref<16x144xbf16, #tpu.memory_space<vmem>>, %arg2: memref<144x256xbf16, #tpu.memory_space<vmem>>, %arg3: memref<16x1xf32, #tpu.memory_space<vmem>>, %arg4: memref<16x1xf32, #tpu.memory_space<vmem>>, %arg5: memref<16x256xf32, #tpu.memory_space<vmem>>, %arg6: memref<16x256xf32, #tpu.memory_space<vmem>>) attributes {dimension_semantics = [#tpu.dimension_semantics<parallel>], iteration_bounds = array<i64: 2>, scalar_prefetch = 0 : i64, scratch_operands = 0 : i64, tpu.core_type = #tpu.core_type<tc>, window_params = [{pipeline_mode = #tpu.pipeline_mode<synchronous>, transform_indices = @transform_0, window_bounds = array<i64: 16, 144>}, {transform_indices = @transform_1, window_bounds = array<i64: 144, 256>}, {pipeline_mode = #tpu.pipeline_mode<synchronous>, transform_indices = @transform_2, window_bounds = array<i64: 16, 1>}, {pipeline_mode = #tpu.pipeline_mode<synchronous>, transform_indices = @transform_3, window_bounds = array<i64: 16, 1>}, {transform_indices = @transform_4, window_bounds = array<i64: 16, 256>}, {transform_indices = @transform_5, window_bounds = array<i64: 16, 256>}]} {
    %c0 = arith.constant 0 : index
    %c0_0 = arith.constant 0 : index
    %0 = vector.load %arg1[%c0, %c0_0] : memref<16x144xbf16, #tpu.memory_space<vmem>>, vector<16x144xbf16>
    %c0_1 = arith.constant 0 : index
    %c0_2 = arith.constant 0 : index
    %1 = vector.load %arg2[%c0_1, %c0_2] : memref<144x256xbf16, #tpu.memory_space<vmem>>, vector<144x256xbf16>
    %cst = arith.constant dense<0.000000e+00> : vector<16x256xf32>
    %2 = tpu.matmul %0, %1, %cst {dimension_numbers = #tpu.dot_dimension_numbers<[1], [0], [0], [1], [0, 0, 1, 1], [], []>} : vector<16x144xbf16>, vector<144x256xbf16>, vector<16x256xf32> -> vector<16x256xf32>
    %c0_3 = arith.constant 0 : index
    %c0_4 = arith.constant 0 : index
    %3 = vector.load %arg3[%c0_3, %c0_4] : memref<16x1xf32, #tpu.memory_space<vmem>>, vector<16x1xf32>
    %4 = vector.broadcast %3 : vector<16x1xf32> to vector<16x256xf32>
    %5 = arith.mulf %2, %4 : vector<16x256xf32>
    %c0_5 = arith.constant 0 : index
    %c0_6 = arith.constant 0 : index
    %6 = vector.load %arg4[%c0_5, %c0_6] : memref<16x1xf32, #tpu.memory_space<vmem>>, vector<16x1xf32>
    %7 = vector.broadcast %6 : vector<16x1xf32> to vector<16x256xf32>
    %8 = arith.addf %5, %7 : vector<16x256xf32>
    %c0_7 = arith.constant 0 : index
    %c0_8 = arith.constant 0 : index
    %9 = vector.load %arg5[%c0_7, %c0_8] : memref<16x256xf32, #tpu.memory_space<vmem>>, vector<16x256xf32>
    %10 = arith.addf %8, %9 : vector<16x256xf32>
    %cst_9 = arith.constant 0.000000e+00 : f32
    %11 = vector.broadcast %cst_9 : f32 to vector<16x256xf32>
    %12 = arith.maximumf %10, %11 : vector<16x256xf32>
    %c0_10 = arith.constant 0 : index
    %c0_11 = arith.constant 0 : index
    %13 = vector.load %arg6[%c0_10, %c0_11] : memref<16x256xf32, #tpu.memory_space<vmem>>, vector<16x256xf32>
    tpu.vector_store %arg6[%c0_10, %c0_11], %12 {strides = array<i32>} : memref<16x256xf32, #tpu.memory_space<vmem>>, vector<16x256xf32>,
    return
  }
  func.func @transform_0(%arg0: i32) -> (i32, i32) {
    %c0_i32 = arith.constant 0 : i32
    %c0_i32_0 = arith.constant 0 : i32
    %c0_i32_1 = arith.constant 0 : i32
    return %c0_i32, %c0_i32_0 : i32, i32
  }
  func.func @transform_1(%arg0: i32) -> (i32, i32) {
    %c0_i32 = arith.constant 0 : i32
    %c0_i32_0 = arith.constant 0 : i32
    return %c0_i32, %arg0 : i32, i32
  }
  func.func @transform_2(%arg0: i32) -> (i32, i32) {
    %c0_i32 = arith.constant 0 : i32
    %c0_i32_0 = arith.constant 0 : i32
    %c0_i32_1 = arith.constant 0 : i32
    return %c0_i32, %c0_i32_0 : i32, i32
  }
  func.func @transform_3(%arg0: i32) -> (i32, i32) {
    %c0_i32 = arith.constant 0 : i32
    %c0_i32_0 = arith.constant 0 : i32
    %c0_i32_1 = arith.constant 0 : i32
    return %c0_i32, %c0_i32_0 : i32, i32
  }
  func.func @transform_4(%arg0: i32) -> (i32, i32) {
    %c0_i32 = arith.constant 0 : i32
    %c0_i32_0 = arith.constant 0 : i32
    return %c0_i32, %arg0 : i32, i32
  }
  func.func @transform_5(%arg0: i32) -> (i32, i32) {
    %c0_i32 = arith.constant 0 : i32
    %c0_i32_0 = arith.constant 0 : i32
    return %c0_i32, %arg0 : i32, i32
  }
}

module attributes {stable_mosaic.version = 11 : i64} {
  func.func @_conv_kernel(%arg0: i32, %arg1: memref<32x144xbf16, #tpu.memory_space<vmem>>, %arg2: memref<144x128xbf16, #tpu.memory_space<vmem>>, %arg3: memref<32x1xf32, #tpu.memory_space<vmem>>, %arg4: memref<32x1xf32, #tpu.memory_space<vmem>>, %arg5: memref<32x128xf32, #tpu.memory_space<vmem>>) attributes {dimension_semantics = [#tpu.dimension_semantics<parallel>], iteration_bounds = array<i64: 1>, scalar_prefetch = 0 : i64, scratch_operands = 0 : i64, tpu.core_type = #tpu.core_type<tc>, window_params = [{pipeline_mode = #tpu.pipeline_mode<synchronous>, transform_indices = @transform_0, window_bounds = array<i64: 32, 144>}, {transform_indices = @transform_1, window_bounds = array<i64: 144, 128>}, {pipeline_mode = #tpu.pipeline_mode<synchronous>, transform_indices = @transform_2, window_bounds = array<i64: 32, 1>}, {pipeline_mode = #tpu.pipeline_mode<synchronous>, transform_indices = @transform_3, window_bounds = array<i64: 32, 1>}, {transform_indices = @transform_4, window_bounds = array<i64: 32, 128>}]} {
    %c0 = arith.constant 0 : index
    %c0_0 = arith.constant 0 : index
    %0 = vector.load %arg1[%c0, %c0_0] : memref<32x144xbf16, #tpu.memory_space<vmem>>, vector<32x144xbf16>
    %c0_1 = arith.constant 0 : index
    %c0_2 = arith.constant 0 : index
    %1 = vector.load %arg2[%c0_1, %c0_2] : memref<144x128xbf16, #tpu.memory_space<vmem>>, vector<144x128xbf16>
    %cst = arith.constant dense<0.000000e+00> : vector<32x128xf32>
    %2 = tpu.matmul %0, %1, %cst {dimension_numbers = #tpu.dot_dimension_numbers<[1], [0], [0], [1], [0, 0, 1, 1], [], []>} : vector<32x144xbf16>, vector<144x128xbf16>, vector<32x128xf32> -> vector<32x128xf32>
    %c0_3 = arith.constant 0 : index
    %c0_4 = arith.constant 0 : index
    %3 = vector.load %arg3[%c0_3, %c0_4] : memref<32x1xf32, #tpu.memory_space<vmem>>, vector<32x1xf32>
    %4 = vector.broadcast %3 : vector<32x1xf32> to vector<32x128xf32>
    %5 = arith.mulf %2, %4 : vector<32x128xf32>
    %c0_5 = arith.constant 0 : index
    %c0_6 = arith.constant 0 : index
    %6 = vector.load %arg4[%c0_5, %c0_6] : memref<32x1xf32, #tpu.memory_space<vmem>>, vector<32x1xf32>
    %7 = vector.broadcast %6 : vector<32x1xf32> to vector<32x128xf32>
    %8 = arith.addf %5, %7 : vector<32x128xf32>
    %cst_7 = arith.constant 0.000000e+00 : f32
    %9 = vector.broadcast %cst_7 : f32 to vector<32x128xf32>
    %10 = arith.maximumf %8, %9 : vector<32x128xf32>
    %c0_8 = arith.constant 0 : index
    %c0_9 = arith.constant 0 : index
    %11 = vector.load %arg5[%c0_8, %c0_9] : memref<32x128xf32, #tpu.memory_space<vmem>>, vector<32x128xf32>
    tpu.vector_store %arg5[%c0_8, %c0_9], %10 {strides = array<i32>} : memref<32x128xf32, #tpu.memory_space<vmem>>, vector<32x128xf32>,
    return
  }
  func.func @transform_0(%arg0: i32) -> (i32, i32) {
    %c0_i32 = arith.constant 0 : i32
    %c0_i32_0 = arith.constant 0 : i32
    %c0_i32_1 = arith.constant 0 : i32
    return %c0_i32, %c0_i32_0 : i32, i32
  }
  func.func @transform_1(%arg0: i32) -> (i32, i32) {
    %c0_i32 = arith.constant 0 : i32
    %c0_i32_0 = arith.constant 0 : i32
    return %c0_i32, %arg0 : i32, i32
  }
  func.func @transform_2(%arg0: i32) -> (i32, i32) {
    %c0_i32 = arith.constant 0 : i32
    %c0_i32_0 = arith.constant 0 : i32
    %c0_i32_1 = arith.constant 0 : i32
    return %c0_i32, %c0_i32_0 : i32, i32
  }
  func.func @transform_3(%arg0: i32) -> (i32, i32) {
    %c0_i32 = arith.constant 0 : i32
    %c0_i32_0 = arith.constant 0 : i32
    %c0_i32_1 = arith.constant 0 : i32
    return %c0_i32, %c0_i32_0 : i32, i32
  }
  func.func @transform_4(%arg0: i32) -> (i32, i32) {
    %c0_i32 = arith.constant 0 : i32
    %c0_i32_0 = arith.constant 0 : i32
    return %c0_i32, %arg0 : i32, i32
  }
}

module attributes {stable_mosaic.version = 11 : i64} {
  func.func @_conv_kernel(%arg0: i32, %arg1: memref<32x288xbf16, #tpu.memory_space<vmem>>, %arg2: memref<288x128xbf16, #tpu.memory_space<vmem>>, %arg3: memref<32x1xf32, #tpu.memory_space<vmem>>, %arg4: memref<32x1xf32, #tpu.memory_space<vmem>>, %arg5: memref<32x128xf32, #tpu.memory_space<vmem>>) attributes {dimension_semantics = [#tpu.dimension_semantics<parallel>], iteration_bounds = array<i64: 1>, scalar_prefetch = 0 : i64, scratch_operands = 0 : i64, tpu.core_type = #tpu.core_type<tc>, window_params = [{pipeline_mode = #tpu.pipeline_mode<synchronous>, transform_indices = @transform_0, window_bounds = array<i64: 32, 288>}, {transform_indices = @transform_1, window_bounds = array<i64: 288, 128>}, {pipeline_mode = #tpu.pipeline_mode<synchronous>, transform_indices = @transform_2, window_bounds = array<i64: 32, 1>}, {pipeline_mode = #tpu.pipeline_mode<synchronous>, transform_indices = @transform_3, window_bounds = array<i64: 32, 1>}, {transform_indices = @transform_4, window_bounds = array<i64: 32, 128>}]} {
    %c0 = arith.constant 0 : index
    %c0_0 = arith.constant 0 : index
    %0 = vector.load %arg1[%c0, %c0_0] : memref<32x288xbf16, #tpu.memory_space<vmem>>, vector<32x288xbf16>
    %c0_1 = arith.constant 0 : index
    %c0_2 = arith.constant 0 : index
    %1 = vector.load %arg2[%c0_1, %c0_2] : memref<288x128xbf16, #tpu.memory_space<vmem>>, vector<288x128xbf16>
    %cst = arith.constant dense<0.000000e+00> : vector<32x128xf32>
    %2 = tpu.matmul %0, %1, %cst {dimension_numbers = #tpu.dot_dimension_numbers<[1], [0], [0], [1], [0, 0, 1, 1], [], []>} : vector<32x288xbf16>, vector<288x128xbf16>, vector<32x128xf32> -> vector<32x128xf32>
    %c0_3 = arith.constant 0 : index
    %c0_4 = arith.constant 0 : index
    %3 = vector.load %arg3[%c0_3, %c0_4] : memref<32x1xf32, #tpu.memory_space<vmem>>, vector<32x1xf32>
    %4 = vector.broadcast %3 : vector<32x1xf32> to vector<32x128xf32>
    %5 = arith.mulf %2, %4 : vector<32x128xf32>
    %c0_5 = arith.constant 0 : index
    %c0_6 = arith.constant 0 : index
    %6 = vector.load %arg4[%c0_5, %c0_6] : memref<32x1xf32, #tpu.memory_space<vmem>>, vector<32x1xf32>
    %7 = vector.broadcast %6 : vector<32x1xf32> to vector<32x128xf32>
    %8 = arith.addf %5, %7 : vector<32x128xf32>
    %cst_7 = arith.constant 0.000000e+00 : f32
    %9 = vector.broadcast %cst_7 : f32 to vector<32x128xf32>
    %10 = arith.maximumf %8, %9 : vector<32x128xf32>
    %c0_8 = arith.constant 0 : index
    %c0_9 = arith.constant 0 : index
    %11 = vector.load %arg5[%c0_8, %c0_9] : memref<32x128xf32, #tpu.memory_space<vmem>>, vector<32x128xf32>
    tpu.vector_store %arg5[%c0_8, %c0_9], %10 {strides = array<i32>} : memref<32x128xf32, #tpu.memory_space<vmem>>, vector<32x128xf32>,
    return
  }
  func.func @transform_0(%arg0: i32) -> (i32, i32) {
    %c0_i32 = arith.constant 0 : i32
    %c0_i32_0 = arith.constant 0 : i32
    %c0_i32_1 = arith.constant 0 : i32
    return %c0_i32, %c0_i32_0 : i32, i32
  }
  func.func @transform_1(%arg0: i32) -> (i32, i32) {
    %c0_i32 = arith.constant 0 : i32
    %c0_i32_0 = arith.constant 0 : i32
    return %c0_i32, %arg0 : i32, i32
  }
  func.func @transform_2(%arg0: i32) -> (i32, i32) {
    %c0_i32 = arith.constant 0 : i32
    %c0_i32_0 = arith.constant 0 : i32
    %c0_i32_1 = arith.constant 0 : i32
    return %c0_i32, %c0_i32_0 : i32, i32
  }
  func.func @transform_3(%arg0: i32) -> (i32, i32) {
    %c0_i32 = arith.constant 0 : i32
    %c0_i32_0 = arith.constant 0 : i32
    %c0_i32_1 = arith.constant 0 : i32
    return %c0_i32, %c0_i32_0 : i32, i32
  }
  func.func @transform_4(%arg0: i32) -> (i32, i32) {
    %c0_i32 = arith.constant 0 : i32
    %c0_i32_0 = arith.constant 0 : i32
    return %c0_i32, %arg0 : i32, i32
  }
}

module attributes {stable_mosaic.version = 11 : i64} {
  func.func @_conv_kernel(%arg0: i32, %arg1: memref<32x288xbf16, #tpu.memory_space<vmem>>, %arg2: memref<288x128xbf16, #tpu.memory_space<vmem>>, %arg3: memref<32x1xf32, #tpu.memory_space<vmem>>, %arg4: memref<32x1xf32, #tpu.memory_space<vmem>>, %arg5: memref<32x16xbf16, #tpu.memory_space<vmem>>, %arg6: memref<16x128xbf16, #tpu.memory_space<vmem>>, %arg7: memref<32x1xf32, #tpu.memory_space<vmem>>, %arg8: memref<32x1xf32, #tpu.memory_space<vmem>>, %arg9: memref<32x128xf32, #tpu.memory_space<vmem>>) attributes {dimension_semantics = [#tpu.dimension_semantics<parallel>], iteration_bounds = array<i64: 1>, scalar_prefetch = 0 : i64, scratch_operands = 0 : i64, tpu.core_type = #tpu.core_type<tc>, window_params = [{pipeline_mode = #tpu.pipeline_mode<synchronous>, transform_indices = @transform_0, window_bounds = array<i64: 32, 288>}, {transform_indices = @transform_1, window_bounds = array<i64: 288, 128>}, {pipeline_mode = #tpu.pipeline_mode<synchronous>, transform_indices = @transform_2, window_bounds = array<i64: 32, 1>}, {pipeline_mode = #tpu.pipeline_mode<synchronous>, transform_indices = @transform_3, window_bounds = array<i64: 32, 1>}, {pipeline_mode = #tpu.pipeline_mode<synchronous>, transform_indices = @transform_4, window_bounds = array<i64: 32, 16>}, {transform_indices = @transform_5, window_bounds = array<i64: 16, 128>}, {pipeline_mode = #tpu.pipeline_mode<synchronous>, transform_indices = @transform_6, window_bounds = array<i64: 32, 1>}, {pipeline_mode = #tpu.pipeline_mode<synchronous>, transform_indices = @transform_7, window_bounds = array<i64: 32, 1>}, {transform_indices = @transform_8, window_bounds = array<i64: 32, 128>}]} {
    %c0 = arith.constant 0 : index
    %c0_0 = arith.constant 0 : index
    %0 = vector.load %arg1[%c0, %c0_0] : memref<32x288xbf16, #tpu.memory_space<vmem>>, vector<32x288xbf16>
    %c0_1 = arith.constant 0 : index
    %c0_2 = arith.constant 0 : index
    %1 = vector.load %arg2[%c0_1, %c0_2] : memref<288x128xbf16, #tpu.memory_space<vmem>>, vector<288x128xbf16>
    %cst = arith.constant dense<0.000000e+00> : vector<32x128xf32>
    %2 = tpu.matmul %0, %1, %cst {dimension_numbers = #tpu.dot_dimension_numbers<[1], [0], [0], [1], [0, 0, 1, 1], [], []>} : vector<32x288xbf16>, vector<288x128xbf16>, vector<32x128xf32> -> vector<32x128xf32>
    %c0_3 = arith.constant 0 : index
    %c0_4 = arith.constant 0 : index
    %3 = vector.load %arg3[%c0_3, %c0_4] : memref<32x1xf32, #tpu.memory_space<vmem>>, vector<32x1xf32>
    %4 = vector.broadcast %3 : vector<32x1xf32> to vector<32x128xf32>
    %5 = arith.mulf %2, %4 : vector<32x128xf32>
    %c0_5 = arith.constant 0 : index
    %c0_6 = arith.constant 0 : index
    %6 = vector.load %arg4[%c0_5, %c0_6] : memref<32x1xf32, #tpu.memory_space<vmem>>, vector<32x1xf32>
    %7 = vector.broadcast %6 : vector<32x1xf32> to vector<32x128xf32>
    %8 = arith.addf %5, %7 : vector<32x128xf32>
    %c0_7 = arith.constant 0 : index
    %c0_8 = arith.constant 0 : index
    %9 = vector.load %arg5[%c0_7, %c0_8] : memref<32x16xbf16, #tpu.memory_space<vmem>>, vector<32x16xbf16>
    %c0_9 = arith.constant 0 : index
    %c0_10 = arith.constant 0 : index
    %10 = vector.load %arg6[%c0_9, %c0_10] : memref<16x128xbf16, #tpu.memory_space<vmem>>, vector<16x128xbf16>
    %cst_11 = arith.constant dense<0.000000e+00> : vector<32x128xf32>
    %11 = tpu.matmul %9, %10, %cst_11 {dimension_numbers = #tpu.dot_dimension_numbers<[1], [0], [0], [1], [0, 0, 1, 1], [], []>} : vector<32x16xbf16>, vector<16x128xbf16>, vector<32x128xf32> -> vector<32x128xf32>
    %c0_12 = arith.constant 0 : index
    %c0_13 = arith.constant 0 : index
    %12 = vector.load %arg7[%c0_12, %c0_13] : memref<32x1xf32, #tpu.memory_space<vmem>>, vector<32x1xf32>
    %13 = vector.broadcast %12 : vector<32x1xf32> to vector<32x128xf32>
    %14 = arith.mulf %11, %13 : vector<32x128xf32>
    %15 = arith.addf %8, %14 : vector<32x128xf32>
    %c0_14 = arith.constant 0 : index
    %c0_15 = arith.constant 0 : index
    %16 = vector.load %arg8[%c0_14, %c0_15] : memref<32x1xf32, #tpu.memory_space<vmem>>, vector<32x1xf32>
    %17 = vector.broadcast %16 : vector<32x1xf32> to vector<32x128xf32>
    %18 = arith.addf %15, %17 : vector<32x128xf32>
    %cst_16 = arith.constant 0.000000e+00 : f32
    %19 = vector.broadcast %cst_16 : f32 to vector<32x128xf32>
    %20 = arith.maximumf %18, %19 : vector<32x128xf32>
    %c0_17 = arith.constant 0 : index
    %c0_18 = arith.constant 0 : index
    %21 = vector.load %arg9[%c0_17, %c0_18] : memref<32x128xf32, #tpu.memory_space<vmem>>, vector<32x128xf32>
    tpu.vector_store %arg9[%c0_17, %c0_18], %20 {strides = array<i32>} : memref<32x128xf32, #tpu.memory_space<vmem>>, vector<32x128xf32>,
    return
  }
  func.func @transform_0(%arg0: i32) -> (i32, i32) {
    %c0_i32 = arith.constant 0 : i32
    %c0_i32_0 = arith.constant 0 : i32
    %c0_i32_1 = arith.constant 0 : i32
    return %c0_i32, %c0_i32_0 : i32, i32
  }
  func.func @transform_1(%arg0: i32) -> (i32, i32) {
    %c0_i32 = arith.constant 0 : i32
    %c0_i32_0 = arith.constant 0 : i32
    return %c0_i32, %arg0 : i32, i32
  }
  func.func @transform_2(%arg0: i32) -> (i32, i32) {
    %c0_i32 = arith.constant 0 : i32
    %c0_i32_0 = arith.constant 0 : i32
    %c0_i32_1 = arith.constant 0 : i32
    return %c0_i32, %c0_i32_0 : i32, i32
  }
  func.func @transform_3(%arg0: i32) -> (i32, i32) {
    %c0_i32 = arith.constant 0 : i32
    %c0_i32_0 = arith.constant 0 : i32
    %c0_i32_1 = arith.constant 0 : i32
    return %c0_i32, %c0_i32_0 : i32, i32
  }
  func.func @transform_4(%arg0: i32) -> (i32, i32) {
    %c0_i32 = arith.constant 0 : i32
    %c0_i32_0 = arith.constant 0 : i32
    %c0_i32_1 = arith.constant 0 : i32
    return %c0_i32, %c0_i32_0 : i32, i32
  }
  func.func @transform_5(%arg0: i32) -> (i32, i32) {
    %c0_i32 = arith.constant 0 : i32
    %c0_i32_0 = arith.constant 0 : i32
    return %c0_i32, %arg0 : i32, i32
  }
  func.func @transform_6(%arg0: i32) -> (i32, i32) {
    %c0_i32 = arith.constant 0 : i32
    %c0_i32_0 = arith.constant 0 : i32
    %c0_i32_1 = arith.constant 0 : i32
    return %c0_i32, %c0_i32_0 : i32, i32
  }
  func.func @transform_7(%arg0: i32) -> (i32, i32) {
    %c0_i32 = arith.constant 0 : i32
    %c0_i32_0 = arith.constant 0 : i32
    %c0_i32_1 = arith.constant 0 : i32
    return %c0_i32, %c0_i32_0 : i32, i32
  }
  func.func @transform_8(%arg0: i32) -> (i32, i32) {
    %c0_i32 = arith.constant 0 : i32
    %c0_i32_0 = arith.constant 0 : i32
    return %c0_i32, %arg0 : i32, i32
  }
}

module attributes {stable_mosaic.version = 11 : i64} {
  func.func @_conv_kernel(%arg0: i32, %arg1: memref<32x288xbf16, #tpu.memory_space<vmem>>, %arg2: memref<288x128xbf16, #tpu.memory_space<vmem>>, %arg3: memref<32x1xf32, #tpu.memory_space<vmem>>, %arg4: memref<32x1xf32, #tpu.memory_space<vmem>>, %arg5: memref<32x128xf32, #tpu.memory_space<vmem>>, %arg6: memref<32x128xf32, #tpu.memory_space<vmem>>) attributes {dimension_semantics = [#tpu.dimension_semantics<parallel>], iteration_bounds = array<i64: 1>, scalar_prefetch = 0 : i64, scratch_operands = 0 : i64, tpu.core_type = #tpu.core_type<tc>, window_params = [{pipeline_mode = #tpu.pipeline_mode<synchronous>, transform_indices = @transform_0, window_bounds = array<i64: 32, 288>}, {transform_indices = @transform_1, window_bounds = array<i64: 288, 128>}, {pipeline_mode = #tpu.pipeline_mode<synchronous>, transform_indices = @transform_2, window_bounds = array<i64: 32, 1>}, {pipeline_mode = #tpu.pipeline_mode<synchronous>, transform_indices = @transform_3, window_bounds = array<i64: 32, 1>}, {transform_indices = @transform_4, window_bounds = array<i64: 32, 128>}, {transform_indices = @transform_5, window_bounds = array<i64: 32, 128>}]} {
    %c0 = arith.constant 0 : index
    %c0_0 = arith.constant 0 : index
    %0 = vector.load %arg1[%c0, %c0_0] : memref<32x288xbf16, #tpu.memory_space<vmem>>, vector<32x288xbf16>
    %c0_1 = arith.constant 0 : index
    %c0_2 = arith.constant 0 : index
    %1 = vector.load %arg2[%c0_1, %c0_2] : memref<288x128xbf16, #tpu.memory_space<vmem>>, vector<288x128xbf16>
    %cst = arith.constant dense<0.000000e+00> : vector<32x128xf32>
    %2 = tpu.matmul %0, %1, %cst {dimension_numbers = #tpu.dot_dimension_numbers<[1], [0], [0], [1], [0, 0, 1, 1], [], []>} : vector<32x288xbf16>, vector<288x128xbf16>, vector<32x128xf32> -> vector<32x128xf32>
    %c0_3 = arith.constant 0 : index
    %c0_4 = arith.constant 0 : index
    %3 = vector.load %arg3[%c0_3, %c0_4] : memref<32x1xf32, #tpu.memory_space<vmem>>, vector<32x1xf32>
    %4 = vector.broadcast %3 : vector<32x1xf32> to vector<32x128xf32>
    %5 = arith.mulf %2, %4 : vector<32x128xf32>
    %c0_5 = arith.constant 0 : index
    %c0_6 = arith.constant 0 : index
    %6 = vector.load %arg4[%c0_5, %c0_6] : memref<32x1xf32, #tpu.memory_space<vmem>>, vector<32x1xf32>
    %7 = vector.broadcast %6 : vector<32x1xf32> to vector<32x128xf32>
    %8 = arith.addf %5, %7 : vector<32x128xf32>
    %c0_7 = arith.constant 0 : index
    %c0_8 = arith.constant 0 : index
    %9 = vector.load %arg5[%c0_7, %c0_8] : memref<32x128xf32, #tpu.memory_space<vmem>>, vector<32x128xf32>
    %10 = arith.addf %8, %9 : vector<32x128xf32>
    %cst_9 = arith.constant 0.000000e+00 : f32
    %11 = vector.broadcast %cst_9 : f32 to vector<32x128xf32>
    %12 = arith.maximumf %10, %11 : vector<32x128xf32>
    %c0_10 = arith.constant 0 : index
    %c0_11 = arith.constant 0 : index
    %13 = vector.load %arg6[%c0_10, %c0_11] : memref<32x128xf32, #tpu.memory_space<vmem>>, vector<32x128xf32>
    tpu.vector_store %arg6[%c0_10, %c0_11], %12 {strides = array<i32>} : memref<32x128xf32, #tpu.memory_space<vmem>>, vector<32x128xf32>,
    return
  }
  func.func @transform_0(%arg0: i32) -> (i32, i32) {
    %c0_i32 = arith.constant 0 : i32
    %c0_i32_0 = arith.constant 0 : i32
    %c0_i32_1 = arith.constant 0 : i32
    return %c0_i32, %c0_i32_0 : i32, i32
  }
  func.func @transform_1(%arg0: i32) -> (i32, i32) {
    %c0_i32 = arith.constant 0 : i32
    %c0_i32_0 = arith.constant 0 : i32
    return %c0_i32, %arg0 : i32, i32
  }
  func.func @transform_2(%arg0: i32) -> (i32, i32) {
    %c0_i32 = arith.constant 0 : i32
    %c0_i32_0 = arith.constant 0 : i32
    %c0_i32_1 = arith.constant 0 : i32
    return %c0_i32, %c0_i32_0 : i32, i32
  }
  func.func @transform_3(%arg0: i32) -> (i32, i32) {
    %c0_i32 = arith.constant 0 : i32
    %c0_i32_0 = arith.constant 0 : i32
    %c0_i32_1 = arith.constant 0 : i32
    return %c0_i32, %c0_i32_0 : i32, i32
  }
  func.func @transform_4(%arg0: i32) -> (i32, i32) {
    %c0_i32 = arith.constant 0 : i32
    %c0_i32_0 = arith.constant 0 : i32
    return %c0_i32, %arg0 : i32, i32
  }
  func.func @transform_5(%arg0: i32) -> (i32, i32) {
    %c0_i32 = arith.constant 0 : i32
    %c0_i32_0 = arith.constant 0 : i32
    return %c0_i32, %arg0 : i32, i32
  }
}

module attributes {stable_mosaic.version = 11 : i64} {
  func.func @_conv_kernel(%arg0: i32, %arg1: memref<64x288xbf16, #tpu.memory_space<vmem>>, %arg2: memref<288x128xbf16, #tpu.memory_space<vmem>>, %arg3: memref<64x1xf32, #tpu.memory_space<vmem>>, %arg4: memref<64x1xf32, #tpu.memory_space<vmem>>, %arg5: memref<64x128xf32, #tpu.memory_space<vmem>>) attributes {dimension_semantics = [#tpu.dimension_semantics<parallel>], iteration_bounds = array<i64: 1>, scalar_prefetch = 0 : i64, scratch_operands = 0 : i64, tpu.core_type = #tpu.core_type<tc>, window_params = [{pipeline_mode = #tpu.pipeline_mode<synchronous>, transform_indices = @transform_0, window_bounds = array<i64: 64, 288>}, {transform_indices = @transform_1, window_bounds = array<i64: 288, 128>}, {pipeline_mode = #tpu.pipeline_mode<synchronous>, transform_indices = @transform_2, window_bounds = array<i64: 64, 1>}, {pipeline_mode = #tpu.pipeline_mode<synchronous>, transform_indices = @transform_3, window_bounds = array<i64: 64, 1>}, {transform_indices = @transform_4, window_bounds = array<i64: 64, 128>}]} {
    %c0 = arith.constant 0 : index
    %c0_0 = arith.constant 0 : index
    %0 = vector.load %arg1[%c0, %c0_0] : memref<64x288xbf16, #tpu.memory_space<vmem>>, vector<64x288xbf16>
    %c0_1 = arith.constant 0 : index
    %c0_2 = arith.constant 0 : index
    %1 = vector.load %arg2[%c0_1, %c0_2] : memref<288x128xbf16, #tpu.memory_space<vmem>>, vector<288x128xbf16>
    %cst = arith.constant dense<0.000000e+00> : vector<64x128xf32>
    %2 = tpu.matmul %0, %1, %cst {dimension_numbers = #tpu.dot_dimension_numbers<[1], [0], [0], [1], [0, 0, 1, 1], [], []>} : vector<64x288xbf16>, vector<288x128xbf16>, vector<64x128xf32> -> vector<64x128xf32>
    %c0_3 = arith.constant 0 : index
    %c0_4 = arith.constant 0 : index
    %3 = vector.load %arg3[%c0_3, %c0_4] : memref<64x1xf32, #tpu.memory_space<vmem>>, vector<64x1xf32>
    %4 = vector.broadcast %3 : vector<64x1xf32> to vector<64x128xf32>
    %5 = arith.mulf %2, %4 : vector<64x128xf32>
    %c0_5 = arith.constant 0 : index
    %c0_6 = arith.constant 0 : index
    %6 = vector.load %arg4[%c0_5, %c0_6] : memref<64x1xf32, #tpu.memory_space<vmem>>, vector<64x1xf32>
    %7 = vector.broadcast %6 : vector<64x1xf32> to vector<64x128xf32>
    %8 = arith.addf %5, %7 : vector<64x128xf32>
    %cst_7 = arith.constant 0.000000e+00 : f32
    %9 = vector.broadcast %cst_7 : f32 to vector<64x128xf32>
    %10 = arith.maximumf %8, %9 : vector<64x128xf32>
    %c0_8 = arith.constant 0 : index
    %c0_9 = arith.constant 0 : index
    %11 = vector.load %arg5[%c0_8, %c0_9] : memref<64x128xf32, #tpu.memory_space<vmem>>, vector<64x128xf32>
    tpu.vector_store %arg5[%c0_8, %c0_9], %10 {strides = array<i32>} : memref<64x128xf32, #tpu.memory_space<vmem>>, vector<64x128xf32>,
    return
  }
  func.func @transform_0(%arg0: i32) -> (i32, i32) {
    %c0_i32 = arith.constant 0 : i32
    %c0_i32_0 = arith.constant 0 : i32
    %c0_i32_1 = arith.constant 0 : i32
    return %c0_i32, %c0_i32_0 : i32, i32
  }
  func.func @transform_1(%arg0: i32) -> (i32, i32) {
    %c0_i32 = arith.constant 0 : i32
    %c0_i32_0 = arith.constant 0 : i32
    return %c0_i32, %arg0 : i32, i32
  }
  func.func @transform_2(%arg0: i32) -> (i32, i32) {
    %c0_i32 = arith.constant 0 : i32
    %c0_i32_0 = arith.constant 0 : i32
    %c0_i32_1 = arith.constant 0 : i32
    return %c0_i32, %c0_i32_0 : i32, i32
  }
  func.func @transform_3(%arg0: i32) -> (i32, i32) {
    %c0_i32 = arith.constant 0 : i32
    %c0_i32_0 = arith.constant 0 : i32
    %c0_i32_1 = arith.constant 0 : i32
    return %c0_i32, %c0_i32_0 : i32, i32
  }
  func.func @transform_4(%arg0: i32) -> (i32, i32) {
    %c0_i32 = arith.constant 0 : i32
    %c0_i32_0 = arith.constant 0 : i32
    return %c0_i32, %arg0 : i32, i32
  }
}

module attributes {stable_mosaic.version = 11 : i64} {
  func.func @_conv_kernel(%arg0: i32, %arg1: memref<64x576xbf16, #tpu.memory_space<vmem>>, %arg2: memref<576x128xbf16, #tpu.memory_space<vmem>>, %arg3: memref<64x1xf32, #tpu.memory_space<vmem>>, %arg4: memref<64x1xf32, #tpu.memory_space<vmem>>, %arg5: memref<64x32xbf16, #tpu.memory_space<vmem>>, %arg6: memref<32x128xbf16, #tpu.memory_space<vmem>>, %arg7: memref<64x1xf32, #tpu.memory_space<vmem>>, %arg8: memref<64x1xf32, #tpu.memory_space<vmem>>, %arg9: memref<64x128xf32, #tpu.memory_space<vmem>>) attributes {dimension_semantics = [#tpu.dimension_semantics<parallel>], iteration_bounds = array<i64: 1>, scalar_prefetch = 0 : i64, scratch_operands = 0 : i64, tpu.core_type = #tpu.core_type<tc>, window_params = [{pipeline_mode = #tpu.pipeline_mode<synchronous>, transform_indices = @transform_0, window_bounds = array<i64: 64, 576>}, {transform_indices = @transform_1, window_bounds = array<i64: 576, 128>}, {pipeline_mode = #tpu.pipeline_mode<synchronous>, transform_indices = @transform_2, window_bounds = array<i64: 64, 1>}, {pipeline_mode = #tpu.pipeline_mode<synchronous>, transform_indices = @transform_3, window_bounds = array<i64: 64, 1>}, {pipeline_mode = #tpu.pipeline_mode<synchronous>, transform_indices = @transform_4, window_bounds = array<i64: 64, 32>}, {transform_indices = @transform_5, window_bounds = array<i64: 32, 128>}, {pipeline_mode = #tpu.pipeline_mode<synchronous>, transform_indices = @transform_6, window_bounds = array<i64: 64, 1>}, {pipeline_mode = #tpu.pipeline_mode<synchronous>, transform_indices = @transform_7, window_bounds = array<i64: 64, 1>}, {transform_indices = @transform_8, window_bounds = array<i64: 64, 128>}]} {
    %c0 = arith.constant 0 : index
    %c0_0 = arith.constant 0 : index
    %0 = vector.load %arg1[%c0, %c0_0] : memref<64x576xbf16, #tpu.memory_space<vmem>>, vector<64x576xbf16>
    %c0_1 = arith.constant 0 : index
    %c0_2 = arith.constant 0 : index
    %1 = vector.load %arg2[%c0_1, %c0_2] : memref<576x128xbf16, #tpu.memory_space<vmem>>, vector<576x128xbf16>
    %cst = arith.constant dense<0.000000e+00> : vector<64x128xf32>
    %2 = tpu.matmul %0, %1, %cst {dimension_numbers = #tpu.dot_dimension_numbers<[1], [0], [0], [1], [0, 0, 1, 1], [], []>} : vector<64x576xbf16>, vector<576x128xbf16>, vector<64x128xf32> -> vector<64x128xf32>
    %c0_3 = arith.constant 0 : index
    %c0_4 = arith.constant 0 : index
    %3 = vector.load %arg3[%c0_3, %c0_4] : memref<64x1xf32, #tpu.memory_space<vmem>>, vector<64x1xf32>
    %4 = vector.broadcast %3 : vector<64x1xf32> to vector<64x128xf32>
    %5 = arith.mulf %2, %4 : vector<64x128xf32>
    %c0_5 = arith.constant 0 : index
    %c0_6 = arith.constant 0 : index
    %6 = vector.load %arg4[%c0_5, %c0_6] : memref<64x1xf32, #tpu.memory_space<vmem>>, vector<64x1xf32>
    %7 = vector.broadcast %6 : vector<64x1xf32> to vector<64x128xf32>
    %8 = arith.addf %5, %7 : vector<64x128xf32>
    %c0_7 = arith.constant 0 : index
    %c0_8 = arith.constant 0 : index
    %9 = vector.load %arg5[%c0_7, %c0_8] : memref<64x32xbf16, #tpu.memory_space<vmem>>, vector<64x32xbf16>
    %c0_9 = arith.constant 0 : index
    %c0_10 = arith.constant 0 : index
    %10 = vector.load %arg6[%c0_9, %c0_10] : memref<32x128xbf16, #tpu.memory_space<vmem>>, vector<32x128xbf16>
    %cst_11 = arith.constant dense<0.000000e+00> : vector<64x128xf32>
    %11 = tpu.matmul %9, %10, %cst_11 {dimension_numbers = #tpu.dot_dimension_numbers<[1], [0], [0], [1], [0, 0, 1, 1], [], []>} : vector<64x32xbf16>, vector<32x128xbf16>, vector<64x128xf32> -> vector<64x128xf32>
    %c0_12 = arith.constant 0 : index
    %c0_13 = arith.constant 0 : index
    %12 = vector.load %arg7[%c0_12, %c0_13] : memref<64x1xf32, #tpu.memory_space<vmem>>, vector<64x1xf32>
    %13 = vector.broadcast %12 : vector<64x1xf32> to vector<64x128xf32>
    %14 = arith.mulf %11, %13 : vector<64x128xf32>
    %15 = arith.addf %8, %14 : vector<64x128xf32>
    %c0_14 = arith.constant 0 : index
    %c0_15 = arith.constant 0 : index
    %16 = vector.load %arg8[%c0_14, %c0_15] : memref<64x1xf32, #tpu.memory_space<vmem>>, vector<64x1xf32>
    %17 = vector.broadcast %16 : vector<64x1xf32> to vector<64x128xf32>
    %18 = arith.addf %15, %17 : vector<64x128xf32>
    %cst_16 = arith.constant 0.000000e+00 : f32
    %19 = vector.broadcast %cst_16 : f32 to vector<64x128xf32>
    %20 = arith.maximumf %18, %19 : vector<64x128xf32>
    %c0_17 = arith.constant 0 : index
    %c0_18 = arith.constant 0 : index
    %21 = vector.load %arg9[%c0_17, %c0_18] : memref<64x128xf32, #tpu.memory_space<vmem>>, vector<64x128xf32>
    tpu.vector_store %arg9[%c0_17, %c0_18], %20 {strides = array<i32>} : memref<64x128xf32, #tpu.memory_space<vmem>>, vector<64x128xf32>,
    return
  }
  func.func @transform_0(%arg0: i32) -> (i32, i32) {
    %c0_i32 = arith.constant 0 : i32
    %c0_i32_0 = arith.constant 0 : i32
    %c0_i32_1 = arith.constant 0 : i32
    return %c0_i32, %c0_i32_0 : i32, i32
  }
  func.func @transform_1(%arg0: i32) -> (i32, i32) {
    %c0_i32 = arith.constant 0 : i32
    %c0_i32_0 = arith.constant 0 : i32
    return %c0_i32, %arg0 : i32, i32
  }
  func.func @transform_2(%arg0: i32) -> (i32, i32) {
    %c0_i32 = arith.constant 0 : i32
    %c0_i32_0 = arith.constant 0 : i32
    %c0_i32_1 = arith.constant 0 : i32
    return %c0_i32, %c0_i32_0 : i32, i32
  }
  func.func @transform_3(%arg0: i32) -> (i32, i32) {
    %c0_i32 = arith.constant 0 : i32
    %c0_i32_0 = arith.constant 0 : i32
    %c0_i32_1 = arith.constant 0 : i32
    return %c0_i32, %c0_i32_0 : i32, i32
  }
  func.func @transform_4(%arg0: i32) -> (i32, i32) {
    %c0_i32 = arith.constant 0 : i32
    %c0_i32_0 = arith.constant 0 : i32
    %c0_i32_1 = arith.constant 0 : i32
    return %c0_i32, %c0_i32_0 : i32, i32
  }
  func.func @transform_5(%arg0: i32) -> (i32, i32) {
    %c0_i32 = arith.constant 0 : i32
    %c0_i32_0 = arith.constant 0 : i32
    return %c0_i32, %arg0 : i32, i32
  }
  func.func @transform_6(%arg0: i32) -> (i32, i32) {
    %c0_i32 = arith.constant 0 : i32
    %c0_i32_0 = arith.constant 0 : i32
    %c0_i32_1 = arith.constant 0 : i32
    return %c0_i32, %c0_i32_0 : i32, i32
  }
  func.func @transform_7(%arg0: i32) -> (i32, i32) {
    %c0_i32 = arith.constant 0 : i32
    %c0_i32_0 = arith.constant 0 : i32
    %c0_i32_1 = arith.constant 0 : i32
    return %c0_i32, %c0_i32_0 : i32, i32
  }
  func.func @transform_8(%arg0: i32) -> (i32, i32) {
    %c0_i32 = arith.constant 0 : i32
    %c0_i32_0 = arith.constant 0 : i32
    return %c0_i32, %arg0 : i32, i32
  }
}

module attributes {stable_mosaic.version = 11 : i64} {
  func.func @_conv_kernel(%arg0: i32, %arg1: memref<64x576xbf16, #tpu.memory_space<vmem>>, %arg2: memref<576x128xbf16, #tpu.memory_space<vmem>>, %arg3: memref<64x1xf32, #tpu.memory_space<vmem>>, %arg4: memref<64x1xf32, #tpu.memory_space<vmem>>, %arg5: memref<64x128xf32, #tpu.memory_space<vmem>>) attributes {dimension_semantics = [#tpu.dimension_semantics<parallel>], iteration_bounds = array<i64: 1>, scalar_prefetch = 0 : i64, scratch_operands = 0 : i64, tpu.core_type = #tpu.core_type<tc>, window_params = [{pipeline_mode = #tpu.pipeline_mode<synchronous>, transform_indices = @transform_0, window_bounds = array<i64: 64, 576>}, {transform_indices = @transform_1, window_bounds = array<i64: 576, 128>}, {pipeline_mode = #tpu.pipeline_mode<synchronous>, transform_indices = @transform_2, window_bounds = array<i64: 64, 1>}, {pipeline_mode = #tpu.pipeline_mode<synchronous>, transform_indices = @transform_3, window_bounds = array<i64: 64, 1>}, {transform_indices = @transform_4, window_bounds = array<i64: 64, 128>}]} {
    %c0 = arith.constant 0 : index
    %c0_0 = arith.constant 0 : index
    %0 = vector.load %arg1[%c0, %c0_0] : memref<64x576xbf16, #tpu.memory_space<vmem>>, vector<64x576xbf16>
    %c0_1 = arith.constant 0 : index
    %c0_2 = arith.constant 0 : index
    %1 = vector.load %arg2[%c0_1, %c0_2] : memref<576x128xbf16, #tpu.memory_space<vmem>>, vector<576x128xbf16>
    %cst = arith.constant dense<0.000000e+00> : vector<64x128xf32>
    %2 = tpu.matmul %0, %1, %cst {dimension_numbers = #tpu.dot_dimension_numbers<[1], [0], [0], [1], [0, 0, 1, 1], [], []>} : vector<64x576xbf16>, vector<576x128xbf16>, vector<64x128xf32> -> vector<64x128xf32>
    %c0_3 = arith.constant 0 : index
    %c0_4 = arith.constant 0 : index
    %3 = vector.load %arg3[%c0_3, %c0_4] : memref<64x1xf32, #tpu.memory_space<vmem>>, vector<64x1xf32>
    %4 = vector.broadcast %3 : vector<64x1xf32> to vector<64x128xf32>
    %5 = arith.mulf %2, %4 : vector<64x128xf32>
    %c0_5 = arith.constant 0 : index
    %c0_6 = arith.constant 0 : index
    %6 = vector.load %arg4[%c0_5, %c0_6] : memref<64x1xf32, #tpu.memory_space<vmem>>, vector<64x1xf32>
    %7 = vector.broadcast %6 : vector<64x1xf32> to vector<64x128xf32>
    %8 = arith.addf %5, %7 : vector<64x128xf32>
    %cst_7 = arith.constant 0.000000e+00 : f32
    %9 = vector.broadcast %cst_7 : f32 to vector<64x128xf32>
    %10 = arith.maximumf %8, %9 : vector<64x128xf32>
    %c0_8 = arith.constant 0 : index
    %c0_9 = arith.constant 0 : index
    %11 = vector.load %arg5[%c0_8, %c0_9] : memref<64x128xf32, #tpu.memory_space<vmem>>, vector<64x128xf32>
    tpu.vector_store %arg5[%c0_8, %c0_9], %10 {strides = array<i32>} : memref<64x128xf32, #tpu.memory_space<vmem>>, vector<64x128xf32>,
    return
  }
  func.func @transform_0(%arg0: i32) -> (i32, i32) {
    %c0_i32 = arith.constant 0 : i32
    %c0_i32_0 = arith.constant 0 : i32
    %c0_i32_1 = arith.constant 0 : i32
    return %c0_i32, %c0_i32_0 : i32, i32
  }
  func.func @transform_1(%arg0: i32) -> (i32, i32) {
    %c0_i32 = arith.constant 0 : i32
    %c0_i32_0 = arith.constant 0 : i32
    return %c0_i32, %arg0 : i32, i32
  }
  func.func @transform_2(%arg0: i32) -> (i32, i32) {
    %c0_i32 = arith.constant 0 : i32
    %c0_i32_0 = arith.constant 0 : i32
    %c0_i32_1 = arith.constant 0 : i32
    return %c0_i32, %c0_i32_0 : i32, i32
  }
  func.func @transform_3(%arg0: i32) -> (i32, i32) {
    %c0_i32 = arith.constant 0 : i32
    %c0_i32_0 = arith.constant 0 : i32
    %c0_i32_1 = arith.constant 0 : i32
    return %c0_i32, %c0_i32_0 : i32, i32
  }
  func.func @transform_4(%arg0: i32) -> (i32, i32) {
    %c0_i32 = arith.constant 0 : i32
    %c0_i32_0 = arith.constant 0 : i32
    return %c0_i32, %arg0 : i32, i32
  }
}

module attributes {stable_mosaic.version = 11 : i64} {
  func.func @_conv_kernel(%arg0: i32, %arg1: memref<64x576xbf16, #tpu.memory_space<vmem>>, %arg2: memref<576x128xbf16, #tpu.memory_space<vmem>>, %arg3: memref<64x1xf32, #tpu.memory_space<vmem>>, %arg4: memref<64x1xf32, #tpu.memory_space<vmem>>, %arg5: memref<64x128xf32, #tpu.memory_space<vmem>>, %arg6: memref<64x128xf32, #tpu.memory_space<vmem>>) attributes {dimension_semantics = [#tpu.dimension_semantics<parallel>], iteration_bounds = array<i64: 1>, scalar_prefetch = 0 : i64, scratch_operands = 0 : i64, tpu.core_type = #tpu.core_type<tc>, window_params = [{pipeline_mode = #tpu.pipeline_mode<synchronous>, transform_indices = @transform_0, window_bounds = array<i64: 64, 576>}, {transform_indices = @transform_1, window_bounds = array<i64: 576, 128>}, {pipeline_mode = #tpu.pipeline_mode<synchronous>, transform_indices = @transform_2, window_bounds = array<i64: 64, 1>}, {pipeline_mode = #tpu.pipeline_mode<synchronous>, transform_indices = @transform_3, window_bounds = array<i64: 64, 1>}, {transform_indices = @transform_4, window_bounds = array<i64: 64, 128>}, {transform_indices = @transform_5, window_bounds = array<i64: 64, 128>}]} {
    %c0 = arith.constant 0 : index
    %c0_0 = arith.constant 0 : index
    %0 = vector.load %arg1[%c0, %c0_0] : memref<64x576xbf16, #tpu.memory_space<vmem>>, vector<64x576xbf16>
    %c0_1 = arith.constant 0 : index
    %c0_2 = arith.constant 0 : index
    %1 = vector.load %arg2[%c0_1, %c0_2] : memref<576x128xbf16, #tpu.memory_space<vmem>>, vector<576x128xbf16>
    %cst = arith.constant dense<0.000000e+00> : vector<64x128xf32>
    %2 = tpu.matmul %0, %1, %cst {dimension_numbers = #tpu.dot_dimension_numbers<[1], [0], [0], [1], [0, 0, 1, 1], [], []>} : vector<64x576xbf16>, vector<576x128xbf16>, vector<64x128xf32> -> vector<64x128xf32>
    %c0_3 = arith.constant 0 : index
    %c0_4 = arith.constant 0 : index
    %3 = vector.load %arg3[%c0_3, %c0_4] : memref<64x1xf32, #tpu.memory_space<vmem>>, vector<64x1xf32>
    %4 = vector.broadcast %3 : vector<64x1xf32> to vector<64x128xf32>
    %5 = arith.mulf %2, %4 : vector<64x128xf32>
    %c0_5 = arith.constant 0 : index
    %c0_6 = arith.constant 0 : index
    %6 = vector.load %arg4[%c0_5, %c0_6] : memref<64x1xf32, #tpu.memory_space<vmem>>, vector<64x1xf32>
    %7 = vector.broadcast %6 : vector<64x1xf32> to vector<64x128xf32>
    %8 = arith.addf %5, %7 : vector<64x128xf32>
    %c0_7 = arith.constant 0 : index
    %c0_8 = arith.constant 0 : index
    %9 = vector.load %arg5[%c0_7, %c0_8] : memref<64x128xf32, #tpu.memory_space<vmem>>, vector<64x128xf32>
    %10 = arith.addf %8, %9 : vector<64x128xf32>
    %cst_9 = arith.constant 0.000000e+00 : f32
    %11 = vector.broadcast %cst_9 : f32 to vector<64x128xf32>
    %12 = arith.maximumf %10, %11 : vector<64x128xf32>
    %c0_10 = arith.constant 0 : index
    %c0_11 = arith.constant 0 : index
    %13 = vector.load %arg6[%c0_10, %c0_11] : memref<64x128xf32, #tpu.memory_space<vmem>>, vector<64x128xf32>
    tpu.vector_store %arg6[%c0_10, %c0_11], %12 {strides = array<i32>} : memref<64x128xf32, #tpu.memory_space<vmem>>, vector<64x128xf32>,
    return
  }
  func.func @transform_0(%arg0: i32) -> (i32, i32) {
    %c0_i32 = arith.constant 0 : i32
    %c0_i32_0 = arith.constant 0 : i32
    %c0_i32_1 = arith.constant 0 : i32
    return %c0_i32, %c0_i32_0 : i32, i32
  }
  func.func @transform_1(%arg0: i32) -> (i32, i32) {
    %c0_i32 = arith.constant 0 : i32
    %c0_i32_0 = arith.constant 0 : i32
    return %c0_i32, %arg0 : i32, i32
  }
  func.func @transform_2(%arg0: i32) -> (i32, i32) {
    %c0_i32 = arith.constant 0 : i32
    %c0_i32_0 = arith.constant 0 : i32
    %c0_i32_1 = arith.constant 0 : i32
    return %c0_i32, %c0_i32_0 : i32, i32
  }
  func.func @transform_3(%arg0: i32) -> (i32, i32) {
    %c0_i32 = arith.constant 0 : i32
    %c0_i32_0 = arith.constant 0 : i32
    %c0_i32_1 = arith.constant 0 : i32
    return %c0_i32, %c0_i32_0 : i32, i32
  }
  func.func @transform_4(%arg0: i32) -> (i32, i32) {
    %c0_i32 = arith.constant 0 : i32
    %c0_i32_0 = arith.constant 0 : i32
    return %c0_i32, %arg0 : i32, i32
  }
  func.func @transform_5(%arg0: i32) -> (i32, i32) {
    %c0_i32 = arith.constant 0 : i32
    %c0_i32_0 = arith.constant 0 : i32
    return %c0_i32, %arg0 : i32, i32
  }
}

module attributes {stable_mosaic.version = 11 : i64} {
  func.func @_pool_linear_kernel(%arg0: i32, %arg1: memref<64x2x16xf32, #tpu.memory_space<vmem>>, %arg2: memref<10x64xf32, #tpu.memory_space<vmem>>, %arg3: memref<10x1xf32, #tpu.memory_space<vmem>>, %arg4: memref<10x2xf32, #tpu.memory_space<vmem>>) attributes {dimension_semantics = [#tpu.dimension_semantics<arbitrary>], iteration_bounds = array<i64: 1>, scalar_prefetch = 0 : i64, scratch_operands = 0 : i64, tpu.core_type = #tpu.core_type<tc>, window_params = [{pipeline_mode = #tpu.pipeline_mode<synchronous>, transform_indices = @transform_0, window_bounds = array<i64: 64, 2, 16>}, {pipeline_mode = #tpu.pipeline_mode<synchronous>, transform_indices = @transform_1, window_bounds = array<i64: 10, 64>}, {pipeline_mode = #tpu.pipeline_mode<synchronous>, transform_indices = @transform_2, window_bounds = array<i64: 10, 1>}, {pipeline_mode = #tpu.pipeline_mode<synchronous>, transform_indices = @transform_3, window_bounds = array<i64: 10, 2>}]} {
    %c0 = arith.constant 0 : index
    %c0_0 = arith.constant 0 : index
    %c0_1 = arith.constant 0 : index
    %0 = vector.load %arg1[%c0, %c0_0, %c0_1] : memref<64x2x16xf32, #tpu.memory_space<vmem>>, vector<64x2x16xf32>
    %cst = arith.constant dense<0.000000e+00> : vector<64x2xf32>
    %1 = vector.multi_reduction <add>, %0, %cst [2] : vector<64x2x16xf32> to vector<64x2xf32>
    %cst_2 = arith.constant 1.600000e+01 : f32
    %2 = vector.broadcast %cst_2 : f32 to vector<64x2xf32>
    %3 = arith.divf %1, %2 : vector<64x2xf32>
    %c0_3 = arith.constant 0 : index
    %c0_4 = arith.constant 0 : index
    %4 = vector.load %arg2[%c0_3, %c0_4] : memref<10x64xf32, #tpu.memory_space<vmem>>, vector<10x64xf32>
    %cst_5 = arith.constant dense<0.000000e+00> : vector<10x2xf32>
    %5 = tpu.matmul %4, %3, %cst_5 {dimension_numbers = #tpu.dot_dimension_numbers<[1], [0], [0], [1], [0, 0, 1, 1], [], []>} : vector<10x64xf32>, vector<64x2xf32>, vector<10x2xf32> -> vector<10x2xf32>
    %c0_6 = arith.constant 0 : index
    %c0_7 = arith.constant 0 : index
    %6 = vector.load %arg3[%c0_6, %c0_7] : memref<10x1xf32, #tpu.memory_space<vmem>>, vector<10x1xf32>
    %7 = vector.broadcast %6 : vector<10x1xf32> to vector<10x2xf32>
    %8 = arith.addf %5, %7 : vector<10x2xf32>
    %c0_8 = arith.constant 0 : index
    %c0_9 = arith.constant 0 : index
    %9 = vector.load %arg4[%c0_8, %c0_9] : memref<10x2xf32, #tpu.memory_space<vmem>>, vector<10x2xf32>
    tpu.vector_store %arg4[%c0_8, %c0_9], %8 {strides = array<i32>} : memref<10x2xf32, #tpu.memory_space<vmem>>, vector<10x2xf32>,
    return
  }
  func.func @transform_0(%arg0: i32) -> (i32, i32, i32) {
    %c0_i32 = arith.constant 0 : i32
    %c0_i32_0 = arith.constant 0 : i32
    %c0_i32_1 = arith.constant 0 : i32
    %c0_i32_2 = arith.constant 0 : i32
    return %c0_i32, %c0_i32_0, %c0_i32_1 : i32, i32, i32
  }
  func.func @transform_1(%arg0: i32) -> (i32, i32) {
    %c0_i32 = arith.constant 0 : i32
    %c0_i32_0 = arith.constant 0 : i32
    %c0_i32_1 = arith.constant 0 : i32
    return %c0_i32, %c0_i32_0 : i32, i32
  }
  func.func @transform_2(%arg0: i32) -> (i32, i32) {
    %c0_i32 = arith.constant 0 : i32
    %c0_i32_0 = arith.constant 0 : i32
    %c0_i32_1 = arith.constant 0 : i32
    return %c0_i32, %c0_i32_0 : i32, i32
  }
  func.func @transform_3(%arg0: i32) -> (i32, i32) {
    %c0_i32 = arith.constant 0 : i32
    %c0_i32_0 = arith.constant 0 : i32
    %c0_i32_1 = arith.constant 0 : i32
    return %c0_i32, %c0_i32_0 : i32, i32
  }
}

</mosaic_0001>

<llo_original>
// kernel: _lambda_.14
$region0: #{_lambda_.14}
  #allocation0 [shape = 'u32[]', space=smem, size = 0x4, offset = 0x4, fixed_abs, tag = 'smem constant byte address 0x4 - core index']
  #allocation1 [shape = 'u32[72,128]{1,0:T(1,128)}', space=vmem, size = 0x9000, scoped, tag = 'internal scratch']
  %s0 = inlined_call_operand.vmem [shape: bf16[16,32], index: 0, kind: input, shape index: {}]
  %s1 = inlined_call_operand.vmem [shape: bf16[32,512], index: 1, kind: input, shape index: {}]
  %s2 = inlined_call_operand.vmem [shape: f32[16,1], index: 2, kind: input, shape index: {}]
  %s3 = inlined_call_operand.vmem [shape: f32[16,1], index: 3, kind: input, shape index: {}]
  %s4 = inlined_call_operand.vmem [shape: f32[16,512], index: 4, kind: output, shape index: {}]
  %s5 = sld [smem:[#allocation0]]
  $region106: #{_lambda_.14} parent=0
    _
  %s7 = ssub.s32 1, %s5
  %s8 = scalar_select 0, %s7, %s5
  $region1: #{_lambda_.14} parent=0
    #allocation2 [shape = 'u8[32768]{0}', space=vmem, size = 0x8000, scoped, tag = 'input window, operand 1']
    #allocation3 [shape = 'u8[32768]{0}', space=vmem, size = 0x8000, scoped, tag = 'output window, operand 0']
    loop: start=0, step=1, limit=4
    $region2: #{_lambda_.14} parent=1 // loop_pre_header
      _
    $region3: #{_lambda_.14} parent=1 // loop_header
      %s10 = sphi 0, %s14
      %p11 = scmp.ge.s32.totalorder %s10, 4
      %s18 = sphi 0, %s18
      %s20 = sphi 0, %s18
      %s21 = sphi 0, %s20
      %s35 = sphi 0, %s21
      %s41 = sphi 0, %s43
      %s44 = sphi 0, %s41
      %s45 = sphi 0, %s44
      %s61 = sphi 0, %s45
      %s65 = sphi 0, %s65
      %s67 = sphi 0, %s65
      %s68 = sphi 0, %s67
      %s82 = sphi 0, %s68
      %s86 = sphi 0, %s86
      %s88 = sphi 0, %s86
      %s89 = sphi 0, %s88
      %s103 = sphi 0, %s89
      %s109 = sphi 0, %s111
      %s112 = sphi 0, %s109
      %s113 = sphi 0, %s112
      %s129 = sphi 0, %s113
    $region4: #{_lambda_.14} parent=1 // loop_header_branch
      %13 = sbr.rel (%p11) target = $region8
    $region5: #{_lambda_.14} parent=1 // loop_body
      %s15 = ssub.s32 %s10, 1
      %s16 = ssub.s32 %s10, 2
      %s17 = sadd.s32 %s10, 1
      %s19 = sadd.s32 %s18, 1
      %p22 = scmp.eq.s32.totalorder %s10, 1
      %p23 = scmp.ne.s32.totalorder %s18, %s20
      %p24 = scmp.eq.s32.totalorder %s10, 0
      %p25 = por %p23, %p24
      %p26 = scmp.ne.s32.totalorder %s18, %s20
      %p27 = scmp.eq.s32.totalorder %s15, 1
      %p28 = por %p26, %p27
      %p29 = scmp.ne.s32.totalorder %s20, %s21
      %p30 = scmp.eq.s32.totalorder %s15, 0
      %p31 = por %p29, %p30
      %p32 = scmp.ne.s32.totalorder %s20, %s21
      %p33 = scmp.eq.s32.totalorder %s16, 1
      %p34 = por %p32, %p33
      %p36 = scmp.ne.s32.totalorder %s21, %s35
      %p37 = scmp.eq.s32.totalorder %s16, 0
      %p38 = por %p36, %p37
      %s39 = ssub.s32 %s10, %s17
      %p40 = scmp.eq.s32.totalorder %s39, 0
      %s42 = sadd.s32 %s41, 1
      %s43 = scalar_select %p40, %s41, %s42
      %p46 = pneg %p40
      %p47 = scmp.eq.s32.totalorder %s10, 1
      %p48 = por %p46, %p47
      %p49 = scmp.ne.s32.totalorder %s41, %s44
      %p50 = scmp.eq.s32.totalorder %s10, 0
      %p51 = por %p49, %p50
      %p52 = scmp.ne.s32.totalorder %s41, %s44
      %p53 = scmp.eq.s32.totalorder %s15, 1
      %p54 = por %p52, %p53
      %p55 = scmp.ne.s32.totalorder %s44, %s45
      %p56 = scmp.eq.s32.totalorder %s15, 0
      %p57 = por %p55, %p56
      %p58 = scmp.ne.s32.totalorder %s44, %s45
      %p59 = scmp.eq.s32.totalorder %s16, 1
      %p60 = por %p58, %p59
      %p62 = scmp.ne.s32.totalorder %s45, %s61
      %p63 = scmp.eq.s32.totalorder %s16, 0
      %p64 = por %p62, %p63
      %s66 = sadd.s32 %s65, 1
      %p69 = scmp.eq.s32.totalorder %s10, 1
      %p70 = scmp.ne.s32.totalorder %s65, %s67
      %p71 = scmp.eq.s32.totalorder %s10, 0
      %p72 = por %p70, %p71
      %p73 = scmp.ne.s32.totalorder %s65, %s67
      %p74 = scmp.eq.s32.totalorder %s15, 1
      %p75 = por %p73, %p74
      %p76 = scmp.ne.s32.totalorder %s67, %s68
      %p77 = scmp.eq.s32.totalorder %s15, 0
      %p78 = por %p76, %p77
      %p79 = scmp.ne.s32.totalorder %s67, %s68
      %p80 = scmp.eq.s32.totalorder %s16, 1
      %p81 = por %p79, %p80
      %p83 = scmp.ne.s32.totalorder %s68, %s82
      %p84 = scmp.eq.s32.totalorder %s16, 0
      %p85 = por %p83, %p84
      %s87 = sadd.s32 %s86, 1
      %p90 = scmp.eq.s32.totalorder %s10, 1
      %p91 = scmp.ne.s32.totalorder %s86, %s88
      %p92 = scmp.eq.s32.totalorder %s10, 0
      %p93 = por %p91, %p92
      %p94 = scmp.ne.s32.totalorder %s86, %s88
      %p95 = scmp.eq.s32.totalorder %s15, 1
      %p96 = por %p94, %p95
      %p97 = scmp.ne.s32.totalorder %s88, %s89
      %p98 = scmp.eq.s32.totalorder %s15, 0
      %p99 = por %p97, %p98
      %p100 = scmp.ne.s32.totalorder %s88, %s89
      %p101 = scmp.eq.s32.totalorder %s16, 1
      %p102 = por %p100, %p101
      %p104 = scmp.ne.s32.totalorder %s89, %s103
      %p105 = scmp.eq.s32.totalorder %s16, 0
      %p106 = por %p104, %p105
      %s107 = ssub.s32 %s10, %s17
      %p108 = scmp.eq.s32.totalorder %s107, 0
      %s110 = sadd.s32 %s109, 1
      %s111 = scalar_select %p108, %s109, %s110
      %p114 = pneg %p108
      %p115 = scmp.eq.s32.totalorder %s10, 1
      %p116 = por %p114, %p115
      %p117 = scmp.ne.s32.totalorder %s109, %s112
      %p118 = scmp.eq.s32.totalorder %s10, 0
      %p119 = por %p117, %p118
      %p120 = scmp.ne.s32.totalorder %s109, %s112
      %p121 = scmp.eq.s32.totalorder %s15, 1
      %p122 = por %p120, %p121
      %p123 = scmp.ne.s32.totalorder %s112, %s113
      %p124 = scmp.eq.s32.totalorder %s15, 0
      %p125 = por %p123, %p124
      %p126 = scmp.ne.s32.totalorder %s112, %s113
      %p127 = scmp.eq.s32.totalorder %s16, 1
      %p128 = por %p126, %p127
      %p130 = scmp.ne.s32.totalorder %s113, %s129
      %p131 = scmp.eq.s32.totalorder %s16, 0
      %p132 = por %p130, %p131
      %p133 = scmp.le.s32.totalorder 1, %s10
      %p134 = scmp.lt.s32.totalorder %s10, 3
      %p135 = pnand %p133, %p134
      %p136 = pneg %p135
      // Predicated region
      $region9: #{_lambda_.14} parent=5 // pred_check
        _
      $region10: #{_lambda_.14} parent=5 // pred_check_branch
        %138 = sbr.rel (%p135) target = $region12
      $region11: #{_lambda_.14} parent=5 // pred_region
        %s139 = ssub.s32 %s10, 1
        // Predicated region
        $region13: #{_lambda_.14} parent=11 // pred_check
          %p140 = pneg %p31
        $region14: #{_lambda_.14} parent=11 // pred_check_branch
          %142 = sbr.rel (%p140) target = $region16
        $region15: #{_lambda_.14} parent=11 // pred_region
          _
        $region16: #{_lambda_.14} parent=11 // pred_fallthru
          _
        // Predicated region
        $region17: #{_lambda_.14} parent=11 // pred_check
          %p143 = pneg %p78
        $region18: #{_lambda_.14} parent=11 // pred_check_branch
          %145 = sbr.rel (%p143) target = $region20
        $region19: #{_lambda_.14} parent=11 // pred_region
          _
        $region20: #{_lambda_.14} parent=11 // pred_fallthru
          _
        // Predicated region
        $region21: #{_lambda_.14} parent=11 // pred_check
          %p146 = pneg %p99
        $region22: #{_lambda_.14} parent=11 // pred_check_branch
          %148 = sbr.rel (%p146) target = $region24
        $region23: #{_lambda_.14} parent=11 // pred_region
          _
        $region24: #{_lambda_.14} parent=11 // pred_fallthru
          _
      $region12: #{_lambda_.14} parent=5 // pred_fallthru
        _
      %p149 = scmp.lt.s32.totalorder %s10, 2
      // Predicated region
      $region25: #{_lambda_.14} parent=5 // pred_check
        %p150 = pneg %p149
      $region26: #{_lambda_.14} parent=5 // pred_check_branch
        %152 = sbr.rel (%p150) target = $region28
      $region27: #{_lambda_.14} parent=5 // pred_region
        // Predicated region
        $region29: #{_lambda_.14} parent=27 // pred_check
          %p153 = pneg %p51
        $region30: #{_lambda_.14} parent=27 // pred_check_branch
          %155 = sbr.rel (%p153) target = $region32
        $region31: #{_lambda_.14} parent=27 // pred_region
          %s156 = sand.u32 %s41, 1
          %s157 = sand.u32 %s41, 1
          %s158 = smul.addr %s157, 32
          %s159 = scalar_lea.vmem [#allocation2], %s158
          %s160 = smul.u32 2, %s10
          %s161 = smul.addr %s160, 4
          %s162 = scalar_lea.vmem %s1, %s161
          // Predicated region
          $region33: #{_lambda_.14} parent=31 // pred_check
            _
          $region34: #{_lambda_.14} parent=31 // pred_check_branch
            %164 = sbr.rel (0) target = $region36
          $region35: #{_lambda_.14} parent=31 // pred_region
            // Predicated region
            $region37: #{_lambda_.14} parent=35 // pred_check
              _
            $region38: #{_lambda_.14} parent=35 // pred_check_branch
              %166 = sbr.rel (0) target = $region40
            $region39: #{_lambda_.14} parent=35 // pred_region
              // Predicated region
              $region52: #{_lambda_.14} parent=39 // pred_check
                _
              $region53: #{_lambda_.14} parent=39 // pred_check_branch
                %188 = sbr.rel (0) target = $region55
              $region54: #{_lambda_.14} parent=39 // pred_region
                loop: start=0, step=1, limit=1
                $region56: #{_lambda_.14} parent=54 // loop_pre_header
                  _
                $region57: #{_lambda_.14} parent=54 // loop_header
                  %s190 = sphi 0, %s194
                  %p191 = scmp.ge.s32.totalorder %s190, 1
                  %s195 = sphi %s162, %s162
                  %s196 = sphi %s159, %s159
                $region58: #{_lambda_.14} parent=54 // loop_header_branch
                  %193 = sbr.rel (%p191) target = $region62
                $region59: #{_lambda_.14} parent=54 // loop_body
                  %v197 = vld [vmem:[%s195] sm:$0xff]
                  %198 = vst [vmem:[%s196] sm:$0xff] %v197
                  %v199 = vld [vmem:[%s195 + $0x10] sm:$0xff]
                  %200 = vst [vmem:[%s196 + $0x8] sm:$0xff] %v199
                  %v201 = vld [vmem:[%s195 + $0x20] sm:$0xff]
                  %202 = vst [vmem:[%s196 + $0x10] sm:$0xff] %v201
                  %v203 = vld [vmem:[%s195 + $0x30] sm:$0xff]
                  %204 = vst [vmem:[%s196 + $0x18] sm:$0xff] %v203
                $region60: #{_lambda_.14} parent=54 // loop_footer
                  %s194 = sadd.s32 1, %s190
                $region61: #{_lambda_.14} parent=54 // loop_footer_branch
                  %189 = sbr.rel target = $region57
                $region62: #{_lambda_.14} parent=54 // loop_exit
                  _
              $region55: #{_lambda_.14} parent=39 // pred_fallthru
                _
              // Predicated region
              $region63: #{_lambda_.14} parent=39 // pred_check
                _
              $region64: #{_lambda_.14} parent=39 // pred_check_branch
                %206 = sbr.rel target = $region66
              $region65: #{_lambda_.14} parent=39 // pred_region
                _
              $region66: #{_lambda_.14} parent=39 // pred_fallthru
                _
            $region40: #{_lambda_.14} parent=35 // pred_fallthru
              _
            // Predicated region
            $region41: #{_lambda_.14} parent=35 // pred_check
              _
            $region42: #{_lambda_.14} parent=35 // pred_check_branch
              %168 = sbr.rel target = $region44
            $region43: #{_lambda_.14} parent=35 // pred_region
              %s170 = ssub.s32 256, 1
              loop: start=0, step=1, limit=1
              $region45: #{_lambda_.14} parent=43 // loop_pre_header
                _
              $region46: #{_lambda_.14} parent=43 // loop_header
                %s172 = sphi 0, %s176
                %p173 = scmp.ge.s32.totalorder %s172, 1
                %s177 = sphi %s162, %s162
                %s178 = sphi %s159, %s159
              $region47: #{_lambda_.14} parent=43 // loop_header_branch
                %175 = sbr.rel (%p173) target = $region51
              $region48: #{_lambda_.14} parent=43 // loop_body
                %v179 = vld [vmem:[%s177] sm:%s170]
                %180 = vst [vmem:[%s178] sm:%s170] %v179
                %v181 = vld [vmem:[%s177 + $0x10] sm:%s170]
                %182 = vst [vmem:[%s178 + $0x8] sm:%s170] %v181
                %v183 = vld [vmem:[%s177 + $0x20] sm:%s170]
                %184 = vst [vmem:[%s178 + $0x10] sm:%s170] %v183
                %v185 = vld [vmem:[%s177 + $0x30] sm:%s170]
                %186 = vst [vmem:[%s178 + $0x18] sm:%s170] %v185
              $region49: #{_lambda_.14} parent=43 // loop_footer
                %s176 = sadd.s32 1, %s172
              $region50: #{_lambda_.14} parent=43 // loop_footer_branch
                %171 = sbr.rel target = $region46
              $region51: #{_lambda_.14} parent=43 // loop_exit
                _
            $region44: #{_lambda_.14} parent=35 // pred_fallthru
              _
          $region36: #{_lambda_.14} parent=31 // pred_fallthru
            _
          %207 = vnop
        $region32: #{_lambda_.14} parent=27 // pred_fallthru
          _
      $region28: #{_lambda_.14} parent=5 // pred_fallthru
        _
      %p208 = scmp.le.s32.totalorder 1, %s10
      %p209 = scmp.lt.s32.totalorder %s10, 3
      %p210 = pnand %p208, %p209
      %p211 = pneg %p210
      // Predicated region
      $region67: #{_lambda_.14} parent=5 // pred_check
        _
      $region68: #{_lambda_.14} parent=5 // pred_check_branch
        %213 = sbr.rel (%p210) target = $region70
      $region69: #{_lambda_.14} parent=5 // pred_region
        %s214 = ssub.s32 %s10, 1
        %s215 = sand.u32 %s44, 1
        %s216 = sand.u32 %s44, 1
        %s217 = smul.addr %s216, 32
        %s218 = scalar_lea.vmem [#allocation2], %s217
        // Predicated region
        $region71: #{_lambda_.14} parent=69 // pred_check
          %p219 = pneg %p57
        $region72: #{_lambda_.14} parent=69 // pred_check_branch
          %221 = sbr.rel (%p219) target = $region74
        $region73: #{_lambda_.14} parent=69 // pred_region
          _
        $region74: #{_lambda_.14} parent=69 // pred_fallthru
          _
        %p222 = pneg %p31
        %p223 = pneg %p28
        %s224 = sand.u32 %s44, 1
        %s225 = sand.u32 %s44, 1
        %s226 = smul.addr %s225, 32
        %s227 = scalar_lea.vmem [#allocation2], %s226
        %p228 = pneg %p57
        %p229 = pneg %p54
        %p230 = pneg %p78
        %p231 = pneg %p75
        %p232 = pneg %p99
        %p233 = pneg %p96
        %p234 = pneg %p125
        %p235 = pneg %p122
        %s236 = sand.u32 %s112, 1
        %s237 = sand.u32 %s112, 1
        %s238 = smul.addr %s237, 32
        %s239 = scalar_lea.vmem [#allocation3], %s238
        %s240 = smul.u32 2, %s15
        %s241 = smul.u32 2, %s15
        %v243 = vld [vmem:[%s0] sm:$0xf]
        %v244 = vld [vmem:[%s0 + $0x4] sm:$0xf]
        %v245 = vld [vmem:[%s218] sm:$0xff]
        %v246 = vld [vmem:[%s218 + $0x8] sm:$0xff]
        %v247 = vld [vmem:[%s218 + $0x10] sm:$0xff]
        %v248 = vld [vmem:[%s218 + $0x18] sm:$0xff]
        %v251 = vunpack.c.l.b16 %v243
        %v252 = vunpack.c.l.b16 %v244
        %v253 = vpack.c.b16 %v252, %v251
        %v258 = vunpack.c.l.b16 %v245
        %v259 = vunpack.c.h.b16 %v245
        %v260 = vunpack.c.l.b16 %v246
        %v261 = vunpack.c.h.b16 %v246
        %v262 = vunpack.c.l.b16 %v247
        %v263 = vunpack.c.h.b16 %v247
        %v264 = vunpack.c.l.b16 %v248
        %v265 = vunpack.c.h.b16 %v248
        %v266 = vpack.c.b16 %v260, %v258
        %v267 = vpack.c.b16 %v261, %v259
        %v268 = vpack.c.b16 %v264, %v262
        %v269 = vpack.c.b16 %v265, %v263
        %vm274 = vcmask 261120
        %v276 = vsel %vm274, %v253, 0
        %278 = vmatpush.bf16.msra.mxu0 0
        %279 = vmatpush.bf16.msra.mxu0 0
        %280 = vmatpush.bf16.msra.mxu0 0
        %281 = vmatpush.bf16.msra.mxu0 0
        %282 = vmatpush.bf16.msra.mxu0 0
        %283 = vmatpush.bf16.msra.mxu0 0
        %284 = vmatpush.bf16.msra.mxu0 %v268
        %285 = vmatpush.bf16.msra.mxu0 %v266
        %286 = vmatmul.bf16.gmra.mxu0 %v276
        %v287 = vpop.f32.mrf.mxu0
        %v288 = vadd.f32 0.0, %v287
        %v289 = vpop.f32.mrf.mxu0
        %v290 = vadd.f32 0.0, %v289
        %291 = vdwg.mxu0
        %292 = vmatpush.bf16.msra.mxu0 0
        %293 = vmatpush.bf16.msra.mxu0 0
        %294 = vmatpush.bf16.msra.mxu0 0
        %295 = vmatpush.bf16.msra.mxu0 0
        %296 = vmatpush.bf16.msra.mxu0 0
        %297 = vmatpush.bf16.msra.mxu0 0
        %298 = vmatpush.bf16.msra.mxu0 %v269
        %299 = vmatpush.bf16.msra.mxu0 %v267
        %300 = vmatmul.bf16.gmra.mxu0 %v276
        %v301 = vpop.f32.mrf.mxu0
        %v302 = vadd.f32 0.0, %v301
        %v303 = vpop.f32.mrf.mxu0
        %v304 = vadd.f32 0.0, %v303
        %305 = vdwg.mxu0
        %v306 = vld [vmem:[%s2] sm:$0xff]
        %v307 = vld [vmem:[%s2 + $0x8] sm:$0xff]
        %309 = vset.pattern.permute.xlu0 0
        %310 = vperm.xlu0 %309, %v306
        %v311 = vpop.permute.xlu0 %310
        %314 = vset.pattern.permute.xlu0 0
        %315 = vperm.xlu0 %314, %v307
        %v316 = vpop.permute.xlu0 %315
        %v318 = vmul.f32 %v288, %v311
        %v319 = vmul.f32 %v302, %v311
        %v320 = vmul.f32 %v290, %v316
        %v321 = vmul.f32 %v304, %v316
        %v322 = vld [vmem:[%s3] sm:$0xff]
        %v323 = vld [vmem:[%s3 + $0x8] sm:$0xff]
        %325 = vset.pattern.permute.xlu0 0
        %326 = vperm.xlu0 %325, %v322
        %v327 = vpop.permute.xlu0 %326
        %330 = vset.pattern.permute.xlu0 0
        %331 = vperm.xlu0 %330, %v323
        %v332 = vpop.permute.xlu0 %331
        %v334 = vadd.f32 %v318, %v327
        %v335 = vadd.f32 %v319, %v327
        %v336 = vadd.f32 %v320, %v332
        %v337 = vadd.f32 %v321, %v332
        %v338 = vmax.f32 %v334, 0.0
        %v339 = vmax.f32 %v335, 0.0
        %v340 = vmax.f32 %v336, 0.0
        %v341 = vmax.f32 %v337, 0.0
        %342 = vst [vmem:[%s239] sm:$0xff] %v338
        %343 = vst [vmem:[%s239 + $0x8] sm:$0xff] %v339
        %344 = vst [vmem:[%s239 + $0x10] sm:$0xff] %v340
        %345 = vst [vmem:[%s239 + $0x18] sm:$0xff] %v341
        %s346 = sand.u32 %s112, 1
        %s347 = sand.u32 %s112, 1
        %s348 = smul.addr %s347, 32
        %s349 = scalar_lea.vmem [#allocation3], %s348
        // Predicated region
        $region75: #{_lambda_.14} parent=69 // pred_check
          %p350 = pneg %p122
        $region76: #{_lambda_.14} parent=69 // pred_check_branch
          %352 = sbr.rel (%p350) target = $region78
        $region77: #{_lambda_.14} parent=69 // pred_region
          %s353 = smul.u32 2, %s15
          %s354 = smul.addr %s353, 8
          %s355 = scalar_lea.vmem %s4, %s354
          // Predicated region
          $region79: #{_lambda_.14} parent=77 // pred_check
            _
          $region80: #{_lambda_.14} parent=77 // pred_check_branch
            %357 = sbr.rel (0) target = $region82
          $region81: #{_lambda_.14} parent=77 // pred_region
            // Predicated region
            $region83: #{_lambda_.14} parent=81 // pred_check
              _
            $region84: #{_lambda_.14} parent=81 // pred_check_branch
              %359 = sbr.rel (0) target = $region86
            $region85: #{_lambda_.14} parent=81 // pred_region
              loop: start=0, step=1, limit=1
              $region87: #{_lambda_.14} parent=85 // loop_pre_header
                _
              $region88: #{_lambda_.14} parent=85 // loop_header
                %s361 = sphi 0, %s365
                %p362 = scmp.ge.s32.totalorder %s361, 1
                %s366 = sphi %s349, %s349
                %s367 = sphi %s355, %s355
              $region89: #{_lambda_.14} parent=85 // loop_header_branch
                %364 = sbr.rel (%p362) target = $region93
              $region90: #{_lambda_.14} parent=85 // loop_body
                %v368 = vld [vmem:[%s366] sm:$0xff]
                %369 = vst [vmem:[%s367] sm:$0xff] %v368
                %v370 = vld [vmem:[%s366 + $0x8] sm:$0xff]
                %371 = vst [vmem:[%s367 + $0x8] sm:$0xff] %v370
                %v372 = vld [vmem:[%s366 + $0x10] sm:$0xff]
                %373 = vst [vmem:[%s367 + $0x20] sm:$0xff] %v372
                %v374 = vld [vmem:[%s366 + $0x18] sm:$0xff]
                %375 = vst [vmem:[%s367 + $0x28] sm:$0xff] %v374
              $region91: #{_lambda_.14} parent=85 // loop_footer
                %s365 = sadd.s32 1, %s361
              $region92: #{_lambda_.14} parent=85 // loop_footer_branch
                %360 = sbr.rel target = $region88
              $region93: #{_lambda_.14} parent=85 // loop_exit
                _
            $region86: #{_lambda_.14} parent=81 // pred_fallthru
              _
            // Predicated region
            $region94: #{_lambda_.14} parent=81 // pred_check
              _
            $region95: #{_lambda_.14} parent=81 // pred_check_branch
              %377 = sbr.rel target = $region97
            $region96: #{_lambda_.14} parent=81 // pred_region
              _
            $region97: #{_lambda_.14} parent=81 // pred_fallthru
              _
          $region82: #{_lambda_.14} parent=77 // pred_fallthru
            _
          %378 = vnop
        $region78: #{_lambda_.14} parent=69 // pred_fallthru
          _
      $region70: #{_lambda_.14} parent=5 // pred_fallthru
        _
      %p379 = scmp.le.s32.totalorder 2, %s10
      // Predicated region
      $region98: #{_lambda_.14} parent=5 // pred_check
        %p380 = pneg %p379
      $region99: #{_lambda_.14} parent=5 // pred_check_branch
        %382 = sbr.rel (%p380) target = $region101
      $region100: #{_lambda_.14} parent=5 // pred_region
        %s383 = ssub.s32 %s10, 2
        // Predicated region
        $region102: #{_lambda_.14} parent=100 // pred_check
          %p384 = pneg %p128
        $region103: #{_lambda_.14} parent=100 // pred_check_branch
          %386 = sbr.rel (%p384) target = $region105
        $region104: #{_lambda_.14} parent=100 // pred_region
          %s387 = sand.u32 %s113, 1
          %s388 = sand.u32 %s113, 1
          %s389 = smul.addr %s388, 32
          %s390 = scalar_lea.vmem [#allocation3], %s389
        $region105: #{_lambda_.14} parent=100 // pred_fallthru
          _
      $region101: #{_lambda_.14} parent=5 // pred_fallthru
        _
    $region6: #{_lambda_.14} parent=1 // loop_footer
      %s14 = sadd.s32 1, %s10
    $region7: #{_lambda_.14} parent=1 // loop_footer_branch
      %9 = sbr.rel target = $region3
    $region8: #{_lambda_.14} parent=1 // loop_exit
      _

// kernel: _lambda_.15
$region0: #{_lambda_.15}
  #allocation0 [shape = 'u32[]', space=smem, size = 0x4, offset = 0x4, fixed_abs, tag = 'smem constant byte address 0x4 - core index']
  #allocation1 [shape = 'u32[72,128]{1,0:T(1,128)}', space=vmem, size = 0x9000, scoped, tag = 'internal scratch']
  %s0 = inlined_call_operand.vmem [shape: bf16[16,144], index: 0, kind: input, shape index: {}]
  %s1 = inlined_call_operand.vmem [shape: bf16[144,512], index: 1, kind: input, shape index: {}]
  %s2 = inlined_call_operand.vmem [shape: f32[16,1], index: 2, kind: input, shape index: {}]
  %s3 = inlined_call_operand.vmem [shape: f32[16,1], index: 3, kind: input, shape index: {}]
  %s4 = inlined_call_operand.vmem [shape: f32[16,512], index: 4, kind: output, shape index: {}]
  %s5 = sld [smem:[#allocation0]]
  $region106: #{_lambda_.15} parent=0
    _
  %s7 = ssub.s32 1, %s5
  %s8 = scalar_select 0, %s7, %s5
  $region1: #{_lambda_.15} parent=0
    #allocation2 [shape = 'u8[147456]{0}', space=vmem, size = 0x24000, scoped, tag = 'input window, operand 1']
    #allocation3 [shape = 'u8[32768]{0}', space=vmem, size = 0x8000, scoped, tag = 'output window, operand 0']
    loop: start=0, step=1, limit=4
    $region2: #{_lambda_.15} parent=1 // loop_pre_header
      _
    $region3: #{_lambda_.15} parent=1 // loop_header
      %s10 = sphi 0, %s14
      %p11 = scmp.ge.s32.totalorder %s10, 4
      %s18 = sphi 0, %s18
      %s20 = sphi 0, %s18
      %s21 = sphi 0, %s20
      %s35 = sphi 0, %s21
      %s41 = sphi 0, %s43
      %s44 = sphi 0, %s41
      %s45 = sphi 0, %s44
      %s61 = sphi 0, %s45
      %s65 = sphi 0, %s65
      %s67 = sphi 0, %s65
      %s68 = sphi 0, %s67
      %s82 = sphi 0, %s68
      %s86 = sphi 0, %s86
      %s88 = sphi 0, %s86
      %s89 = sphi 0, %s88
      %s103 = sphi 0, %s89
      %s109 = sphi 0, %s111
      %s112 = sphi 0, %s109
      %s113 = sphi 0, %s112
      %s129 = sphi 0, %s113
    $region4: #{_lambda_.15} parent=1 // loop_header_branch
      %13 = sbr.rel (%p11) target = $region8
    $region5: #{_lambda_.15} parent=1 // loop_body
      %s15 = ssub.s32 %s10, 1
      %s16 = ssub.s32 %s10, 2
      %s17 = sadd.s32 %s10, 1
      %s19 = sadd.s32 %s18, 1
      %p22 = scmp.eq.s32.totalorder %s10, 1
      %p23 = scmp.ne.s32.totalorder %s18, %s20
      %p24 = scmp.eq.s32.totalorder %s10, 0
      %p25 = por %p23, %p24
      %p26 = scmp.ne.s32.totalorder %s18, %s20
      %p27 = scmp.eq.s32.totalorder %s15, 1
      %p28 = por %p26, %p27
      %p29 = scmp.ne.s32.totalorder %s20, %s21
      %p30 = scmp.eq.s32.totalorder %s15, 0
      %p31 = por %p29, %p30
      %p32 = scmp.ne.s32.totalorder %s20, %s21
      %p33 = scmp.eq.s32.totalorder %s16, 1
      %p34 = por %p32, %p33
      %p36 = scmp.ne.s32.totalorder %s21, %s35
      %p37 = scmp.eq.s32.totalorder %s16, 0
      %p38 = por %p36, %p37
      %s39 = ssub.s32 %s10, %s17
      %p40 = scmp.eq.s32.totalorder %s39, 0
      %s42 = sadd.s32 %s41, 1
      %s43 = scalar_select %p40, %s41, %s42
      %p46 = pneg %p40
      %p47 = scmp.eq.s32.totalorder %s10, 1
      %p48 = por %p46, %p47
      %p49 = scmp.ne.s32.totalorder %s41, %s44
      %p50 = scmp.eq.s32.totalorder %s10, 0
      %p51 = por %p49, %p50
      %p52 = scmp.ne.s32.totalorder %s41, %s44
      %p53 = scmp.eq.s32.totalorder %s15, 1
      %p54 = por %p52, %p53
      %p55 = scmp.ne.s32.totalorder %s44, %s45
      %p56 = scmp.eq.s32.totalorder %s15, 0
      %p57 = por %p55, %p56
      %p58 = scmp.ne.s32.totalorder %s44, %s45
      %p59 = scmp.eq.s32.totalorder %s16, 1
      %p60 = por %p58, %p59
      %p62 = scmp.ne.s32.totalorder %s45, %s61
      %p63 = scmp.eq.s32.totalorder %s16, 0
      %p64 = por %p62, %p63
      %s66 = sadd.s32 %s65, 1
      %p69 = scmp.eq.s32.totalorder %s10, 1
      %p70 = scmp.ne.s32.totalorder %s65, %s67
      %p71 = scmp.eq.s32.totalorder %s10, 0
      %p72 = por %p70, %p71
      %p73 = scmp.ne.s32.totalorder %s65, %s67
      %p74 = scmp.eq.s32.totalorder %s15, 1
      %p75 = por %p73, %p74
      %p76 = scmp.ne.s32.totalorder %s67, %s68
      %p77 = scmp.eq.s32.totalorder %s15, 0
      %p78 = por %p76, %p77
      %p79 = scmp.ne.s32.totalorder %s67, %s68
      %p80 = scmp.eq.s32.totalorder %s16, 1
      %p81 = por %p79, %p80
      %p83 = scmp.ne.s32.totalorder %s68, %s82
      %p84 = scmp.eq.s32.totalorder %s16, 0
      %p85 = por %p83, %p84
      %s87 = sadd.s32 %s86, 1
      %p90 = scmp.eq.s32.totalorder %s10, 1
      %p91 = scmp.ne.s32.totalorder %s86, %s88
      %p92 = scmp.eq.s32.totalorder %s10, 0
      %p93 = por %p91, %p92
      %p94 = scmp.ne.s32.totalorder %s86, %s88
      %p95 = scmp.eq.s32.totalorder %s15, 1
      %p96 = por %p94, %p95
      %p97 = scmp.ne.s32.totalorder %s88, %s89
      %p98 = scmp.eq.s32.totalorder %s15, 0
      %p99 = por %p97, %p98
      %p100 = scmp.ne.s32.totalorder %s88, %s89
      %p101 = scmp.eq.s32.totalorder %s16, 1
      %p102 = por %p100, %p101
      %p104 = scmp.ne.s32.totalorder %s89, %s103
      %p105 = scmp.eq.s32.totalorder %s16, 0
      %p106 = por %p104, %p105
      %s107 = ssub.s32 %s10, %s17
      %p108 = scmp.eq.s32.totalorder %s107, 0
      %s110 = sadd.s32 %s109, 1
      %s111 = scalar_select %p108, %s109, %s110
      %p114 = pneg %p108
      %p115 = scmp.eq.s32.totalorder %s10, 1
      %p116 = por %p114, %p115
      %p117 = scmp.ne.s32.totalorder %s109, %s112
      %p118 = scmp.eq.s32.totalorder %s10, 0
      %p119 = por %p117, %p118
      %p120 = scmp.ne.s32.totalorder %s109, %s112
      %p121 = scmp.eq.s32.totalorder %s15, 1
      %p122 = por %p120, %p121
      %p123 = scmp.ne.s32.totalorder %s112, %s113
      %p124 = scmp.eq.s32.totalorder %s15, 0
      %p125 = por %p123, %p124
      %p126 = scmp.ne.s32.totalorder %s112, %s113
      %p127 = scmp.eq.s32.totalorder %s16, 1
      %p128 = por %p126, %p127
      %p130 = scmp.ne.s32.totalorder %s113, %s129
      %p131 = scmp.eq.s32.totalorder %s16, 0
      %p132 = por %p130, %p131
      %p133 = scmp.le.s32.totalorder 1, %s10
      %p134 = scmp.lt.s32.totalorder %s10, 3
      %p135 = pnand %p133, %p134
      %p136 = pneg %p135
      // Predicated region
      $region9: #{_lambda_.15} parent=5 // pred_check
        _
      $region10: #{_lambda_.15} parent=5 // pred_check_branch
        %138 = sbr.rel (%p135) target = $region12
      $region11: #{_lambda_.15} parent=5 // pred_region
        %s139 = ssub.s32 %s10, 1
        // Predicated region
        $region13: #{_lambda_.15} parent=11 // pred_check
          %p140 = pneg %p31
        $region14: #{_lambda_.15} parent=11 // pred_check_branch
          %142 = sbr.rel (%p140) target = $region16
        $region15: #{_lambda_.15} parent=11 // pred_region
          _
        $region16: #{_lambda_.15} parent=11 // pred_fallthru
          _
        // Predicated region
        $region17: #{_lambda_.15} parent=11 // pred_check
          %p143 = pneg %p78
        $region18: #{_lambda_.15} parent=11 // pred_check_branch
          %145 = sbr.rel (%p143) target = $region20
        $region19: #{_lambda_.15} parent=11 // pred_region
          _
        $region20: #{_lambda_.15} parent=11 // pred_fallthru
          _
        // Predicated region
        $region21: #{_lambda_.15} parent=11 // pred_check
          %p146 = pneg %p99
        $region22: #{_lambda_.15} parent=11 // pred_check_branch
          %148 = sbr.rel (%p146) target = $region24
        $region23: #{_lambda_.15} parent=11 // pred_region
          _
        $region24: #{_lambda_.15} parent=11 // pred_fallthru
          _
      $region12: #{_lambda_.15} parent=5 // pred_fallthru
        _
      %p149 = scmp.lt.s32.totalorder %s10, 2
      // Predicated region
      $region25: #{_lambda_.15} parent=5 // pred_check
        %p150 = pneg %p149
      $region26: #{_lambda_.15} parent=5 // pred_check_branch
        %152 = sbr.rel (%p150) target = $region28
      $region27: #{_lambda_.15} parent=5 // pred_region
        // Predicated region
        $region29: #{_lambda_.15} parent=27 // pred_check
          %p153 = pneg %p51
        $region30: #{_lambda_.15} parent=27 // pred_check_branch
          %155 = sbr.rel (%p153) target = $region32
        $region31: #{_lambda_.15} parent=27 // pred_region
          %s156 = sand.u32 %s41, 1
          %s157 = sand.u32 %s41, 1
          %s158 = smul.addr %s157, 144
          %s159 = scalar_lea.vmem [#allocation2], %s158
          %s160 = smul.u32 2, %s10
          %s161 = smul.addr %s160, 4
          %s162 = scalar_lea.vmem %s1, %s161
          // Predicated region
          $region33: #{_lambda_.15} parent=31 // pred_check
            _
          $region34: #{_lambda_.15} parent=31 // pred_check_branch
            %164 = sbr.rel (0) target = $region36
          $region35: #{_lambda_.15} parent=31 // pred_region
            // Predicated region
            $region37: #{_lambda_.15} parent=35 // pred_check
              _
            $region38: #{_lambda_.15} parent=35 // pred_check_branch
              %166 = sbr.rel (0) target = $region40
            $region39: #{_lambda_.15} parent=35 // pred_region
              // Predicated region
              $region52: #{_lambda_.15} parent=39 // pred_check
                _
              $region53: #{_lambda_.15} parent=39 // pred_check_branch
                %216 = sbr.rel (0) target = $region55
              $region54: #{_lambda_.15} parent=39 // pred_region
                loop: start=0, step=1, limit=1
                $region56: #{_lambda_.15} parent=54 // loop_pre_header
                  _
                $region57: #{_lambda_.15} parent=54 // loop_header
                  %s218 = sphi 0, %s222
                  %p219 = scmp.ge.s32.totalorder %s218, 1
                  %s223 = sphi %s162, %s162
                  %s224 = sphi %s159, %s159
                $region58: #{_lambda_.15} parent=54 // loop_header_branch
                  %221 = sbr.rel (%p219) target = $region62
                $region59: #{_lambda_.15} parent=54 // loop_body
                  %v225 = vld [vmem:[%s223] sm:$0xff]
                  %226 = vst [vmem:[%s224] sm:$0xff] %v225
                  %v227 = vld [vmem:[%s223 + $0x10] sm:$0xff]
                  %228 = vst [vmem:[%s224 + $0x8] sm:$0xff] %v227
                  %v229 = vld [vmem:[%s223 + $0x20] sm:$0xff]
                  %230 = vst [vmem:[%s224 + $0x10] sm:$0xff] %v229
                  %v231 = vld [vmem:[%s223 + $0x30] sm:$0xff]
                  %232 = vst [vmem:[%s224 + $0x18] sm:$0xff] %v231
                  %v233 = vld [vmem:[%s223 + $0x40] sm:$0xff]
                  %234 = vst [vmem:[%s224 + $0x20] sm:$0xff] %v233
                  %v235 = vld [vmem:[%s223 + $0x50] sm:$0xff]
                  %236 = vst [vmem:[%s224 + $0x28] sm:$0xff] %v235
                  %v237 = vld [vmem:[%s223 + $0x60] sm:$0xff]
                  %238 = vst [vmem:[%s224 + $0x30] sm:$0xff] %v237
                  %v239 = vld [vmem:[%s223 + $0x70] sm:$0xff]
                  %240 = vst [vmem:[%s224 + $0x38] sm:$0xff] %v239
                  %v241 = vld [vmem:[%s223 + $0x80] sm:$0xff]
                  %242 = vst [vmem:[%s224 + $0x40] sm:$0xff] %v241
                  %v243 = vld [vmem:[%s223 + $0x90] sm:$0xff]
                  %244 = vst [vmem:[%s224 + $0x48] sm:$0xff] %v243
                  %v245 = vld [vmem:[%s223 + $0xa0] sm:$0xff]
                  %246 = vst [vmem:[%s224 + $0x50] sm:$0xff] %v245
                  %v247 = vld [vmem:[%s223 + $0xb0] sm:$0xff]
                  %248 = vst [vmem:[%s224 + $0x58] sm:$0xff] %v247
                  %v249 = vld [vmem:[%s223 + $0xc0] sm:$0xff]
                  %250 = vst [vmem:[%s224 + $0x60] sm:$0xff] %v249
                  %v251 = vld [vmem:[%s223 + $0xd0] sm:$0xff]
                  %252 = vst [vmem:[%s224 + $0x68] sm:$0xff] %v251
                  %v253 = vld [vmem:[%s223 + $0xe0] sm:$0xff]
                  %254 = vst [vmem:[%s224 + $0x70] sm:$0xff] %v253
                  %v255 = vld [vmem:[%s223 + $0xf0] sm:$0xff]
                  %256 = vst [vmem:[%s224 + $0x78] sm:$0xff] %v255
                  %v257 = vld [vmem:[%s223 + $0x100] sm:$0xff]
                  %258 = vst [vmem:[%s224 + $0x80] sm:$0xff] %v257
                  %v259 = vld [vmem:[%s223 + $0x110] sm:$0xff]
                  %260 = vst [vmem:[%s224 + $0x88] sm:$0xff] %v259
                $region60: #{_lambda_.15} parent=54 // loop_footer
                  %s222 = sadd.s32 1, %s218
                $region61: #{_lambda_.15} parent=54 // loop_footer_branch
                  %217 = sbr.rel target = $region57
                $region62: #{_lambda_.15} parent=54 // loop_exit
                  _
              $region55: #{_lambda_.15} parent=39 // pred_fallthru
                _
              // Predicated region
              $region63: #{_lambda_.15} parent=39 // pred_check
                _
              $region64: #{_lambda_.15} parent=39 // pred_check_branch
                %262 = sbr.rel target = $region66
              $region65: #{_lambda_.15} parent=39 // pred_region
                _
              $region66: #{_lambda_.15} parent=39 // pred_fallthru
                _
            $region40: #{_lambda_.15} parent=35 // pred_fallthru
              _
            // Predicated region
            $region41: #{_lambda_.15} parent=35 // pred_check
              _
            $region42: #{_lambda_.15} parent=35 // pred_check_branch
              %168 = sbr.rel target = $region44
            $region43: #{_lambda_.15} parent=35 // pred_region
              %s170 = ssub.s32 256, 1
              loop: start=0, step=1, limit=1
              $region45: #{_lambda_.15} parent=43 // loop_pre_header
                _
              $region46: #{_lambda_.15} parent=43 // loop_header
                %s172 = sphi 0, %s176
                %p173 = scmp.ge.s32.totalorder %s172, 1
                %s177 = sphi %s162, %s162
                %s178 = sphi %s159, %s159
              $region47: #{_lambda_.15} parent=43 // loop_header_branch
                %175 = sbr.rel (%p173) target = $region51
              $region48: #{_lambda_.15} parent=43 // loop_body
                %v179 = vld [vmem:[%s177] sm:%s170]
                %180 = vst [vmem:[%s178] sm:%s170] %v179
                %v181 = vld [vmem:[%s177 + $0x10] sm:%s170]
                %182 = vst [vmem:[%s178 + $0x8] sm:%s170] %v181
                %v183 = vld [vmem:[%s177 + $0x20] sm:%s170]
                %184 = vst [vmem:[%s178 + $0x10] sm:%s170] %v183
                %v185 = vld [vmem:[%s177 + $0x30] sm:%s170]
                %186 = vst [vmem:[%s178 + $0x18] sm:%s170] %v185
                %v187 = vld [vmem:[%s177 + $0x40] sm:%s170]
                %188 = vst [vmem:[%s178 + $0x20] sm:%s170] %v187
                %v189 = vld [vmem:[%s177 + $0x50] sm:%s170]
                %190 = vst [vmem:[%s178 + $0x28] sm:%s170] %v189
                %v191 = vld [vmem:[%s177 + $0x60] sm:%s170]
                %192 = vst [vmem:[%s178 + $0x30] sm:%s170] %v191
                %v193 = vld [vmem:[%s177 + $0x70] sm:%s170]
                %194 = vst [vmem:[%s178 + $0x38] sm:%s170] %v193
                %v195 = vld [vmem:[%s177 + $0x80] sm:%s170]
                %196 = vst [vmem:[%s178 + $0x40] sm:%s170] %v195
                %v197 = vld [vmem:[%s177 + $0x90] sm:%s170]
                %198 = vst [vmem:[%s178 + $0x48] sm:%s170] %v197
                %v199 = vld [vmem:[%s177 + $0xa0] sm:%s170]
                %200 = vst [vmem:[%s178 + $0x50] sm:%s170] %v199
                %v201 = vld [vmem:[%s177 + $0xb0] sm:%s170]
                %202 = vst [vmem:[%s178 + $0x58] sm:%s170] %v201
                %v203 = vld [vmem:[%s177 + $0xc0] sm:%s170]
                %204 = vst [vmem:[%s178 + $0x60] sm:%s170] %v203
                %v205 = vld [vmem:[%s177 + $0xd0] sm:%s170]
                %206 = vst [vmem:[%s178 + $0x68] sm:%s170] %v205
                %v207 = vld [vmem:[%s177 + $0xe0] sm:%s170]
                %208 = vst [vmem:[%s178 + $0x70] sm:%s170] %v207
                %v209 = vld [vmem:[%s177 + $0xf0] sm:%s170]
                %210 = vst [vmem:[%s178 + $0x78] sm:%s170] %v209
                %v211 = vld [vmem:[%s177 + $0x100] sm:%s170]
                %212 = vst [vmem:[%s178 + $0x80] sm:%s170] %v211
                %v213 = vld [vmem:[%s177 + $0x110] sm:%s170]
                %214 = vst [vmem:[%s178 + $0x88] sm:%s170] %v213
              $region49: #{_lambda_.15} parent=43 // loop_footer
                %s176 = sadd.s32 1, %s172
              $region50: #{_lambda_.15} parent=43 // loop_footer_branch
                %171 = sbr.rel target = $region46
              $region51: #{_lambda_.15} parent=43 // loop_exit
                _
            $region44: #{_lambda_.15} parent=35 // pred_fallthru
              _
          $region36: #{_lambda_.15} parent=31 // pred_fallthru
            _
          %263 = vnop
        $region32: #{_lambda_.15} parent=27 // pred_fallthru
          _
      $region28: #{_lambda_.15} parent=5 // pred_fallthru
        _
      %p264 = scmp.le.s32.totalorder 1, %s10
      %p265 = scmp.lt.s32.totalorder %s10, 3
      %p266 = pnand %p264, %p265
      %p267 = pneg %p266
      // Predicated region
      $region67: #{_lambda_.15} parent=5 // pred_check
        _
      $region68: #{_lambda_.15} parent=5 // pred_check_branch
        %269 = sbr.rel (%p266) target = $region70
      $region69: #{_lambda_.15} parent=5 // pred_region
        %s270 = ssub.s32 %s10, 1
        %s271 = sand.u32 %s44, 1
        %s272 = sand.u32 %s44, 1
        %s273 = smul.addr %s272, 144
        %s274 = scalar_lea.vmem [#allocation2], %s273
        // Predicated region
        $region71: #{_lambda_.15} parent=69 // pred_check
          %p275 = pneg %p57
        $region72: #{_lambda_.15} parent=69 // pred_check_branch
          %277 = sbr.rel (%p275) target = $region74
        $region73: #{_lambda_.15} parent=69 // pred_region
          _
        $region74: #{_lambda_.15} parent=69 // pred_fallthru
          _
        %p278 = pneg %p31
        %p279 = pneg %p28
        %s280 = sand.u32 %s44, 1
        %s281 = sand.u32 %s44, 1
        %s282 = smul.addr %s281, 144
        %s283 = scalar_lea.vmem [#allocation2], %s282
        %p284 = pneg %p57
        %p285 = pneg %p54
        %p286 = pneg %p78
        %p287 = pneg %p75
        %p288 = pneg %p99
        %p289 = pneg %p96
        %p290 = pneg %p125
        %p291 = pneg %p122
        %s292 = sand.u32 %s112, 1
        %s293 = sand.u32 %s112, 1
        %s294 = smul.addr %s293, 32
        %s295 = scalar_lea.vmem [#allocation3], %s294
        %s296 = smul.u32 2, %s15
        %s297 = smul.u32 2, %s15
        %v299 = vld [vmem:[%s0] sm:$0xff]
        %v300 = vld [vmem:[%s0 + $0x8] sm:$0xff]
        %v301 = vld [vmem:[%s274] sm:$0xff]
        %v302 = vld [vmem:[%s274 + $0x8] sm:$0xff]
        %v303 = vld [vmem:[%s274 + $0x10] sm:$0xff]
        %v304 = vld [vmem:[%s274 + $0x18] sm:$0xff]
        %v305 = vld [vmem:[%s274 + $0x20] sm:$0xff]
        %v306 = vld [vmem:[%s274 + $0x28] sm:$0xff]
        %v307 = vld [vmem:[%s274 + $0x30] sm:$0xff]
        %v308 = vld [vmem:[%s274 + $0x38] sm:$0xff]
        %v309 = vld [vmem:[%s274 + $0x40] sm:$0xff]
        %v310 = vld [vmem:[%s274 + $0x48] sm:$0xff]
        %v311 = vld [vmem:[%s274 + $0x50] sm:$0xff]
        %v312 = vld [vmem:[%s274 + $0x58] sm:$0xff]
        %v313 = vld [vmem:[%s274 + $0x60] sm:$0xff]
        %v314 = vld [vmem:[%s274 + $0x68] sm:$0xff]
        %v315 = vld [vmem:[%s274 + $0x70] sm:$0xff]
        %v316 = vld [vmem:[%s274 + $0x78] sm:$0xff]
        %v317 = vld [vmem:[%s274 + $0x80] sm:$0xff]
        %v318 = vld [vmem:[%s274 + $0x88] sm:$0xff]
        %v321 = vunpack.c.l.b16 %v299
        %v322 = vunpack.c.h.b16 %v299
        %v323 = vunpack.c.l.b16 %v300
        %v324 = vunpack.c.h.b16 %v300
        %v325 = vpack.c.b16 %v323, %v321
        %v326 = vpack.c.b16 %v324, %v322
        %v346 = vunpack.c.l.b16 %v301
        %v347 = vunpack.c.h.b16 %v301
        %v348 = vunpack.c.l.b16 %v302
        %v349 = vunpack.c.h.b16 %v302
        %v350 = vunpack.c.l.b16 %v303
        %v351 = vunpack.c.h.b16 %v303
        %v352 = vunpack.c.l.b16 %v304
        %v353 = vunpack.c.h.b16 %v304
        %v354 = vunpack.c.l.b16 %v305
        %v355 = vunpack.c.h.b16 %v305
        %v356 = vunpack.c.l.b16 %v306
        %v357 = vunpack.c.h.b16 %v306
        %v358 = vunpack.c.l.b16 %v307
        %v359 = vunpack.c.h.b16 %v307
        %v360 = vunpack.c.l.b16 %v308
        %v361 = vunpack.c.h.b16 %v308
        %v362 = vunpack.c.l.b16 %v309
        %v363 = vunpack.c.h.b16 %v309
        %v364 = vunpack.c.l.b16 %v310
        %v365 = vunpack.c.h.b16 %v310
        %v366 = vunpack.c.l.b16 %v311
        %v367 = vunpack.c.h.b16 %v311
        %v368 = vunpack.c.l.b16 %v312
        %v369 = vunpack.c.h.b16 %v312
        %v370 = vunpack.c.l.b16 %v313
        %v371 = vunpack.c.h.b16 %v313
        %v372 = vunpack.c.l.b16 %v314
        %v373 = vunpack.c.h.b16 %v314
        %v374 = vunpack.c.l.b16 %v315
        %v375 = vunpack.c.h.b16 %v315
        %v376 = vunpack.c.l.b16 %v316
        %v377 = vunpack.c.h.b16 %v316
        %v378 = vunpack.c.l.b16 %v317
        %v379 = vunpack.c.h.b16 %v317
        %v380 = vunpack.c.l.b16 %v318
        %v381 = vunpack.c.h.b16 %v318
        %v382 = vpack.c.b16 %v348, %v346
        %v383 = vpack.c.b16 %v349, %v347
        %v384 = vpack.c.b16 %v352, %v350
        %v385 = vpack.c.b16 %v353, %v351
        %v386 = vpack.c.b16 %v356, %v354
        %v387 = vpack.c.b16 %v357, %v355
        %v388 = vpack.c.b16 %v360, %v358
        %v389 = vpack.c.b16 %v361, %v359
        %v390 = vpack.c.b16 %v364, %v362
        %v391 = vpack.c.b16 %v365, %v363
        %v392 = vpack.c.b16 %v368, %v366
        %v393 = vpack.c.b16 %v369, %v367
        %v394 = vpack.c.b16 %v372, %v370
        %v395 = vpack.c.b16 %v373, %v371
        %v396 = vpack.c.b16 %v376, %v374
        %v397 = vpack.c.b16 %v377, %v375
        %v398 = vpack.c.b16 %v380, %v378
        %v399 = vpack.c.b16 %v381, %v379
        %vm418 = vcmask 130048
        %v420 = vsel %vm418, %v326, 0
        %422 = vmatpush.bf16.msra.mxu0 %v396
        %423 = vmatpush.bf16.msra.mxu0 %v394
        %424 = vmatpush.bf16.msra.mxu0 %v392
        %425 = vmatpush.bf16.msra.mxu0 %v390
        %426 = vmatpush.bf16.msra.mxu0 %v388
        %427 = vmatpush.bf16.msra.mxu0 %v386
        %428 = vmatpush.bf16.msra.mxu0 %v384
        %429 = vmatpush.bf16.msra.mxu0 %v382
        %430 = vmatmul.bf16.gmra.mxu0 %v325
        %v431 = vpop.f32.mrf.mxu0
        %v432 = vadd.f32 0.0, %v431
        %v433 = vpop.f32.mrf.mxu0
        %v434 = vadd.f32 0.0, %v433
        %435 = vdwg.mxu0
        %436 = vmatpush.bf16.msra.mxu0 0
        %437 = vmatpush.bf16.msra.mxu0 0
        %438 = vmatpush.bf16.msra.mxu0 0
        %439 = vmatpush.bf16.msra.mxu0 0
        %440 = vmatpush.bf16.msra.mxu0 0
        %441 = vmatpush.bf16.msra.mxu0 0
        %442 = vmatpush.bf16.msra.mxu0 0
        %443 = vmatpush.bf16.msra.mxu0 %v398
        %444 = vmatmul.bf16.gmra.mxu0 %v420
        %v445 = vpop.f32.mrf.mxu0
        %v446 = vadd.f32 %v432, %v445
        %v447 = vpop.f32.mrf.mxu0
        %v448 = vadd.f32 %v434, %v447
        %449 = vdwg.mxu0
        %450 = vmatpush.bf16.msra.mxu0 %v397
        %451 = vmatpush.bf16.msra.mxu0 %v395
        %452 = vmatpush.bf16.msra.mxu0 %v393
        %453 = vmatpush.bf16.msra.mxu0 %v391
        %454 = vmatpush.bf16.msra.mxu0 %v389
        %455 = vmatpush.bf16.msra.mxu0 %v387
        %456 = vmatpush.bf16.msra.mxu0 %v385
        %457 = vmatpush.bf16.msra.mxu0 %v383
        %458 = vmatmul.bf16.gmra.mxu0 %v325
        %v459 = vpop.f32.mrf.mxu0
        %v460 = vadd.f32 0.0, %v459
        %v461 = vpop.f32.mrf.mxu0
        %v462 = vadd.f32 0.0, %v461
        %463 = vdwg.mxu0
        %464 = vmatpush.bf16.msra.mxu0 0
        %465 = vmatpush.bf16.msra.mxu0 0
        %466 = vmatpush.bf16.msra.mxu0 0
        %467 = vmatpush.bf16.msra.mxu0 0
        %468 = vmatpush.bf16.msra.mxu0 0
        %469 = vmatpush.bf16.msra.mxu0 0
        %470 = vmatpush.bf16.msra.mxu0 0
        %471 = vmatpush.bf16.msra.mxu0 %v399
        %472 = vmatmul.bf16.gmra.mxu0 %v420
        %v473 = vpop.f32.mrf.mxu0
        %v474 = vadd.f32 %v460, %v473
        %v475 = vpop.f32.mrf.mxu0
        %v476 = vadd.f32 %v462, %v475
        %477 = vdwg.mxu0
        %v478 = vld [vmem:[%s2] sm:$0xff]
        %v479 = vld [vmem:[%s2 + $0x8] sm:$0xff]
        %481 = vset.pattern.permute.xlu0 0
        %482 = vperm.xlu0 %481, %v478
        %v483 = vpop.permute.xlu0 %482
        %486 = vset.pattern.permute.xlu0 0
        %487 = vperm.xlu0 %486, %v479
        %v488 = vpop.permute.xlu0 %487
        %v490 = vmul.f32 %v446, %v483
        %v491 = vmul.f32 %v474, %v483
        %v492 = vmul.f32 %v448, %v488
        %v493 = vmul.f32 %v476, %v488
        %v494 = vld [vmem:[%s3] sm:$0xff]
        %v495 = vld [vmem:[%s3 + $0x8] sm:$0xff]
        %497 = vset.pattern.permute.xlu0 0
        %498 = vperm.xlu0 %497, %v494
        %v499 = vpop.permute.xlu0 %498
        %502 = vset.pattern.permute.xlu0 0
        %503 = vperm.xlu0 %502, %v495
        %v504 = vpop.permute.xlu0 %503
        %v506 = vadd.f32 %v490, %v499
        %v507 = vadd.f32 %v491, %v499
        %v508 = vadd.f32 %v492, %v504
        %v509 = vadd.f32 %v493, %v504
        %v510 = vmax.f32 %v506, 0.0
        %v511 = vmax.f32 %v507, 0.0
        %v512 = vmax.f32 %v508, 0.0
        %v513 = vmax.f32 %v509, 0.0
        %514 = vst [vmem:[%s295] sm:$0xff] %v510
        %515 = vst [vmem:[%s295 + $0x8] sm:$0xff] %v511
        %516 = vst [vmem:[%s295 + $0x10] sm:$0xff] %v512
        %517 = vst [vmem:[%s295 + $0x18] sm:$0xff] %v513
        %s518 = sand.u32 %s112, 1
        %s519 = sand.u32 %s112, 1
        %s520 = smul.addr %s519, 32
        %s521 = scalar_lea.vmem [#allocation3], %s520
        // Predicated region
        $region75: #{_lambda_.15} parent=69 // pred_check
          %p522 = pneg %p122
        $region76: #{_lambda_.15} parent=69 // pred_check_branch
          %524 = sbr.rel (%p522) target = $region78
        $region77: #{_lambda_.15} parent=69 // pred_region
          %s525 = smul.u32 2, %s15
          %s526 = smul.addr %s525, 8
          %s527 = scalar_lea.vmem %s4, %s526
          // Predicated region
          $region79: #{_lambda_.15} parent=77 // pred_check
            _
          $region80: #{_lambda_.15} parent=77 // pred_check_branch
            %529 = sbr.rel (0) target = $region82
          $region81: #{_lambda_.15} parent=77 // pred_region
            // Predicated region
            $region83: #{_lambda_.15} parent=81 // pred_check
              _
            $region84: #{_lambda_.15} parent=81 // pred_check_branch
              %531 = sbr.rel (0) target = $region86
            $region85: #{_lambda_.15} parent=81 // pred_region
              loop: start=0, step=1, limit=1
              $region87: #{_lambda_.15} parent=85 // loop_pre_header
                _
              $region88: #{_lambda_.15} parent=85 // loop_header
                %s533 = sphi 0, %s537
                %p534 = scmp.ge.s32.totalorder %s533, 1
                %s538 = sphi %s521, %s521
                %s539 = sphi %s527, %s527
              $region89: #{_lambda_.15} parent=85 // loop_header_branch
                %536 = sbr.rel (%p534) target = $region93
              $region90: #{_lambda_.15} parent=85 // loop_body
                %v540 = vld [vmem:[%s538] sm:$0xff]
                %541 = vst [vmem:[%s539] sm:$0xff] %v540
                %v542 = vld [vmem:[%s538 + $0x8] sm:$0xff]
                %543 = vst [vmem:[%s539 + $0x8] sm:$0xff] %v542
                %v544 = vld [vmem:[%s538 + $0x10] sm:$0xff]
                %545 = vst [vmem:[%s539 + $0x20] sm:$0xff] %v544
                %v546 = vld [vmem:[%s538 + $0x18] sm:$0xff]
                %547 = vst [vmem:[%s539 + $0x28] sm:$0xff] %v546
              $region91: #{_lambda_.15} parent=85 // loop_footer
                %s537 = sadd.s32 1, %s533
              $region92: #{_lambda_.15} parent=85 // loop_footer_branch
                %532 = sbr.rel target = $region88
              $region93: #{_lambda_.15} parent=85 // loop_exit
                _
            $region86: #{_lambda_.15} parent=81 // pred_fallthru
              _
            // Predicated region
            $region94: #{_lambda_.15} parent=81 // pred_check
              _
            $region95: #{_lambda_.15} parent=81 // pred_check_branch
              %549 = sbr.rel target = $region97
            $region96: #{_lambda_.15} parent=81 // pred_region
              _
            $region97: #{_lambda_.15} parent=81 // pred_fallthru
              _
          $region82: #{_lambda_.15} parent=77 // pred_fallthru
            _
          %550 = vnop
        $region78: #{_lambda_.15} parent=69 // pred_fallthru
          _
      $region70: #{_lambda_.15} parent=5 // pred_fallthru
        _
      %p551 = scmp.le.s32.totalorder 2, %s10
      // Predicated region
      $region98: #{_lambda_.15} parent=5 // pred_check
        %p552 = pneg %p551
      $region99: #{_lambda_.15} parent=5 // pred_check_branch
        %554 = sbr.rel (%p552) target = $region101
      $region100: #{_lambda_.15} parent=5 // pred_region
        %s555 = ssub.s32 %s10, 2
        // Predicated region
        $region102: #{_lambda_.15} parent=100 // pred_check
          %p556 = pneg %p128
        $region103: #{_lambda_.15} parent=100 // pred_check_branch
          %558 = sbr.rel (%p556) target = $region105
        $region104: #{_lambda_.15} parent=100 // pred_region
          %s559 = sand.u32 %s113, 1
          %s560 = sand.u32 %s113, 1
          %s561 = smul.addr %s560, 32
          %s562 = scalar_lea.vmem [#allocation3], %s561
        $region105: #{_lambda_.15} parent=100 // pred_fallthru
          _
      $region101: #{_lambda_.15} parent=5 // pred_fallthru
        _
    $region6: #{_lambda_.15} parent=1 // loop_footer
      %s14 = sadd.s32 1, %s10
    $region7: #{_lambda_.15} parent=1 // loop_footer_branch
      %9 = sbr.rel target = $region3
    $region8: #{_lambda_.15} parent=1 // loop_exit
      _

// kernel: _lambda_.16
$region0: #{_lambda_.16}
  #allocation0 [shape = 'u32[]', space=smem, size = 0x4, offset = 0x4, fixed_abs, tag = 'smem constant byte address 0x4 - core index']
  #allocation1 [shape = 'u32[72,128]{1,0:T(1,128)}', space=vmem, size = 0x9000, scoped, tag = 'internal scratch']
  %s0 = inlined_call_operand.vmem [shape: bf16[16,144], index: 0, kind: input, shape index: {}]
  %s1 = inlined_call_operand.vmem [shape: bf16[144,512], index: 1, kind: input, shape index: {}]
  %s2 = inlined_call_operand.vmem [shape: f32[16,1], index: 2, kind: input, shape index: {}]
  %s3 = inlined_call_operand.vmem [shape: f32[16,1], index: 3, kind: input, shape index: {}]
  %s4 = inlined_call_operand.vmem [shape: f32[16,512], index: 4, kind: input, shape index: {}]
  %s5 = inlined_call_operand.vmem [shape: f32[16,512], index: 5, kind: output, shape index: {}]
  %s6 = sld [smem:[#allocation0]]
  $region133: #{_lambda_.16} parent=0
    _
  %s8 = ssub.s32 1, %s6
  %s9 = scalar_select 0, %s8, %s6
  $region1: #{_lambda_.16} parent=0
    #allocation2 [shape = 'u8[147456]{0}', space=vmem, size = 0x24000, scoped, tag = 'input window, operand 1']
    #allocation3 [shape = 'u8[32768]{0}', space=vmem, size = 0x8000, scoped, tag = 'input window, operand 4']
    #allocation4 [shape = 'u8[32768]{0}', space=vmem, size = 0x8000, scoped, tag = 'output window, operand 0']
    loop: start=0, step=1, limit=4
    $region2: #{_lambda_.16} parent=1 // loop_pre_header
      _
    $region3: #{_lambda_.16} parent=1 // loop_header
      %s11 = sphi 0, %s15
      %p12 = scmp.ge.s32.totalorder %s11, 4
      %s19 = sphi 0, %s19
      %s21 = sphi 0, %s19
      %s22 = sphi 0, %s21
      %s36 = sphi 0, %s22
      %s42 = sphi 0, %s44
      %s45 = sphi 0, %s42
      %s46 = sphi 0, %s45
      %s62 = sphi 0, %s46
      %s66 = sphi 0, %s66
      %s68 = sphi 0, %s66
      %s69 = sphi 0, %s68
      %s83 = sphi 0, %s69
      %s87 = sphi 0, %s87
      %s89 = sphi 0, %s87
      %s90 = sphi 0, %s89
      %s104 = sphi 0, %s90
      %s110 = sphi 0, %s112
      %s113 = sphi 0, %s110
      %s114 = sphi 0, %s113
      %s130 = sphi 0, %s114
      %s136 = sphi 0, %s138
      %s139 = sphi 0, %s136
      %s140 = sphi 0, %s139
      %s156 = sphi 0, %s140
    $region4: #{_lambda_.16} parent=1 // loop_header_branch
      %14 = sbr.rel (%p12) target = $region8
    $region5: #{_lambda_.16} parent=1 // loop_body
      %s16 = ssub.s32 %s11, 1
      %s17 = ssub.s32 %s11, 2
      %s18 = sadd.s32 %s11, 1
      %s20 = sadd.s32 %s19, 1
      %p23 = scmp.eq.s32.totalorder %s11, 1
      %p24 = scmp.ne.s32.totalorder %s19, %s21
      %p25 = scmp.eq.s32.totalorder %s11, 0
      %p26 = por %p24, %p25
      %p27 = scmp.ne.s32.totalorder %s19, %s21
      %p28 = scmp.eq.s32.totalorder %s16, 1
      %p29 = por %p27, %p28
      %p30 = scmp.ne.s32.totalorder %s21, %s22
      %p31 = scmp.eq.s32.totalorder %s16, 0
      %p32 = por %p30, %p31
      %p33 = scmp.ne.s32.totalorder %s21, %s22
      %p34 = scmp.eq.s32.totalorder %s17, 1
      %p35 = por %p33, %p34
      %p37 = scmp.ne.s32.totalorder %s22, %s36
      %p38 = scmp.eq.s32.totalorder %s17, 0
      %p39 = por %p37, %p38
      %s40 = ssub.s32 %s11, %s18
      %p41 = scmp.eq.s32.totalorder %s40, 0
      %s43 = sadd.s32 %s42, 1
      %s44 = scalar_select %p41, %s42, %s43
      %p47 = pneg %p41
      %p48 = scmp.eq.s32.totalorder %s11, 1
      %p49 = por %p47, %p48
      %p50 = scmp.ne.s32.totalorder %s42, %s45
      %p51 = scmp.eq.s32.totalorder %s11, 0
      %p52 = por %p50, %p51
      %p53 = scmp.ne.s32.totalorder %s42, %s45
      %p54 = scmp.eq.s32.totalorder %s16, 1
      %p55 = por %p53, %p54
      %p56 = scmp.ne.s32.totalorder %s45, %s46
      %p57 = scmp.eq.s32.totalorder %s16, 0
      %p58 = por %p56, %p57
      %p59 = scmp.ne.s32.totalorder %s45, %s46
      %p60 = scmp.eq.s32.totalorder %s17, 1
      %p61 = por %p59, %p60
      %p63 = scmp.ne.s32.totalorder %s46, %s62
      %p64 = scmp.eq.s32.totalorder %s17, 0
      %p65 = por %p63, %p64
      %s67 = sadd.s32 %s66, 1
      %p70 = scmp.eq.s32.totalorder %s11, 1
      %p71 = scmp.ne.s32.totalorder %s66, %s68
      %p72 = scmp.eq.s32.totalorder %s11, 0
      %p73 = por %p71, %p72
      %p74 = scmp.ne.s32.totalorder %s66, %s68
      %p75 = scmp.eq.s32.totalorder %s16, 1
      %p76 = por %p74, %p75
      %p77 = scmp.ne.s32.totalorder %s68, %s69
      %p78 = scmp.eq.s32.totalorder %s16, 0
      %p79 = por %p77, %p78
      %p80 = scmp.ne.s32.totalorder %s68, %s69
      %p81 = scmp.eq.s32.totalorder %s17, 1
      %p82 = por %p80, %p81
      %p84 = scmp.ne.s32.totalorder %s69, %s83
      %p85 = scmp.eq.s32.totalorder %s17, 0
      %p86 = por %p84, %p85
      %s88 = sadd.s32 %s87, 1
      %p91 = scmp.eq.s32.totalorder %s11, 1
      %p92 = scmp.ne.s32.totalorder %s87, %s89
      %p93 = scmp.eq.s32.totalorder %s11, 0
      %p94 = por %p92, %p93
      %p95 = scmp.ne.s32.totalorder %s87, %s89
      %p96 = scmp.eq.s32.totalorder %s16, 1
      %p97 = por %p95, %p96
      %p98 = scmp.ne.s32.totalorder %s89, %s90
      %p99 = scmp.eq.s32.totalorder %s16, 0
      %p100 = por %p98, %p99
      %p101 = scmp.ne.s32.totalorder %s89, %s90
      %p102 = scmp.eq.s32.totalorder %s17, 1
      %p103 = por %p101, %p102
      %p105 = scmp.ne.s32.totalorder %s90, %s104
      %p106 = scmp.eq.s32.totalorder %s17, 0
      %p107 = por %p105, %p106
      %s108 = ssub.s32 %s11, %s18
      %p109 = scmp.eq.s32.totalorder %s108, 0
      %s111 = sadd.s32 %s110, 1
      %s112 = scalar_select %p109, %s110, %s111
      %p115 = pneg %p109
      %p116 = scmp.eq.s32.totalorder %s11, 1
      %p117 = por %p115, %p116
      %p118 = scmp.ne.s32.totalorder %s110, %s113
      %p119 = scmp.eq.s32.totalorder %s11, 0
      %p120 = por %p118, %p119
      %p121 = scmp.ne.s32.totalorder %s110, %s113
      %p122 = scmp.eq.s32.totalorder %s16, 1
      %p123 = por %p121, %p122
      %p124 = scmp.ne.s32.totalorder %s113, %s114
      %p125 = scmp.eq.s32.totalorder %s16, 0
      %p126 = por %p124, %p125
      %p127 = scmp.ne.s32.totalorder %s113, %s114
      %p128 = scmp.eq.s32.totalorder %s17, 1
      %p129 = por %p127, %p128
      %p131 = scmp.ne.s32.totalorder %s114, %s130
      %p132 = scmp.eq.s32.totalorder %s17, 0
      %p133 = por %p131, %p132
      %s134 = ssub.s32 %s11, %s18
      %p135 = scmp.eq.s32.totalorder %s134, 0
      %s137 = sadd.s32 %s136, 1
      %s138 = scalar_select %p135, %s136, %s137
      %p141 = pneg %p135
      %p142 = scmp.eq.s32.totalorder %s11, 1
      %p143 = por %p141, %p142
      %p144 = scmp.ne.s32.totalorder %s136, %s139
      %p145 = scmp.eq.s32.totalorder %s11, 0
      %p146 = por %p144, %p145
      %p147 = scmp.ne.s32.totalorder %s136, %s139
      %p148 = scmp.eq.s32.totalorder %s16, 1
      %p149 = por %p147, %p148
      %p150 = scmp.ne.s32.totalorder %s139, %s140
      %p151 = scmp.eq.s32.totalorder %s16, 0
      %p152 = por %p150, %p151
      %p153 = scmp.ne.s32.totalorder %s139, %s140
      %p154 = scmp.eq.s32.totalorder %s17, 1
      %p155 = por %p153, %p154
      %p157 = scmp.ne.s32.totalorder %s140, %s156
      %p158 = scmp.eq.s32.totalorder %s17, 0
      %p159 = por %p157, %p158
      %p160 = scmp.le.s32.totalorder 1, %s11
      %p161 = scmp.lt.s32.totalorder %s11, 3
      %p162 = pnand %p160, %p161
      %p163 = pneg %p162
      // Predicated region
      $region9: #{_lambda_.16} parent=5 // pred_check
        _
      $region10: #{_lambda_.16} parent=5 // pred_check_branch
        %165 = sbr.rel (%p162) target = $region12
      $region11: #{_lambda_.16} parent=5 // pred_region
        %s166 = ssub.s32 %s11, 1
        // Predicated region
        $region13: #{_lambda_.16} parent=11 // pred_check
          %p167 = pneg %p32
        $region14: #{_lambda_.16} parent=11 // pred_check_branch
          %169 = sbr.rel (%p167) target = $region16
        $region15: #{_lambda_.16} parent=11 // pred_region
          _
        $region16: #{_lambda_.16} parent=11 // pred_fallthru
          _
        // Predicated region
        $region17: #{_lambda_.16} parent=11 // pred_check
          %p170 = pneg %p79
        $region18: #{_lambda_.16} parent=11 // pred_check_branch
          %172 = sbr.rel (%p170) target = $region20
        $region19: #{_lambda_.16} parent=11 // pred_region
          _
        $region20: #{_lambda_.16} parent=11 // pred_fallthru
          _
        // Predicated region
        $region21: #{_lambda_.16} parent=11 // pred_check
          %p173 = pneg %p100
        $region22: #{_lambda_.16} parent=11 // pred_check_branch
          %175 = sbr.rel (%p173) target = $region24
        $region23: #{_lambda_.16} parent=11 // pred_region
          _
        $region24: #{_lambda_.16} parent=11 // pred_fallthru
          _
      $region12: #{_lambda_.16} parent=5 // pred_fallthru
        _
      %p176 = scmp.lt.s32.totalorder %s11, 2
      // Predicated region
      $region25: #{_lambda_.16} parent=5 // pred_check
        %p177 = pneg %p176
      $region26: #{_lambda_.16} parent=5 // pred_check_branch
        %179 = sbr.rel (%p177) target = $region28
      $region27: #{_lambda_.16} parent=5 // pred_region
        // Predicated region
        $region29: #{_lambda_.16} parent=27 // pred_check
          %p180 = pneg %p52
        $region30: #{_lambda_.16} parent=27 // pred_check_branch
          %182 = sbr.rel (%p180) target = $region32
        $region31: #{_lambda_.16} parent=27 // pred_region
          %s183 = sand.u32 %s42, 1
          %s184 = sand.u32 %s42, 1
          %s185 = smul.addr %s184, 144
          %s186 = scalar_lea.vmem [#allocation2], %s185
          %s187 = smul.u32 2, %s11
          %s188 = smul.addr %s187, 4
          %s189 = scalar_lea.vmem %s1, %s188
          // Predicated region
          $region33: #{_lambda_.16} parent=31 // pred_check
            _
          $region34: #{_lambda_.16} parent=31 // pred_check_branch
            %191 = sbr.rel (0) target = $region36
          $region35: #{_lambda_.16} parent=31 // pred_region
            // Predicated region
            $region37: #{_lambda_.16} parent=35 // pred_check
              _
            $region38: #{_lambda_.16} parent=35 // pred_check_branch
              %193 = sbr.rel (0) target = $region40
            $region39: #{_lambda_.16} parent=35 // pred_region
              // Predicated region
              $region52: #{_lambda_.16} parent=39 // pred_check
                _
              $region53: #{_lambda_.16} parent=39 // pred_check_branch
                %243 = sbr.rel (0) target = $region55
              $region54: #{_lambda_.16} parent=39 // pred_region
                loop: start=0, step=1, limit=1
                $region56: #{_lambda_.16} parent=54 // loop_pre_header
                  _
                $region57: #{_lambda_.16} parent=54 // loop_header
                  %s245 = sphi 0, %s249
                  %p246 = scmp.ge.s32.totalorder %s245, 1
                  %s250 = sphi %s189, %s189
                  %s251 = sphi %s186, %s186
                $region58: #{_lambda_.16} parent=54 // loop_header_branch
                  %248 = sbr.rel (%p246) target = $region62
                $region59: #{_lambda_.16} parent=54 // loop_body
                  %v252 = vld [vmem:[%s250] sm:$0xff]
                  %253 = vst [vmem:[%s251] sm:$0xff] %v252
                  %v254 = vld [vmem:[%s250 + $0x10] sm:$0xff]
                  %255 = vst [vmem:[%s251 + $0x8] sm:$0xff] %v254
                  %v256 = vld [vmem:[%s250 + $0x20] sm:$0xff]
                  %257 = vst [vmem:[%s251 + $0x10] sm:$0xff] %v256
                  %v258 = vld [vmem:[%s250 + $0x30] sm:$0xff]
                  %259 = vst [vmem:[%s251 + $0x18] sm:$0xff] %v258
                  %v260 = vld [vmem:[%s250 + $0x40] sm:$0xff]
                  %261 = vst [vmem:[%s251 + $0x20] sm:$0xff] %v260
                  %v262 = vld [vmem:[%s250 + $0x50] sm:$0xff]
                  %263 = vst [vmem:[%s251 + $0x28] sm:$0xff] %v262
                  %v264 = vld [vmem:[%s250 + $0x60] sm:$0xff]
                  %265 = vst [vmem:[%s251 + $0x30] sm:$0xff] %v264
                  %v266 = vld [vmem:[%s250 + $0x70] sm:$0xff]
                  %267 = vst [vmem:[%s251 + $0x38] sm:$0xff] %v266
                  %v268 = vld [vmem:[%s250 + $0x80] sm:$0xff]
                  %269 = vst [vmem:[%s251 + $0x40] sm:$0xff] %v268
                  %v270 = vld [vmem:[%s250 + $0x90] sm:$0xff]
                  %271 = vst [vmem:[%s251 + $0x48] sm:$0xff] %v270
                  %v272 = vld [vmem:[%s250 + $0xa0] sm:$0xff]
                  %273 = vst [vmem:[%s251 + $0x50] sm:$0xff] %v272
                  %v274 = vld [vmem:[%s250 + $0xb0] sm:$0xff]
                  %275 = vst [vmem:[%s251 + $0x58] sm:$0xff] %v274
                  %v276 = vld [vmem:[%s250 + $0xc0] sm:$0xff]
                  %277 = vst [vmem:[%s251 + $0x60] sm:$0xff] %v276
                  %v278 = vld [vmem:[%s250 + $0xd0] sm:$0xff]
                  %279 = vst [vmem:[%s251 + $0x68] sm:$0xff] %v278
                  %v280 = vld [vmem:[%s250 + $0xe0] sm:$0xff]
                  %281 = vst [vmem:[%s251 + $0x70] sm:$0xff] %v280
                  %v282 = vld [vmem:[%s250 + $0xf0] sm:$0xff]
                  %283 = vst [vmem:[%s251 + $0x78] sm:$0xff] %v282
                  %v284 = vld [vmem:[%s250 + $0x100] sm:$0xff]
                  %285 = vst [vmem:[%s251 + $0x80] sm:$0xff] %v284
                  %v286 = vld [vmem:[%s250 + $0x110] sm:$0xff]
                  %287 = vst [vmem:[%s251 + $0x88] sm:$0xff] %v286
                $region60: #{_lambda_.16} parent=54 // loop_footer
                  %s249 = sadd.s32 1, %s245
                $region61: #{_lambda_.16} parent=54 // loop_footer_branch
                  %244 = sbr.rel target = $region57
                $region62: #{_lambda_.16} parent=54 // loop_exit
                  _
              $region55: #{_lambda_.16} parent=39 // pred_fallthru
                _
              // Predicated region
              $region63: #{_lambda_.16} parent=39 // pred_check
                _
              $region64: #{_lambda_.16} parent=39 // pred_check_branch
                %289 = sbr.rel target = $region66
              $region65: #{_lambda_.16} parent=39 // pred_region
                _
              $region66: #{_lambda_.16} parent=39 // pred_fallthru
                _
            $region40: #{_lambda_.16} parent=35 // pred_fallthru
              _
            // Predicated region
            $region41: #{_lambda_.16} parent=35 // pred_check
              _
            $region42: #{_lambda_.16} parent=35 // pred_check_branch
              %195 = sbr.rel target = $region44
            $region43: #{_lambda_.16} parent=35 // pred_region
              %s197 = ssub.s32 256, 1
              loop: start=0, step=1, limit=1
              $region45: #{_lambda_.16} parent=43 // loop_pre_header
                _
              $region46: #{_lambda_.16} parent=43 // loop_header
                %s199 = sphi 0, %s203
                %p200 = scmp.ge.s32.totalorder %s199, 1
                %s204 = sphi %s189, %s189
                %s205 = sphi %s186, %s186
              $region47: #{_lambda_.16} parent=43 // loop_header_branch
                %202 = sbr.rel (%p200) target = $region51
              $region48: #{_lambda_.16} parent=43 // loop_body
                %v206 = vld [vmem:[%s204] sm:%s197]
                %207 = vst [vmem:[%s205] sm:%s197] %v206
                %v208 = vld [vmem:[%s204 + $0x10] sm:%s197]
                %209 = vst [vmem:[%s205 + $0x8] sm:%s197] %v208
                %v210 = vld [vmem:[%s204 + $0x20] sm:%s197]
                %211 = vst [vmem:[%s205 + $0x10] sm:%s197] %v210
                %v212 = vld [vmem:[%s204 + $0x30] sm:%s197]
                %213 = vst [vmem:[%s205 + $0x18] sm:%s197] %v212
                %v214 = vld [vmem:[%s204 + $0x40] sm:%s197]
                %215 = vst [vmem:[%s205 + $0x20] sm:%s197] %v214
                %v216 = vld [vmem:[%s204 + $0x50] sm:%s197]
                %217 = vst [vmem:[%s205 + $0x28] sm:%s197] %v216
                %v218 = vld [vmem:[%s204 + $0x60] sm:%s197]
                %219 = vst [vmem:[%s205 + $0x30] sm:%s197] %v218
                %v220 = vld [vmem:[%s204 + $0x70] sm:%s197]
                %221 = vst [vmem:[%s205 + $0x38] sm:%s197] %v220
                %v222 = vld [vmem:[%s204 + $0x80] sm:%s197]
                %223 = vst [vmem:[%s205 + $0x40] sm:%s197] %v222
                %v224 = vld [vmem:[%s204 + $0x90] sm:%s197]
                %225 = vst [vmem:[%s205 + $0x48] sm:%s197] %v224
                %v226 = vld [vmem:[%s204 + $0xa0] sm:%s197]
                %227 = vst [vmem:[%s205 + $0x50] sm:%s197] %v226
                %v228 = vld [vmem:[%s204 + $0xb0] sm:%s197]
                %229 = vst [vmem:[%s205 + $0x58] sm:%s197] %v228
                %v230 = vld [vmem:[%s204 + $0xc0] sm:%s197]
                %231 = vst [vmem:[%s205 + $0x60] sm:%s197] %v230
                %v232 = vld [vmem:[%s204 + $0xd0] sm:%s197]
                %233 = vst [vmem:[%s205 + $0x68] sm:%s197] %v232
                %v234 = vld [vmem:[%s204 + $0xe0] sm:%s197]
                %235 = vst [vmem:[%s205 + $0x70] sm:%s197] %v234
                %v236 = vld [vmem:[%s204 + $0xf0] sm:%s197]
                %237 = vst [vmem:[%s205 + $0x78] sm:%s197] %v236
                %v238 = vld [vmem:[%s204 + $0x100] sm:%s197]
                %239 = vst [vmem:[%s205 + $0x80] sm:%s197] %v238
                %v240 = vld [vmem:[%s204 + $0x110] sm:%s197]
                %241 = vst [vmem:[%s205 + $0x88] sm:%s197] %v240
              $region49: #{_lambda_.16} parent=43 // loop_footer
                %s203 = sadd.s32 1, %s199
              $region50: #{_lambda_.16} parent=43 // loop_footer_branch
                %198 = sbr.rel target = $region46
              $region51: #{_lambda_.16} parent=43 // loop_exit
                _
            $region44: #{_lambda_.16} parent=35 // pred_fallthru
              _
          $region36: #{_lambda_.16} parent=31 // pred_fallthru
            _
          %290 = vnop
        $region32: #{_lambda_.16} parent=27 // pred_fallthru
          _
        // Predicated region
        $region67: #{_lambda_.16} parent=27 // pred_check
          %p291 = pneg %p120
        $region68: #{_lambda_.16} parent=27 // pred_check_branch
          %293 = sbr.rel (%p291) target = $region70
        $region69: #{_lambda_.16} parent=27 // pred_region
          %s294 = sand.u32 %s110, 1
          %s295 = sand.u32 %s110, 1
          %s296 = smul.addr %s295, 32
          %s297 = scalar_lea.vmem [#allocation3], %s296
          %s298 = smul.u32 2, %s11
          %s299 = smul.addr %s298, 8
          %s300 = scalar_lea.vmem %s4, %s299
          // Predicated region
          $region71: #{_lambda_.16} parent=69 // pred_check
            _
          $region72: #{_lambda_.16} parent=69 // pred_check_branch
            %302 = sbr.rel (0) target = $region74
          $region73: #{_lambda_.16} parent=69 // pred_region
            // Predicated region
            $region75: #{_lambda_.16} parent=73 // pred_check
              _
            $region76: #{_lambda_.16} parent=73 // pred_check_branch
              %304 = sbr.rel (0) target = $region78
            $region77: #{_lambda_.16} parent=73 // pred_region
              loop: start=0, step=1, limit=1
              $region79: #{_lambda_.16} parent=77 // loop_pre_header
                _
              $region80: #{_lambda_.16} parent=77 // loop_header
                %s306 = sphi 0, %s310
                %p307 = scmp.ge.s32.totalorder %s306, 1
                %s311 = sphi %s300, %s300
                %s312 = sphi %s297, %s297
              $region81: #{_lambda_.16} parent=77 // loop_header_branch
                %309 = sbr.rel (%p307) target = $region85
              $region82: #{_lambda_.16} parent=77 // loop_body
                %v313 = vld [vmem:[%s311] sm:$0xff]
                %314 = vst [vmem:[%s312] sm:$0xff] %v313
                %v315 = vld [vmem:[%s311 + $0x8] sm:$0xff]
                %316 = vst [vmem:[%s312 + $0x8] sm:$0xff] %v315
                %v317 = vld [vmem:[%s311 + $0x20] sm:$0xff]
                %318 = vst [vmem:[%s312 + $0x10] sm:$0xff] %v317
                %v319 = vld [vmem:[%s311 + $0x28] sm:$0xff]
                %320 = vst [vmem:[%s312 + $0x18] sm:$0xff] %v319
              $region83: #{_lambda_.16} parent=77 // loop_footer
                %s310 = sadd.s32 1, %s306
              $region84: #{_lambda_.16} parent=77 // loop_footer_branch
                %305 = sbr.rel target = $region80
              $region85: #{_lambda_.16} parent=77 // loop_exit
                _
            $region78: #{_lambda_.16} parent=73 // pred_fallthru
              _
            // Predicated region
            $region86: #{_lambda_.16} parent=73 // pred_check
              _
            $region87: #{_lambda_.16} parent=73 // pred_check_branch
              %322 = sbr.rel target = $region89
            $region88: #{_lambda_.16} parent=73 // pred_region
              _
            $region89: #{_lambda_.16} parent=73 // pred_fallthru
              _
          $region74: #{_lambda_.16} parent=69 // pred_fallthru
            _
          %323 = vnop
        $region70: #{_lambda_.16} parent=27 // pred_fallthru
          _
      $region28: #{_lambda_.16} parent=5 // pred_fallthru
        _
      %p324 = scmp.le.s32.totalorder 1, %s11
      %p325 = scmp.lt.s32.totalorder %s11, 3
      %p326 = pnand %p324, %p325
      %p327 = pneg %p326
      // Predicated region
      $region90: #{_lambda_.16} parent=5 // pred_check
        _
      $region91: #{_lambda_.16} parent=5 // pred_check_branch
        %329 = sbr.rel (%p326) target = $region93
      $region92: #{_lambda_.16} parent=5 // pred_region
        %s330 = ssub.s32 %s11, 1
        %s331 = sand.u32 %s45, 1
        %s332 = sand.u32 %s45, 1
        %s333 = smul.addr %s332, 144
        %s334 = scalar_lea.vmem [#allocation2], %s333
        // Predicated region
        $region94: #{_lambda_.16} parent=92 // pred_check
          %p335 = pneg %p58
        $region95: #{_lambda_.16} parent=92 // pred_check_branch
          %337 = sbr.rel (%p335) target = $region97
        $region96: #{_lambda_.16} parent=92 // pred_region
          _
        $region97: #{_lambda_.16} parent=92 // pred_fallthru
          _
        %s338 = sand.u32 %s113, 1
        %s339 = sand.u32 %s113, 1
        %s340 = smul.addr %s339, 32
        %s341 = scalar_lea.vmem [#allocation3], %s340
        // Predicated region
        $region98: #{_lambda_.16} parent=92 // pred_check
          %p342 = pneg %p126
        $region99: #{_lambda_.16} parent=92 // pred_check_branch
          %344 = sbr.rel (%p342) target = $region101
        $region100: #{_lambda_.16} parent=92 // pred_region
          _
        $region101: #{_lambda_.16} parent=92 // pred_fallthru
          _
        %p345 = pneg %p32
        %p346 = pneg %p29
        %s347 = sand.u32 %s45, 1
        %s348 = sand.u32 %s45, 1
        %s349 = smul.addr %s348, 144
        %s350 = scalar_lea.vmem [#allocation2], %s349
        %p351 = pneg %p58
        %p352 = pneg %p55
        %p353 = pneg %p79
        %p354 = pneg %p76
        %p355 = pneg %p100
        %p356 = pneg %p97
        %s357 = sand.u32 %s113, 1
        %s358 = sand.u32 %s113, 1
        %s359 = smul.addr %s358, 32
        %s360 = scalar_lea.vmem [#allocation3], %s359
        %p361 = pneg %p126
        %p362 = pneg %p123
        %p363 = pneg %p152
        %p364 = pneg %p149
        %s365 = sand.u32 %s139, 1
        %s366 = sand.u32 %s139, 1
        %s367 = smul.addr %s366, 32
        %s368 = scalar_lea.vmem [#allocation4], %s367
        %s369 = smul.u32 2, %s16
        %s370 = smul.u32 2, %s16
        %s371 = smul.u32 2, %s16
        %v373 = vld [vmem:[%s0] sm:$0xff]
        %v374 = vld [vmem:[%s0 + $0x8] sm:$0xff]
        %v375 = vld [vmem:[%s334] sm:$0xff]
        %v376 = vld [vmem:[%s334 + $0x8] sm:$0xff]
        %v377 = vld [vmem:[%s334 + $0x10] sm:$0xff]
        %v378 = vld [vmem:[%s334 + $0x18] sm:$0xff]
        %v379 = vld [vmem:[%s334 + $0x20] sm:$0xff]
        %v380 = vld [vmem:[%s334 + $0x28] sm:$0xff]
        %v381 = vld [vmem:[%s334 + $0x30] sm:$0xff]
        %v382 = vld [vmem:[%s334 + $0x38] sm:$0xff]
        %v383 = vld [vmem:[%s334 + $0x40] sm:$0xff]
        %v384 = vld [vmem:[%s334 + $0x48] sm:$0xff]
        %v385 = vld [vmem:[%s334 + $0x50] sm:$0xff]
        %v386 = vld [vmem:[%s334 + $0x58] sm:$0xff]
        %v387 = vld [vmem:[%s334 + $0x60] sm:$0xff]
        %v388 = vld [vmem:[%s334 + $0x68] sm:$0xff]
        %v389 = vld [vmem:[%s334 + $0x70] sm:$0xff]
        %v390 = vld [vmem:[%s334 + $0x78] sm:$0xff]
        %v391 = vld [vmem:[%s334 + $0x80] sm:$0xff]
        %v392 = vld [vmem:[%s334 + $0x88] sm:$0xff]
        %v395 = vunpack.c.l.b16 %v373
        %v396 = vunpack.c.h.b16 %v373
        %v397 = vunpack.c.l.b16 %v374
        %v398 = vunpack.c.h.b16 %v374
        %v399 = vpack.c.b16 %v397, %v395
        %v400 = vpack.c.b16 %v398, %v396
        %v420 = vunpack.c.l.b16 %v375
        %v421 = vunpack.c.h.b16 %v375
        %v422 = vunpack.c.l.b16 %v376
        %v423 = vunpack.c.h.b16 %v376
        %v424 = vunpack.c.l.b16 %v377
        %v425 = vunpack.c.h.b16 %v377
        %v426 = vunpack.c.l.b16 %v378
        %v427 = vunpack.c.h.b16 %v378
        %v428 = vunpack.c.l.b16 %v379
        %v429 = vunpack.c.h.b16 %v379
        %v430 = vunpack.c.l.b16 %v380
        %v431 = vunpack.c.h.b16 %v380
        %v432 = vunpack.c.l.b16 %v381
        %v433 = vunpack.c.h.b16 %v381
        %v434 = vunpack.c.l.b16 %v382
        %v435 = vunpack.c.h.b16 %v382
        %v436 = vunpack.c.l.b16 %v383
        %v437 = vunpack.c.h.b16 %v383
        %v438 = vunpack.c.l.b16 %v384
        %v439 = vunpack.c.h.b16 %v384
        %v440 = vunpack.c.l.b16 %v385
        %v441 = vunpack.c.h.b16 %v385
        %v442 = vunpack.c.l.b16 %v386
        %v443 = vunpack.c.h.b16 %v386
        %v444 = vunpack.c.l.b16 %v387
        %v445 = vunpack.c.h.b16 %v387
        %v446 = vunpack.c.l.b16 %v388
        %v447 = vunpack.c.h.b16 %v388
        %v448 = vunpack.c.l.b16 %v389
        %v449 = vunpack.c.h.b16 %v389
        %v450 = vunpack.c.l.b16 %v390
        %v451 = vunpack.c.h.b16 %v390
        %v452 = vunpack.c.l.b16 %v391
        %v453 = vunpack.c.h.b16 %v391
        %v454 = vunpack.c.l.b16 %v392
        %v455 = vunpack.c.h.b16 %v392
        %v456 = vpack.c.b16 %v422, %v420
        %v457 = vpack.c.b16 %v423, %v421
        %v458 = vpack.c.b16 %v426, %v424
        %v459 = vpack.c.b16 %v427, %v425
        %v460 = vpack.c.b16 %v430, %v428
        %v461 = vpack.c.b16 %v431, %v429
        %v462 = vpack.c.b16 %v434, %v432
        %v463 = vpack.c.b16 %v435, %v433
        %v464 = vpack.c.b16 %v438, %v436
        %v465 = vpack.c.b16 %v439, %v437
        %v466 = vpack.c.b16 %v442, %v440
        %v467 = vpack.c.b16 %v443, %v441
        %v468 = vpack.c.b16 %v446, %v444
        %v469 = vpack.c.b16 %v447, %v445
        %v470 = vpack.c.b16 %v450, %v448
        %v471 = vpack.c.b16 %v451, %v449
        %v472 = vpack.c.b16 %v454, %v452
        %v473 = vpack.c.b16 %v455, %v453
        %vm492 = vcmask 130048
        %v494 = vsel %vm492, %v400, 0
        %496 = vmatpush.bf16.msra.mxu0 %v470
        %497 = vmatpush.bf16.msra.mxu0 %v468
        %498 = vmatpush.bf16.msra.mxu0 %v466
        %499 = vmatpush.bf16.msra.mxu0 %v464
        %500 = vmatpush.bf16.msra.mxu0 %v462
        %501 = vmatpush.bf16.msra.mxu0 %v460
        %502 = vmatpush.bf16.msra.mxu0 %v458
        %503 = vmatpush.bf16.msra.mxu0 %v456
        %504 = vmatmul.bf16.gmra.mxu0 %v399
        %v505 = vpop.f32.mrf.mxu0
        %v506 = vadd.f32 0.0, %v505
        %v507 = vpop.f32.mrf.mxu0
        %v508 = vadd.f32 0.0, %v507
        %509 = vdwg.mxu0
        %510 = vmatpush.bf16.msra.mxu0 0
        %511 = vmatpush.bf16.msra.mxu0 0
        %512 = vmatpush.bf16.msra.mxu0 0
        %513 = vmatpush.bf16.msra.mxu0 0
        %514 = vmatpush.bf16.msra.mxu0 0
        %515 = vmatpush.bf16.msra.mxu0 0
        %516 = vmatpush.bf16.msra.mxu0 0
        %517 = vmatpush.bf16.msra.mxu0 %v472
        %518 = vmatmul.bf16.gmra.mxu0 %v494
        %v519 = vpop.f32.mrf.mxu0
        %v520 = vadd.f32 %v506, %v519
        %v521 = vpop.f32.mrf.mxu0
        %v522 = vadd.f32 %v508, %v521
        %523 = vdwg.mxu0
        %524 = vmatpush.bf16.msra.mxu0 %v471
        %525 = vmatpush.bf16.msra.mxu0 %v469
        %526 = vmatpush.bf16.msra.mxu0 %v467
        %527 = vmatpush.bf16.msra.mxu0 %v465
        %528 = vmatpush.bf16.msra.mxu0 %v463
        %529 = vmatpush.bf16.msra.mxu0 %v461
        %530 = vmatpush.bf16.msra.mxu0 %v459
        %531 = vmatpush.bf16.msra.mxu0 %v457
        %532 = vmatmul.bf16.gmra.mxu0 %v399
        %v533 = vpop.f32.mrf.mxu0
        %v534 = vadd.f32 0.0, %v533
        %v535 = vpop.f32.mrf.mxu0
        %v536 = vadd.f32 0.0, %v535
        %537 = vdwg.mxu0
        %538 = vmatpush.bf16.msra.mxu0 0
        %539 = vmatpush.bf16.msra.mxu0 0
        %540 = vmatpush.bf16.msra.mxu0 0
        %541 = vmatpush.bf16.msra.mxu0 0
        %542 = vmatpush.bf16.msra.mxu0 0
        %543 = vmatpush.bf16.msra.mxu0 0
        %544 = vmatpush.bf16.msra.mxu0 0
        %545 = vmatpush.bf16.msra.mxu0 %v473
        %546 = vmatmul.bf16.gmra.mxu0 %v494
        %v547 = vpop.f32.mrf.mxu0
        %v548 = vadd.f32 %v534, %v547
        %v549 = vpop.f32.mrf.mxu0
        %v550 = vadd.f32 %v536, %v549
        %551 = vdwg.mxu0
        %v552 = vld [vmem:[%s2] sm:$0xff]
        %v553 = vld [vmem:[%s2 + $0x8] sm:$0xff]
        %555 = vset.pattern.permute.xlu0 0
        %556 = vperm.xlu0 %555, %v552
        %v557 = vpop.permute.xlu0 %556
        %560 = vset.pattern.permute.xlu0 0
        %561 = vperm.xlu0 %560, %v553
        %v562 = vpop.permute.xlu0 %561
        %v564 = vmul.f32 %v520, %v557
        %v565 = vmul.f32 %v548, %v557
        %v566 = vmul.f32 %v522, %v562
        %v567 = vmul.f32 %v550, %v562
        %v568 = vld [vmem:[%s3] sm:$0xff]
        %v569 = vld [vmem:[%s3 + $0x8] sm:$0xff]
        %571 = vset.pattern.permute.xlu0 0
        %572 = vperm.xlu0 %571, %v568
        %v573 = vpop.permute.xlu0 %572
        %576 = vset.pattern.permute.xlu0 0
        %577 = vperm.xlu0 %576, %v569
        %v578 = vpop.permute.xlu0 %577
        %v580 = vadd.f32 %v564, %v573
        %v581 = vadd.f32 %v565, %v573
        %v582 = vadd.f32 %v566, %v578
        %v583 = vadd.f32 %v567, %v578
        %v584 = vld [vmem:[%s341] sm:$0xff]
        %v585 = vld [vmem:[%s341 + $0x8] sm:$0xff]
        %v586 = vld [vmem:[%s341 + $0x10] sm:$0xff]
        %v587 = vld [vmem:[%s341 + $0x18] sm:$0xff]
        %v588 = vadd.f32 %v580, %v584
        %v589 = vadd.f32 %v581, %v585
        %v590 = vadd.f32 %v582, %v586
        %v591 = vadd.f32 %v583, %v587
        %v592 = vmax.f32 %v588, 0.0
        %v593 = vmax.f32 %v589, 0.0
        %v594 = vmax.f32 %v590, 0.0
        %v595 = vmax.f32 %v591, 0.0
        %596 = vst [vmem:[%s368] sm:$0xff] %v592
        %597 = vst [vmem:[%s368 + $0x8] sm:$0xff] %v593
        %598 = vst [vmem:[%s368 + $0x10] sm:$0xff] %v594
        %599 = vst [vmem:[%s368 + $0x18] sm:$0xff] %v595
        %s600 = sand.u32 %s139, 1
        %s601 = sand.u32 %s139, 1
        %s602 = smul.addr %s601, 32
        %s603 = scalar_lea.vmem [#allocation4], %s602
        // Predicated region
        $region102: #{_lambda_.16} parent=92 // pred_check
          %p604 = pneg %p149
        $region103: #{_lambda_.16} parent=92 // pred_check_branch
          %606 = sbr.rel (%p604) target = $region105
        $region104: #{_lambda_.16} parent=92 // pred_region
          %s607 = smul.u32 2, %s16
          %s608 = smul.addr %s607, 8
          %s609 = scalar_lea.vmem %s5, %s608
          // Predicated region
          $region106: #{_lambda_.16} parent=104 // pred_check
            _
          $region107: #{_lambda_.16} parent=104 // pred_check_branch
            %611 = sbr.rel (0) target = $region109
          $region108: #{_lambda_.16} parent=104 // pred_region
            // Predicated region
            $region110: #{_lambda_.16} parent=108 // pred_check
              _
            $region111: #{_lambda_.16} parent=108 // pred_check_branch
              %613 = sbr.rel (0) target = $region113
            $region112: #{_lambda_.16} parent=108 // pred_region
              loop: start=0, step=1, limit=1
              $region114: #{_lambda_.16} parent=112 // loop_pre_header
                _
              $region115: #{_lambda_.16} parent=112 // loop_header
                %s615 = sphi 0, %s619
                %p616 = scmp.ge.s32.totalorder %s615, 1
                %s620 = sphi %s603, %s603
                %s621 = sphi %s609, %s609
              $region116: #{_lambda_.16} parent=112 // loop_header_branch
                %618 = sbr.rel (%p616) target = $region120
              $region117: #{_lambda_.16} parent=112 // loop_body
                %v622 = vld [vmem:[%s620] sm:$0xff]
                %623 = vst [vmem:[%s621] sm:$0xff] %v622
                %v624 = vld [vmem:[%s620 + $0x8] sm:$0xff]
                %625 = vst [vmem:[%s621 + $0x8] sm:$0xff] %v624
                %v626 = vld [vmem:[%s620 + $0x10] sm:$0xff]
                %627 = vst [vmem:[%s621 + $0x20] sm:$0xff] %v626
                %v628 = vld [vmem:[%s620 + $0x18] sm:$0xff]
                %629 = vst [vmem:[%s621 + $0x28] sm:$0xff] %v628
              $region118: #{_lambda_.16} parent=112 // loop_footer
                %s619 = sadd.s32 1, %s615
              $region119: #{_lambda_.16} parent=112 // loop_footer_branch
                %614 = sbr.rel target = $region115
              $region120: #{_lambda_.16} parent=112 // loop_exit
                _
            $region113: #{_lambda_.16} parent=108 // pred_fallthru
              _
            // Predicated region
            $region121: #{_lambda_.16} parent=108 // pred_check
              _
            $region122: #{_lambda_.16} parent=108 // pred_check_branch
              %631 = sbr.rel target = $region124
            $region123: #{_lambda_.16} parent=108 // pred_region
              _
            $region124: #{_lambda_.16} parent=108 // pred_fallthru
              _
          $region109: #{_lambda_.16} parent=104 // pred_fallthru
            _
          %632 = vnop
        $region105: #{_lambda_.16} parent=92 // pred_fallthru
          _
      $region93: #{_lambda_.16} parent=5 // pred_fallthru
        _
      %p633 = scmp.le.s32.totalorder 2, %s11
      // Predicated region
      $region125: #{_lambda_.16} parent=5 // pred_check
        %p634 = pneg %p633
      $region126: #{_lambda_.16} parent=5 // pred_check_branch
        %636 = sbr.rel (%p634) target = $region128
      $region127: #{_lambda_.16} parent=5 // pred_region
        %s637 = ssub.s32 %s11, 2
        // Predicated region
        $region129: #{_lambda_.16} parent=127 // pred_check
          %p638 = pneg %p155
        $region130: #{_lambda_.16} parent=127 // pred_check_branch
          %640 = sbr.rel (%p638) target = $region132
        $region131: #{_lambda_.16} parent=127 // pred_region
          %s641 = sand.u32 %s140, 1
          %s642 = sand.u32 %s140, 1
          %s643 = smul.addr %s642, 32
          %s644 = scalar_lea.vmem [#allocation4], %s643
        $region132: #{_lambda_.16} parent=127 // pred_fallthru
          _
      $region128: #{_lambda_.16} parent=5 // pred_fallthru
        _
    $region6: #{_lambda_.16} parent=1 // loop_footer
      %s15 = sadd.s32 1, %s11
    $region7: #{_lambda_.16} parent=1 // loop_footer_branch
      %10 = sbr.rel target = $region3
    $region8: #{_lambda_.16} parent=1 // loop_exit
      _

// kernel: _lambda_.19
$region0: #{_lambda_.19}
  #allocation0 [shape = 'u32[]', space=smem, size = 0x4, offset = 0x4, fixed_abs, tag = 'smem constant byte address 0x4 - core index']
  #allocation1 [shape = 'u32[72,128]{1,0:T(1,128)}', space=vmem, size = 0x9000, scoped, tag = 'internal scratch']
  %s0 = inlined_call_operand.vmem [shape: bf16[32,144], index: 0, kind: input, shape index: {}]
  %s1 = inlined_call_operand.vmem [shape: bf16[144,128], index: 1, kind: input, shape index: {}]
  %s2 = inlined_call_operand.vmem [shape: f32[32,1], index: 2, kind: input, shape index: {}]
  %s3 = inlined_call_operand.vmem [shape: f32[32,1], index: 3, kind: input, shape index: {}]
  %s4 = inlined_call_operand.vmem [shape: f32[32,128], index: 4, kind: output, shape index: {}]
  %s5 = sld [smem:[#allocation0]]
  $region26: #{_lambda_.19} parent=0
    _
  %s7 = ssub.s32 1, %s5
  %s8 = scalar_select 0, %s7, %s5
  // Predicated region
  $region2: #{_lambda_.19} parent=0 // pred_check
    _
  $region3: #{_lambda_.19} parent=0 // pred_check_branch
    %10 = sbr.rel (0) target = $region5
  $region4: #{_lambda_.19} parent=0 // pred_region
    _
  $region5: #{_lambda_.19} parent=0 // pred_fallthru
    _
  // Predicated region
  $region6: #{_lambda_.19} parent=0 // pred_check
    _
  $region7: #{_lambda_.19} parent=0 // pred_check_branch
    %12 = sbr.rel (0) target = $region9
  $region8: #{_lambda_.19} parent=0 // pred_region
    _
  $region9: #{_lambda_.19} parent=0 // pred_fallthru
    _
  // Predicated region
  $region10: #{_lambda_.19} parent=0 // pred_check
    _
  $region11: #{_lambda_.19} parent=0 // pred_check_branch
    %14 = sbr.rel (0) target = $region13
  $region12: #{_lambda_.19} parent=0 // pred_region
    _
  $region13: #{_lambda_.19} parent=0 // pred_fallthru
    _
  // Predicated region
  $region14: #{_lambda_.19} parent=0 // pred_check
    _
  $region15: #{_lambda_.19} parent=0 // pred_check_branch
    %16 = sbr.rel (0) target = $region17
  $region16: #{_lambda_.19} parent=0 // pred_region
    _
  $region17: #{_lambda_.19} parent=0 // pred_fallthru
    _
  %v18 = vld [vmem:[%s0] sm:$0xff]
  %v19 = vld [vmem:[%s0 + $0x8] sm:$0xff]
  %v20 = vld [vmem:[%s0 + $0x10] sm:$0xff]
  %v21 = vld [vmem:[%s0 + $0x18] sm:$0xff]
  %v22 = vld [vmem:[%s1] sm:$0xf]
  %v23 = vld [vmem:[%s1 + $0x4] sm:$0xf]
  %v24 = vld [vmem:[%s1 + $0x8] sm:$0xf]
  %v25 = vld [vmem:[%s1 + $0xc] sm:$0xf]
  %v26 = vld [vmem:[%s1 + $0x10] sm:$0xf]
  %v27 = vld [vmem:[%s1 + $0x14] sm:$0xf]
  %v28 = vld [vmem:[%s1 + $0x18] sm:$0xf]
  %v29 = vld [vmem:[%s1 + $0x1c] sm:$0xf]
  %v30 = vld [vmem:[%s1 + $0x20] sm:$0xf]
  %v31 = vld [vmem:[%s1 + $0x24] sm:$0xf]
  %v32 = vld [vmem:[%s1 + $0x28] sm:$0xf]
  %v33 = vld [vmem:[%s1 + $0x2c] sm:$0xf]
  %v34 = vld [vmem:[%s1 + $0x30] sm:$0xf]
  %v35 = vld [vmem:[%s1 + $0x34] sm:$0xf]
  %v36 = vld [vmem:[%s1 + $0x38] sm:$0xf]
  %v37 = vld [vmem:[%s1 + $0x3c] sm:$0xf]
  %v38 = vld [vmem:[%s1 + $0x40] sm:$0xf]
  %v39 = vld [vmem:[%s1 + $0x44] sm:$0xf]
  %v44 = vunpack.c.l.b16 %v18
  %v45 = vunpack.c.h.b16 %v18
  %v46 = vunpack.c.l.b16 %v19
  %v47 = vunpack.c.h.b16 %v19
  %v48 = vunpack.c.l.b16 %v20
  %v49 = vunpack.c.h.b16 %v20
  %v50 = vunpack.c.l.b16 %v21
  %v51 = vunpack.c.h.b16 %v21
  %v52 = vpack.c.b16 %v46, %v44
  %v53 = vpack.c.b16 %v47, %v45
  %v54 = vpack.c.b16 %v50, %v48
  %v55 = vpack.c.b16 %v51, %v49
  %v76 = vunpack.c.l.b16 %v22
  %v77 = vunpack.c.l.b16 %v23
  %v78 = vunpack.c.l.b16 %v24
  %v79 = vunpack.c.l.b16 %v25
  %v80 = vunpack.c.l.b16 %v26
  %v81 = vunpack.c.l.b16 %v27
  %v82 = vunpack.c.l.b16 %v28
  %v83 = vunpack.c.l.b16 %v29
  %v84 = vunpack.c.l.b16 %v30
  %v85 = vunpack.c.l.b16 %v31
  %v86 = vunpack.c.l.b16 %v32
  %v87 = vunpack.c.l.b16 %v33
  %v88 = vunpack.c.l.b16 %v34
  %v89 = vunpack.c.l.b16 %v35
  %v90 = vunpack.c.l.b16 %v36
  %v91 = vunpack.c.l.b16 %v37
  %v92 = vunpack.c.l.b16 %v38
  %v93 = vunpack.c.l.b16 %v39
  %v94 = vpack.c.b16 %v77, %v76
  %v95 = vpack.c.b16 %v79, %v78
  %v96 = vpack.c.b16 %v81, %v80
  %v97 = vpack.c.b16 %v83, %v82
  %v98 = vpack.c.b16 %v85, %v84
  %v99 = vpack.c.b16 %v87, %v86
  %v100 = vpack.c.b16 %v89, %v88
  %v101 = vpack.c.b16 %v91, %v90
  %v102 = vpack.c.b16 %v93, %v92
  %vm112 = vcmask 130048
  %v114 = vsel %vm112, %v53, 0
  %v117 = vsel %vm112, %v55, 0
  %119 = vmatpush.bf16.msra.mxu0 %v101
  %120 = vmatpush.bf16.msra.mxu0 %v100
  %121 = vmatpush.bf16.msra.mxu0 %v99
  %122 = vmatpush.bf16.msra.mxu0 %v98
  %123 = vmatpush.bf16.msra.mxu0 %v97
  %124 = vmatpush.bf16.msra.mxu0 %v96
  %125 = vmatpush.bf16.msra.mxu0 %v95
  %126 = vmatpush.bf16.msra.mxu0 %v94
  %127 = vmatmul.bf16.gmra.mxu0 %v52
  %v128 = vpop.f32.mrf.mxu0
  %v129 = vadd.f32 0.0, %v128
  %v130 = vpop.f32.mrf.mxu0
  %v131 = vadd.f32 0.0, %v130
  %132 = vmatmul.bf16.gmra.mxu0 %v54
  %v133 = vpop.f32.mrf.mxu0
  %v134 = vadd.f32 0.0, %v133
  %v135 = vpop.f32.mrf.mxu0
  %v136 = vadd.f32 0.0, %v135
  %137 = vdwg.mxu0
  %138 = vmatpush.bf16.msra.mxu0 0
  %139 = vmatpush.bf16.msra.mxu0 0
  %140 = vmatpush.bf16.msra.mxu0 0
  %141 = vmatpush.bf16.msra.mxu0 0
  %142 = vmatpush.bf16.msra.mxu0 0
  %143 = vmatpush.bf16.msra.mxu0 0
  %144 = vmatpush.bf16.msra.mxu0 0
  %145 = vmatpush.bf16.msra.mxu0 %v102
  %146 = vmatmul.bf16.gmra.mxu0 %v114
  %v147 = vpop.f32.mrf.mxu0
  %v148 = vadd.f32 %v129, %v147
  %v149 = vpop.f32.mrf.mxu0
  %v150 = vadd.f32 %v131, %v149
  %151 = vmatmul.bf16.gmra.mxu0 %v117
  %v152 = vpop.f32.mrf.mxu0
  %v153 = vadd.f32 %v134, %v152
  %v154 = vpop.f32.mrf.mxu0
  %v155 = vadd.f32 %v136, %v154
  %156 = vdwg.mxu0
  %v157 = vld [vmem:[%s2] sm:$0xff]
  %v158 = vld [vmem:[%s2 + $0x8] sm:$0xff]
  %v159 = vld [vmem:[%s2 + $0x10] sm:$0xff]
  %v160 = vld [vmem:[%s2 + $0x18] sm:$0xff]
  %162 = vset.pattern.permute.xlu0 0
  %163 = vperm.xlu0 %162, %v157
  %v164 = vpop.permute.xlu0 %163
  %167 = vset.pattern.permute.xlu0 0
  %168 = vperm.xlu0 %167, %v158
  %v169 = vpop.permute.xlu0 %168
  %172 = vset.pattern.permute.xlu0 0
  %173 = vperm.xlu0 %172, %v159
  %v174 = vpop.permute.xlu0 %173
  %177 = vset.pattern.permute.xlu0 0
  %178 = vperm.xlu0 %177, %v160
  %v179 = vpop.permute.xlu0 %178
  %v181 = vmul.f32 %v148, %v164
  %v182 = vmul.f32 %v150, %v169
  %v183 = vmul.f32 %v153, %v174
  %v184 = vmul.f32 %v155, %v179
  %v185 = vld [vmem:[%s3] sm:$0xff]
  %v186 = vld [vmem:[%s3 + $0x8] sm:$0xff]
  %v187 = vld [vmem:[%s3 + $0x10] sm:$0xff]
  %v188 = vld [vmem:[%s3 + $0x18] sm:$0xff]
  %190 = vset.pattern.permute.xlu0 0
  %191 = vperm.xlu0 %190, %v185
  %v192 = vpop.permute.xlu0 %191
  %195 = vset.pattern.permute.xlu0 0
  %196 = vperm.xlu0 %195, %v186
  %v197 = vpop.permute.xlu0 %196
  %200 = vset.pattern.permute.xlu0 0
  %201 = vperm.xlu0 %200, %v187
  %v202 = vpop.permute.xlu0 %201
  %205 = vset.pattern.permute.xlu0 0
  %206 = vperm.xlu0 %205, %v188
  %v207 = vpop.permute.xlu0 %206
  %v209 = vadd.f32 %v181, %v192
  %v210 = vadd.f32 %v182, %v197
  %v211 = vadd.f32 %v183, %v202
  %v212 = vadd.f32 %v184, %v207
  %v213 = vmax.f32 %v209, 0.0
  %v214 = vmax.f32 %v210, 0.0
  %v215 = vmax.f32 %v211, 0.0
  %v216 = vmax.f32 %v212, 0.0
  %217 = vst [vmem:[%s4] sm:$0xff] %v213
  %218 = vst [vmem:[%s4 + $0x8] sm:$0xff] %v214
  %219 = vst [vmem:[%s4 + $0x10] sm:$0xff] %v215
  %220 = vst [vmem:[%s4 + $0x18] sm:$0xff] %v216
  // Predicated region
  $region18: #{_lambda_.19} parent=0 // pred_check
    _
  $region19: #{_lambda_.19} parent=0 // pred_check_branch
    %222 = sbr.rel (0) target = $region21
  $region20: #{_lambda_.19} parent=0 // pred_region
    _
  $region21: #{_lambda_.19} parent=0 // pred_fallthru
    _
  // Predicated region
  $region22: #{_lambda_.19} parent=0 // pred_check
    _
  $region23: #{_lambda_.19} parent=0 // pred_check_branch
    %224 = sbr.rel (0) target = $region25
  $region24: #{_lambda_.19} parent=0 // pred_region
    _
  $region25: #{_lambda_.19} parent=0 // pred_fallthru
    _

// kernel: _lambda_.21
$region0: #{_lambda_.21}
  #allocation0 [shape = 'u32[]', space=smem, size = 0x4, offset = 0x4, fixed_abs, tag = 'smem constant byte address 0x4 - core index']
  #allocation1 [shape = 'u32[72,128]{1,0:T(1,128)}', space=vmem, size = 0x9000, scoped, tag = 'internal scratch']
  %s0 = inlined_call_operand.vmem [shape: bf16[32,288], index: 0, kind: input, shape index: {}]
  %s1 = inlined_call_operand.vmem [shape: bf16[288,128], index: 1, kind: input, shape index: {}]
  %s2 = inlined_call_operand.vmem [shape: f32[32,1], index: 2, kind: input, shape index: {}]
  %s3 = inlined_call_operand.vmem [shape: f32[32,1], index: 3, kind: input, shape index: {}]
  %s4 = inlined_call_operand.vmem [shape: f32[32,128], index: 4, kind: output, shape index: {}]
  %s5 = sld [smem:[#allocation0]]
  $region26: #{_lambda_.21} parent=0
    _
  %s7 = ssub.s32 1, %s5
  %s8 = scalar_select 0, %s7, %s5
  // Predicated region
  $region2: #{_lambda_.21} parent=0 // pred_check
    _
  $region3: #{_lambda_.21} parent=0 // pred_check_branch
    %10 = sbr.rel (0) target = $region5
  $region4: #{_lambda_.21} parent=0 // pred_region
    _
  $region5: #{_lambda_.21} parent=0 // pred_fallthru
    _
  // Predicated region
  $region6: #{_lambda_.21} parent=0 // pred_check
    _
  $region7: #{_lambda_.21} parent=0 // pred_check_branch
    %12 = sbr.rel (0) target = $region9
  $region8: #{_lambda_.21} parent=0 // pred_region
    _
  $region9: #{_lambda_.21} parent=0 // pred_fallthru
    _
  // Predicated region
  $region10: #{_lambda_.21} parent=0 // pred_check
    _
  $region11: #{_lambda_.21} parent=0 // pred_check_branch
    %14 = sbr.rel (0) target = $region13
  $region12: #{_lambda_.21} parent=0 // pred_region
    _
  $region13: #{_lambda_.21} parent=0 // pred_fallthru
    _
  // Predicated region
  $region14: #{_lambda_.21} parent=0 // pred_check
    _
  $region15: #{_lambda_.21} parent=0 // pred_check_branch
    %16 = sbr.rel (0) target = $region17
  $region16: #{_lambda_.21} parent=0 // pred_region
    _
  $region17: #{_lambda_.21} parent=0 // pred_fallthru
    _
  %v18 = vld [vmem:[%s0] sm:$0xff]
  %v19 = vld [vmem:[%s0 + $0x8] sm:$0xf]
  %v20 = vld [vmem:[%s0 + $0xc] sm:$0xff]
  %v21 = vld [vmem:[%s0 + $0x14] sm:$0xf]
  %v22 = vld [vmem:[%s0 + $0x18] sm:$0xff]
  %v23 = vld [vmem:[%s0 + $0x20] sm:$0xf]
  %v24 = vld [vmem:[%s0 + $0x24] sm:$0xff]
  %v25 = vld [vmem:[%s0 + $0x2c] sm:$0xf]
  %v26 = vld [vmem:[%s1] sm:$0xf]
  %v27 = vld [vmem:[%s1 + $0x4] sm:$0xf]
  %v28 = vld [vmem:[%s1 + $0x8] sm:$0xf]
  %v29 = vld [vmem:[%s1 + $0xc] sm:$0xf]
  %v30 = vld [vmem:[%s1 + $0x10] sm:$0xf]
  %v31 = vld [vmem:[%s1 + $0x14] sm:$0xf]
  %v32 = vld [vmem:[%s1 + $0x18] sm:$0xf]
  %v33 = vld [vmem:[%s1 + $0x1c] sm:$0xf]
  %v34 = vld [vmem:[%s1 + $0x20] sm:$0xf]
  %v35 = vld [vmem:[%s1 + $0x24] sm:$0xf]
  %v36 = vld [vmem:[%s1 + $0x28] sm:$0xf]
  %v37 = vld [vmem:[%s1 + $0x2c] sm:$0xf]
  %v38 = vld [vmem:[%s1 + $0x30] sm:$0xf]
  %v39 = vld [vmem:[%s1 + $0x34] sm:$0xf]
  %v40 = vld [vmem:[%s1 + $0x38] sm:$0xf]
  %v41 = vld [vmem:[%s1 + $0x3c] sm:$0xf]
  %v42 = vld [vmem:[%s1 + $0x40] sm:$0xf]
  %v43 = vld [vmem:[%s1 + $0x44] sm:$0xf]
  %v44 = vld [vmem:[%s1 + $0x48] sm:$0xf]
  %v45 = vld [vmem:[%s1 + $0x4c] sm:$0xf]
  %v46 = vld [vmem:[%s1 + $0x50] sm:$0xf]
  %v47 = vld [vmem:[%s1 + $0x54] sm:$0xf]
  %v48 = vld [vmem:[%s1 + $0x58] sm:$0xf]
  %v49 = vld [vmem:[%s1 + $0x5c] sm:$0xf]
  %v50 = vld [vmem:[%s1 + $0x60] sm:$0xf]
  %v51 = vld [vmem:[%s1 + $0x64] sm:$0xf]
  %v52 = vld [vmem:[%s1 + $0x68] sm:$0xf]
  %v53 = vld [vmem:[%s1 + $0x6c] sm:$0xf]
  %v54 = vld [vmem:[%s1 + $0x70] sm:$0xf]
  %v55 = vld [vmem:[%s1 + $0x74] sm:$0xf]
  %v56 = vld [vmem:[%s1 + $0x78] sm:$0xf]
  %v57 = vld [vmem:[%s1 + $0x7c] sm:$0xf]
  %v58 = vld [vmem:[%s1 + $0x80] sm:$0xf]
  %v59 = vld [vmem:[%s1 + $0x84] sm:$0xf]
  %v60 = vld [vmem:[%s1 + $0x88] sm:$0xf]
  %v61 = vld [vmem:[%s1 + $0x8c] sm:$0xf]
  %v70 = vunpack.c.l.b16 %v18
  %v71 = vunpack.c.h.b16 %v18
  %v72 = vunpack.c.l.b16 %v19
  %v73 = vunpack.c.l.b16 %v20
  %v74 = vunpack.c.h.b16 %v20
  %v75 = vunpack.c.l.b16 %v21
  %v76 = vunpack.c.l.b16 %v22
  %v77 = vunpack.c.h.b16 %v22
  %v78 = vunpack.c.l.b16 %v23
  %v79 = vunpack.c.l.b16 %v24
  %v80 = vunpack.c.h.b16 %v24
  %v81 = vunpack.c.l.b16 %v25
  %v82 = vpack.c.b16 %v73, %v70
  %v83 = vpack.c.b16 %v74, %v71
  %v84 = vpack.c.b16 %v75, %v72
  %v85 = vpack.c.b16 %v79, %v76
  %v86 = vpack.c.b16 %v80, %v77
  %v87 = vpack.c.b16 %v81, %v78
  %v128 = vunpack.c.l.b16 %v26
  %v129 = vunpack.c.l.b16 %v27
  %v130 = vunpack.c.l.b16 %v28
  %v131 = vunpack.c.l.b16 %v29
  %v132 = vunpack.c.l.b16 %v30
  %v133 = vunpack.c.l.b16 %v31
  %v134 = vunpack.c.l.b16 %v32
  %v135 = vunpack.c.l.b16 %v33
  %v136 = vunpack.c.l.b16 %v34
  %v137 = vunpack.c.l.b16 %v35
  %v138 = vunpack.c.l.b16 %v36
  %v139 = vunpack.c.l.b16 %v37
  %v140 = vunpack.c.l.b16 %v38
  %v141 = vunpack.c.l.b16 %v39
  %v142 = vunpack.c.l.b16 %v40
  %v143 = vunpack.c.l.b16 %v41
  %v144 = vunpack.c.l.b16 %v42
  %v145 = vunpack.c.l.b16 %v43
  %v146 = vunpack.c.l.b16 %v44
  %v147 = vunpack.c.l.b16 %v45
  %v148 = vunpack.c.l.b16 %v46
  %v149 = vunpack.c.l.b16 %v47
  %v150 = vunpack.c.l.b16 %v48
  %v151 = vunpack.c.l.b16 %v49
  %v152 = vunpack.c.l.b16 %v50
  %v153 = vunpack.c.l.b16 %v51
  %v154 = vunpack.c.l.b16 %v52
  %v155 = vunpack.c.l.b16 %v53
  %v156 = vunpack.c.l.b16 %v54
  %v157 = vunpack.c.l.b16 %v55
  %v158 = vunpack.c.l.b16 %v56
  %v159 = vunpack.c.l.b16 %v57
  %v160 = vunpack.c.l.b16 %v58
  %v161 = vunpack.c.l.b16 %v59
  %v162 = vunpack.c.l.b16 %v60
  %v163 = vunpack.c.l.b16 %v61
  %v164 = vpack.c.b16 %v129, %v128
  %v165 = vpack.c.b16 %v131, %v130
  %v166 = vpack.c.b16 %v133, %v132
  %v167 = vpack.c.b16 %v135, %v134
  %v168 = vpack.c.b16 %v137, %v136
  %v169 = vpack.c.b16 %v139, %v138
  %v170 = vpack.c.b16 %v141, %v140
  %v171 = vpack.c.b16 %v143, %v142
  %v172 = vpack.c.b16 %v145, %v144
  %v173 = vpack.c.b16 %v147, %v146
  %v174 = vpack.c.b16 %v149, %v148
  %v175 = vpack.c.b16 %v151, %v150
  %v176 = vpack.c.b16 %v153, %v152
  %v177 = vpack.c.b16 %v155, %v154
  %v178 = vpack.c.b16 %v157, %v156
  %v179 = vpack.c.b16 %v159, %v158
  %v180 = vpack.c.b16 %v161, %v160
  %v181 = vpack.c.b16 %v163, %v162
  %vm200 = vcmask 261120
  %v202 = vsel %vm200, %v84, 0
  %v205 = vsel %vm200, %v87, 0
  %207 = vmatpush.bf16.msra.mxu0 %v171
  %208 = vmatpush.bf16.msra.mxu0 %v170
  %209 = vmatpush.bf16.msra.mxu0 %v169
  %210 = vmatpush.bf16.msra.mxu0 %v168
  %211 = vmatpush.bf16.msra.mxu0 %v167
  %212 = vmatpush.bf16.msra.mxu0 %v166
  %213 = vmatpush.bf16.msra.mxu0 %v165
  %214 = vmatpush.bf16.msra.mxu0 %v164
  %215 = vmatmul.bf16.gmra.mxu0 %v82
  %v216 = vpop.f32.mrf.mxu0
  %v217 = vadd.f32 0.0, %v216
  %v218 = vpop.f32.mrf.mxu0
  %v219 = vadd.f32 0.0, %v218
  %220 = vmatmul.bf16.gmra.mxu0 %v85
  %v221 = vpop.f32.mrf.mxu0
  %v222 = vadd.f32 0.0, %v221
  %v223 = vpop.f32.mrf.mxu0
  %v224 = vadd.f32 0.0, %v223
  %225 = vdwg.mxu0
  %226 = vmatpush.bf16.msra.mxu0 %v179
  %227 = vmatpush.bf16.msra.mxu0 %v178
  %228 = vmatpush.bf16.msra.mxu0 %v177
  %229 = vmatpush.bf16.msra.mxu0 %v176
  %230 = vmatpush.bf16.msra.mxu0 %v175
  %231 = vmatpush.bf16.msra.mxu0 %v174
  %232 = vmatpush.bf16.msra.mxu0 %v173
  %233 = vmatpush.bf16.msra.mxu0 %v172
  %234 = vmatmul.bf16.gmra.mxu0 %v83
  %v235 = vpop.f32.mrf.mxu0
  %v236 = vadd.f32 %v217, %v235
  %v237 = vpop.f32.mrf.mxu0
  %v238 = vadd.f32 %v219, %v237
  %239 = vmatmul.bf16.gmra.mxu0 %v86
  %v240 = vpop.f32.mrf.mxu0
  %v241 = vadd.f32 %v222, %v240
  %v242 = vpop.f32.mrf.mxu0
  %v243 = vadd.f32 %v224, %v242
  %244 = vdwg.mxu0
  %245 = vmatpush.bf16.msra.mxu0 0
  %246 = vmatpush.bf16.msra.mxu0 0
  %247 = vmatpush.bf16.msra.mxu0 0
  %248 = vmatpush.bf16.msra.mxu0 0
  %249 = vmatpush.bf16.msra.mxu0 0
  %250 = vmatpush.bf16.msra.mxu0 0
  %251 = vmatpush.bf16.msra.mxu0 %v181
  %252 = vmatpush.bf16.msra.mxu0 %v180
  %253 = vmatmul.bf16.gmra.mxu0 %v202
  %v254 = vpop.f32.mrf.mxu0
  %v255 = vadd.f32 %v236, %v254
  %v256 = vpop.f32.mrf.mxu0
  %v257 = vadd.f32 %v238, %v256
  %258 = vmatmul.bf16.gmra.mxu0 %v205
  %v259 = vpop.f32.mrf.mxu0
  %v260 = vadd.f32 %v241, %v259
  %v261 = vpop.f32.mrf.mxu0
  %v262 = vadd.f32 %v243, %v261
  %263 = vdwg.mxu0
  %v264 = vld [vmem:[%s2] sm:$0xff]
  %v265 = vld [vmem:[%s2 + $0x8] sm:$0xff]
  %v266 = vld [vmem:[%s2 + $0x10] sm:$0xff]
  %v267 = vld [vmem:[%s2 + $0x18] sm:$0xff]
  %269 = vset.pattern.permute.xlu0 0
  %270 = vperm.xlu0 %269, %v264
  %v271 = vpop.permute.xlu0 %270
  %274 = vset.pattern.permute.xlu0 0
  %275 = vperm.xlu0 %274, %v265
  %v276 = vpop.permute.xlu0 %275
  %279 = vset.pattern.permute.xlu0 0
  %280 = vperm.xlu0 %279, %v266
  %v281 = vpop.permute.xlu0 %280
  %284 = vset.pattern.permute.xlu0 0
  %285 = vperm.xlu0 %284, %v267
  %v286 = vpop.permute.xlu0 %285
  %v288 = vmul.f32 %v255, %v271
  %v289 = vmul.f32 %v257, %v276
  %v290 = vmul.f32 %v260, %v281
  %v291 = vmul.f32 %v262, %v286
  %v292 = vld [vmem:[%s3] sm:$0xff]
  %v293 = vld [vmem:[%s3 + $0x8] sm:$0xff]
  %v294 = vld [vmem:[%s3 + $0x10] sm:$0xff]
  %v295 = vld [vmem:[%s3 + $0x18] sm:$0xff]
  %297 = vset.pattern.permute.xlu0 0
  %298 = vperm.xlu0 %297, %v292
  %v299 = vpop.permute.xlu0 %298
  %302 = vset.pattern.permute.xlu0 0
  %303 = vperm.xlu0 %302, %v293
  %v304 = vpop.permute.xlu0 %303
  %307 = vset.pattern.permute.xlu0 0
  %308 = vperm.xlu0 %307, %v294
  %v309 = vpop.permute.xlu0 %308
  %312 = vset.pattern.permute.xlu0 0
  %313 = vperm.xlu0 %312, %v295
  %v314 = vpop.permute.xlu0 %313
  %v316 = vadd.f32 %v288, %v299
  %v317 = vadd.f32 %v289, %v304
  %v318 = vadd.f32 %v290, %v309
  %v319 = vadd.f32 %v291, %v314
  %v320 = vmax.f32 %v316, 0.0
  %v321 = vmax.f32 %v317, 0.0
  %v322 = vmax.f32 %v318, 0.0
  %v323 = vmax.f32 %v319, 0.0
  %324 = vst [vmem:[%s4] sm:$0xff] %v320
  %325 = vst [vmem:[%s4 + $0x8] sm:$0xff] %v321
  %326 = vst [vmem:[%s4 + $0x10] sm:$0xff] %v322
  %327 = vst [vmem:[%s4 + $0x18] sm:$0xff] %v323
  // Predicated region
  $region18: #{_lambda_.21} parent=0 // pred_check
    _
  $region19: #{_lambda_.21} parent=0 // pred_check_branch
    %329 = sbr.rel (0) target = $region21
  $region20: #{_lambda_.21} parent=0 // pred_region
    _
  $region21: #{_lambda_.21} parent=0 // pred_fallthru
    _
  // Predicated region
  $region22: #{_lambda_.21} parent=0 // pred_check
    _
  $region23: #{_lambda_.21} parent=0 // pred_check_branch
    %331 = sbr.rel (0) target = $region25
  $region24: #{_lambda_.21} parent=0 // pred_region
    _
  $region25: #{_lambda_.21} parent=0 // pred_fallthru
    _

// kernel: _lambda_.20
$region0: #{_lambda_.20}
  #allocation0 [shape = 'u32[]', space=smem, size = 0x4, offset = 0x4, fixed_abs, tag = 'smem constant byte address 0x4 - core index']
  #allocation1 [shape = 'u32[72,128]{1,0:T(1,128)}', space=vmem, size = 0x9000, scoped, tag = 'internal scratch']
  %s0 = inlined_call_operand.vmem [shape: bf16[32,288], index: 0, kind: input, shape index: {}]
  %s1 = inlined_call_operand.vmem [shape: bf16[288,128], index: 1, kind: input, shape index: {}]
  %s2 = inlined_call_operand.vmem [shape: f32[32,1], index: 2, kind: input, shape index: {}]
  %s3 = inlined_call_operand.vmem [shape: f32[32,1], index: 3, kind: input, shape index: {}]
  %s4 = inlined_call_operand.vmem [shape: bf16[32,16], index: 4, kind: input, shape index: {}]
  %s5 = inlined_call_operand.vmem [shape: bf16[16,128], index: 5, kind: input, shape index: {}]
  %s6 = inlined_call_operand.vmem [shape: f32[32,1], index: 6, kind: input, shape index: {}]
  %s7 = inlined_call_operand.vmem [shape: f32[32,1], index: 7, kind: input, shape index: {}]
  %s8 = inlined_call_operand.vmem [shape: f32[32,128], index: 8, kind: output, shape index: {}]
  %s9 = sld [smem:[#allocation0]]
  $region42: #{_lambda_.20} parent=0
    _
  %s11 = ssub.s32 1, %s9
  %s12 = scalar_select 0, %s11, %s9
  // Predicated region
  $region2: #{_lambda_.20} parent=0 // pred_check
    _
  $region3: #{_lambda_.20} parent=0 // pred_check_branch
    %14 = sbr.rel (0) target = $region5
  $region4: #{_lambda_.20} parent=0 // pred_region
    _
  $region5: #{_lambda_.20} parent=0 // pred_fallthru
    _
  // Predicated region
  $region6: #{_lambda_.20} parent=0 // pred_check
    _
  $region7: #{_lambda_.20} parent=0 // pred_check_branch
    %16 = sbr.rel (0) target = $region9
  $region8: #{_lambda_.20} parent=0 // pred_region
    _
  $region9: #{_lambda_.20} parent=0 // pred_fallthru
    _
  // Predicated region
  $region10: #{_lambda_.20} parent=0 // pred_check
    _
  $region11: #{_lambda_.20} parent=0 // pred_check_branch
    %18 = sbr.rel (0) target = $region13
  $region12: #{_lambda_.20} parent=0 // pred_region
    _
  $region13: #{_lambda_.20} parent=0 // pred_fallthru
    _
  // Predicated region
  $region14: #{_lambda_.20} parent=0 // pred_check
    _
  $region15: #{_lambda_.20} parent=0 // pred_check_branch
    %20 = sbr.rel (0) target = $region17
  $region16: #{_lambda_.20} parent=0 // pred_region
    _
  $region17: #{_lambda_.20} parent=0 // pred_fallthru
    _
  // Predicated region
  $region18: #{_lambda_.20} parent=0 // pred_check
    _
  $region19: #{_lambda_.20} parent=0 // pred_check_branch
    %22 = sbr.rel (0) target = $region21
  $region20: #{_lambda_.20} parent=0 // pred_region
    _
  $region21: #{_lambda_.20} parent=0 // pred_fallthru
    _
  // Predicated region
  $region22: #{_lambda_.20} parent=0 // pred_check
    _
  $region23: #{_lambda_.20} parent=0 // pred_check_branch
    %24 = sbr.rel (0) target = $region25
  $region24: #{_lambda_.20} parent=0 // pred_region
    _
  $region25: #{_lambda_.20} parent=0 // pred_fallthru
    _
  // Predicated region
  $region26: #{_lambda_.20} parent=0 // pred_check
    _
  $region27: #{_lambda_.20} parent=0 // pred_check_branch
    %26 = sbr.rel (0) target = $region29
  $region28: #{_lambda_.20} parent=0 // pred_region
    _
  $region29: #{_lambda_.20} parent=0 // pred_fallthru
    _
  // Predicated region
  $region30: #{_lambda_.20} parent=0 // pred_check
    _
  $region31: #{_lambda_.20} parent=0 // pred_check_branch
    %28 = sbr.rel (0) target = $region33
  $region32: #{_lambda_.20} parent=0 // pred_region
    _
  $region33: #{_lambda_.20} parent=0 // pred_fallthru
    _
  %v30 = vld [vmem:[%s0] sm:$0xff]
  %v31 = vld [vmem:[%s0 + $0x8] sm:$0xf]
  %v32 = vld [vmem:[%s0 + $0xc] sm:$0xff]
  %v33 = vld [vmem:[%s0 + $0x14] sm:$0xf]
  %v34 = vld [vmem:[%s0 + $0x18] sm:$0xff]
  %v35 = vld [vmem:[%s0 + $0x20] sm:$0xf]
  %v36 = vld [vmem:[%s0 + $0x24] sm:$0xff]
  %v37 = vld [vmem:[%s0 + $0x2c] sm:$0xf]
  %v38 = vld [vmem:[%s1] sm:$0xf]
  %v39 = vld [vmem:[%s1 + $0x4] sm:$0xf]
  %v40 = vld [vmem:[%s1 + $0x8] sm:$0xf]
  %v41 = vld [vmem:[%s1 + $0xc] sm:$0xf]
  %v42 = vld [vmem:[%s1 + $0x10] sm:$0xf]
  %v43 = vld [vmem:[%s1 + $0x14] sm:$0xf]
  %v44 = vld [vmem:[%s1 + $0x18] sm:$0xf]
  %v45 = vld [vmem:[%s1 + $0x1c] sm:$0xf]
  %v46 = vld [vmem:[%s1 + $0x20] sm:$0xf]
  %v47 = vld [vmem:[%s1 + $0x24] sm:$0xf]
  %v48 = vld [vmem:[%s1 + $0x28] sm:$0xf]
  %v49 = vld [vmem:[%s1 + $0x2c] sm:$0xf]
  %v50 = vld [vmem:[%s1 + $0x30] sm:$0xf]
  %v51 = vld [vmem:[%s1 + $0x34] sm:$0xf]
  %v52 = vld [vmem:[%s1 + $0x38] sm:$0xf]
  %v53 = vld [vmem:[%s1 + $0x3c] sm:$0xf]
  %v54 = vld [vmem:[%s1 + $0x40] sm:$0xf]
  %v55 = vld [vmem:[%s1 + $0x44] sm:$0xf]
  %v56 = vld [vmem:[%s1 + $0x48] sm:$0xf]
  %v57 = vld [vmem:[%s1 + $0x4c] sm:$0xf]
  %v58 = vld [vmem:[%s1 + $0x50] sm:$0xf]
  %v59 = vld [vmem:[%s1 + $0x54] sm:$0xf]
  %v60 = vld [vmem:[%s1 + $0x58] sm:$0xf]
  %v61 = vld [vmem:[%s1 + $0x5c] sm:$0xf]
  %v62 = vld [vmem:[%s1 + $0x60] sm:$0xf]
  %v63 = vld [vmem:[%s1 + $0x64] sm:$0xf]
  %v64 = vld [vmem:[%s1 + $0x68] sm:$0xf]
  %v65 = vld [vmem:[%s1 + $0x6c] sm:$0xf]
  %v66 = vld [vmem:[%s1 + $0x70] sm:$0xf]
  %v67 = vld [vmem:[%s1 + $0x74] sm:$0xf]
  %v68 = vld [vmem:[%s1 + $0x78] sm:$0xf]
  %v69 = vld [vmem:[%s1 + $0x7c] sm:$0xf]
  %v70 = vld [vmem:[%s1 + $0x80] sm:$0xf]
  %v71 = vld [vmem:[%s1 + $0x84] sm:$0xf]
  %v72 = vld [vmem:[%s1 + $0x88] sm:$0xf]
  %v73 = vld [vmem:[%s1 + $0x8c] sm:$0xf]
  %v82 = vunpack.c.l.b16 %v30
  %v83 = vunpack.c.h.b16 %v30
  %v84 = vunpack.c.l.b16 %v31
  %v85 = vunpack.c.l.b16 %v32
  %v86 = vunpack.c.h.b16 %v32
  %v87 = vunpack.c.l.b16 %v33
  %v88 = vunpack.c.l.b16 %v34
  %v89 = vunpack.c.h.b16 %v34
  %v90 = vunpack.c.l.b16 %v35
  %v91 = vunpack.c.l.b16 %v36
  %v92 = vunpack.c.h.b16 %v36
  %v93 = vunpack.c.l.b16 %v37
  %v94 = vpack.c.b16 %v85, %v82
  %v95 = vpack.c.b16 %v86, %v83
  %v96 = vpack.c.b16 %v87, %v84
  %v97 = vpack.c.b16 %v91, %v88
  %v98 = vpack.c.b16 %v92, %v89
  %v99 = vpack.c.b16 %v93, %v90
  %v140 = vunpack.c.l.b16 %v38
  %v141 = vunpack.c.l.b16 %v39
  %v142 = vunpack.c.l.b16 %v40
  %v143 = vunpack.c.l.b16 %v41
  %v144 = vunpack.c.l.b16 %v42
  %v145 = vunpack.c.l.b16 %v43
  %v146 = vunpack.c.l.b16 %v44
  %v147 = vunpack.c.l.b16 %v45
  %v148 = vunpack.c.l.b16 %v46
  %v149 = vunpack.c.l.b16 %v47
  %v150 = vunpack.c.l.b16 %v48
  %v151 = vunpack.c.l.b16 %v49
  %v152 = vunpack.c.l.b16 %v50
  %v153 = vunpack.c.l.b16 %v51
  %v154 = vunpack.c.l.b16 %v52
  %v155 = vunpack.c.l.b16 %v53
  %v156 = vunpack.c.l.b16 %v54
  %v157 = vunpack.c.l.b16 %v55
  %v158 = vunpack.c.l.b16 %v56
  %v159 = vunpack.c.l.b16 %v57
  %v160 = vunpack.c.l.b16 %v58
  %v161 = vunpack.c.l.b16 %v59
  %v162 = vunpack.c.l.b16 %v60
  %v163 = vunpack.c.l.b16 %v61
  %v164 = vunpack.c.l.b16 %v62
  %v165 = vunpack.c.l.b16 %v63
  %v166 = vunpack.c.l.b16 %v64
  %v167 = vunpack.c.l.b16 %v65
  %v168 = vunpack.c.l.b16 %v66
  %v169 = vunpack.c.l.b16 %v67
  %v170 = vunpack.c.l.b16 %v68
  %v171 = vunpack.c.l.b16 %v69
  %v172 = vunpack.c.l.b16 %v70
  %v173 = vunpack.c.l.b16 %v71
  %v174 = vunpack.c.l.b16 %v72
  %v175 = vunpack.c.l.b16 %v73
  %v176 = vpack.c.b16 %v141, %v140
  %v177 = vpack.c.b16 %v143, %v142
  %v178 = vpack.c.b16 %v145, %v144
  %v179 = vpack.c.b16 %v147, %v146
  %v180 = vpack.c.b16 %v149, %v148
  %v181 = vpack.c.b16 %v151, %v150
  %v182 = vpack.c.b16 %v153, %v152
  %v183 = vpack.c.b16 %v155, %v154
  %v184 = vpack.c.b16 %v157, %v156
  %v185 = vpack.c.b16 %v159, %v158
  %v186 = vpack.c.b16 %v161, %v160
  %v187 = vpack.c.b16 %v163, %v162
  %v188 = vpack.c.b16 %v165, %v164
  %v189 = vpack.c.b16 %v167, %v166
  %v190 = vpack.c.b16 %v169, %v168
  %v191 = vpack.c.b16 %v171, %v170
  %v192 = vpack.c.b16 %v173, %v172
  %v193 = vpack.c.b16 %v175, %v174
  %vm212 = vcmask 261120
  %v214 = vsel %vm212, %v96, 0
  %v217 = vsel %vm212, %v99, 0
  %219 = vmatpush.bf16.msra.mxu0 %v183
  %220 = vmatpush.bf16.msra.mxu0 %v182
  %221 = vmatpush.bf16.msra.mxu0 %v181
  %222 = vmatpush.bf16.msra.mxu0 %v180
  %223 = vmatpush.bf16.msra.mxu0 %v179
  %224 = vmatpush.bf16.msra.mxu0 %v178
  %225 = vmatpush.bf16.msra.mxu0 %v177
  %226 = vmatpush.bf16.msra.mxu0 %v176
  %227 = vmatmul.bf16.gmra.mxu0 %v94
  %v228 = vpop.f32.mrf.mxu0
  %v229 = vadd.f32 0.0, %v228
  %v230 = vpop.f32.mrf.mxu0
  %v231 = vadd.f32 0.0, %v230
  %232 = vmatmul.bf16.gmra.mxu0 %v97
  %v233 = vpop.f32.mrf.mxu0
  %v234 = vadd.f32 0.0, %v233
  %v235 = vpop.f32.mrf.mxu0
  %v236 = vadd.f32 0.0, %v235
  %237 = vdwg.mxu0
  %238 = vmatpush.bf16.msra.mxu0 %v191
  %239 = vmatpush.bf16.msra.mxu0 %v190
  %240 = vmatpush.bf16.msra.mxu0 %v189
  %241 = vmatpush.bf16.msra.mxu0 %v188
  %242 = vmatpush.bf16.msra.mxu0 %v187
  %243 = vmatpush.bf16.msra.mxu0 %v186
  %244 = vmatpush.bf16.msra.mxu0 %v185
  %245 = vmatpush.bf16.msra.mxu0 %v184
  %246 = vmatmul.bf16.gmra.mxu0 %v95
  %v247 = vpop.f32.mrf.mxu0
  %v248 = vadd.f32 %v229, %v247
  %v249 = vpop.f32.mrf.mxu0
  %v250 = vadd.f32 %v231, %v249
  %251 = vmatmul.bf16.gmra.mxu0 %v98
  %v252 = vpop.f32.mrf.mxu0
  %v253 = vadd.f32 %v234, %v252
  %v254 = vpop.f32.mrf.mxu0
  %v255 = vadd.f32 %v236, %v254
  %256 = vdwg.mxu0
  %257 = vmatpush.bf16.msra.mxu0 0
  %258 = vmatpush.bf16.msra.mxu0 0
  %259 = vmatpush.bf16.msra.mxu0 0
  %260 = vmatpush.bf16.msra.mxu0 0
  %261 = vmatpush.bf16.msra.mxu0 0
  %262 = vmatpush.bf16.msra.mxu0 0
  %263 = vmatpush.bf16.msra.mxu0 %v193
  %264 = vmatpush.bf16.msra.mxu0 %v192
  %265 = vmatmul.bf16.gmra.mxu0 %v214
  %v266 = vpop.f32.mrf.mxu0
  %v267 = vadd.f32 %v248, %v266
  %v268 = vpop.f32.mrf.mxu0
  %v269 = vadd.f32 %v250, %v268
  %270 = vmatmul.bf16.gmra.mxu0 %v217
  %v271 = vpop.f32.mrf.mxu0
  %v272 = vadd.f32 %v253, %v271
  %v273 = vpop.f32.mrf.mxu0
  %v274 = vadd.f32 %v255, %v273
  %275 = vdwg.mxu0
  %v276 = vld [vmem:[%s2] sm:$0xff]
  %v277 = vld [vmem:[%s2 + $0x8] sm:$0xff]
  %v278 = vld [vmem:[%s2 + $0x10] sm:$0xff]
  %v279 = vld [vmem:[%s2 + $0x18] sm:$0xff]
  %281 = vset.pattern.permute.xlu0 0
  %282 = vperm.xlu0 %281, %v276
  %v283 = vpop.permute.xlu0 %282
  %286 = vset.pattern.permute.xlu0 0
  %287 = vperm.xlu0 %286, %v277
  %v288 = vpop.permute.xlu0 %287
  %291 = vset.pattern.permute.xlu0 0
  %292 = vperm.xlu0 %291, %v278
  %v293 = vpop.permute.xlu0 %292
  %296 = vset.pattern.permute.xlu0 0
  %297 = vperm.xlu0 %296, %v279
  %v298 = vpop.permute.xlu0 %297
  %v300 = vmul.f32 %v267, %v283
  %v301 = vmul.f32 %v269, %v288
  %v302 = vmul.f32 %v272, %v293
  %v303 = vmul.f32 %v274, %v298
  %v304 = vld [vmem:[%s3] sm:$0xff]
  %v305 = vld [vmem:[%s3 + $0x8] sm:$0xff]
  %v306 = vld [vmem:[%s3 + $0x10] sm:$0xff]
  %v307 = vld [vmem:[%s3 + $0x18] sm:$0xff]
  %309 = vset.pattern.permute.xlu0 0
  %310 = vperm.xlu0 %309, %v304
  %v311 = vpop.permute.xlu0 %310
  %314 = vset.pattern.permute.xlu0 0
  %315 = vperm.xlu0 %314, %v305
  %v316 = vpop.permute.xlu0 %315
  %319 = vset.pattern.permute.xlu0 0
  %320 = vperm.xlu0 %319, %v306
  %v321 = vpop.permute.xlu0 %320
  %324 = vset.pattern.permute.xlu0 0
  %325 = vperm.xlu0 %324, %v307
  %v326 = vpop.permute.xlu0 %325
  %v328 = vadd.f32 %v300, %v311
  %v329 = vadd.f32 %v301, %v316
  %v330 = vadd.f32 %v302, %v321
  %v331 = vadd.f32 %v303, %v326
  %v332 = vld [vmem:[%s4] sm:$0xf]
  %v333 = vld [vmem:[%s4 + $0x4] sm:$0xf]
  %v334 = vld [vmem:[%s4 + $0x8] sm:$0xf]
  %v335 = vld [vmem:[%s4 + $0xc] sm:$0xf]
  %v336 = vld [vmem:[%s5] sm:$0xf]
  %v337 = vld [vmem:[%s5 + $0x4] sm:$0xf]
  %v342 = vunpack.c.l.b16 %v332
  %v343 = vunpack.c.l.b16 %v333
  %v344 = vunpack.c.l.b16 %v334
  %v345 = vunpack.c.l.b16 %v335
  %v346 = vpack.c.b16 %v343, %v342
  %v347 = vpack.c.b16 %v345, %v344
  %v350 = vunpack.c.l.b16 %v336
  %v351 = vunpack.c.l.b16 %v337
  %v352 = vpack.c.b16 %v351, %v350
  %vm354 = vcmask 130048
  %v356 = vsel %vm354, %v346, 0
  %v359 = vsel %vm354, %v347, 0
  %361 = vmatpush.bf16.msra.mxu0 0
  %362 = vmatpush.bf16.msra.mxu0 0
  %363 = vmatpush.bf16.msra.mxu0 0
  %364 = vmatpush.bf16.msra.mxu0 0
  %365 = vmatpush.bf16.msra.mxu0 0
  %366 = vmatpush.bf16.msra.mxu0 0
  %367 = vmatpush.bf16.msra.mxu0 0
  %368 = vmatpush.bf16.msra.mxu0 %v352
  %369 = vmatmul.bf16.gmra.mxu0 %v356
  %v370 = vpop.f32.mrf.mxu0
  %v371 = vadd.f32 0.0, %v370
  %v372 = vpop.f32.mrf.mxu0
  %v373 = vadd.f32 0.0, %v372
  %374 = vmatmul.bf16.gmra.mxu0 %v359
  %v375 = vpop.f32.mrf.mxu0
  %v376 = vadd.f32 0.0, %v375
  %v377 = vpop.f32.mrf.mxu0
  %v378 = vadd.f32 0.0, %v377
  %379 = vdwg.mxu0
  %v380 = vld [vmem:[%s6] sm:$0xff]
  %v381 = vld [vmem:[%s6 + $0x8] sm:$0xff]
  %v382 = vld [vmem:[%s6 + $0x10] sm:$0xff]
  %v383 = vld [vmem:[%s6 + $0x18] sm:$0xff]
  %385 = vset.pattern.permute.xlu0 0
  %386 = vperm.xlu0 %385, %v380
  %v387 = vpop.permute.xlu0 %386
  %390 = vset.pattern.permute.xlu0 0
  %391 = vperm.xlu0 %390, %v381
  %v392 = vpop.permute.xlu0 %391
  %395 = vset.pattern.permute.xlu0 0
  %396 = vperm.xlu0 %395, %v382
  %v397 = vpop.permute.xlu0 %396
  %400 = vset.pattern.permute.xlu0 0
  %401 = vperm.xlu0 %400, %v383
  %v402 = vpop.permute.xlu0 %401
  %v404 = vmul.f32 %v371, %v387
  %v405 = vmul.f32 %v373, %v392
  %v406 = vmul.f32 %v376, %v397
  %v407 = vmul.f32 %v378, %v402
  %v408 = vadd.f32 %v328, %v404
  %v409 = vadd.f32 %v329, %v405
  %v410 = vadd.f32 %v330, %v406
  %v411 = vadd.f32 %v331, %v407
  %v412 = vld [vmem:[%s7] sm:$0xff]
  %v413 = vld [vmem:[%s7 + $0x8] sm:$0xff]
  %v414 = vld [vmem:[%s7 + $0x10] sm:$0xff]
  %v415 = vld [vmem:[%s7 + $0x18] sm:$0xff]
  %417 = vset.pattern.permute.xlu0 0
  %418 = vperm.xlu0 %417, %v412
  %v419 = vpop.permute.xlu0 %418
  %422 = vset.pattern.permute.xlu0 0
  %423 = vperm.xlu0 %422, %v413
  %v424 = vpop.permute.xlu0 %423
  %427 = vset.pattern.permute.xlu0 0
  %428 = vperm.xlu0 %427, %v414
  %v429 = vpop.permute.xlu0 %428
  %432 = vset.pattern.permute.xlu0 0
  %433 = vperm.xlu0 %432, %v415
  %v434 = vpop.permute.xlu0 %433
  %v436 = vadd.f32 %v408, %v419
  %v437 = vadd.f32 %v409, %v424
  %v438 = vadd.f32 %v410, %v429
  %v439 = vadd.f32 %v411, %v434
  %v440 = vmax.f32 %v436, 0.0
  %v441 = vmax.f32 %v437, 0.0
  %v442 = vmax.f32 %v438, 0.0
  %v443 = vmax.f32 %v439, 0.0
  %444 = vst [vmem:[%s8] sm:$0xff] %v440
  %445 = vst [vmem:[%s8 + $0x8] sm:$0xff] %v441
  %446 = vst [vmem:[%s8 + $0x10] sm:$0xff] %v442
  %447 = vst [vmem:[%s8 + $0x18] sm:$0xff] %v443
  // Predicated region
  $region34: #{_lambda_.20} parent=0 // pred_check
    _
  $region35: #{_lambda_.20} parent=0 // pred_check_branch
    %449 = sbr.rel (0) target = $region37
  $region36: #{_lambda_.20} parent=0 // pred_region
    _
  $region37: #{_lambda_.20} parent=0 // pred_fallthru
    _
  // Predicated region
  $region38: #{_lambda_.20} parent=0 // pred_check
    _
  $region39: #{_lambda_.20} parent=0 // pred_check_branch
    %451 = sbr.rel (0) target = $region41
  $region40: #{_lambda_.20} parent=0 // pred_region
    _
  $region41: #{_lambda_.20} parent=0 // pred_fallthru
    _

// kernel: _lambda_.22
$region0: #{_lambda_.22}
  #allocation0 [shape = 'u32[]', space=smem, size = 0x4, offset = 0x4, fixed_abs, tag = 'smem constant byte address 0x4 - core index']
  #allocation1 [shape = 'u32[72,128]{1,0:T(1,128)}', space=vmem, size = 0x9000, scoped, tag = 'internal scratch']
  %s0 = inlined_call_operand.vmem [shape: bf16[32,288], index: 0, kind: input, shape index: {}]
  %s1 = inlined_call_operand.vmem [shape: bf16[288,128], index: 1, kind: input, shape index: {}]
  %s2 = inlined_call_operand.vmem [shape: f32[32,1], index: 2, kind: input, shape index: {}]
  %s3 = inlined_call_operand.vmem [shape: f32[32,1], index: 3, kind: input, shape index: {}]
  %s4 = inlined_call_operand.vmem [shape: f32[32,128], index: 4, kind: input, shape index: {}]
  %s5 = inlined_call_operand.vmem [shape: f32[32,128], index: 5, kind: output, shape index: {}]
  %s6 = sld [smem:[#allocation0]]
  $region30: #{_lambda_.22} parent=0
    _
  %s8 = ssub.s32 1, %s6
  %s9 = scalar_select 0, %s8, %s6
  // Predicated region
  $region2: #{_lambda_.22} parent=0 // pred_check
    _
  $region3: #{_lambda_.22} parent=0 // pred_check_branch
    %11 = sbr.rel (0) target = $region5
  $region4: #{_lambda_.22} parent=0 // pred_region
    _
  $region5: #{_lambda_.22} parent=0 // pred_fallthru
    _
  // Predicated region
  $region6: #{_lambda_.22} parent=0 // pred_check
    _
  $region7: #{_lambda_.22} parent=0 // pred_check_branch
    %13 = sbr.rel (0) target = $region9
  $region8: #{_lambda_.22} parent=0 // pred_region
    _
  $region9: #{_lambda_.22} parent=0 // pred_fallthru
    _
  // Predicated region
  $region10: #{_lambda_.22} parent=0 // pred_check
    _
  $region11: #{_lambda_.22} parent=0 // pred_check_branch
    %15 = sbr.rel (0) target = $region13
  $region12: #{_lambda_.22} parent=0 // pred_region
    _
  $region13: #{_lambda_.22} parent=0 // pred_fallthru
    _
  // Predicated region
  $region14: #{_lambda_.22} parent=0 // pred_check
    _
  $region15: #{_lambda_.22} parent=0 // pred_check_branch
    %17 = sbr.rel (0) target = $region17
  $region16: #{_lambda_.22} parent=0 // pred_region
    _
  $region17: #{_lambda_.22} parent=0 // pred_fallthru
    _
  // Predicated region
  $region18: #{_lambda_.22} parent=0 // pred_check
    _
  $region19: #{_lambda_.22} parent=0 // pred_check_branch
    %19 = sbr.rel (0) target = $region21
  $region20: #{_lambda_.22} parent=0 // pred_region
    _
  $region21: #{_lambda_.22} parent=0 // pred_fallthru
    _
  %v21 = vld [vmem:[%s0] sm:$0xff]
  %v22 = vld [vmem:[%s0 + $0x8] sm:$0xf]
  %v23 = vld [vmem:[%s0 + $0xc] sm:$0xff]
  %v24 = vld [vmem:[%s0 + $0x14] sm:$0xf]
  %v25 = vld [vmem:[%s0 + $0x18] sm:$0xff]
  %v26 = vld [vmem:[%s0 + $0x20] sm:$0xf]
  %v27 = vld [vmem:[%s0 + $0x24] sm:$0xff]
  %v28 = vld [vmem:[%s0 + $0x2c] sm:$0xf]
  %v29 = vld [vmem:[%s1] sm:$0xf]
  %v30 = vld [vmem:[%s1 + $0x4] sm:$0xf]
  %v31 = vld [vmem:[%s1 + $0x8] sm:$0xf]
  %v32 = vld [vmem:[%s1 + $0xc] sm:$0xf]
  %v33 = vld [vmem:[%s1 + $0x10] sm:$0xf]
  %v34 = vld [vmem:[%s1 + $0x14] sm:$0xf]
  %v35 = vld [vmem:[%s1 + $0x18] sm:$0xf]
  %v36 = vld [vmem:[%s1 + $0x1c] sm:$0xf]
  %v37 = vld [vmem:[%s1 + $0x20] sm:$0xf]
  %v38 = vld [vmem:[%s1 + $0x24] sm:$0xf]
  %v39 = vld [vmem:[%s1 + $0x28] sm:$0xf]
  %v40 = vld [vmem:[%s1 + $0x2c] sm:$0xf]
  %v41 = vld [vmem:[%s1 + $0x30] sm:$0xf]
  %v42 = vld [vmem:[%s1 + $0x34] sm:$0xf]
  %v43 = vld [vmem:[%s1 + $0x38] sm:$0xf]
  %v44 = vld [vmem:[%s1 + $0x3c] sm:$0xf]
  %v45 = vld [vmem:[%s1 + $0x40] sm:$0xf]
  %v46 = vld [vmem:[%s1 + $0x44] sm:$0xf]
  %v47 = vld [vmem:[%s1 + $0x48] sm:$0xf]
  %v48 = vld [vmem:[%s1 + $0x4c] sm:$0xf]
  %v49 = vld [vmem:[%s1 + $0x50] sm:$0xf]
  %v50 = vld [vmem:[%s1 + $0x54] sm:$0xf]
  %v51 = vld [vmem:[%s1 + $0x58] sm:$0xf]
  %v52 = vld [vmem:[%s1 + $0x5c] sm:$0xf]
  %v53 = vld [vmem:[%s1 + $0x60] sm:$0xf]
  %v54 = vld [vmem:[%s1 + $0x64] sm:$0xf]
  %v55 = vld [vmem:[%s1 + $0x68] sm:$0xf]
  %v56 = vld [vmem:[%s1 + $0x6c] sm:$0xf]
  %v57 = vld [vmem:[%s1 + $0x70] sm:$0xf]
  %v58 = vld [vmem:[%s1 + $0x74] sm:$0xf]
  %v59 = vld [vmem:[%s1 + $0x78] sm:$0xf]
  %v60 = vld [vmem:[%s1 + $0x7c] sm:$0xf]
  %v61 = vld [vmem:[%s1 + $0x80] sm:$0xf]
  %v62 = vld [vmem:[%s1 + $0x84] sm:$0xf]
  %v63 = vld [vmem:[%s1 + $0x88] sm:$0xf]
  %v64 = vld [vmem:[%s1 + $0x8c] sm:$0xf]
  %v73 = vunpack.c.l.b16 %v21
  %v74 = vunpack.c.h.b16 %v21
  %v75 = vunpack.c.l.b16 %v22
  %v76 = vunpack.c.l.b16 %v23
  %v77 = vunpack.c.h.b16 %v23
  %v78 = vunpack.c.l.b16 %v24
  %v79 = vunpack.c.l.b16 %v25
  %v80 = vunpack.c.h.b16 %v25
  %v81 = vunpack.c.l.b16 %v26
  %v82 = vunpack.c.l.b16 %v27
  %v83 = vunpack.c.h.b16 %v27
  %v84 = vunpack.c.l.b16 %v28
  %v85 = vpack.c.b16 %v76, %v73
  %v86 = vpack.c.b16 %v77, %v74
  %v87 = vpack.c.b16 %v78, %v75
  %v88 = vpack.c.b16 %v82, %v79
  %v89 = vpack.c.b16 %v83, %v80
  %v90 = vpack.c.b16 %v84, %v81
  %v131 = vunpack.c.l.b16 %v29
  %v132 = vunpack.c.l.b16 %v30
  %v133 = vunpack.c.l.b16 %v31
  %v134 = vunpack.c.l.b16 %v32
  %v135 = vunpack.c.l.b16 %v33
  %v136 = vunpack.c.l.b16 %v34
  %v137 = vunpack.c.l.b16 %v35
  %v138 = vunpack.c.l.b16 %v36
  %v139 = vunpack.c.l.b16 %v37
  %v140 = vunpack.c.l.b16 %v38
  %v141 = vunpack.c.l.b16 %v39
  %v142 = vunpack.c.l.b16 %v40
  %v143 = vunpack.c.l.b16 %v41
  %v144 = vunpack.c.l.b16 %v42
  %v145 = vunpack.c.l.b16 %v43
  %v146 = vunpack.c.l.b16 %v44
  %v147 = vunpack.c.l.b16 %v45
  %v148 = vunpack.c.l.b16 %v46
  %v149 = vunpack.c.l.b16 %v47
  %v150 = vunpack.c.l.b16 %v48
  %v151 = vunpack.c.l.b16 %v49
  %v152 = vunpack.c.l.b16 %v50
  %v153 = vunpack.c.l.b16 %v51
  %v154 = vunpack.c.l.b16 %v52
  %v155 = vunpack.c.l.b16 %v53
  %v156 = vunpack.c.l.b16 %v54
  %v157 = vunpack.c.l.b16 %v55
  %v158 = vunpack.c.l.b16 %v56
  %v159 = vunpack.c.l.b16 %v57
  %v160 = vunpack.c.l.b16 %v58
  %v161 = vunpack.c.l.b16 %v59
  %v162 = vunpack.c.l.b16 %v60
  %v163 = vunpack.c.l.b16 %v61
  %v164 = vunpack.c.l.b16 %v62
  %v165 = vunpack.c.l.b16 %v63
  %v166 = vunpack.c.l.b16 %v64
  %v167 = vpack.c.b16 %v132, %v131
  %v168 = vpack.c.b16 %v134, %v133
  %v169 = vpack.c.b16 %v136, %v135
  %v170 = vpack.c.b16 %v138, %v137
  %v171 = vpack.c.b16 %v140, %v139
  %v172 = vpack.c.b16 %v142, %v141
  %v173 = vpack.c.b16 %v144, %v143
  %v174 = vpack.c.b16 %v146, %v145
  %v175 = vpack.c.b16 %v148, %v147
  %v176 = vpack.c.b16 %v150, %v149
  %v177 = vpack.c.b16 %v152, %v151
  %v178 = vpack.c.b16 %v154, %v153
  %v179 = vpack.c.b16 %v156, %v155
  %v180 = vpack.c.b16 %v158, %v157
  %v181 = vpack.c.b16 %v160, %v159
  %v182 = vpack.c.b16 %v162, %v161
  %v183 = vpack.c.b16 %v164, %v163
  %v184 = vpack.c.b16 %v166, %v165
  %vm203 = vcmask 261120
  %v205 = vsel %vm203, %v87, 0
  %v208 = vsel %vm203, %v90, 0
  %210 = vmatpush.bf16.msra.mxu0 %v174
  %211 = vmatpush.bf16.msra.mxu0 %v173
  %212 = vmatpush.bf16.msra.mxu0 %v172
  %213 = vmatpush.bf16.msra.mxu0 %v171
  %214 = vmatpush.bf16.msra.mxu0 %v170
  %215 = vmatpush.bf16.msra.mxu0 %v169
  %216 = vmatpush.bf16.msra.mxu0 %v168
  %217 = vmatpush.bf16.msra.mxu0 %v167
  %218 = vmatmul.bf16.gmra.mxu0 %v85
  %v219 = vpop.f32.mrf.mxu0
  %v220 = vadd.f32 0.0, %v219
  %v221 = vpop.f32.mrf.mxu0
  %v222 = vadd.f32 0.0, %v221
  %223 = vmatmul.bf16.gmra.mxu0 %v88
  %v224 = vpop.f32.mrf.mxu0
  %v225 = vadd.f32 0.0, %v224
  %v226 = vpop.f32.mrf.mxu0
  %v227 = vadd.f32 0.0, %v226
  %228 = vdwg.mxu0
  %229 = vmatpush.bf16.msra.mxu0 %v182
  %230 = vmatpush.bf16.msra.mxu0 %v181
  %231 = vmatpush.bf16.msra.mxu0 %v180
  %232 = vmatpush.bf16.msra.mxu0 %v179
  %233 = vmatpush.bf16.msra.mxu0 %v178
  %234 = vmatpush.bf16.msra.mxu0 %v177
  %235 = vmatpush.bf16.msra.mxu0 %v176
  %236 = vmatpush.bf16.msra.mxu0 %v175
  %237 = vmatmul.bf16.gmra.mxu0 %v86
  %v238 = vpop.f32.mrf.mxu0
  %v239 = vadd.f32 %v220, %v238
  %v240 = vpop.f32.mrf.mxu0
  %v241 = vadd.f32 %v222, %v240
  %242 = vmatmul.bf16.gmra.mxu0 %v89
  %v243 = vpop.f32.mrf.mxu0
  %v244 = vadd.f32 %v225, %v243
  %v245 = vpop.f32.mrf.mxu0
  %v246 = vadd.f32 %v227, %v245
  %247 = vdwg.mxu0
  %248 = vmatpush.bf16.msra.mxu0 0
  %249 = vmatpush.bf16.msra.mxu0 0
  %250 = vmatpush.bf16.msra.mxu0 0
  %251 = vmatpush.bf16.msra.mxu0 0
  %252 = vmatpush.bf16.msra.mxu0 0
  %253 = vmatpush.bf16.msra.mxu0 0
  %254 = vmatpush.bf16.msra.mxu0 %v184
  %255 = vmatpush.bf16.msra.mxu0 %v183
  %256 = vmatmul.bf16.gmra.mxu0 %v205
  %v257 = vpop.f32.mrf.mxu0
  %v258 = vadd.f32 %v239, %v257
  %v259 = vpop.f32.mrf.mxu0
  %v260 = vadd.f32 %v241, %v259
  %261 = vmatmul.bf16.gmra.mxu0 %v208
  %v262 = vpop.f32.mrf.mxu0
  %v263 = vadd.f32 %v244, %v262
  %v264 = vpop.f32.mrf.mxu0
  %v265 = vadd.f32 %v246, %v264
  %266 = vdwg.mxu0
  %v267 = vld [vmem:[%s2] sm:$0xff]
  %v268 = vld [vmem:[%s2 + $0x8] sm:$0xff]
  %v269 = vld [vmem:[%s2 + $0x10] sm:$0xff]
  %v270 = vld [vmem:[%s2 + $0x18] sm:$0xff]
  %272 = vset.pattern.permute.xlu0 0
  %273 = vperm.xlu0 %272, %v267
  %v274 = vpop.permute.xlu0 %273
  %277 = vset.pattern.permute.xlu0 0
  %278 = vperm.xlu0 %277, %v268
  %v279 = vpop.permute.xlu0 %278
  %282 = vset.pattern.permute.xlu0 0
  %283 = vperm.xlu0 %282, %v269
  %v284 = vpop.permute.xlu0 %283
  %287 = vset.pattern.permute.xlu0 0
  %288 = vperm.xlu0 %287, %v270
  %v289 = vpop.permute.xlu0 %288
  %v291 = vmul.f32 %v258, %v274
  %v292 = vmul.f32 %v260, %v279
  %v293 = vmul.f32 %v263, %v284
  %v294 = vmul.f32 %v265, %v289
  %v295 = vld [vmem:[%s3] sm:$0xff]
  %v296 = vld [vmem:[%s3 + $0x8] sm:$0xff]
  %v297 = vld [vmem:[%s3 + $0x10] sm:$0xff]
  %v298 = vld [vmem:[%s3 + $0x18] sm:$0xff]
  %300 = vset.pattern.permute.xlu0 0
  %301 = vperm.xlu0 %300, %v295
  %v302 = vpop.permute.xlu0 %301
  %305 = vset.pattern.permute.xlu0 0
  %306 = vperm.xlu0 %305, %v296
  %v307 = vpop.permute.xlu0 %306
  %310 = vset.pattern.permute.xlu0 0
  %311 = vperm.xlu0 %310, %v297
  %v312 = vpop.permute.xlu0 %311
  %315 = vset.pattern.permute.xlu0 0
  %316 = vperm.xlu0 %315, %v298
  %v317 = vpop.permute.xlu0 %316
  %v319 = vadd.f32 %v291, %v302
  %v320 = vadd.f32 %v292, %v307
  %v321 = vadd.f32 %v293, %v312
  %v322 = vadd.f32 %v294, %v317
  %v323 = vld [vmem:[%s4] sm:$0xff]
  %v324 = vld [vmem:[%s4 + $0x8] sm:$0xff]
  %v325 = vld [vmem:[%s4 + $0x10] sm:$0xff]
  %v326 = vld [vmem:[%s4 + $0x18] sm:$0xff]
  %v327 = vadd.f32 %v319, %v323
  %v328 = vadd.f32 %v320, %v324
  %v329 = vadd.f32 %v321, %v325
  %v330 = vadd.f32 %v322, %v326
  %v331 = vmax.f32 %v327, 0.0
  %v332 = vmax.f32 %v328, 0.0
  %v333 = vmax.f32 %v329, 0.0
  %v334 = vmax.f32 %v330, 0.0
  %335 = vst [vmem:[%s5] sm:$0xff] %v331
  %336 = vst [vmem:[%s5 + $0x8] sm:$0xff] %v332
  %337 = vst [vmem:[%s5 + $0x10] sm:$0xff] %v333
  %338 = vst [vmem:[%s5 + $0x18] sm:$0xff] %v334
  // Predicated region
  $region22: #{_lambda_.22} parent=0 // pred_check
    _
  $region23: #{_lambda_.22} parent=0 // pred_check_branch
    %340 = sbr.rel (0) target = $region25
  $region24: #{_lambda_.22} parent=0 // pred_region
    _
  $region25: #{_lambda_.22} parent=0 // pred_fallthru
    _
  // Predicated region
  $region26: #{_lambda_.22} parent=0 // pred_check
    _
  $region27: #{_lambda_.22} parent=0 // pred_check_branch
    %342 = sbr.rel (0) target = $region29
  $region28: #{_lambda_.22} parent=0 // pred_region
    _
  $region29: #{_lambda_.22} parent=0 // pred_fallthru
    _

// kernel: _lambda_.23
$region0: #{_lambda_.23}
  #allocation0 [shape = 'u32[]', space=smem, size = 0x4, offset = 0x4, fixed_abs, tag = 'smem constant byte address 0x4 - core index']
  #allocation1 [shape = 'u32[72,128]{1,0:T(1,128)}', space=vmem, size = 0x9000, scoped, tag = 'internal scratch']
  %s0 = inlined_call_operand.vmem [shape: bf16[64,288], index: 0, kind: input, shape index: {}]
  %s1 = inlined_call_operand.vmem [shape: bf16[288,128], index: 1, kind: input, shape index: {}]
  %s2 = inlined_call_operand.vmem [shape: f32[64,1], index: 2, kind: input, shape index: {}]
  %s3 = inlined_call_operand.vmem [shape: f32[64,1], index: 3, kind: input, shape index: {}]
  %s4 = inlined_call_operand.vmem [shape: f32[64,128], index: 4, kind: output, shape index: {}]
  %s5 = sld [smem:[#allocation0]]
  $region26: #{_lambda_.23} parent=0
    _
  %s7 = ssub.s32 1, %s5
  %s8 = scalar_select 0, %s7, %s5
  // Predicated region
  $region2: #{_lambda_.23} parent=0 // pred_check
    _
  $region3: #{_lambda_.23} parent=0 // pred_check_branch
    %10 = sbr.rel (0) target = $region5
  $region4: #{_lambda_.23} parent=0 // pred_region
    _
  $region5: #{_lambda_.23} parent=0 // pred_fallthru
    _
  // Predicated region
  $region6: #{_lambda_.23} parent=0 // pred_check
    _
  $region7: #{_lambda_.23} parent=0 // pred_check_branch
    %12 = sbr.rel (0) target = $region9
  $region8: #{_lambda_.23} parent=0 // pred_region
    _
  $region9: #{_lambda_.23} parent=0 // pred_fallthru
    _
  // Predicated region
  $region10: #{_lambda_.23} parent=0 // pred_check
    _
  $region11: #{_lambda_.23} parent=0 // pred_check_branch
    %14 = sbr.rel (0) target = $region13
  $region12: #{_lambda_.23} parent=0 // pred_region
    _
  $region13: #{_lambda_.23} parent=0 // pred_fallthru
    _
  // Predicated region
  $region14: #{_lambda_.23} parent=0 // pred_check
    _
  $region15: #{_lambda_.23} parent=0 // pred_check_branch
    %16 = sbr.rel (0) target = $region17
  $region16: #{_lambda_.23} parent=0 // pred_region
    _
  $region17: #{_lambda_.23} parent=0 // pred_fallthru
    _
  %v18 = vld [vmem:[%s0] sm:$0xff]
  %v19 = vld [vmem:[%s0 + $0x8] sm:$0xf]
  %v20 = vld [vmem:[%s0 + $0xc] sm:$0xff]
  %v21 = vld [vmem:[%s0 + $0x14] sm:$0xf]
  %v22 = vld [vmem:[%s0 + $0x18] sm:$0xff]
  %v23 = vld [vmem:[%s0 + $0x20] sm:$0xf]
  %v24 = vld [vmem:[%s0 + $0x24] sm:$0xff]
  %v25 = vld [vmem:[%s0 + $0x2c] sm:$0xf]
  %v26 = vld [vmem:[%s0 + $0x30] sm:$0xff]
  %v27 = vld [vmem:[%s0 + $0x38] sm:$0xf]
  %v28 = vld [vmem:[%s0 + $0x3c] sm:$0xff]
  %v29 = vld [vmem:[%s0 + $0x44] sm:$0xf]
  %v30 = vld [vmem:[%s0 + $0x48] sm:$0xff]
  %v31 = vld [vmem:[%s0 + $0x50] sm:$0xf]
  %v32 = vld [vmem:[%s0 + $0x54] sm:$0xff]
  %v33 = vld [vmem:[%s0 + $0x5c] sm:$0xf]
  %v34 = vld [vmem:[%s1] sm:$0xf]
  %v35 = vld [vmem:[%s1 + $0x4] sm:$0xf]
  %v36 = vld [vmem:[%s1 + $0x8] sm:$0xf]
  %v37 = vld [vmem:[%s1 + $0xc] sm:$0xf]
  %v38 = vld [vmem:[%s1 + $0x10] sm:$0xf]
  %v39 = vld [vmem:[%s1 + $0x14] sm:$0xf]
  %v40 = vld [vmem:[%s1 + $0x18] sm:$0xf]
  %v41 = vld [vmem:[%s1 + $0x1c] sm:$0xf]
  %v42 = vld [vmem:[%s1 + $0x20] sm:$0xf]
  %v43 = vld [vmem:[%s1 + $0x24] sm:$0xf]
  %v44 = vld [vmem:[%s1 + $0x28] sm:$0xf]
  %v45 = vld [vmem:[%s1 + $0x2c] sm:$0xf]
  %v46 = vld [vmem:[%s1 + $0x30] sm:$0xf]
  %v47 = vld [vmem:[%s1 + $0x34] sm:$0xf]
  %v48 = vld [vmem:[%s1 + $0x38] sm:$0xf]
  %v49 = vld [vmem:[%s1 + $0x3c] sm:$0xf]
  %v50 = vld [vmem:[%s1 + $0x40] sm:$0xf]
  %v51 = vld [vmem:[%s1 + $0x44] sm:$0xf]
  %v52 = vld [vmem:[%s1 + $0x48] sm:$0xf]
  %v53 = vld [vmem:[%s1 + $0x4c] sm:$0xf]
  %v54 = vld [vmem:[%s1 + $0x50] sm:$0xf]
  %v55 = vld [vmem:[%s1 + $0x54] sm:$0xf]
  %v56 = vld [vmem:[%s1 + $0x58] sm:$0xf]
  %v57 = vld [vmem:[%s1 + $0x5c] sm:$0xf]
  %v58 = vld [vmem:[%s1 + $0x60] sm:$0xf]
  %v59 = vld [vmem:[%s1 + $0x64] sm:$0xf]
  %v60 = vld [vmem:[%s1 + $0x68] sm:$0xf]
  %v61 = vld [vmem:[%s1 + $0x6c] sm:$0xf]
  %v62 = vld [vmem:[%s1 + $0x70] sm:$0xf]
  %v63 = vld [vmem:[%s1 + $0x74] sm:$0xf]
  %v64 = vld [vmem:[%s1 + $0x78] sm:$0xf]
  %v65 = vld [vmem:[%s1 + $0x7c] sm:$0xf]
  %v66 = vld [vmem:[%s1 + $0x80] sm:$0xf]
  %v67 = vld [vmem:[%s1 + $0x84] sm:$0xf]
  %v68 = vld [vmem:[%s1 + $0x88] sm:$0xf]
  %v69 = vld [vmem:[%s1 + $0x8c] sm:$0xf]
  %v86 = vunpack.c.l.b16 %v18
  %v87 = vunpack.c.h.b16 %v18
  %v88 = vunpack.c.l.b16 %v19
  %v89 = vunpack.c.l.b16 %v20
  %v90 = vunpack.c.h.b16 %v20
  %v91 = vunpack.c.l.b16 %v21
  %v92 = vunpack.c.l.b16 %v22
  %v93 = vunpack.c.h.b16 %v22
  %v94 = vunpack.c.l.b16 %v23
  %v95 = vunpack.c.l.b16 %v24
  %v96 = vunpack.c.h.b16 %v24
  %v97 = vunpack.c.l.b16 %v25
  %v98 = vunpack.c.l.b16 %v26
  %v99 = vunpack.c.h.b16 %v26
  %v100 = vunpack.c.l.b16 %v27
  %v101 = vunpack.c.l.b16 %v28
  %v102 = vunpack.c.h.b16 %v28
  %v103 = vunpack.c.l.b16 %v29
  %v104 = vunpack.c.l.b16 %v30
  %v105 = vunpack.c.h.b16 %v30
  %v106 = vunpack.c.l.b16 %v31
  %v107 = vunpack.c.l.b16 %v32
  %v108 = vunpack.c.h.b16 %v32
  %v109 = vunpack.c.l.b16 %v33
  %v110 = vpack.c.b16 %v89, %v86
  %v111 = vpack.c.b16 %v90, %v87
  %v112 = vpack.c.b16 %v91, %v88
  %v113 = vpack.c.b16 %v95, %v92
  %v114 = vpack.c.b16 %v96, %v93
  %v115 = vpack.c.b16 %v97, %v94
  %v116 = vpack.c.b16 %v101, %v98
  %v117 = vpack.c.b16 %v102, %v99
  %v118 = vpack.c.b16 %v103, %v100
  %v119 = vpack.c.b16 %v107, %v104
  %v120 = vpack.c.b16 %v108, %v105
  %v121 = vpack.c.b16 %v109, %v106
  %v166 = vunpack.c.l.b16 %v34
  %v167 = vunpack.c.l.b16 %v35
  %v168 = vunpack.c.l.b16 %v36
  %v169 = vunpack.c.l.b16 %v37
  %v170 = vunpack.c.l.b16 %v38
  %v171 = vunpack.c.l.b16 %v39
  %v172 = vunpack.c.l.b16 %v40
  %v173 = vunpack.c.l.b16 %v41
  %v174 = vunpack.c.l.b16 %v42
  %v175 = vunpack.c.l.b16 %v43
  %v176 = vunpack.c.l.b16 %v44
  %v177 = vunpack.c.l.b16 %v45
  %v178 = vunpack.c.l.b16 %v46
  %v179 = vunpack.c.l.b16 %v47
  %v180 = vunpack.c.l.b16 %v48
  %v181 = vunpack.c.l.b16 %v49
  %v182 = vunpack.c.l.b16 %v50
  %v183 = vunpack.c.l.b16 %v51
  %v184 = vunpack.c.l.b16 %v52
  %v185 = vunpack.c.l.b16 %v53
  %v186 = vunpack.c.l.b16 %v54
  %v187 = vunpack.c.l.b16 %v55
  %v188 = vunpack.c.l.b16 %v56
  %v189 = vunpack.c.l.b16 %v57
  %v190 = vunpack.c.l.b16 %v58
  %v191 = vunpack.c.l.b16 %v59
  %v192 = vunpack.c.l.b16 %v60
  %v193 = vunpack.c.l.b16 %v61
  %v194 = vunpack.c.l.b16 %v62
  %v195 = vunpack.c.l.b16 %v63
  %v196 = vunpack.c.l.b16 %v64
  %v197 = vunpack.c.l.b16 %v65
  %v198 = vunpack.c.l.b16 %v66
  %v199 = vunpack.c.l.b16 %v67
  %v200 = vunpack.c.l.b16 %v68
  %v201 = vunpack.c.l.b16 %v69
  %v202 = vpack.c.b16 %v167, %v166
  %v203 = vpack.c.b16 %v169, %v168
  %v204 = vpack.c.b16 %v171, %v170
  %v205 = vpack.c.b16 %v173, %v172
  %v206 = vpack.c.b16 %v175, %v174
  %v207 = vpack.c.b16 %v177, %v176
  %v208 = vpack.c.b16 %v179, %v178
  %v209 = vpack.c.b16 %v181, %v180
  %v210 = vpack.c.b16 %v183, %v182
  %v211 = vpack.c.b16 %v185, %v184
  %v212 = vpack.c.b16 %v187, %v186
  %v213 = vpack.c.b16 %v189, %v188
  %v214 = vpack.c.b16 %v191, %v190
  %v215 = vpack.c.b16 %v193, %v192
  %v216 = vpack.c.b16 %v195, %v194
  %v217 = vpack.c.b16 %v197, %v196
  %v218 = vpack.c.b16 %v199, %v198
  %v219 = vpack.c.b16 %v201, %v200
  %vm238 = vcmask 261120
  %v240 = vsel %vm238, %v112, 0
  %v243 = vsel %vm238, %v115, 0
  %v246 = vsel %vm238, %v118, 0
  %v249 = vsel %vm238, %v121, 0
  %251 = vmatpush.bf16.msra.mxu0 %v209
  %252 = vmatpush.bf16.msra.mxu0 %v208
  %253 = vmatpush.bf16.msra.mxu0 %v207
  %254 = vmatpush.bf16.msra.mxu0 %v206
  %255 = vmatpush.bf16.msra.mxu0 %v205
  %256 = vmatpush.bf16.msra.mxu0 %v204
  %257 = vmatpush.bf16.msra.mxu0 %v203
  %258 = vmatpush.bf16.msra.mxu0 %v202
  %259 = vmatmul.bf16.gmra.mxu0 %v110
  %v260 = vpop.f32.mrf.mxu0
  %v261 = vadd.f32 0.0, %v260
  %v262 = vpop.f32.mrf.mxu0
  %v263 = vadd.f32 0.0, %v262
  %264 = vmatmul.bf16.gmra.mxu0 %v113
  %v265 = vpop.f32.mrf.mxu0
  %v266 = vadd.f32 0.0, %v265
  %v267 = vpop.f32.mrf.mxu0
  %v268 = vadd.f32 0.0, %v267
  %269 = vmatmul.bf16.gmra.mxu0 %v116
  %v270 = vpop.f32.mrf.mxu0
  %v271 = vadd.f32 0.0, %v270
  %v272 = vpop.f32.mrf.mxu0
  %v273 = vadd.f32 0.0, %v272
  %274 = vmatmul.bf16.gmra.mxu0 %v119
  %v275 = vpop.f32.mrf.mxu0
  %v276 = vadd.f32 0.0, %v275
  %v277 = vpop.f32.mrf.mxu0
  %v278 = vadd.f32 0.0, %v277
  %279 = vdwg.mxu0
  %280 = vmatpush.bf16.msra.mxu0 %v217
  %281 = vmatpush.bf16.msra.mxu0 %v216
  %282 = vmatpush.bf16.msra.mxu0 %v215
  %283 = vmatpush.bf16.msra.mxu0 %v214
  %284 = vmatpush.bf16.msra.mxu0 %v213
  %285 = vmatpush.bf16.msra.mxu0 %v212
  %286 = vmatpush.bf16.msra.mxu0 %v211
  %287 = vmatpush.bf16.msra.mxu0 %v210
  %288 = vmatmul.bf16.gmra.mxu0 %v111
  %v289 = vpop.f32.mrf.mxu0
  %v290 = vadd.f32 %v261, %v289
  %v291 = vpop.f32.mrf.mxu0
  %v292 = vadd.f32 %v263, %v291
  %293 = vmatmul.bf16.gmra.mxu0 %v114
  %v294 = vpop.f32.mrf.mxu0
  %v295 = vadd.f32 %v266, %v294
  %v296 = vpop.f32.mrf.mxu0
  %v297 = vadd.f32 %v268, %v296
  %298 = vmatmul.bf16.gmra.mxu0 %v117
  %v299 = vpop.f32.mrf.mxu0
  %v300 = vadd.f32 %v271, %v299
  %v301 = vpop.f32.mrf.mxu0
  %v302 = vadd.f32 %v273, %v301
  %303 = vmatmul.bf16.gmra.mxu0 %v120
  %v304 = vpop.f32.mrf.mxu0
  %v305 = vadd.f32 %v276, %v304
  %v306 = vpop.f32.mrf.mxu0
  %v307 = vadd.f32 %v278, %v306
  %308 = vdwg.mxu0
  %309 = vmatpush.bf16.msra.mxu0 0
  %310 = vmatpush.bf16.msra.mxu0 0
  %311 = vmatpush.bf16.msra.mxu0 0
  %312 = vmatpush.bf16.msra.mxu0 0
  %313 = vmatpush.bf16.msra.mxu0 0
  %314 = vmatpush.bf16.msra.mxu0 0
  %315 = vmatpush.bf16.msra.mxu0 %v219
  %316 = vmatpush.bf16.msra.mxu0 %v218
  %317 = vmatmul.bf16.gmra.mxu0 %v240
  %v318 = vpop.f32.mrf.mxu0
  %v319 = vadd.f32 %v290, %v318
  %v320 = vpop.f32.mrf.mxu0
  %v321 = vadd.f32 %v292, %v320
  %322 = vmatmul.bf16.gmra.mxu0 %v243
  %v323 = vpop.f32.mrf.mxu0
  %v324 = vadd.f32 %v295, %v323
  %v325 = vpop.f32.mrf.mxu0
  %v326 = vadd.f32 %v297, %v325
  %327 = vmatmul.bf16.gmra.mxu0 %v246
  %v328 = vpop.f32.mrf.mxu0
  %v329 = vadd.f32 %v300, %v328
  %v330 = vpop.f32.mrf.mxu0
  %v331 = vadd.f32 %v302, %v330
  %332 = vmatmul.bf16.gmra.mxu0 %v249
  %v333 = vpop.f32.mrf.mxu0
  %v334 = vadd.f32 %v305, %v333
  %v335 = vpop.f32.mrf.mxu0
  %v336 = vadd.f32 %v307, %v335
  %337 = vdwg.mxu0
  %v338 = vld [vmem:[%s2] sm:$0xff]
  %v339 = vld [vmem:[%s2 + $0x8] sm:$0xff]
  %v340 = vld [vmem:[%s2 + $0x10] sm:$0xff]
  %v341 = vld [vmem:[%s2 + $0x18] sm:$0xff]
  %v342 = vld [vmem:[%s2 + $0x20] sm:$0xff]
  %v343 = vld [vmem:[%s2 + $0x28] sm:$0xff]
  %v344 = vld [vmem:[%s2 + $0x30] sm:$0xff]
  %v345 = vld [vmem:[%s2 + $0x38] sm:$0xff]
  %347 = vset.pattern.permute.xlu0 0
  %348 = vperm.xlu0 %347, %v338
  %v349 = vpop.permute.xlu0 %348
  %352 = vset.pattern.permute.xlu0 0
  %353 = vperm.xlu0 %352, %v339
  %v354 = vpop.permute.xlu0 %353
  %357 = vset.pattern.permute.xlu0 0
  %358 = vperm.xlu0 %357, %v340
  %v359 = vpop.permute.xlu0 %358
  %362 = vset.pattern.permute.xlu0 0
  %363 = vperm.xlu0 %362, %v341
  %v364 = vpop.permute.xlu0 %363
  %367 = vset.pattern.permute.xlu0 0
  %368 = vperm.xlu0 %367, %v342
  %v369 = vpop.permute.xlu0 %368
  %372 = vset.pattern.permute.xlu0 0
  %373 = vperm.xlu0 %372, %v343
  %v374 = vpop.permute.xlu0 %373
  %377 = vset.pattern.permute.xlu0 0
  %378 = vperm.xlu0 %377, %v344
  %v379 = vpop.permute.xlu0 %378
  %382 = vset.pattern.permute.xlu0 0
  %383 = vperm.xlu0 %382, %v345
  %v384 = vpop.permute.xlu0 %383
  %v386 = vmul.f32 %v319, %v349
  %v387 = vmul.f32 %v321, %v354
  %v388 = vmul.f32 %v324, %v359
  %v389 = vmul.f32 %v326, %v364
  %v390 = vmul.f32 %v329, %v369
  %v391 = vmul.f32 %v331, %v374
  %v392 = vmul.f32 %v334, %v379
  %v393 = vmul.f32 %v336, %v384
  %v394 = vld [vmem:[%s3] sm:$0xff]
  %v395 = vld [vmem:[%s3 + $0x8] sm:$0xff]
  %v396 = vld [vmem:[%s3 + $0x10] sm:$0xff]
  %v397 = vld [vmem:[%s3 + $0x18] sm:$0xff]
  %v398 = vld [vmem:[%s3 + $0x20] sm:$0xff]
  %v399 = vld [vmem:[%s3 + $0x28] sm:$0xff]
  %v400 = vld [vmem:[%s3 + $0x30] sm:$0xff]
  %v401 = vld [vmem:[%s3 + $0x38] sm:$0xff]
  %403 = vset.pattern.permute.xlu0 0
  %404 = vperm.xlu0 %403, %v394
  %v405 = vpop.permute.xlu0 %404
  %408 = vset.pattern.permute.xlu0 0
  %409 = vperm.xlu0 %408, %v395
  %v410 = vpop.permute.xlu0 %409
  %413 = vset.pattern.permute.xlu0 0
  %414 = vperm.xlu0 %413, %v396
  %v415 = vpop.permute.xlu0 %414
  %418 = vset.pattern.permute.xlu0 0
  %419 = vperm.xlu0 %418, %v397
  %v420 = vpop.permute.xlu0 %419
  %423 = vset.pattern.permute.xlu0 0
  %424 = vperm.xlu0 %423, %v398
  %v425 = vpop.permute.xlu0 %424
  %428 = vset.pattern.permute.xlu0 0
  %429 = vperm.xlu0 %428, %v399
  %v430 = vpop.permute.xlu0 %429
  %433 = vset.pattern.permute.xlu0 0
  %434 = vperm.xlu0 %433, %v400
  %v435 = vpop.permute.xlu0 %434
  %438 = vset.pattern.permute.xlu0 0
  %439 = vperm.xlu0 %438, %v401
  %v440 = vpop.permute.xlu0 %439
  %v442 = vadd.f32 %v386, %v405
  %v443 = vadd.f32 %v387, %v410
  %v444 = vadd.f32 %v388, %v415
  %v445 = vadd.f32 %v389, %v420
  %v446 = vadd.f32 %v390, %v425
  %v447 = vadd.f32 %v391, %v430
  %v448 = vadd.f32 %v392, %v435
  %v449 = vadd.f32 %v393, %v440
  %v450 = vmax.f32 %v442, 0.0
  %v451 = vmax.f32 %v443, 0.0
  %v452 = vmax.f32 %v444, 0.0
  %v453 = vmax.f32 %v445, 0.0
  %v454 = vmax.f32 %v446, 0.0
  %v455 = vmax.f32 %v447, 0.0
  %v456 = vmax.f32 %v448, 0.0
  %v457 = vmax.f32 %v449, 0.0
  %458 = vst [vmem:[%s4] sm:$0xff] %v450
  %459 = vst [vmem:[%s4 + $0x8] sm:$0xff] %v451
  %460 = vst [vmem:[%s4 + $0x10] sm:$0xff] %v452
  %461 = vst [vmem:[%s4 + $0x18] sm:$0xff] %v453
  %462 = vst [vmem:[%s4 + $0x20] sm:$0xff] %v454
  %463 = vst [vmem:[%s4 + $0x28] sm:$0xff] %v455
  %464 = vst [vmem:[%s4 + $0x30] sm:$0xff] %v456
  %465 = vst [vmem:[%s4 + $0x38] sm:$0xff] %v457
  // Predicated region
  $region18: #{_lambda_.23} parent=0 // pred_check
    _
  $region19: #{_lambda_.23} parent=0 // pred_check_branch
    %467 = sbr.rel (0) target = $region21
  $region20: #{_lambda_.23} parent=0 // pred_region
    _
  $region21: #{_lambda_.23} parent=0 // pred_fallthru
    _
  // Predicated region
  $region22: #{_lambda_.23} parent=0 // pred_check
    _
  $region23: #{_lambda_.23} parent=0 // pred_check_branch
    %469 = sbr.rel (0) target = $region25
  $region24: #{_lambda_.23} parent=0 // pred_region
    _
  $region25: #{_lambda_.23} parent=0 // pred_fallthru
    _

// kernel: _lambda_.24
$region0: #{_lambda_.24}
  #allocation0 [shape = 'u32[]', space=smem, size = 0x4, offset = 0x4, fixed_abs, tag = 'smem constant byte address 0x4 - core index']
  #allocation1 [shape = 'u32[72,128]{1,0:T(1,128)}', space=vmem, size = 0x9000, scoped, tag = 'internal scratch']
  %s0 = inlined_call_operand.vmem [shape: bf16[64,576], index: 0, kind: input, shape index: {}]
  %s1 = inlined_call_operand.vmem [shape: bf16[576,128], index: 1, kind: input, shape index: {}]
  %s2 = inlined_call_operand.vmem [shape: f32[64,1], index: 2, kind: input, shape index: {}]
  %s3 = inlined_call_operand.vmem [shape: f32[64,1], index: 3, kind: input, shape index: {}]
  %s4 = inlined_call_operand.vmem [shape: bf16[64,32], index: 4, kind: input, shape index: {}]
  %s5 = inlined_call_operand.vmem [shape: bf16[32,128], index: 5, kind: input, shape index: {}]
  %s6 = inlined_call_operand.vmem [shape: f32[64,1], index: 6, kind: input, shape index: {}]
  %s7 = inlined_call_operand.vmem [shape: f32[64,1], index: 7, kind: input, shape index: {}]
  %s8 = inlined_call_operand.vmem [shape: f32[64,128], index: 8, kind: output, shape index: {}]
  %s9 = sld [smem:[#allocation0]]
  $region42: #{_lambda_.24} parent=0
    _
  %s11 = ssub.s32 1, %s9
  %s12 = scalar_select 0, %s11, %s9
  // Predicated region
  $region2: #{_lambda_.24} parent=0 // pred_check
    _
  $region3: #{_lambda_.24} parent=0 // pred_check_branch
    %14 = sbr.rel (0) target = $region5
  $region4: #{_lambda_.24} parent=0 // pred_region
    _
  $region5: #{_lambda_.24} parent=0 // pred_fallthru
    _
  // Predicated region
  $region6: #{_lambda_.24} parent=0 // pred_check
    _
  $region7: #{_lambda_.24} parent=0 // pred_check_branch
    %16 = sbr.rel (0) target = $region9
  $region8: #{_lambda_.24} parent=0 // pred_region
    _
  $region9: #{_lambda_.24} parent=0 // pred_fallthru
    _
  // Predicated region
  $region10: #{_lambda_.24} parent=0 // pred_check
    _
  $region11: #{_lambda_.24} parent=0 // pred_check_branch
    %18 = sbr.rel (0) target = $region13
  $region12: #{_lambda_.24} parent=0 // pred_region
    _
  $region13: #{_lambda_.24} parent=0 // pred_fallthru
    _
  // Predicated region
  $region14: #{_lambda_.24} parent=0 // pred_check
    _
  $region15: #{_lambda_.24} parent=0 // pred_check_branch
    %20 = sbr.rel (0) target = $region17
  $region16: #{_lambda_.24} parent=0 // pred_region
    _
  $region17: #{_lambda_.24} parent=0 // pred_fallthru
    _
  // Predicated region
  $region18: #{_lambda_.24} parent=0 // pred_check
    _
  $region19: #{_lambda_.24} parent=0 // pred_check_branch
    %22 = sbr.rel (0) target = $region21
  $region20: #{_lambda_.24} parent=0 // pred_region
    _
  $region21: #{_lambda_.24} parent=0 // pred_fallthru
    _
  // Predicated region
  $region22: #{_lambda_.24} parent=0 // pred_check
    _
  $region23: #{_lambda_.24} parent=0 // pred_check_branch
    %24 = sbr.rel (0) target = $region25
  $region24: #{_lambda_.24} parent=0 // pred_region
    _
  $region25: #{_lambda_.24} parent=0 // pred_fallthru
    _
  // Predicated region
  $region26: #{_lambda_.24} parent=0 // pred_check
    _
  $region27: #{_lambda_.24} parent=0 // pred_check_branch
    %26 = sbr.rel (0) target = $region29
  $region28: #{_lambda_.24} parent=0 // pred_region
    _
  $region29: #{_lambda_.24} parent=0 // pred_fallthru
    _
  // Predicated region
  $region30: #{_lambda_.24} parent=0 // pred_check
    _
  $region31: #{_lambda_.24} parent=0 // pred_check_branch
    %28 = sbr.rel (0) target = $region33
  $region32: #{_lambda_.24} parent=0 // pred_region
    _
  $region33: #{_lambda_.24} parent=0 // pred_fallthru
    _
  %v30 = vld [vmem:[%s0] sm:$0xff]
  %v31 = vld [vmem:[%s0 + $0x8] sm:$0xff]
  %v32 = vld [vmem:[%s0 + $0x10] sm:$0xf]
  %v33 = vld [vmem:[%s0 + $0x14] sm:$0xff]
  %v34 = vld [vmem:[%s0 + $0x1c] sm:$0xff]
  %v35 = vld [vmem:[%s0 + $0x24] sm:$0xf]
  %v36 = vld [vmem:[%s0 + $0x28] sm:$0xff]
  %v37 = vld [vmem:[%s0 + $0x30] sm:$0xff]
  %v38 = vld [vmem:[%s0 + $0x38] sm:$0xf]
  %v39 = vld [vmem:[%s0 + $0x3c] sm:$0xff]
  %v40 = vld [vmem:[%s0 + $0x44] sm:$0xff]
  %v41 = vld [vmem:[%s0 + $0x4c] sm:$0xf]
  %v42 = vld [vmem:[%s0 + $0x50] sm:$0xff]
  %v43 = vld [vmem:[%s0 + $0x58] sm:$0xff]
  %v44 = vld [vmem:[%s0 + $0x60] sm:$0xf]
  %v45 = vld [vmem:[%s0 + $0x64] sm:$0xff]
  %v46 = vld [vmem:[%s0 + $0x6c] sm:$0xff]
  %v47 = vld [vmem:[%s0 + $0x74] sm:$0xf]
  %v48 = vld [vmem:[%s0 + $0x78] sm:$0xff]
  %v49 = vld [vmem:[%s0 + $0x80] sm:$0xff]
  %v50 = vld [vmem:[%s0 + $0x88] sm:$0xf]
  %v51 = vld [vmem:[%s0 + $0x8c] sm:$0xff]
  %v52 = vld [vmem:[%s0 + $0x94] sm:$0xff]
  %v53 = vld [vmem:[%s0 + $0x9c] sm:$0xf]
  %v54 = vld [vmem:[%s1] sm:$0xf]
  %v55 = vld [vmem:[%s1 + $0x4] sm:$0xf]
  %v56 = vld [vmem:[%s1 + $0x8] sm:$0xf]
  %v57 = vld [vmem:[%s1 + $0xc] sm:$0xf]
  %v58 = vld [vmem:[%s1 + $0x10] sm:$0xf]
  %v59 = vld [vmem:[%s1 + $0x14] sm:$0xf]
  %v60 = vld [vmem:[%s1 + $0x18] sm:$0xf]
  %v61 = vld [vmem:[%s1 + $0x1c] sm:$0xf]
  %v62 = vld [vmem:[%s1 + $0x20] sm:$0xf]
  %v63 = vld [vmem:[%s1 + $0x24] sm:$0xf]
  %v64 = vld [vmem:[%s1 + $0x28] sm:$0xf]
  %v65 = vld [vmem:[%s1 + $0x2c] sm:$0xf]
  %v66 = vld [vmem:[%s1 + $0x30] sm:$0xf]
  %v67 = vld [vmem:[%s1 + $0x34] sm:$0xf]
  %v68 = vld [vmem:[%s1 + $0x38] sm:$0xf]
  %v69 = vld [vmem:[%s1 + $0x3c] sm:$0xf]
  %v70 = vld [vmem:[%s1 + $0x40] sm:$0xf]
  %v71 = vld [vmem:[%s1 + $0x44] sm:$0xf]
  %v72 = vld [vmem:[%s1 + $0x48] sm:$0xf]
  %v73 = vld [vmem:[%s1 + $0x4c] sm:$0xf]
  %v74 = vld [vmem:[%s1 + $0x50] sm:$0xf]
  %v75 = vld [vmem:[%s1 + $0x54] sm:$0xf]
  %v76 = vld [vmem:[%s1 + $0x58] sm:$0xf]
  %v77 = vld [vmem:[%s1 + $0x5c] sm:$0xf]
  %v78 = vld [vmem:[%s1 + $0x60] sm:$0xf]
  %v79 = vld [vmem:[%s1 + $0x64] sm:$0xf]
  %v80 = vld [vmem:[%s1 + $0x68] sm:$0xf]
  %v81 = vld [vmem:[%s1 + $0x6c] sm:$0xf]
  %v82 = vld [vmem:[%s1 + $0x70] sm:$0xf]
  %v83 = vld [vmem:[%s1 + $0x74] sm:$0xf]
  %v84 = vld [vmem:[%s1 + $0x78] sm:$0xf]
  %v85 = vld [vmem:[%s1 + $0x7c] sm:$0xf]
  %v86 = vld [vmem:[%s1 + $0x80] sm:$0xf]
  %v87 = vld [vmem:[%s1 + $0x84] sm:$0xf]
  %v88 = vld [vmem:[%s1 + $0x88] sm:$0xf]
  %v89 = vld [vmem:[%s1 + $0x8c] sm:$0xf]
  %v90 = vld [vmem:[%s1 + $0x90] sm:$0xf]
  %v91 = vld [vmem:[%s1 + $0x94] sm:$0xf]
  %v92 = vld [vmem:[%s1 + $0x98] sm:$0xf]
  %v93 = vld [vmem:[%s1 + $0x9c] sm:$0xf]
  %v94 = vld [vmem:[%s1 + $0xa0] sm:$0xf]
  %v95 = vld [vmem:[%s1 + $0xa4] sm:$0xf]
  %v96 = vld [vmem:[%s1 + $0xa8] sm:$0xf]
  %v97 = vld [vmem:[%s1 + $0xac] sm:$0xf]
  %v98 = vld [vmem:[%s1 + $0xb0] sm:$0xf]
  %v99 = vld [vmem:[%s1 + $0xb4] sm:$0xf]
  %v100 = vld [vmem:[%s1 + $0xb8] sm:$0xf]
  %v101 = vld [vmem:[%s1 + $0xbc] sm:$0xf]
  %v102 = vld [vmem:[%s1 + $0xc0] sm:$0xf]
  %v103 = vld [vmem:[%s1 + $0xc4] sm:$0xf]
  %v104 = vld [vmem:[%s1 + $0xc8] sm:$0xf]
  %v105 = vld [vmem:[%s1 + $0xcc] sm:$0xf]
  %v106 = vld [vmem:[%s1 + $0xd0] sm:$0xf]
  %v107 = vld [vmem:[%s1 + $0xd4] sm:$0xf]
  %v108 = vld [vmem:[%s1 + $0xd8] sm:$0xf]
  %v109 = vld [vmem:[%s1 + $0xdc] sm:$0xf]
  %v110 = vld [vmem:[%s1 + $0xe0] sm:$0xf]
  %v111 = vld [vmem:[%s1 + $0xe4] sm:$0xf]
  %v112 = vld [vmem:[%s1 + $0xe8] sm:$0xf]
  %v113 = vld [vmem:[%s1 + $0xec] sm:$0xf]
  %v114 = vld [vmem:[%s1 + $0xf0] sm:$0xf]
  %v115 = vld [vmem:[%s1 + $0xf4] sm:$0xf]
  %v116 = vld [vmem:[%s1 + $0xf8] sm:$0xf]
  %v117 = vld [vmem:[%s1 + $0xfc] sm:$0xf]
  %v118 = vld [vmem:[%s1 + $0x100] sm:$0xf]
  %v119 = vld [vmem:[%s1 + $0x104] sm:$0xf]
  %v120 = vld [vmem:[%s1 + $0x108] sm:$0xf]
  %v121 = vld [vmem:[%s1 + $0x10c] sm:$0xf]
  %v122 = vld [vmem:[%s1 + $0x110] sm:$0xf]
  %v123 = vld [vmem:[%s1 + $0x114] sm:$0xf]
  %v124 = vld [vmem:[%s1 + $0x118] sm:$0xf]
  %v125 = vld [vmem:[%s1 + $0x11c] sm:$0xf]
  %v150 = vunpack.c.l.b16 %v30
  %v151 = vunpack.c.h.b16 %v30
  %v152 = vunpack.c.l.b16 %v31
  %v153 = vunpack.c.h.b16 %v31
  %v154 = vunpack.c.l.b16 %v32
  %v155 = vunpack.c.l.b16 %v33
  %v156 = vunpack.c.h.b16 %v33
  %v157 = vunpack.c.l.b16 %v34
  %v158 = vunpack.c.h.b16 %v34
  %v159 = vunpack.c.l.b16 %v35
  %v160 = vunpack.c.l.b16 %v36
  %v161 = vunpack.c.h.b16 %v36
  %v162 = vunpack.c.l.b16 %v37
  %v163 = vunpack.c.h.b16 %v37
  %v164 = vunpack.c.l.b16 %v38
  %v165 = vunpack.c.l.b16 %v39
  %v166 = vunpack.c.h.b16 %v39
  %v167 = vunpack.c.l.b16 %v40
  %v168 = vunpack.c.h.b16 %v40
  %v169 = vunpack.c.l.b16 %v41
  %v170 = vunpack.c.l.b16 %v42
  %v171 = vunpack.c.h.b16 %v42
  %v172 = vunpack.c.l.b16 %v43
  %v173 = vunpack.c.h.b16 %v43
  %v174 = vunpack.c.l.b16 %v44
  %v175 = vunpack.c.l.b16 %v45
  %v176 = vunpack.c.h.b16 %v45
  %v177 = vunpack.c.l.b16 %v46
  %v178 = vunpack.c.h.b16 %v46
  %v179 = vunpack.c.l.b16 %v47
  %v180 = vunpack.c.l.b16 %v48
  %v181 = vunpack.c.h.b16 %v48
  %v182 = vunpack.c.l.b16 %v49
  %v183 = vunpack.c.h.b16 %v49
  %v184 = vunpack.c.l.b16 %v50
  %v185 = vunpack.c.l.b16 %v51
  %v186 = vunpack.c.h.b16 %v51
  %v187 = vunpack.c.l.b16 %v52
  %v188 = vunpack.c.h.b16 %v52
  %v189 = vunpack.c.l.b16 %v53
  %v190 = vpack.c.b16 %v155, %v150
  %v191 = vpack.c.b16 %v156, %v151
  %v192 = vpack.c.b16 %v157, %v152
  %v193 = vpack.c.b16 %v158, %v153
  %v194 = vpack.c.b16 %v159, %v154
  %v195 = vpack.c.b16 %v165, %v160
  %v196 = vpack.c.b16 %v166, %v161
  %v197 = vpack.c.b16 %v167, %v162
  %v198 = vpack.c.b16 %v168, %v163
  %v199 = vpack.c.b16 %v169, %v164
  %v200 = vpack.c.b16 %v175, %v170
  %v201 = vpack.c.b16 %v176, %v171
  %v202 = vpack.c.b16 %v177, %v172
  %v203 = vpack.c.b16 %v178, %v173
  %v204 = vpack.c.b16 %v179, %v174
  %v205 = vpack.c.b16 %v185, %v180
  %v206 = vpack.c.b16 %v186, %v181
  %v207 = vpack.c.b16 %v187, %v182
  %v208 = vpack.c.b16 %v188, %v183
  %v209 = vpack.c.b16 %v189, %v184
  %v298 = vunpack.c.l.b16 %v54
  %v299 = vunpack.c.l.b16 %v55
  %v300 = vunpack.c.l.b16 %v56
  %v301 = vunpack.c.l.b16 %v57
  %v302 = vunpack.c.l.b16 %v58
  %v303 = vunpack.c.l.b16 %v59
  %v304 = vunpack.c.l.b16 %v60
  %v305 = vunpack.c.l.b16 %v61
  %v306 = vunpack.c.l.b16 %v62
  %v307 = vunpack.c.l.b16 %v63
  %v308 = vunpack.c.l.b16 %v64
  %v309 = vunpack.c.l.b16 %v65
  %v310 = vunpack.c.l.b16 %v66
  %v311 = vunpack.c.l.b16 %v67
  %v312 = vunpack.c.l.b16 %v68
  %v313 = vunpack.c.l.b16 %v69
  %v314 = vunpack.c.l.b16 %v70
  %v315 = vunpack.c.l.b16 %v71
  %v316 = vunpack.c.l.b16 %v72
  %v317 = vunpack.c.l.b16 %v73
  %v318 = vunpack.c.l.b16 %v74
  %v319 = vunpack.c.l.b16 %v75
  %v320 = vunpack.c.l.b16 %v76
  %v321 = vunpack.c.l.b16 %v77
  %v322 = vunpack.c.l.b16 %v78
  %v323 = vunpack.c.l.b16 %v79
  %v324 = vunpack.c.l.b16 %v80
  %v325 = vunpack.c.l.b16 %v81
  %v326 = vunpack.c.l.b16 %v82
  %v327 = vunpack.c.l.b16 %v83
  %v328 = vunpack.c.l.b16 %v84
  %v329 = vunpack.c.l.b16 %v85
  %v330 = vunpack.c.l.b16 %v86
  %v331 = vunpack.c.l.b16 %v87
  %v332 = vunpack.c.l.b16 %v88
  %v333 = vunpack.c.l.b16 %v89
  %v334 = vunpack.c.l.b16 %v90
  %v335 = vunpack.c.l.b16 %v91
  %v336 = vunpack.c.l.b16 %v92
  %v337 = vunpack.c.l.b16 %v93
  %v338 = vunpack.c.l.b16 %v94
  %v339 = vunpack.c.l.b16 %v95
  %v340 = vunpack.c.l.b16 %v96
  %v341 = vunpack.c.l.b16 %v97
  %v342 = vunpack.c.l.b16 %v98
  %v343 = vunpack.c.l.b16 %v99
  %v344 = vunpack.c.l.b16 %v100
  %v345 = vunpack.c.l.b16 %v101
  %v346 = vunpack.c.l.b16 %v102
  %v347 = vunpack.c.l.b16 %v103
  %v348 = vunpack.c.l.b16 %v104
  %v349 = vunpack.c.l.b16 %v105
  %v350 = vunpack.c.l.b16 %v106
  %v351 = vunpack.c.l.b16 %v107
  %v352 = vunpack.c.l.b16 %v108
  %v353 = vunpack.c.l.b16 %v109
  %v354 = vunpack.c.l.b16 %v110
  %v355 = vunpack.c.l.b16 %v111
  %v356 = vunpack.c.l.b16 %v112
  %v357 = vunpack.c.l.b16 %v113
  %v358 = vunpack.c.l.b16 %v114
  %v359 = vunpack.c.l.b16 %v115
  %v360 = vunpack.c.l.b16 %v116
  %v361 = vunpack.c.l.b16 %v117
  %v362 = vunpack.c.l.b16 %v118
  %v363 = vunpack.c.l.b16 %v119
  %v364 = vunpack.c.l.b16 %v120
  %v365 = vunpack.c.l.b16 %v121
  %v366 = vunpack.c.l.b16 %v122
  %v367 = vunpack.c.l.b16 %v123
  %v368 = vunpack.c.l.b16 %v124
  %v369 = vunpack.c.l.b16 %v125
  %v370 = vpack.c.b16 %v299, %v298
  %v371 = vpack.c.b16 %v301, %v300
  %v372 = vpack.c.b16 %v303, %v302
  %v373 = vpack.c.b16 %v305, %v304
  %v374 = vpack.c.b16 %v307, %v306
  %v375 = vpack.c.b16 %v309, %v308
  %v376 = vpack.c.b16 %v311, %v310
  %v377 = vpack.c.b16 %v313, %v312
  %v378 = vpack.c.b16 %v315, %v314
  %v379 = vpack.c.b16 %v317, %v316
  %v380 = vpack.c.b16 %v319, %v318
  %v381 = vpack.c.b16 %v321, %v320
  %v382 = vpack.c.b16 %v323, %v322
  %v383 = vpack.c.b16 %v325, %v324
  %v384 = vpack.c.b16 %v327, %v326
  %v385 = vpack.c.b16 %v329, %v328
  %v386 = vpack.c.b16 %v331, %v330
  %v387 = vpack.c.b16 %v333, %v332
  %v388 = vpack.c.b16 %v335, %v334
  %v389 = vpack.c.b16 %v337, %v336
  %v390 = vpack.c.b16 %v339, %v338
  %v391 = vpack.c.b16 %v341, %v340
  %v392 = vpack.c.b16 %v343, %v342
  %v393 = vpack.c.b16 %v345, %v344
  %v394 = vpack.c.b16 %v347, %v346
  %v395 = vpack.c.b16 %v349, %v348
  %v396 = vpack.c.b16 %v351, %v350
  %v397 = vpack.c.b16 %v353, %v352
  %v398 = vpack.c.b16 %v355, %v354
  %v399 = vpack.c.b16 %v357, %v356
  %v400 = vpack.c.b16 %v359, %v358
  %v401 = vpack.c.b16 %v361, %v360
  %v402 = vpack.c.b16 %v363, %v362
  %v403 = vpack.c.b16 %v365, %v364
  %v404 = vpack.c.b16 %v367, %v366
  %v405 = vpack.c.b16 %v369, %v368
  %vm442 = vcmask 523264
  %v444 = vsel %vm442, %v194, 0
  %v447 = vsel %vm442, %v199, 0
  %v450 = vsel %vm442, %v204, 0
  %v453 = vsel %vm442, %v209, 0
  %455 = vmatpush.bf16.msra.mxu0 %v377
  %456 = vmatpush.bf16.msra.mxu0 %v376
  %457 = vmatpush.bf16.msra.mxu0 %v375
  %458 = vmatpush.bf16.msra.mxu0 %v374
  %459 = vmatpush.bf16.msra.mxu0 %v373
  %460 = vmatpush.bf16.msra.mxu0 %v372
  %461 = vmatpush.bf16.msra.mxu0 %v371
  %462 = vmatpush.bf16.msra.mxu0 %v370
  %463 = vmatmul.bf16.gmra.mxu0 %v190
  %v464 = vpop.f32.mrf.mxu0
  %v465 = vadd.f32 0.0, %v464
  %v466 = vpop.f32.mrf.mxu0
  %v467 = vadd.f32 0.0, %v466
  %468 = vmatmul.bf16.gmra.mxu0 %v195
  %v469 = vpop.f32.mrf.mxu0
  %v470 = vadd.f32 0.0, %v469
  %v471 = vpop.f32.mrf.mxu0
  %v472 = vadd.f32 0.0, %v471
  %473 = vmatmul.bf16.gmra.mxu0 %v200
  %v474 = vpop.f32.mrf.mxu0
  %v475 = vadd.f32 0.0, %v474
  %v476 = vpop.f32.mrf.mxu0
  %v477 = vadd.f32 0.0, %v476
  %478 = vmatmul.bf16.gmra.mxu0 %v205
  %v479 = vpop.f32.mrf.mxu0
  %v480 = vadd.f32 0.0, %v479
  %v481 = vpop.f32.mrf.mxu0
  %v482 = vadd.f32 0.0, %v481
  %483 = vdwg.mxu0
  %484 = vmatpush.bf16.msra.mxu0 %v385
  %485 = vmatpush.bf16.msra.mxu0 %v384
  %486 = vmatpush.bf16.msra.mxu0 %v383
  %487 = vmatpush.bf16.msra.mxu0 %v382
  %488 = vmatpush.bf16.msra.mxu0 %v381
  %489 = vmatpush.bf16.msra.mxu0 %v380
  %490 = vmatpush.bf16.msra.mxu0 %v379
  %491 = vmatpush.bf16.msra.mxu0 %v378
  %492 = vmatmul.bf16.gmra.mxu0 %v191
  %v493 = vpop.f32.mrf.mxu0
  %v494 = vadd.f32 %v465, %v493
  %v495 = vpop.f32.mrf.mxu0
  %v496 = vadd.f32 %v467, %v495
  %497 = vmatmul.bf16.gmra.mxu0 %v196
  %v498 = vpop.f32.mrf.mxu0
  %v499 = vadd.f32 %v470, %v498
  %v500 = vpop.f32.mrf.mxu0
  %v501 = vadd.f32 %v472, %v500
  %502 = vmatmul.bf16.gmra.mxu0 %v201
  %v503 = vpop.f32.mrf.mxu0
  %v504 = vadd.f32 %v475, %v503
  %v505 = vpop.f32.mrf.mxu0
  %v506 = vadd.f32 %v477, %v505
  %507 = vmatmul.bf16.gmra.mxu0 %v206
  %v508 = vpop.f32.mrf.mxu0
  %v509 = vadd.f32 %v480, %v508
  %v510 = vpop.f32.mrf.mxu0
  %v511 = vadd.f32 %v482, %v510
  %512 = vdwg.mxu0
  %513 = vmatpush.bf16.msra.mxu0 %v393
  %514 = vmatpush.bf16.msra.mxu0 %v392
  %515 = vmatpush.bf16.msra.mxu0 %v391
  %516 = vmatpush.bf16.msra.mxu0 %v390
  %517 = vmatpush.bf16.msra.mxu0 %v389
  %518 = vmatpush.bf16.msra.mxu0 %v388
  %519 = vmatpush.bf16.msra.mxu0 %v387
  %520 = vmatpush.bf16.msra.mxu0 %v386
  %521 = vmatmul.bf16.gmra.mxu0 %v192
  %v522 = vpop.f32.mrf.mxu0
  %v523 = vadd.f32 %v494, %v522
  %v524 = vpop.f32.mrf.mxu0
  %v525 = vadd.f32 %v496, %v524
  %526 = vmatmul.bf16.gmra.mxu0 %v197
  %v527 = vpop.f32.mrf.mxu0
  %v528 = vadd.f32 %v499, %v527
  %v529 = vpop.f32.mrf.mxu0
  %v530 = vadd.f32 %v501, %v529
  %531 = vmatmul.bf16.gmra.mxu0 %v202
  %v532 = vpop.f32.mrf.mxu0
  %v533 = vadd.f32 %v504, %v532
  %v534 = vpop.f32.mrf.mxu0
  %v535 = vadd.f32 %v506, %v534
  %536 = vmatmul.bf16.gmra.mxu0 %v207
  %v537 = vpop.f32.mrf.mxu0
  %v538 = vadd.f32 %v509, %v537
  %v539 = vpop.f32.mrf.mxu0
  %v540 = vadd.f32 %v511, %v539
  %541 = vdwg.mxu0
  %542 = vmatpush.bf16.msra.mxu0 %v401
  %543 = vmatpush.bf16.msra.mxu0 %v400
  %544 = vmatpush.bf16.msra.mxu0 %v399
  %545 = vmatpush.bf16.msra.mxu0 %v398
  %546 = vmatpush.bf16.msra.mxu0 %v397
  %547 = vmatpush.bf16.msra.mxu0 %v396
  %548 = vmatpush.bf16.msra.mxu0 %v395
  %549 = vmatpush.bf16.msra.mxu0 %v394
  %550 = vmatmul.bf16.gmra.mxu0 %v193
  %v551 = vpop.f32.mrf.mxu0
  %v552 = vadd.f32 %v523, %v551
  %v553 = vpop.f32.mrf.mxu0
  %v554 = vadd.f32 %v525, %v553
  %555 = vmatmul.bf16.gmra.mxu0 %v198
  %v556 = vpop.f32.mrf.mxu0
  %v557 = vadd.f32 %v528, %v556
  %v558 = vpop.f32.mrf.mxu0
  %v559 = vadd.f32 %v530, %v558
  %560 = vmatmul.bf16.gmra.mxu0 %v203
  %v561 = vpop.f32.mrf.mxu0
  %v562 = vadd.f32 %v533, %v561
  %v563 = vpop.f32.mrf.mxu0
  %v564 = vadd.f32 %v535, %v563
  %565 = vmatmul.bf16.gmra.mxu0 %v208
  %v566 = vpop.f32.mrf.mxu0
  %v567 = vadd.f32 %v538, %v566
  %v568 = vpop.f32.mrf.mxu0
  %v569 = vadd.f32 %v540, %v568
  %570 = vdwg.mxu0
  %571 = vmatpush.bf16.msra.mxu0 0
  %572 = vmatpush.bf16.msra.mxu0 0
  %573 = vmatpush.bf16.msra.mxu0 0
  %574 = vmatpush.bf16.msra.mxu0 0
  %575 = vmatpush.bf16.msra.mxu0 %v405
  %576 = vmatpush.bf16.msra.mxu0 %v404
  %577 = vmatpush.bf16.msra.mxu0 %v403
  %578 = vmatpush.bf16.msra.mxu0 %v402
  %579 = vmatmul.bf16.gmra.mxu0 %v444
  %v580 = vpop.f32.mrf.mxu0
  %v581 = vadd.f32 %v552, %v580
  %v582 = vpop.f32.mrf.mxu0
  %v583 = vadd.f32 %v554, %v582
  %584 = vmatmul.bf16.gmra.mxu0 %v447
  %v585 = vpop.f32.mrf.mxu0
  %v586 = vadd.f32 %v557, %v585
  %v587 = vpop.f32.mrf.mxu0
  %v588 = vadd.f32 %v559, %v587
  %589 = vmatmul.bf16.gmra.mxu0 %v450
  %v590 = vpop.f32.mrf.mxu0
  %v591 = vadd.f32 %v562, %v590
  %v592 = vpop.f32.mrf.mxu0
  %v593 = vadd.f32 %v564, %v592
  %594 = vmatmul.bf16.gmra.mxu0 %v453
  %v595 = vpop.f32.mrf.mxu0
  %v596 = vadd.f32 %v567, %v595
  %v597 = vpop.f32.mrf.mxu0
  %v598 = vadd.f32 %v569, %v597
  %599 = vdwg.mxu0
  %v600 = vld [vmem:[%s2] sm:$0xff]
  %v601 = vld [vmem:[%s2 + $0x8] sm:$0xff]
  %v602 = vld [vmem:[%s2 + $0x10] sm:$0xff]
  %v603 = vld [vmem:[%s2 + $0x18] sm:$0xff]
  %v604 = vld [vmem:[%s2 + $0x20] sm:$0xff]
  %v605 = vld [vmem:[%s2 + $0x28] sm:$0xff]
  %v606 = vld [vmem:[%s2 + $0x30] sm:$0xff]
  %v607 = vld [vmem:[%s2 + $0x38] sm:$0xff]
  %609 = vset.pattern.permute.xlu0 0
  %610 = vperm.xlu0 %609, %v600
  %v611 = vpop.permute.xlu0 %610
  %614 = vset.pattern.permute.xlu0 0
  %615 = vperm.xlu0 %614, %v601
  %v616 = vpop.permute.xlu0 %615
  %619 = vset.pattern.permute.xlu0 0
  %620 = vperm.xlu0 %619, %v602
  %v621 = vpop.permute.xlu0 %620
  %624 = vset.pattern.permute.xlu0 0
  %625 = vperm.xlu0 %624, %v603
  %v626 = vpop.permute.xlu0 %625
  %629 = vset.pattern.permute.xlu0 0
  %630 = vperm.xlu0 %629, %v604
  %v631 = vpop.permute.xlu0 %630
  %634 = vset.pattern.permute.xlu0 0
  %635 = vperm.xlu0 %634, %v605
  %v636 = vpop.permute.xlu0 %635
  %639 = vset.pattern.permute.xlu0 0
  %640 = vperm.xlu0 %639, %v606
  %v641 = vpop.permute.xlu0 %640
  %644 = vset.pattern.permute.xlu0 0
  %645 = vperm.xlu0 %644, %v607
  %v646 = vpop.permute.xlu0 %645
  %v648 = vmul.f32 %v581, %v611
  %v649 = vmul.f32 %v583, %v616
  %v650 = vmul.f32 %v586, %v621
  %v651 = vmul.f32 %v588, %v626
  %v652 = vmul.f32 %v591, %v631
  %v653 = vmul.f32 %v593, %v636
  %v654 = vmul.f32 %v596, %v641
  %v655 = vmul.f32 %v598, %v646
  %v656 = vld [vmem:[%s3] sm:$0xff]
  %v657 = vld [vmem:[%s3 + $0x8] sm:$0xff]
  %v658 = vld [vmem:[%s3 + $0x10] sm:$0xff]
  %v659 = vld [vmem:[%s3 + $0x18] sm:$0xff]
  %v660 = vld [vmem:[%s3 + $0x20] sm:$0xff]
  %v661 = vld [vmem:[%s3 + $0x28] sm:$0xff]
  %v662 = vld [vmem:[%s3 + $0x30] sm:$0xff]
  %v663 = vld [vmem:[%s3 + $0x38] sm:$0xff]
  %665 = vset.pattern.permute.xlu0 0
  %666 = vperm.xlu0 %665, %v656
  %v667 = vpop.permute.xlu0 %666
  %670 = vset.pattern.permute.xlu0 0
  %671 = vperm.xlu0 %670, %v657
  %v672 = vpop.permute.xlu0 %671
  %675 = vset.pattern.permute.xlu0 0
  %676 = vperm.xlu0 %675, %v658
  %v677 = vpop.permute.xlu0 %676
  %680 = vset.pattern.permute.xlu0 0
  %681 = vperm.xlu0 %680, %v659
  %v682 = vpop.permute.xlu0 %681
  %685 = vset.pattern.permute.xlu0 0
  %686 = vperm.xlu0 %685, %v660
  %v687 = vpop.permute.xlu0 %686
  %690 = vset.pattern.permute.xlu0 0
  %691 = vperm.xlu0 %690, %v661
  %v692 = vpop.permute.xlu0 %691
  %695 = vset.pattern.permute.xlu0 0
  %696 = vperm.xlu0 %695, %v662
  %v697 = vpop.permute.xlu0 %696
  %700 = vset.pattern.permute.xlu0 0
  %701 = vperm.xlu0 %700, %v663
  %v702 = vpop.permute.xlu0 %701
  %v704 = vadd.f32 %v648, %v667
  %v705 = vadd.f32 %v649, %v672
  %v706 = vadd.f32 %v650, %v677
  %v707 = vadd.f32 %v651, %v682
  %v708 = vadd.f32 %v652, %v687
  %v709 = vadd.f32 %v653, %v692
  %v710 = vadd.f32 %v654, %v697
  %v711 = vadd.f32 %v655, %v702
  %v712 = vld [vmem:[%s4] sm:$0xf]
  %v713 = vld [vmem:[%s4 + $0x4] sm:$0xf]
  %v714 = vld [vmem:[%s4 + $0x8] sm:$0xf]
  %v715 = vld [vmem:[%s4 + $0xc] sm:$0xf]
  %v716 = vld [vmem:[%s4 + $0x10] sm:$0xf]
  %v717 = vld [vmem:[%s4 + $0x14] sm:$0xf]
  %v718 = vld [vmem:[%s4 + $0x18] sm:$0xf]
  %v719 = vld [vmem:[%s4 + $0x1c] sm:$0xf]
  %v720 = vld [vmem:[%s5] sm:$0xf]
  %v721 = vld [vmem:[%s5 + $0x4] sm:$0xf]
  %v722 = vld [vmem:[%s5 + $0x8] sm:$0xf]
  %v723 = vld [vmem:[%s5 + $0xc] sm:$0xf]
  %v732 = vunpack.c.l.b16 %v712
  %v733 = vunpack.c.l.b16 %v713
  %v734 = vunpack.c.l.b16 %v714
  %v735 = vunpack.c.l.b16 %v715
  %v736 = vunpack.c.l.b16 %v716
  %v737 = vunpack.c.l.b16 %v717
  %v738 = vunpack.c.l.b16 %v718
  %v739 = vunpack.c.l.b16 %v719
  %v740 = vpack.c.b16 %v733, %v732
  %v741 = vpack.c.b16 %v735, %v734
  %v742 = vpack.c.b16 %v737, %v736
  %v743 = vpack.c.b16 %v739, %v738
  %v748 = vunpack.c.l.b16 %v720
  %v749 = vunpack.c.l.b16 %v721
  %v750 = vunpack.c.l.b16 %v722
  %v751 = vunpack.c.l.b16 %v723
  %v752 = vpack.c.b16 %v749, %v748
  %v753 = vpack.c.b16 %v751, %v750
  %vm756 = vcmask 261120
  %v758 = vsel %vm756, %v740, 0
  %v761 = vsel %vm756, %v741, 0
  %v764 = vsel %vm756, %v742, 0
  %v767 = vsel %vm756, %v743, 0
  %769 = vmatpush.bf16.msra.mxu0 0
  %770 = vmatpush.bf16.msra.mxu0 0
  %771 = vmatpush.bf16.msra.mxu0 0
  %772 = vmatpush.bf16.msra.mxu0 0
  %773 = vmatpush.bf16.msra.mxu0 0
  %774 = vmatpush.bf16.msra.mxu0 0
  %775 = vmatpush.bf16.msra.mxu0 %v753
  %776 = vmatpush.bf16.msra.mxu0 %v752
  %777 = vmatmul.bf16.gmra.mxu0 %v758
  %v778 = vpop.f32.mrf.mxu0
  %v779 = vadd.f32 0.0, %v778
  %v780 = vpop.f32.mrf.mxu0
  %v781 = vadd.f32 0.0, %v780
  %782 = vmatmul.bf16.gmra.mxu0 %v761
  %v783 = vpop.f32.mrf.mxu0
  %v784 = vadd.f32 0.0, %v783
  %v785 = vpop.f32.mrf.mxu0
  %v786 = vadd.f32 0.0, %v785
  %787 = vmatmul.bf16.gmra.mxu0 %v764
  %v788 = vpop.f32.mrf.mxu0
  %v789 = vadd.f32 0.0, %v788
  %v790 = vpop.f32.mrf.mxu0
  %v791 = vadd.f32 0.0, %v790
  %792 = vmatmul.bf16.gmra.mxu0 %v767
  %v793 = vpop.f32.mrf.mxu0
  %v794 = vadd.f32 0.0, %v793
  %v795 = vpop.f32.mrf.mxu0
  %v796 = vadd.f32 0.0, %v795
  %797 = vdwg.mxu0
  %v798 = vld [vmem:[%s6] sm:$0xff]
  %v799 = vld [vmem:[%s6 + $0x8] sm:$0xff]
  %v800 = vld [vmem:[%s6 + $0x10] sm:$0xff]
  %v801 = vld [vmem:[%s6 + $0x18] sm:$0xff]
  %v802 = vld [vmem:[%s6 + $0x20] sm:$0xff]
  %v803 = vld [vmem:[%s6 + $0x28] sm:$0xff]
  %v804 = vld [vmem:[%s6 + $0x30] sm:$0xff]
  %v805 = vld [vmem:[%s6 + $0x38] sm:$0xff]
  %807 = vset.pattern.permute.xlu0 0
  %808 = vperm.xlu0 %807, %v798
  %v809 = vpop.permute.xlu0 %808
  %812 = vset.pattern.permute.xlu0 0
  %813 = vperm.xlu0 %812, %v799
  %v814 = vpop.permute.xlu0 %813
  %817 = vset.pattern.permute.xlu0 0
  %818 = vperm.xlu0 %817, %v800
  %v819 = vpop.permute.xlu0 %818
  %822 = vset.pattern.permute.xlu0 0
  %823 = vperm.xlu0 %822, %v801
  %v824 = vpop.permute.xlu0 %823
  %827 = vset.pattern.permute.xlu0 0
  %828 = vperm.xlu0 %827, %v802
  %v829 = vpop.permute.xlu0 %828
  %832 = vset.pattern.permute.xlu0 0
  %833 = vperm.xlu0 %832, %v803
  %v834 = vpop.permute.xlu0 %833
  %837 = vset.pattern.permute.xlu0 0
  %838 = vperm.xlu0 %837, %v804
  %v839 = vpop.permute.xlu0 %838
  %842 = vset.pattern.permute.xlu0 0
  %843 = vperm.xlu0 %842, %v805
  %v844 = vpop.permute.xlu0 %843
  %v846 = vmul.f32 %v779, %v809
  %v847 = vmul.f32 %v781, %v814
  %v848 = vmul.f32 %v784, %v819
  %v849 = vmul.f32 %v786, %v824
  %v850 = vmul.f32 %v789, %v829
  %v851 = vmul.f32 %v791, %v834
  %v852 = vmul.f32 %v794, %v839
  %v853 = vmul.f32 %v796, %v844
  %v854 = vadd.f32 %v704, %v846
  %v855 = vadd.f32 %v705, %v847
  %v856 = vadd.f32 %v706, %v848
  %v857 = vadd.f32 %v707, %v849
  %v858 = vadd.f32 %v708, %v850
  %v859 = vadd.f32 %v709, %v851
  %v860 = vadd.f32 %v710, %v852
  %v861 = vadd.f32 %v711, %v853
  %v862 = vld [vmem:[%s7] sm:$0xff]
  %v863 = vld [vmem:[%s7 + $0x8] sm:$0xff]
  %v864 = vld [vmem:[%s7 + $0x10] sm:$0xff]
  %v865 = vld [vmem:[%s7 + $0x18] sm:$0xff]
  %v866 = vld [vmem:[%s7 + $0x20] sm:$0xff]
  %v867 = vld [vmem:[%s7 + $0x28] sm:$0xff]
  %v868 = vld [vmem:[%s7 + $0x30] sm:$0xff]
  %v869 = vld [vmem:[%s7 + $0x38] sm:$0xff]
  %871 = vset.pattern.permute.xlu0 0
  %872 = vperm.xlu0 %871, %v862
  %v873 = vpop.permute.xlu0 %872
  %876 = vset.pattern.permute.xlu0 0
  %877 = vperm.xlu0 %876, %v863
  %v878 = vpop.permute.xlu0 %877
  %881 = vset.pattern.permute.xlu0 0
  %882 = vperm.xlu0 %881, %v864
  %v883 = vpop.permute.xlu0 %882
  %886 = vset.pattern.permute.xlu0 0
  %887 = vperm.xlu0 %886, %v865
  %v888 = vpop.permute.xlu0 %887
  %891 = vset.pattern.permute.xlu0 0
  %892 = vperm.xlu0 %891, %v866
  %v893 = vpop.permute.xlu0 %892
  %896 = vset.pattern.permute.xlu0 0
  %897 = vperm.xlu0 %896, %v867
  %v898 = vpop.permute.xlu0 %897
  %901 = vset.pattern.permute.xlu0 0
  %902 = vperm.xlu0 %901, %v868
  %v903 = vpop.permute.xlu0 %902
  %906 = vset.pattern.permute.xlu0 0
  %907 = vperm.xlu0 %906, %v869
  %v908 = vpop.permute.xlu0 %907
  %v910 = vadd.f32 %v854, %v873
  %v911 = vadd.f32 %v855, %v878
  %v912 = vadd.f32 %v856, %v883
  %v913 = vadd.f32 %v857, %v888
  %v914 = vadd.f32 %v858, %v893
  %v915 = vadd.f32 %v859, %v898
  %v916 = vadd.f32 %v860, %v903
  %v917 = vadd.f32 %v861, %v908
  %v918 = vmax.f32 %v910, 0.0
  %v919 = vmax.f32 %v911, 0.0
  %v920 = vmax.f32 %v912, 0.0
  %v921 = vmax.f32 %v913, 0.0
  %v922 = vmax.f32 %v914, 0.0
  %v923 = vmax.f32 %v915, 0.0
  %v924 = vmax.f32 %v916, 0.0
  %v925 = vmax.f32 %v917, 0.0
  %926 = vst [vmem:[%s8] sm:$0xff] %v918
  %927 = vst [vmem:[%s8 + $0x8] sm:$0xff] %v919
  %928 = vst [vmem:[%s8 + $0x10] sm:$0xff] %v920
  %929 = vst [vmem:[%s8 + $0x18] sm:$0xff] %v921
  %930 = vst [vmem:[%s8 + $0x20] sm:$0xff] %v922
  %931 = vst [vmem:[%s8 + $0x28] sm:$0xff] %v923
  %932 = vst [vmem:[%s8 + $0x30] sm:$0xff] %v924
  %933 = vst [vmem:[%s8 + $0x38] sm:$0xff] %v925
  // Predicated region
  $region34: #{_lambda_.24} parent=0 // pred_check
    _
  $region35: #{_lambda_.24} parent=0 // pred_check_branch
    %935 = sbr.rel (0) target = $region37
  $region36: #{_lambda_.24} parent=0 // pred_region
    _
  $region37: #{_lambda_.24} parent=0 // pred_fallthru
    _
  // Predicated region
  $region38: #{_lambda_.24} parent=0 // pred_check
    _
  $region39: #{_lambda_.24} parent=0 // pred_check_branch
    %937 = sbr.rel (0) target = $region41
  $region40: #{_lambda_.24} parent=0 // pred_region
    _
  $region41: #{_lambda_.24} parent=0 // pred_fallthru
    _

// kernel: _lambda_.25
$region0: #{_lambda_.25}
  #allocation0 [shape = 'u32[]', space=smem, size = 0x4, offset = 0x4, fixed_abs, tag = 'smem constant byte address 0x4 - core index']
  #allocation1 [shape = 'u32[72,128]{1,0:T(1,128)}', space=vmem, size = 0x9000, scoped, tag = 'internal scratch']
  %s0 = inlined_call_operand.vmem [shape: bf16[64,576], index: 0, kind: input, shape index: {}]
  %s1 = inlined_call_operand.vmem [shape: bf16[576,128], index: 1, kind: input, shape index: {}]
  %s2 = inlined_call_operand.vmem [shape: f32[64,1], index: 2, kind: input, shape index: {}]
  %s3 = inlined_call_operand.vmem [shape: f32[64,1], index: 3, kind: input, shape index: {}]
  %s4 = inlined_call_operand.vmem [shape: f32[64,128], index: 4, kind: output, shape index: {}]
  %s5 = sld [smem:[#allocation0]]
  $region26: #{_lambda_.25} parent=0
    _
  %s7 = ssub.s32 1, %s5
  %s8 = scalar_select 0, %s7, %s5
  // Predicated region
  $region2: #{_lambda_.25} parent=0 // pred_check
    _
  $region3: #{_lambda_.25} parent=0 // pred_check_branch
    %10 = sbr.rel (0) target = $region5
  $region4: #{_lambda_.25} parent=0 // pred_region
    _
  $region5: #{_lambda_.25} parent=0 // pred_fallthru
    _
  // Predicated region
  $region6: #{_lambda_.25} parent=0 // pred_check
    _
  $region7: #{_lambda_.25} parent=0 // pred_check_branch
    %12 = sbr.rel (0) target = $region9
  $region8: #{_lambda_.25} parent=0 // pred_region
    _
  $region9: #{_lambda_.25} parent=0 // pred_fallthru
    _
  // Predicated region
  $region10: #{_lambda_.25} parent=0 // pred_check
    _
  $region11: #{_lambda_.25} parent=0 // pred_check_branch
    %14 = sbr.rel (0) target = $region13
  $region12: #{_lambda_.25} parent=0 // pred_region
    _
  $region13: #{_lambda_.25} parent=0 // pred_fallthru
    _
  // Predicated region
  $region14: #{_lambda_.25} parent=0 // pred_check
    _
  $region15: #{_lambda_.25} parent=0 // pred_check_branch
    %16 = sbr.rel (0) target = $region17
  $region16: #{_lambda_.25} parent=0 // pred_region
    _
  $region17: #{_lambda_.25} parent=0 // pred_fallthru
    _
  %v18 = vld [vmem:[%s0] sm:$0xff]
  %v19 = vld [vmem:[%s0 + $0x8] sm:$0xff]
  %v20 = vld [vmem:[%s0 + $0x10] sm:$0xf]
  %v21 = vld [vmem:[%s0 + $0x14] sm:$0xff]
  %v22 = vld [vmem:[%s0 + $0x1c] sm:$0xff]
  %v23 = vld [vmem:[%s0 + $0x24] sm:$0xf]
  %v24 = vld [vmem:[%s0 + $0x28] sm:$0xff]
  %v25 = vld [vmem:[%s0 + $0x30] sm:$0xff]
  %v26 = vld [vmem:[%s0 + $0x38] sm:$0xf]
  %v27 = vld [vmem:[%s0 + $0x3c] sm:$0xff]
  %v28 = vld [vmem:[%s0 + $0x44] sm:$0xff]
  %v29 = vld [vmem:[%s0 + $0x4c] sm:$0xf]
  %v30 = vld [vmem:[%s0 + $0x50] sm:$0xff]
  %v31 = vld [vmem:[%s0 + $0x58] sm:$0xff]
  %v32 = vld [vmem:[%s0 + $0x60] sm:$0xf]
  %v33 = vld [vmem:[%s0 + $0x64] sm:$0xff]
  %v34 = vld [vmem:[%s0 + $0x6c] sm:$0xff]
  %v35 = vld [vmem:[%s0 + $0x74] sm:$0xf]
  %v36 = vld [vmem:[%s0 + $0x78] sm:$0xff]
  %v37 = vld [vmem:[%s0 + $0x80] sm:$0xff]
  %v38 = vld [vmem:[%s0 + $0x88] sm:$0xf]
  %v39 = vld [vmem:[%s0 + $0x8c] sm:$0xff]
  %v40 = vld [vmem:[%s0 + $0x94] sm:$0xff]
  %v41 = vld [vmem:[%s0 + $0x9c] sm:$0xf]
  %v42 = vld [vmem:[%s1] sm:$0xf]
  %v43 = vld [vmem:[%s1 + $0x4] sm:$0xf]
  %v44 = vld [vmem:[%s1 + $0x8] sm:$0xf]
  %v45 = vld [vmem:[%s1 + $0xc] sm:$0xf]
  %v46 = vld [vmem:[%s1 + $0x10] sm:$0xf]
  %v47 = vld [vmem:[%s1 + $0x14] sm:$0xf]
  %v48 = vld [vmem:[%s1 + $0x18] sm:$0xf]
  %v49 = vld [vmem:[%s1 + $0x1c] sm:$0xf]
  %v50 = vld [vmem:[%s1 + $0x20] sm:$0xf]
  %v51 = vld [vmem:[%s1 + $0x24] sm:$0xf]
  %v52 = vld [vmem:[%s1 + $0x28] sm:$0xf]
  %v53 = vld [vmem:[%s1 + $0x2c] sm:$0xf]
  %v54 = vld [vmem:[%s1 + $0x30] sm:$0xf]
  %v55 = vld [vmem:[%s1 + $0x34] sm:$0xf]
  %v56 = vld [vmem:[%s1 + $0x38] sm:$0xf]
  %v57 = vld [vmem:[%s1 + $0x3c] sm:$0xf]
  %v58 = vld [vmem:[%s1 + $0x40] sm:$0xf]
  %v59 = vld [vmem:[%s1 + $0x44] sm:$0xf]
  %v60 = vld [vmem:[%s1 + $0x48] sm:$0xf]
  %v61 = vld [vmem:[%s1 + $0x4c] sm:$0xf]
  %v62 = vld [vmem:[%s1 + $0x50] sm:$0xf]
  %v63 = vld [vmem:[%s1 + $0x54] sm:$0xf]
  %v64 = vld [vmem:[%s1 + $0x58] sm:$0xf]
  %v65 = vld [vmem:[%s1 + $0x5c] sm:$0xf]
  %v66 = vld [vmem:[%s1 + $0x60] sm:$0xf]
  %v67 = vld [vmem:[%s1 + $0x64] sm:$0xf]
  %v68 = vld [vmem:[%s1 + $0x68] sm:$0xf]
  %v69 = vld [vmem:[%s1 + $0x6c] sm:$0xf]
  %v70 = vld [vmem:[%s1 + $0x70] sm:$0xf]
  %v71 = vld [vmem:[%s1 + $0x74] sm:$0xf]
  %v72 = vld [vmem:[%s1 + $0x78] sm:$0xf]
  %v73 = vld [vmem:[%s1 + $0x7c] sm:$0xf]
  %v74 = vld [vmem:[%s1 + $0x80] sm:$0xf]
  %v75 = vld [vmem:[%s1 + $0x84] sm:$0xf]
  %v76 = vld [vmem:[%s1 + $0x88] sm:$0xf]
  %v77 = vld [vmem:[%s1 + $0x8c] sm:$0xf]
  %v78 = vld [vmem:[%s1 + $0x90] sm:$0xf]
  %v79 = vld [vmem:[%s1 + $0x94] sm:$0xf]
  %v80 = vld [vmem:[%s1 + $0x98] sm:$0xf]
  %v81 = vld [vmem:[%s1 + $0x9c] sm:$0xf]
  %v82 = vld [vmem:[%s1 + $0xa0] sm:$0xf]
  %v83 = vld [vmem:[%s1 + $0xa4] sm:$0xf]
  %v84 = vld [vmem:[%s1 + $0xa8] sm:$0xf]
  %v85 = vld [vmem:[%s1 + $0xac] sm:$0xf]
  %v86 = vld [vmem:[%s1 + $0xb0] sm:$0xf]
  %v87 = vld [vmem:[%s1 + $0xb4] sm:$0xf]
  %v88 = vld [vmem:[%s1 + $0xb8] sm:$0xf]
  %v89 = vld [vmem:[%s1 + $0xbc] sm:$0xf]
  %v90 = vld [vmem:[%s1 + $0xc0] sm:$0xf]
  %v91 = vld [vmem:[%s1 + $0xc4] sm:$0xf]
  %v92 = vld [vmem:[%s1 + $0xc8] sm:$0xf]
  %v93 = vld [vmem:[%s1 + $0xcc] sm:$0xf]
  %v94 = vld [vmem:[%s1 + $0xd0] sm:$0xf]
  %v95 = vld [vmem:[%s1 + $0xd4] sm:$0xf]
  %v96 = vld [vmem:[%s1 + $0xd8] sm:$0xf]
  %v97 = vld [vmem:[%s1 + $0xdc] sm:$0xf]
  %v98 = vld [vmem:[%s1 + $0xe0] sm:$0xf]
  %v99 = vld [vmem:[%s1 + $0xe4] sm:$0xf]
  %v100 = vld [vmem:[%s1 + $0xe8] sm:$0xf]
  %v101 = vld [vmem:[%s1 + $0xec] sm:$0xf]
  %v102 = vld [vmem:[%s1 + $0xf0] sm:$0xf]
  %v103 = vld [vmem:[%s1 + $0xf4] sm:$0xf]
  %v104 = vld [vmem:[%s1 + $0xf8] sm:$0xf]
  %v105 = vld [vmem:[%s1 + $0xfc] sm:$0xf]
  %v106 = vld [vmem:[%s1 + $0x100] sm:$0xf]
  %v107 = vld [vmem:[%s1 + $0x104] sm:$0xf]
  %v108 = vld [vmem:[%s1 + $0x108] sm:$0xf]
  %v109 = vld [vmem:[%s1 + $0x10c] sm:$0xf]
  %v110 = vld [vmem:[%s1 + $0x110] sm:$0xf]
  %v111 = vld [vmem:[%s1 + $0x114] sm:$0xf]
  %v112 = vld [vmem:[%s1 + $0x118] sm:$0xf]
  %v113 = vld [vmem:[%s1 + $0x11c] sm:$0xf]
  %v138 = vunpack.c.l.b16 %v18
  %v139 = vunpack.c.h.b16 %v18
  %v140 = vunpack.c.l.b16 %v19
  %v141 = vunpack.c.h.b16 %v19
  %v142 = vunpack.c.l.b16 %v20
  %v143 = vunpack.c.l.b16 %v21
  %v144 = vunpack.c.h.b16 %v21
  %v145 = vunpack.c.l.b16 %v22
  %v146 = vunpack.c.h.b16 %v22
  %v147 = vunpack.c.l.b16 %v23
  %v148 = vunpack.c.l.b16 %v24
  %v149 = vunpack.c.h.b16 %v24
  %v150 = vunpack.c.l.b16 %v25
  %v151 = vunpack.c.h.b16 %v25
  %v152 = vunpack.c.l.b16 %v26
  %v153 = vunpack.c.l.b16 %v27
  %v154 = vunpack.c.h.b16 %v27
  %v155 = vunpack.c.l.b16 %v28
  %v156 = vunpack.c.h.b16 %v28
  %v157 = vunpack.c.l.b16 %v29
  %v158 = vunpack.c.l.b16 %v30
  %v159 = vunpack.c.h.b16 %v30
  %v160 = vunpack.c.l.b16 %v31
  %v161 = vunpack.c.h.b16 %v31
  %v162 = vunpack.c.l.b16 %v32
  %v163 = vunpack.c.l.b16 %v33
  %v164 = vunpack.c.h.b16 %v33
  %v165 = vunpack.c.l.b16 %v34
  %v166 = vunpack.c.h.b16 %v34
  %v167 = vunpack.c.l.b16 %v35
  %v168 = vunpack.c.l.b16 %v36
  %v169 = vunpack.c.h.b16 %v36
  %v170 = vunpack.c.l.b16 %v37
  %v171 = vunpack.c.h.b16 %v37
  %v172 = vunpack.c.l.b16 %v38
  %v173 = vunpack.c.l.b16 %v39
  %v174 = vunpack.c.h.b16 %v39
  %v175 = vunpack.c.l.b16 %v40
  %v176 = vunpack.c.h.b16 %v40
  %v177 = vunpack.c.l.b16 %v41
  %v178 = vpack.c.b16 %v143, %v138
  %v179 = vpack.c.b16 %v144, %v139
  %v180 = vpack.c.b16 %v145, %v140
  %v181 = vpack.c.b16 %v146, %v141
  %v182 = vpack.c.b16 %v147, %v142
  %v183 = vpack.c.b16 %v153, %v148
  %v184 = vpack.c.b16 %v154, %v149
  %v185 = vpack.c.b16 %v155, %v150
  %v186 = vpack.c.b16 %v156, %v151
  %v187 = vpack.c.b16 %v157, %v152
  %v188 = vpack.c.b16 %v163, %v158
  %v189 = vpack.c.b16 %v164, %v159
  %v190 = vpack.c.b16 %v165, %v160
  %v191 = vpack.c.b16 %v166, %v161
  %v192 = vpack.c.b16 %v167, %v162
  %v193 = vpack.c.b16 %v173, %v168
  %v194 = vpack.c.b16 %v174, %v169
  %v195 = vpack.c.b16 %v175, %v170
  %v196 = vpack.c.b16 %v176, %v171
  %v197 = vpack.c.b16 %v177, %v172
  %v286 = vunpack.c.l.b16 %v42
  %v287 = vunpack.c.l.b16 %v43
  %v288 = vunpack.c.l.b16 %v44
  %v289 = vunpack.c.l.b16 %v45
  %v290 = vunpack.c.l.b16 %v46
  %v291 = vunpack.c.l.b16 %v47
  %v292 = vunpack.c.l.b16 %v48
  %v293 = vunpack.c.l.b16 %v49
  %v294 = vunpack.c.l.b16 %v50
  %v295 = vunpack.c.l.b16 %v51
  %v296 = vunpack.c.l.b16 %v52
  %v297 = vunpack.c.l.b16 %v53
  %v298 = vunpack.c.l.b16 %v54
  %v299 = vunpack.c.l.b16 %v55
  %v300 = vunpack.c.l.b16 %v56
  %v301 = vunpack.c.l.b16 %v57
  %v302 = vunpack.c.l.b16 %v58
  %v303 = vunpack.c.l.b16 %v59
  %v304 = vunpack.c.l.b16 %v60
  %v305 = vunpack.c.l.b16 %v61
  %v306 = vunpack.c.l.b16 %v62
  %v307 = vunpack.c.l.b16 %v63
  %v308 = vunpack.c.l.b16 %v64
  %v309 = vunpack.c.l.b16 %v65
  %v310 = vunpack.c.l.b16 %v66
  %v311 = vunpack.c.l.b16 %v67
  %v312 = vunpack.c.l.b16 %v68
  %v313 = vunpack.c.l.b16 %v69
  %v314 = vunpack.c.l.b16 %v70
  %v315 = vunpack.c.l.b16 %v71
  %v316 = vunpack.c.l.b16 %v72
  %v317 = vunpack.c.l.b16 %v73
  %v318 = vunpack.c.l.b16 %v74
  %v319 = vunpack.c.l.b16 %v75
  %v320 = vunpack.c.l.b16 %v76
  %v321 = vunpack.c.l.b16 %v77
  %v322 = vunpack.c.l.b16 %v78
  %v323 = vunpack.c.l.b16 %v79
  %v324 = vunpack.c.l.b16 %v80
  %v325 = vunpack.c.l.b16 %v81
  %v326 = vunpack.c.l.b16 %v82
  %v327 = vunpack.c.l.b16 %v83
  %v328 = vunpack.c.l.b16 %v84
  %v329 = vunpack.c.l.b16 %v85
  %v330 = vunpack.c.l.b16 %v86
  %v331 = vunpack.c.l.b16 %v87
  %v332 = vunpack.c.l.b16 %v88
  %v333 = vunpack.c.l.b16 %v89
  %v334 = vunpack.c.l.b16 %v90
  %v335 = vunpack.c.l.b16 %v91
  %v336 = vunpack.c.l.b16 %v92
  %v337 = vunpack.c.l.b16 %v93
  %v338 = vunpack.c.l.b16 %v94
  %v339 = vunpack.c.l.b16 %v95
  %v340 = vunpack.c.l.b16 %v96
  %v341 = vunpack.c.l.b16 %v97
  %v342 = vunpack.c.l.b16 %v98
  %v343 = vunpack.c.l.b16 %v99
  %v344 = vunpack.c.l.b16 %v100
  %v345 = vunpack.c.l.b16 %v101
  %v346 = vunpack.c.l.b16 %v102
  %v347 = vunpack.c.l.b16 %v103
  %v348 = vunpack.c.l.b16 %v104
  %v349 = vunpack.c.l.b16 %v105
  %v350 = vunpack.c.l.b16 %v106
  %v351 = vunpack.c.l.b16 %v107
  %v352 = vunpack.c.l.b16 %v108
  %v353 = vunpack.c.l.b16 %v109
  %v354 = vunpack.c.l.b16 %v110
  %v355 = vunpack.c.l.b16 %v111
  %v356 = vunpack.c.l.b16 %v112
  %v357 = vunpack.c.l.b16 %v113
  %v358 = vpack.c.b16 %v287, %v286
  %v359 = vpack.c.b16 %v289, %v288
  %v360 = vpack.c.b16 %v291, %v290
  %v361 = vpack.c.b16 %v293, %v292
  %v362 = vpack.c.b16 %v295, %v294
  %v363 = vpack.c.b16 %v297, %v296
  %v364 = vpack.c.b16 %v299, %v298
  %v365 = vpack.c.b16 %v301, %v300
  %v366 = vpack.c.b16 %v303, %v302
  %v367 = vpack.c.b16 %v305, %v304
  %v368 = vpack.c.b16 %v307, %v306
  %v369 = vpack.c.b16 %v309, %v308
  %v370 = vpack.c.b16 %v311, %v310
  %v371 = vpack.c.b16 %v313, %v312
  %v372 = vpack.c.b16 %v315, %v314
  %v373 = vpack.c.b16 %v317, %v316
  %v374 = vpack.c.b16 %v319, %v318
  %v375 = vpack.c.b16 %v321, %v320
  %v376 = vpack.c.b16 %v323, %v322
  %v377 = vpack.c.b16 %v325, %v324
  %v378 = vpack.c.b16 %v327, %v326
  %v379 = vpack.c.b16 %v329, %v328
  %v380 = vpack.c.b16 %v331, %v330
  %v381 = vpack.c.b16 %v333, %v332
  %v382 = vpack.c.b16 %v335, %v334
  %v383 = vpack.c.b16 %v337, %v336
  %v384 = vpack.c.b16 %v339, %v338
  %v385 = vpack.c.b16 %v341, %v340
  %v386 = vpack.c.b16 %v343, %v342
  %v387 = vpack.c.b16 %v345, %v344
  %v388 = vpack.c.b16 %v347, %v346
  %v389 = vpack.c.b16 %v349, %v348
  %v390 = vpack.c.b16 %v351, %v350
  %v391 = vpack.c.b16 %v353, %v352
  %v392 = vpack.c.b16 %v355, %v354
  %v393 = vpack.c.b16 %v357, %v356
  %vm430 = vcmask 523264
  %v432 = vsel %vm430, %v182, 0
  %v435 = vsel %vm430, %v187, 0
  %v438 = vsel %vm430, %v192, 0
  %v441 = vsel %vm430, %v197, 0
  %443 = vmatpush.bf16.msra.mxu0 %v365
  %444 = vmatpush.bf16.msra.mxu0 %v364
  %445 = vmatpush.bf16.msra.mxu0 %v363
  %446 = vmatpush.bf16.msra.mxu0 %v362
  %447 = vmatpush.bf16.msra.mxu0 %v361
  %448 = vmatpush.bf16.msra.mxu0 %v360
  %449 = vmatpush.bf16.msra.mxu0 %v359
  %450 = vmatpush.bf16.msra.mxu0 %v358
  %451 = vmatmul.bf16.gmra.mxu0 %v178
  %v452 = vpop.f32.mrf.mxu0
  %v453 = vadd.f32 0.0, %v452
  %v454 = vpop.f32.mrf.mxu0
  %v455 = vadd.f32 0.0, %v454
  %456 = vmatmul.bf16.gmra.mxu0 %v183
  %v457 = vpop.f32.mrf.mxu0
  %v458 = vadd.f32 0.0, %v457
  %v459 = vpop.f32.mrf.mxu0
  %v460 = vadd.f32 0.0, %v459
  %461 = vmatmul.bf16.gmra.mxu0 %v188
  %v462 = vpop.f32.mrf.mxu0
  %v463 = vadd.f32 0.0, %v462
  %v464 = vpop.f32.mrf.mxu0
  %v465 = vadd.f32 0.0, %v464
  %466 = vmatmul.bf16.gmra.mxu0 %v193
  %v467 = vpop.f32.mrf.mxu0
  %v468 = vadd.f32 0.0, %v467
  %v469 = vpop.f32.mrf.mxu0
  %v470 = vadd.f32 0.0, %v469
  %471 = vdwg.mxu0
  %472 = vmatpush.bf16.msra.mxu0 %v373
  %473 = vmatpush.bf16.msra.mxu0 %v372
  %474 = vmatpush.bf16.msra.mxu0 %v371
  %475 = vmatpush.bf16.msra.mxu0 %v370
  %476 = vmatpush.bf16.msra.mxu0 %v369
  %477 = vmatpush.bf16.msra.mxu0 %v368
  %478 = vmatpush.bf16.msra.mxu0 %v367
  %479 = vmatpush.bf16.msra.mxu0 %v366
  %480 = vmatmul.bf16.gmra.mxu0 %v179
  %v481 = vpop.f32.mrf.mxu0
  %v482 = vadd.f32 %v453, %v481
  %v483 = vpop.f32.mrf.mxu0
  %v484 = vadd.f32 %v455, %v483
  %485 = vmatmul.bf16.gmra.mxu0 %v184
  %v486 = vpop.f32.mrf.mxu0
  %v487 = vadd.f32 %v458, %v486
  %v488 = vpop.f32.mrf.mxu0
  %v489 = vadd.f32 %v460, %v488
  %490 = vmatmul.bf16.gmra.mxu0 %v189
  %v491 = vpop.f32.mrf.mxu0
  %v492 = vadd.f32 %v463, %v491
  %v493 = vpop.f32.mrf.mxu0
  %v494 = vadd.f32 %v465, %v493
  %495 = vmatmul.bf16.gmra.mxu0 %v194
  %v496 = vpop.f32.mrf.mxu0
  %v497 = vadd.f32 %v468, %v496
  %v498 = vpop.f32.mrf.mxu0
  %v499 = vadd.f32 %v470, %v498
  %500 = vdwg.mxu0
  %501 = vmatpush.bf16.msra.mxu0 %v381
  %502 = vmatpush.bf16.msra.mxu0 %v380
  %503 = vmatpush.bf16.msra.mxu0 %v379
  %504 = vmatpush.bf16.msra.mxu0 %v378
  %505 = vmatpush.bf16.msra.mxu0 %v377
  %506 = vmatpush.bf16.msra.mxu0 %v376
  %507 = vmatpush.bf16.msra.mxu0 %v375
  %508 = vmatpush.bf16.msra.mxu0 %v374
  %509 = vmatmul.bf16.gmra.mxu0 %v180
  %v510 = vpop.f32.mrf.mxu0
  %v511 = vadd.f32 %v482, %v510
  %v512 = vpop.f32.mrf.mxu0
  %v513 = vadd.f32 %v484, %v512
  %514 = vmatmul.bf16.gmra.mxu0 %v185
  %v515 = vpop.f32.mrf.mxu0
  %v516 = vadd.f32 %v487, %v515
  %v517 = vpop.f32.mrf.mxu0
  %v518 = vadd.f32 %v489, %v517
  %519 = vmatmul.bf16.gmra.mxu0 %v190
  %v520 = vpop.f32.mrf.mxu0
  %v521 = vadd.f32 %v492, %v520
  %v522 = vpop.f32.mrf.mxu0
  %v523 = vadd.f32 %v494, %v522
  %524 = vmatmul.bf16.gmra.mxu0 %v195
  %v525 = vpop.f32.mrf.mxu0
  %v526 = vadd.f32 %v497, %v525
  %v527 = vpop.f32.mrf.mxu0
  %v528 = vadd.f32 %v499, %v527
  %529 = vdwg.mxu0
  %530 = vmatpush.bf16.msra.mxu0 %v389
  %531 = vmatpush.bf16.msra.mxu0 %v388
  %532 = vmatpush.bf16.msra.mxu0 %v387
  %533 = vmatpush.bf16.msra.mxu0 %v386
  %534 = vmatpush.bf16.msra.mxu0 %v385
  %535 = vmatpush.bf16.msra.mxu0 %v384
  %536 = vmatpush.bf16.msra.mxu0 %v383
  %537 = vmatpush.bf16.msra.mxu0 %v382
  %538 = vmatmul.bf16.gmra.mxu0 %v181
  %v539 = vpop.f32.mrf.mxu0
  %v540 = vadd.f32 %v511, %v539
  %v541 = vpop.f32.mrf.mxu0
  %v542 = vadd.f32 %v513, %v541
  %543 = vmatmul.bf16.gmra.mxu0 %v186
  %v544 = vpop.f32.mrf.mxu0
  %v545 = vadd.f32 %v516, %v544
  %v546 = vpop.f32.mrf.mxu0
  %v547 = vadd.f32 %v518, %v546
  %548 = vmatmul.bf16.gmra.mxu0 %v191
  %v549 = vpop.f32.mrf.mxu0
  %v550 = vadd.f32 %v521, %v549
  %v551 = vpop.f32.mrf.mxu0
  %v552 = vadd.f32 %v523, %v551
  %553 = vmatmul.bf16.gmra.mxu0 %v196
  %v554 = vpop.f32.mrf.mxu0
  %v555 = vadd.f32 %v526, %v554
  %v556 = vpop.f32.mrf.mxu0
  %v557 = vadd.f32 %v528, %v556
  %558 = vdwg.mxu0
  %559 = vmatpush.bf16.msra.mxu0 0
  %560 = vmatpush.bf16.msra.mxu0 0
  %561 = vmatpush.bf16.msra.mxu0 0
  %562 = vmatpush.bf16.msra.mxu0 0
  %563 = vmatpush.bf16.msra.mxu0 %v393
  %564 = vmatpush.bf16.msra.mxu0 %v392
  %565 = vmatpush.bf16.msra.mxu0 %v391
  %566 = vmatpush.bf16.msra.mxu0 %v390
  %567 = vmatmul.bf16.gmra.mxu0 %v432
  %v568 = vpop.f32.mrf.mxu0
  %v569 = vadd.f32 %v540, %v568
  %v570 = vpop.f32.mrf.mxu0
  %v571 = vadd.f32 %v542, %v570
  %572 = vmatmul.bf16.gmra.mxu0 %v435
  %v573 = vpop.f32.mrf.mxu0
  %v574 = vadd.f32 %v545, %v573
  %v575 = vpop.f32.mrf.mxu0
  %v576 = vadd.f32 %v547, %v575
  %577 = vmatmul.bf16.gmra.mxu0 %v438
  %v578 = vpop.f32.mrf.mxu0
  %v579 = vadd.f32 %v550, %v578
  %v580 = vpop.f32.mrf.mxu0
  %v581 = vadd.f32 %v552, %v580
  %582 = vmatmul.bf16.gmra.mxu0 %v441
  %v583 = vpop.f32.mrf.mxu0
  %v584 = vadd.f32 %v555, %v583
  %v585 = vpop.f32.mrf.mxu0
  %v586 = vadd.f32 %v557, %v585
  %587 = vdwg.mxu0
  %v588 = vld [vmem:[%s2] sm:$0xff]
  %v589 = vld [vmem:[%s2 + $0x8] sm:$0xff]
  %v590 = vld [vmem:[%s2 + $0x10] sm:$0xff]
  %v591 = vld [vmem:[%s2 + $0x18] sm:$0xff]
  %v592 = vld [vmem:[%s2 + $0x20] sm:$0xff]
  %v593 = vld [vmem:[%s2 + $0x28] sm:$0xff]
  %v594 = vld [vmem:[%s2 + $0x30] sm:$0xff]
  %v595 = vld [vmem:[%s2 + $0x38] sm:$0xff]
  %597 = vset.pattern.permute.xlu0 0
  %598 = vperm.xlu0 %597, %v588
  %v599 = vpop.permute.xlu0 %598
  %602 = vset.pattern.permute.xlu0 0
  %603 = vperm.xlu0 %602, %v589
  %v604 = vpop.permute.xlu0 %603
  %607 = vset.pattern.permute.xlu0 0
  %608 = vperm.xlu0 %607, %v590
  %v609 = vpop.permute.xlu0 %608
  %612 = vset.pattern.permute.xlu0 0
  %613 = vperm.xlu0 %612, %v591
  %v614 = vpop.permute.xlu0 %613
  %617 = vset.pattern.permute.xlu0 0
  %618 = vperm.xlu0 %617, %v592
  %v619 = vpop.permute.xlu0 %618
  %622 = vset.pattern.permute.xlu0 0
  %623 = vperm.xlu0 %622, %v593
  %v624 = vpop.permute.xlu0 %623
  %627 = vset.pattern.permute.xlu0 0
  %628 = vperm.xlu0 %627, %v594
  %v629 = vpop.permute.xlu0 %628
  %632 = vset.pattern.permute.xlu0 0
  %633 = vperm.xlu0 %632, %v595
  %v634 = vpop.permute.xlu0 %633
  %v636 = vmul.f32 %v569, %v599
  %v637 = vmul.f32 %v571, %v604
  %v638 = vmul.f32 %v574, %v609
  %v639 = vmul.f32 %v576, %v614
  %v640 = vmul.f32 %v579, %v619
  %v641 = vmul.f32 %v581, %v624
  %v642 = vmul.f32 %v584, %v629
  %v643 = vmul.f32 %v586, %v634
  %v644 = vld [vmem:[%s3] sm:$0xff]
  %v645 = vld [vmem:[%s3 + $0x8] sm:$0xff]
  %v646 = vld [vmem:[%s3 + $0x10] sm:$0xff]
  %v647 = vld [vmem:[%s3 + $0x18] sm:$0xff]
  %v648 = vld [vmem:[%s3 + $0x20] sm:$0xff]
  %v649 = vld [vmem:[%s3 + $0x28] sm:$0xff]
  %v650 = vld [vmem:[%s3 + $0x30] sm:$0xff]
  %v651 = vld [vmem:[%s3 + $0x38] sm:$0xff]
  %653 = vset.pattern.permute.xlu0 0
  %654 = vperm.xlu0 %653, %v644
  %v655 = vpop.permute.xlu0 %654
  %658 = vset.pattern.permute.xlu0 0
  %659 = vperm.xlu0 %658, %v645
  %v660 = vpop.permute.xlu0 %659
  %663 = vset.pattern.permute.xlu0 0
  %664 = vperm.xlu0 %663, %v646
  %v665 = vpop.permute.xlu0 %664
  %668 = vset.pattern.permute.xlu0 0
  %669 = vperm.xlu0 %668, %v647
  %v670 = vpop.permute.xlu0 %669
  %673 = vset.pattern.permute.xlu0 0
  %674 = vperm.xlu0 %673, %v648
  %v675 = vpop.permute.xlu0 %674
  %678 = vset.pattern.permute.xlu0 0
  %679 = vperm.xlu0 %678, %v649
  %v680 = vpop.permute.xlu0 %679
  %683 = vset.pattern.permute.xlu0 0
  %684 = vperm.xlu0 %683, %v650
  %v685 = vpop.permute.xlu0 %684
  %688 = vset.pattern.permute.xlu0 0
  %689 = vperm.xlu0 %688, %v651
  %v690 = vpop.permute.xlu0 %689
  %v692 = vadd.f32 %v636, %v655
  %v693 = vadd.f32 %v637, %v660
  %v694 = vadd.f32 %v638, %v665
  %v695 = vadd.f32 %v639, %v670
  %v696 = vadd.f32 %v640, %v675
  %v697 = vadd.f32 %v641, %v680
  %v698 = vadd.f32 %v642, %v685
  %v699 = vadd.f32 %v643, %v690
  %v700 = vmax.f32 %v692, 0.0
  %v701 = vmax.f32 %v693, 0.0
  %v702 = vmax.f32 %v694, 0.0
  %v703 = vmax.f32 %v695, 0.0
  %v704 = vmax.f32 %v696, 0.0
  %v705 = vmax.f32 %v697, 0.0
  %v706 = vmax.f32 %v698, 0.0
  %v707 = vmax.f32 %v699, 0.0
  %708 = vst [vmem:[%s4] sm:$0xff] %v700
  %709 = vst [vmem:[%s4 + $0x8] sm:$0xff] %v701
  %710 = vst [vmem:[%s4 + $0x10] sm:$0xff] %v702
  %711 = vst [vmem:[%s4 + $0x18] sm:$0xff] %v703
  %712 = vst [vmem:[%s4 + $0x20] sm:$0xff] %v704
  %713 = vst [vmem:[%s4 + $0x28] sm:$0xff] %v705
  %714 = vst [vmem:[%s4 + $0x30] sm:$0xff] %v706
  %715 = vst [vmem:[%s4 + $0x38] sm:$0xff] %v707
  // Predicated region
  $region18: #{_lambda_.25} parent=0 // pred_check
    _
  $region19: #{_lambda_.25} parent=0 // pred_check_branch
    %717 = sbr.rel (0) target = $region21
  $region20: #{_lambda_.25} parent=0 // pred_region
    _
  $region21: #{_lambda_.25} parent=0 // pred_fallthru
    _
  // Predicated region
  $region22: #{_lambda_.25} parent=0 // pred_check
    _
  $region23: #{_lambda_.25} parent=0 // pred_check_branch
    %719 = sbr.rel (0) target = $region25
  $region24: #{_lambda_.25} parent=0 // pred_region
    _
  $region25: #{_lambda_.25} parent=0 // pred_fallthru
    _

// kernel: _lambda_.26
$region0: #{_lambda_.26}
  #allocation0 [shape = 'u32[]', space=smem, size = 0x4, offset = 0x4, fixed_abs, tag = 'smem constant byte address 0x4 - core index']
  #allocation1 [shape = 'u32[72,128]{1,0:T(1,128)}', space=vmem, size = 0x9000, scoped, tag = 'internal scratch']
  %s0 = inlined_call_operand.vmem [shape: bf16[64,576], index: 0, kind: input, shape index: {}]
  %s1 = inlined_call_operand.vmem [shape: bf16[576,128], index: 1, kind: input, shape index: {}]
  %s2 = inlined_call_operand.vmem [shape: f32[64,1], index: 2, kind: input, shape index: {}]
  %s3 = inlined_call_operand.vmem [shape: f32[64,1], index: 3, kind: input, shape index: {}]
  %s4 = inlined_call_operand.vmem [shape: f32[64,128], index: 4, kind: input, shape index: {}]
  %s5 = inlined_call_operand.vmem [shape: f32[64,128], index: 5, kind: output, shape index: {}]
  %s6 = sld [smem:[#allocation0]]
  $region30: #{_lambda_.26} parent=0
    _
  %s8 = ssub.s32 1, %s6
  %s9 = scalar_select 0, %s8, %s6
  // Predicated region
  $region2: #{_lambda_.26} parent=0 // pred_check
    _
  $region3: #{_lambda_.26} parent=0 // pred_check_branch
    %11 = sbr.rel (0) target = $region5
  $region4: #{_lambda_.26} parent=0 // pred_region
    _
  $region5: #{_lambda_.26} parent=0 // pred_fallthru
    _
  // Predicated region
  $region6: #{_lambda_.26} parent=0 // pred_check
    _
  $region7: #{_lambda_.26} parent=0 // pred_check_branch
    %13 = sbr.rel (0) target = $region9
  $region8: #{_lambda_.26} parent=0 // pred_region
    _
  $region9: #{_lambda_.26} parent=0 // pred_fallthru
    _
  // Predicated region
  $region10: #{_lambda_.26} parent=0 // pred_check
    _
  $region11: #{_lambda_.26} parent=0 // pred_check_branch
    %15 = sbr.rel (0) target = $region13
  $region12: #{_lambda_.26} parent=0 // pred_region
    _
  $region13: #{_lambda_.26} parent=0 // pred_fallthru
    _
  // Predicated region
  $region14: #{_lambda_.26} parent=0 // pred_check
    _
  $region15: #{_lambda_.26} parent=0 // pred_check_branch
    %17 = sbr.rel (0) target = $region17
  $region16: #{_lambda_.26} parent=0 // pred_region
    _
  $region17: #{_lambda_.26} parent=0 // pred_fallthru
    _
  // Predicated region
  $region18: #{_lambda_.26} parent=0 // pred_check
    _
  $region19: #{_lambda_.26} parent=0 // pred_check_branch
    %19 = sbr.rel (0) target = $region21
  $region20: #{_lambda_.26} parent=0 // pred_region
    _
  $region21: #{_lambda_.26} parent=0 // pred_fallthru
    _
  %v21 = vld [vmem:[%s0] sm:$0xff]
  %v22 = vld [vmem:[%s0 + $0x8] sm:$0xff]
  %v23 = vld [vmem:[%s0 + $0x10] sm:$0xf]
  %v24 = vld [vmem:[%s0 + $0x14] sm:$0xff]
  %v25 = vld [vmem:[%s0 + $0x1c] sm:$0xff]
  %v26 = vld [vmem:[%s0 + $0x24] sm:$0xf]
  %v27 = vld [vmem:[%s0 + $0x28] sm:$0xff]
  %v28 = vld [vmem:[%s0 + $0x30] sm:$0xff]
  %v29 = vld [vmem:[%s0 + $0x38] sm:$0xf]
  %v30 = vld [vmem:[%s0 + $0x3c] sm:$0xff]
  %v31 = vld [vmem:[%s0 + $0x44] sm:$0xff]
  %v32 = vld [vmem:[%s0 + $0x4c] sm:$0xf]
  %v33 = vld [vmem:[%s0 + $0x50] sm:$0xff]
  %v34 = vld [vmem:[%s0 + $0x58] sm:$0xff]
  %v35 = vld [vmem:[%s0 + $0x60] sm:$0xf]
  %v36 = vld [vmem:[%s0 + $0x64] sm:$0xff]
  %v37 = vld [vmem:[%s0 + $0x6c] sm:$0xff]
  %v38 = vld [vmem:[%s0 + $0x74] sm:$0xf]
  %v39 = vld [vmem:[%s0 + $0x78] sm:$0xff]
  %v40 = vld [vmem:[%s0 + $0x80] sm:$0xff]
  %v41 = vld [vmem:[%s0 + $0x88] sm:$0xf]
  %v42 = vld [vmem:[%s0 + $0x8c] sm:$0xff]
  %v43 = vld [vmem:[%s0 + $0x94] sm:$0xff]
  %v44 = vld [vmem:[%s0 + $0x9c] sm:$0xf]
  %v45 = vld [vmem:[%s1] sm:$0xf]
  %v46 = vld [vmem:[%s1 + $0x4] sm:$0xf]
  %v47 = vld [vmem:[%s1 + $0x8] sm:$0xf]
  %v48 = vld [vmem:[%s1 + $0xc] sm:$0xf]
  %v49 = vld [vmem:[%s1 + $0x10] sm:$0xf]
  %v50 = vld [vmem:[%s1 + $0x14] sm:$0xf]
  %v51 = vld [vmem:[%s1 + $0x18] sm:$0xf]
  %v52 = vld [vmem:[%s1 + $0x1c] sm:$0xf]
  %v53 = vld [vmem:[%s1 + $0x20] sm:$0xf]
  %v54 = vld [vmem:[%s1 + $0x24] sm:$0xf]
  %v55 = vld [vmem:[%s1 + $0x28] sm:$0xf]
  %v56 = vld [vmem:[%s1 + $0x2c] sm:$0xf]
  %v57 = vld [vmem:[%s1 + $0x30] sm:$0xf]
  %v58 = vld [vmem:[%s1 + $0x34] sm:$0xf]
  %v59 = vld [vmem:[%s1 + $0x38] sm:$0xf]
  %v60 = vld [vmem:[%s1 + $0x3c] sm:$0xf]
  %v61 = vld [vmem:[%s1 + $0x40] sm:$0xf]
  %v62 = vld [vmem:[%s1 + $0x44] sm:$0xf]
  %v63 = vld [vmem:[%s1 + $0x48] sm:$0xf]
  %v64 = vld [vmem:[%s1 + $0x4c] sm:$0xf]
  %v65 = vld [vmem:[%s1 + $0x50] sm:$0xf]
  %v66 = vld [vmem:[%s1 + $0x54] sm:$0xf]
  %v67 = vld [vmem:[%s1 + $0x58] sm:$0xf]
  %v68 = vld [vmem:[%s1 + $0x5c] sm:$0xf]
  %v69 = vld [vmem:[%s1 + $0x60] sm:$0xf]
  %v70 = vld [vmem:[%s1 + $0x64] sm:$0xf]
  %v71 = vld [vmem:[%s1 + $0x68] sm:$0xf]
  %v72 = vld [vmem:[%s1 + $0x6c] sm:$0xf]
  %v73 = vld [vmem:[%s1 + $0x70] sm:$0xf]
  %v74 = vld [vmem:[%s1 + $0x74] sm:$0xf]
  %v75 = vld [vmem:[%s1 + $0x78] sm:$0xf]
  %v76 = vld [vmem:[%s1 + $0x7c] sm:$0xf]
  %v77 = vld [vmem:[%s1 + $0x80] sm:$0xf]
  %v78 = vld [vmem:[%s1 + $0x84] sm:$0xf]
  %v79 = vld [vmem:[%s1 + $0x88] sm:$0xf]
  %v80 = vld [vmem:[%s1 + $0x8c] sm:$0xf]
  %v81 = vld [vmem:[%s1 + $0x90] sm:$0xf]
  %v82 = vld [vmem:[%s1 + $0x94] sm:$0xf]
  %v83 = vld [vmem:[%s1 + $0x98] sm:$0xf]
  %v84 = vld [vmem:[%s1 + $0x9c] sm:$0xf]
  %v85 = vld [vmem:[%s1 + $0xa0] sm:$0xf]
  %v86 = vld [vmem:[%s1 + $0xa4] sm:$0xf]
  %v87 = vld [vmem:[%s1 + $0xa8] sm:$0xf]
  %v88 = vld [vmem:[%s1 + $0xac] sm:$0xf]
  %v89 = vld [vmem:[%s1 + $0xb0] sm:$0xf]
  %v90 = vld [vmem:[%s1 + $0xb4] sm:$0xf]
  %v91 = vld [vmem:[%s1 + $0xb8] sm:$0xf]
  %v92 = vld [vmem:[%s1 + $0xbc] sm:$0xf]
  %v93 = vld [vmem:[%s1 + $0xc0] sm:$0xf]
  %v94 = vld [vmem:[%s1 + $0xc4] sm:$0xf]
  %v95 = vld [vmem:[%s1 + $0xc8] sm:$0xf]
  %v96 = vld [vmem:[%s1 + $0xcc] sm:$0xf]
  %v97 = vld [vmem:[%s1 + $0xd0] sm:$0xf]
  %v98 = vld [vmem:[%s1 + $0xd4] sm:$0xf]
  %v99 = vld [vmem:[%s1 + $0xd8] sm:$0xf]
  %v100 = vld [vmem:[%s1 + $0xdc] sm:$0xf]
  %v101 = vld [vmem:[%s1 + $0xe0] sm:$0xf]
  %v102 = vld [vmem:[%s1 + $0xe4] sm:$0xf]
  %v103 = vld [vmem:[%s1 + $0xe8] sm:$0xf]
  %v104 = vld [vmem:[%s1 + $0xec] sm:$0xf]
  %v105 = vld [vmem:[%s1 + $0xf0] sm:$0xf]
  %v106 = vld [vmem:[%s1 + $0xf4] sm:$0xf]
  %v107 = vld [vmem:[%s1 + $0xf8] sm:$0xf]
  %v108 = vld [vmem:[%s1 + $0xfc] sm:$0xf]
  %v109 = vld [vmem:[%s1 + $0x100] sm:$0xf]
  %v110 = vld [vmem:[%s1 + $0x104] sm:$0xf]
  %v111 = vld [vmem:[%s1 + $0x108] sm:$0xf]
  %v112 = vld [vmem:[%s1 + $0x10c] sm:$0xf]
  %v113 = vld [vmem:[%s1 + $0x110] sm:$0xf]
  %v114 = vld [vmem:[%s1 + $0x114] sm:$0xf]
  %v115 = vld [vmem:[%s1 + $0x118] sm:$0xf]
  %v116 = vld [vmem:[%s1 + $0x11c] sm:$0xf]
  %v141 = vunpack.c.l.b16 %v21
  %v142 = vunpack.c.h.b16 %v21
  %v143 = vunpack.c.l.b16 %v22
  %v144 = vunpack.c.h.b16 %v22
  %v145 = vunpack.c.l.b16 %v23
  %v146 = vunpack.c.l.b16 %v24
  %v147 = vunpack.c.h.b16 %v24
  %v148 = vunpack.c.l.b16 %v25
  %v149 = vunpack.c.h.b16 %v25
  %v150 = vunpack.c.l.b16 %v26
  %v151 = vunpack.c.l.b16 %v27
  %v152 = vunpack.c.h.b16 %v27
  %v153 = vunpack.c.l.b16 %v28
  %v154 = vunpack.c.h.b16 %v28
  %v155 = vunpack.c.l.b16 %v29
  %v156 = vunpack.c.l.b16 %v30
  %v157 = vunpack.c.h.b16 %v30
  %v158 = vunpack.c.l.b16 %v31
  %v159 = vunpack.c.h.b16 %v31
  %v160 = vunpack.c.l.b16 %v32
  %v161 = vunpack.c.l.b16 %v33
  %v162 = vunpack.c.h.b16 %v33
  %v163 = vunpack.c.l.b16 %v34
  %v164 = vunpack.c.h.b16 %v34
  %v165 = vunpack.c.l.b16 %v35
  %v166 = vunpack.c.l.b16 %v36
  %v167 = vunpack.c.h.b16 %v36
  %v168 = vunpack.c.l.b16 %v37
  %v169 = vunpack.c.h.b16 %v37
  %v170 = vunpack.c.l.b16 %v38
  %v171 = vunpack.c.l.b16 %v39
  %v172 = vunpack.c.h.b16 %v39
  %v173 = vunpack.c.l.b16 %v40
  %v174 = vunpack.c.h.b16 %v40
  %v175 = vunpack.c.l.b16 %v41
  %v176 = vunpack.c.l.b16 %v42
  %v177 = vunpack.c.h.b16 %v42
  %v178 = vunpack.c.l.b16 %v43
  %v179 = vunpack.c.h.b16 %v43
  %v180 = vunpack.c.l.b16 %v44
  %v181 = vpack.c.b16 %v146, %v141
  %v182 = vpack.c.b16 %v147, %v142
  %v183 = vpack.c.b16 %v148, %v143
  %v184 = vpack.c.b16 %v149, %v144
  %v185 = vpack.c.b16 %v150, %v145
  %v186 = vpack.c.b16 %v156, %v151
  %v187 = vpack.c.b16 %v157, %v152
  %v188 = vpack.c.b16 %v158, %v153
  %v189 = vpack.c.b16 %v159, %v154
  %v190 = vpack.c.b16 %v160, %v155
  %v191 = vpack.c.b16 %v166, %v161
  %v192 = vpack.c.b16 %v167, %v162
  %v193 = vpack.c.b16 %v168, %v163
  %v194 = vpack.c.b16 %v169, %v164
  %v195 = vpack.c.b16 %v170, %v165
  %v196 = vpack.c.b16 %v176, %v171
  %v197 = vpack.c.b16 %v177, %v172
  %v198 = vpack.c.b16 %v178, %v173
  %v199 = vpack.c.b16 %v179, %v174
  %v200 = vpack.c.b16 %v180, %v175
  %v289 = vunpack.c.l.b16 %v45
  %v290 = vunpack.c.l.b16 %v46
  %v291 = vunpack.c.l.b16 %v47
  %v292 = vunpack.c.l.b16 %v48
  %v293 = vunpack.c.l.b16 %v49
  %v294 = vunpack.c.l.b16 %v50
  %v295 = vunpack.c.l.b16 %v51
  %v296 = vunpack.c.l.b16 %v52
  %v297 = vunpack.c.l.b16 %v53
  %v298 = vunpack.c.l.b16 %v54
  %v299 = vunpack.c.l.b16 %v55
  %v300 = vunpack.c.l.b16 %v56
  %v301 = vunpack.c.l.b16 %v57
  %v302 = vunpack.c.l.b16 %v58
  %v303 = vunpack.c.l.b16 %v59
  %v304 = vunpack.c.l.b16 %v60
  %v305 = vunpack.c.l.b16 %v61
  %v306 = vunpack.c.l.b16 %v62
  %v307 = vunpack.c.l.b16 %v63
  %v308 = vunpack.c.l.b16 %v64
  %v309 = vunpack.c.l.b16 %v65
  %v310 = vunpack.c.l.b16 %v66
  %v311 = vunpack.c.l.b16 %v67
  %v312 = vunpack.c.l.b16 %v68
  %v313 = vunpack.c.l.b16 %v69
  %v314 = vunpack.c.l.b16 %v70
  %v315 = vunpack.c.l.b16 %v71
  %v316 = vunpack.c.l.b16 %v72
  %v317 = vunpack.c.l.b16 %v73
  %v318 = vunpack.c.l.b16 %v74
  %v319 = vunpack.c.l.b16 %v75
  %v320 = vunpack.c.l.b16 %v76
  %v321 = vunpack.c.l.b16 %v77
  %v322 = vunpack.c.l.b16 %v78
  %v323 = vunpack.c.l.b16 %v79
  %v324 = vunpack.c.l.b16 %v80
  %v325 = vunpack.c.l.b16 %v81
  %v326 = vunpack.c.l.b16 %v82
  %v327 = vunpack.c.l.b16 %v83
  %v328 = vunpack.c.l.b16 %v84
  %v329 = vunpack.c.l.b16 %v85
  %v330 = vunpack.c.l.b16 %v86
  %v331 = vunpack.c.l.b16 %v87
  %v332 = vunpack.c.l.b16 %v88
  %v333 = vunpack.c.l.b16 %v89
  %v334 = vunpack.c.l.b16 %v90
  %v335 = vunpack.c.l.b16 %v91
  %v336 = vunpack.c.l.b16 %v92
  %v337 = vunpack.c.l.b16 %v93
  %v338 = vunpack.c.l.b16 %v94
  %v339 = vunpack.c.l.b16 %v95
  %v340 = vunpack.c.l.b16 %v96
  %v341 = vunpack.c.l.b16 %v97
  %v342 = vunpack.c.l.b16 %v98
  %v343 = vunpack.c.l.b16 %v99
  %v344 = vunpack.c.l.b16 %v100
  %v345 = vunpack.c.l.b16 %v101
  %v346 = vunpack.c.l.b16 %v102
  %v347 = vunpack.c.l.b16 %v103
  %v348 = vunpack.c.l.b16 %v104
  %v349 = vunpack.c.l.b16 %v105
  %v350 = vunpack.c.l.b16 %v106
  %v351 = vunpack.c.l.b16 %v107
  %v352 = vunpack.c.l.b16 %v108
  %v353 = vunpack.c.l.b16 %v109
  %v354 = vunpack.c.l.b16 %v110
  %v355 = vunpack.c.l.b16 %v111
  %v356 = vunpack.c.l.b16 %v112
  %v357 = vunpack.c.l.b16 %v113
  %v358 = vunpack.c.l.b16 %v114
  %v359 = vunpack.c.l.b16 %v115
  %v360 = vunpack.c.l.b16 %v116
  %v361 = vpack.c.b16 %v290, %v289
  %v362 = vpack.c.b16 %v292, %v291
  %v363 = vpack.c.b16 %v294, %v293
  %v364 = vpack.c.b16 %v296, %v295
  %v365 = vpack.c.b16 %v298, %v297
  %v366 = vpack.c.b16 %v300, %v299
  %v367 = vpack.c.b16 %v302, %v301
  %v368 = vpack.c.b16 %v304, %v303
  %v369 = vpack.c.b16 %v306, %v305
  %v370 = vpack.c.b16 %v308, %v307
  %v371 = vpack.c.b16 %v310, %v309
  %v372 = vpack.c.b16 %v312, %v311
  %v373 = vpack.c.b16 %v314, %v313
  %v374 = vpack.c.b16 %v316, %v315
  %v375 = vpack.c.b16 %v318, %v317
  %v376 = vpack.c.b16 %v320, %v319
  %v377 = vpack.c.b16 %v322, %v321
  %v378 = vpack.c.b16 %v324, %v323
  %v379 = vpack.c.b16 %v326, %v325
  %v380 = vpack.c.b16 %v328, %v327
  %v381 = vpack.c.b16 %v330, %v329
  %v382 = vpack.c.b16 %v332, %v331
  %v383 = vpack.c.b16 %v334, %v333
  %v384 = vpack.c.b16 %v336, %v335
  %v385 = vpack.c.b16 %v338, %v337
  %v386 = vpack.c.b16 %v340, %v339
  %v387 = vpack.c.b16 %v342, %v341
  %v388 = vpack.c.b16 %v344, %v343
  %v389 = vpack.c.b16 %v346, %v345
  %v390 = vpack.c.b16 %v348, %v347
  %v391 = vpack.c.b16 %v350, %v349
  %v392 = vpack.c.b16 %v352, %v351
  %v393 = vpack.c.b16 %v354, %v353
  %v394 = vpack.c.b16 %v356, %v355
  %v395 = vpack.c.b16 %v358, %v357
  %v396 = vpack.c.b16 %v360, %v359
  %vm433 = vcmask 523264
  %v435 = vsel %vm433, %v185, 0
  %v438 = vsel %vm433, %v190, 0
  %v441 = vsel %vm433, %v195, 0
  %v444 = vsel %vm433, %v200, 0
  %446 = vmatpush.bf16.msra.mxu0 %v368
  %447 = vmatpush.bf16.msra.mxu0 %v367
  %448 = vmatpush.bf16.msra.mxu0 %v366
  %449 = vmatpush.bf16.msra.mxu0 %v365
  %450 = vmatpush.bf16.msra.mxu0 %v364
  %451 = vmatpush.bf16.msra.mxu0 %v363
  %452 = vmatpush.bf16.msra.mxu0 %v362
  %453 = vmatpush.bf16.msra.mxu0 %v361
  %454 = vmatmul.bf16.gmra.mxu0 %v181
  %v455 = vpop.f32.mrf.mxu0
  %v456 = vadd.f32 0.0, %v455
  %v457 = vpop.f32.mrf.mxu0
  %v458 = vadd.f32 0.0, %v457
  %459 = vmatmul.bf16.gmra.mxu0 %v186
  %v460 = vpop.f32.mrf.mxu0
  %v461 = vadd.f32 0.0, %v460
  %v462 = vpop.f32.mrf.mxu0
  %v463 = vadd.f32 0.0, %v462
  %464 = vmatmul.bf16.gmra.mxu0 %v191
  %v465 = vpop.f32.mrf.mxu0
  %v466 = vadd.f32 0.0, %v465
  %v467 = vpop.f32.mrf.mxu0
  %v468 = vadd.f32 0.0, %v467
  %469 = vmatmul.bf16.gmra.mxu0 %v196
  %v470 = vpop.f32.mrf.mxu0
  %v471 = vadd.f32 0.0, %v470
  %v472 = vpop.f32.mrf.mxu0
  %v473 = vadd.f32 0.0, %v472
  %474 = vdwg.mxu0
  %475 = vmatpush.bf16.msra.mxu0 %v376
  %476 = vmatpush.bf16.msra.mxu0 %v375
  %477 = vmatpush.bf16.msra.mxu0 %v374
  %478 = vmatpush.bf16.msra.mxu0 %v373
  %479 = vmatpush.bf16.msra.mxu0 %v372
  %480 = vmatpush.bf16.msra.mxu0 %v371
  %481 = vmatpush.bf16.msra.mxu0 %v370
  %482 = vmatpush.bf16.msra.mxu0 %v369
  %483 = vmatmul.bf16.gmra.mxu0 %v182
  %v484 = vpop.f32.mrf.mxu0
  %v485 = vadd.f32 %v456, %v484
  %v486 = vpop.f32.mrf.mxu0
  %v487 = vadd.f32 %v458, %v486
  %488 = vmatmul.bf16.gmra.mxu0 %v187
  %v489 = vpop.f32.mrf.mxu0
  %v490 = vadd.f32 %v461, %v489
  %v491 = vpop.f32.mrf.mxu0
  %v492 = vadd.f32 %v463, %v491
  %493 = vmatmul.bf16.gmra.mxu0 %v192
  %v494 = vpop.f32.mrf.mxu0
  %v495 = vadd.f32 %v466, %v494
  %v496 = vpop.f32.mrf.mxu0
  %v497 = vadd.f32 %v468, %v496
  %498 = vmatmul.bf16.gmra.mxu0 %v197
  %v499 = vpop.f32.mrf.mxu0
  %v500 = vadd.f32 %v471, %v499
  %v501 = vpop.f32.mrf.mxu0
  %v502 = vadd.f32 %v473, %v501
  %503 = vdwg.mxu0
  %504 = vmatpush.bf16.msra.mxu0 %v384
  %505 = vmatpush.bf16.msra.mxu0 %v383
  %506 = vmatpush.bf16.msra.mxu0 %v382
  %507 = vmatpush.bf16.msra.mxu0 %v381
  %508 = vmatpush.bf16.msra.mxu0 %v380
  %509 = vmatpush.bf16.msra.mxu0 %v379
  %510 = vmatpush.bf16.msra.mxu0 %v378
  %511 = vmatpush.bf16.msra.mxu0 %v377
  %512 = vmatmul.bf16.gmra.mxu0 %v183
  %v513 = vpop.f32.mrf.mxu0
  %v514 = vadd.f32 %v485, %v513
  %v515 = vpop.f32.mrf.mxu0
  %v516 = vadd.f32 %v487, %v515
  %517 = vmatmul.bf16.gmra.mxu0 %v188
  %v518 = vpop.f32.mrf.mxu0
  %v519 = vadd.f32 %v490, %v518
  %v520 = vpop.f32.mrf.mxu0
  %v521 = vadd.f32 %v492, %v520
  %522 = vmatmul.bf16.gmra.mxu0 %v193
  %v523 = vpop.f32.mrf.mxu0
  %v524 = vadd.f32 %v495, %v523
  %v525 = vpop.f32.mrf.mxu0
  %v526 = vadd.f32 %v497, %v525
  %527 = vmatmul.bf16.gmra.mxu0 %v198
  %v528 = vpop.f32.mrf.mxu0
  %v529 = vadd.f32 %v500, %v528
  %v530 = vpop.f32.mrf.mxu0
  %v531 = vadd.f32 %v502, %v530
  %532 = vdwg.mxu0
  %533 = vmatpush.bf16.msra.mxu0 %v392
  %534 = vmatpush.bf16.msra.mxu0 %v391
  %535 = vmatpush.bf16.msra.mxu0 %v390
  %536 = vmatpush.bf16.msra.mxu0 %v389
  %537 = vmatpush.bf16.msra.mxu0 %v388
  %538 = vmatpush.bf16.msra.mxu0 %v387
  %539 = vmatpush.bf16.msra.mxu0 %v386
  %540 = vmatpush.bf16.msra.mxu0 %v385
  %541 = vmatmul.bf16.gmra.mxu0 %v184
  %v542 = vpop.f32.mrf.mxu0
  %v543 = vadd.f32 %v514, %v542
  %v544 = vpop.f32.mrf.mxu0
  %v545 = vadd.f32 %v516, %v544
  %546 = vmatmul.bf16.gmra.mxu0 %v189
  %v547 = vpop.f32.mrf.mxu0
  %v548 = vadd.f32 %v519, %v547
  %v549 = vpop.f32.mrf.mxu0
  %v550 = vadd.f32 %v521, %v549
  %551 = vmatmul.bf16.gmra.mxu0 %v194
  %v552 = vpop.f32.mrf.mxu0
  %v553 = vadd.f32 %v524, %v552
  %v554 = vpop.f32.mrf.mxu0
  %v555 = vadd.f32 %v526, %v554
  %556 = vmatmul.bf16.gmra.mxu0 %v199
  %v557 = vpop.f32.mrf.mxu0
  %v558 = vadd.f32 %v529, %v557
  %v559 = vpop.f32.mrf.mxu0
  %v560 = vadd.f32 %v531, %v559
  %561 = vdwg.mxu0
  %562 = vmatpush.bf16.msra.mxu0 0
  %563 = vmatpush.bf16.msra.mxu0 0
  %564 = vmatpush.bf16.msra.mxu0 0
  %565 = vmatpush.bf16.msra.mxu0 0
  %566 = vmatpush.bf16.msra.mxu0 %v396
  %567 = vmatpush.bf16.msra.mxu0 %v395
  %568 = vmatpush.bf16.msra.mxu0 %v394
  %569 = vmatpush.bf16.msra.mxu0 %v393
  %570 = vmatmul.bf16.gmra.mxu0 %v435
  %v571 = vpop.f32.mrf.mxu0
  %v572 = vadd.f32 %v543, %v571
  %v573 = vpop.f32.mrf.mxu0
  %v574 = vadd.f32 %v545, %v573
  %575 = vmatmul.bf16.gmra.mxu0 %v438
  %v576 = vpop.f32.mrf.mxu0
  %v577 = vadd.f32 %v548, %v576
  %v578 = vpop.f32.mrf.mxu0
  %v579 = vadd.f32 %v550, %v578
  %580 = vmatmul.bf16.gmra.mxu0 %v441
  %v581 = vpop.f32.mrf.mxu0
  %v582 = vadd.f32 %v553, %v581
  %v583 = vpop.f32.mrf.mxu0
  %v584 = vadd.f32 %v555, %v583
  %585 = vmatmul.bf16.gmra.mxu0 %v444
  %v586 = vpop.f32.mrf.mxu0
  %v587 = vadd.f32 %v558, %v586
  %v588 = vpop.f32.mrf.mxu0
  %v589 = vadd.f32 %v560, %v588
  %590 = vdwg.mxu0
  %v591 = vld [vmem:[%s2] sm:$0xff]
  %v592 = vld [vmem:[%s2 + $0x8] sm:$0xff]
  %v593 = vld [vmem:[%s2 + $0x10] sm:$0xff]
  %v594 = vld [vmem:[%s2 + $0x18] sm:$0xff]
  %v595 = vld [vmem:[%s2 + $0x20] sm:$0xff]
  %v596 = vld [vmem:[%s2 + $0x28] sm:$0xff]
  %v597 = vld [vmem:[%s2 + $0x30] sm:$0xff]
  %v598 = vld [vmem:[%s2 + $0x38] sm:$0xff]
  %600 = vset.pattern.permute.xlu0 0
  %601 = vperm.xlu0 %600, %v591
  %v602 = vpop.permute.xlu0 %601
  %605 = vset.pattern.permute.xlu0 0
  %606 = vperm.xlu0 %605, %v592
  %v607 = vpop.permute.xlu0 %606
  %610 = vset.pattern.permute.xlu0 0
  %611 = vperm.xlu0 %610, %v593
  %v612 = vpop.permute.xlu0 %611
  %615 = vset.pattern.permute.xlu0 0
  %616 = vperm.xlu0 %615, %v594
  %v617 = vpop.permute.xlu0 %616
  %620 = vset.pattern.permute.xlu0 0
  %621 = vperm.xlu0 %620, %v595
  %v622 = vpop.permute.xlu0 %621
  %625 = vset.pattern.permute.xlu0 0
  %626 = vperm.xlu0 %625, %v596
  %v627 = vpop.permute.xlu0 %626
  %630 = vset.pattern.permute.xlu0 0
  %631 = vperm.xlu0 %630, %v597
  %v632 = vpop.permute.xlu0 %631
  %635 = vset.pattern.permute.xlu0 0
  %636 = vperm.xlu0 %635, %v598
  %v637 = vpop.permute.xlu0 %636
  %v639 = vmul.f32 %v572, %v602
  %v640 = vmul.f32 %v574, %v607
  %v641 = vmul.f32 %v577, %v612
  %v642 = vmul.f32 %v579, %v617
  %v643 = vmul.f32 %v582, %v622
  %v644 = vmul.f32 %v584, %v627
  %v645 = vmul.f32 %v587, %v632
  %v646 = vmul.f32 %v589, %v637
  %v647 = vld [vmem:[%s3] sm:$0xff]
  %v648 = vld [vmem:[%s3 + $0x8] sm:$0xff]
  %v649 = vld [vmem:[%s3 + $0x10] sm:$0xff]
  %v650 = vld [vmem:[%s3 + $0x18] sm:$0xff]
  %v651 = vld [vmem:[%s3 + $0x20] sm:$0xff]
  %v652 = vld [vmem:[%s3 + $0x28] sm:$0xff]
  %v653 = vld [vmem:[%s3 + $0x30] sm:$0xff]
  %v654 = vld [vmem:[%s3 + $0x38] sm:$0xff]
  %656 = vset.pattern.permute.xlu0 0
  %657 = vperm.xlu0 %656, %v647
  %v658 = vpop.permute.xlu0 %657
  %661 = vset.pattern.permute.xlu0 0
  %662 = vperm.xlu0 %661, %v648
  %v663 = vpop.permute.xlu0 %662
  %666 = vset.pattern.permute.xlu0 0
  %667 = vperm.xlu0 %666, %v649
  %v668 = vpop.permute.xlu0 %667
  %671 = vset.pattern.permute.xlu0 0
  %672 = vperm.xlu0 %671, %v650
  %v673 = vpop.permute.xlu0 %672
  %676 = vset.pattern.permute.xlu0 0
  %677 = vperm.xlu0 %676, %v651
  %v678 = vpop.permute.xlu0 %677
  %681 = vset.pattern.permute.xlu0 0
  %682 = vperm.xlu0 %681, %v652
  %v683 = vpop.permute.xlu0 %682
  %686 = vset.pattern.permute.xlu0 0
  %687 = vperm.xlu0 %686, %v653
  %v688 = vpop.permute.xlu0 %687
  %691 = vset.pattern.permute.xlu0 0
  %692 = vperm.xlu0 %691, %v654
  %v693 = vpop.permute.xlu0 %692
  %v695 = vadd.f32 %v639, %v658
  %v696 = vadd.f32 %v640, %v663
  %v697 = vadd.f32 %v641, %v668
  %v698 = vadd.f32 %v642, %v673
  %v699 = vadd.f32 %v643, %v678
  %v700 = vadd.f32 %v644, %v683
  %v701 = vadd.f32 %v645, %v688
  %v702 = vadd.f32 %v646, %v693
  %v703 = vld [vmem:[%s4] sm:$0xff]
  %v704 = vld [vmem:[%s4 + $0x8] sm:$0xff]
  %v705 = vld [vmem:[%s4 + $0x10] sm:$0xff]
  %v706 = vld [vmem:[%s4 + $0x18] sm:$0xff]
  %v707 = vld [vmem:[%s4 + $0x20] sm:$0xff]
  %v708 = vld [vmem:[%s4 + $0x28] sm:$0xff]
  %v709 = vld [vmem:[%s4 + $0x30] sm:$0xff]
  %v710 = vld [vmem:[%s4 + $0x38] sm:$0xff]
  %v711 = vadd.f32 %v695, %v703
  %v712 = vadd.f32 %v696, %v704
  %v713 = vadd.f32 %v697, %v705
  %v714 = vadd.f32 %v698, %v706
  %v715 = vadd.f32 %v699, %v707
  %v716 = vadd.f32 %v700, %v708
  %v717 = vadd.f32 %v701, %v709
  %v718 = vadd.f32 %v702, %v710
  %v719 = vmax.f32 %v711, 0.0
  %v720 = vmax.f32 %v712, 0.0
  %v721 = vmax.f32 %v713, 0.0
  %v722 = vmax.f32 %v714, 0.0
  %v723 = vmax.f32 %v715, 0.0
  %v724 = vmax.f32 %v716, 0.0
  %v725 = vmax.f32 %v717, 0.0
  %v726 = vmax.f32 %v718, 0.0
  %727 = vst [vmem:[%s5] sm:$0xff] %v719
  %728 = vst [vmem:[%s5 + $0x8] sm:$0xff] %v720
  %729 = vst [vmem:[%s5 + $0x10] sm:$0xff] %v721
  %730 = vst [vmem:[%s5 + $0x18] sm:$0xff] %v722
  %731 = vst [vmem:[%s5 + $0x20] sm:$0xff] %v723
  %732 = vst [vmem:[%s5 + $0x28] sm:$0xff] %v724
  %733 = vst [vmem:[%s5 + $0x30] sm:$0xff] %v725
  %734 = vst [vmem:[%s5 + $0x38] sm:$0xff] %v726
  // Predicated region
  $region22: #{_lambda_.26} parent=0 // pred_check
    _
  $region23: #{_lambda_.26} parent=0 // pred_check_branch
    %736 = sbr.rel (0) target = $region25
  $region24: #{_lambda_.26} parent=0 // pred_region
    _
  $region25: #{_lambda_.26} parent=0 // pred_fallthru
    _
  // Predicated region
  $region26: #{_lambda_.26} parent=0 // pred_check
    _
  $region27: #{_lambda_.26} parent=0 // pred_check_branch
    %738 = sbr.rel (0) target = $region29
  $region28: #{_lambda_.26} parent=0 // pred_region
    _
  $region29: #{_lambda_.26} parent=0 // pred_fallthru
    _

// kernel: _lambda_.27
$region0: #{_lambda_.27}
  #allocation0 [shape = 'u32[]', space=smem, size = 0x4, offset = 0x4, fixed_abs, tag = 'smem constant byte address 0x4 - core index']
  #allocation1 [shape = 'u32[72,128]{1,0:T(1,128)}', space=vmem, size = 0x9000, scoped, tag = 'internal scratch']
  %s0 = inlined_call_operand.vmem [shape: f32[64,2,16], index: 0, kind: input, shape index: {}]
  %s1 = inlined_call_operand.vmem [shape: f32[10,64], index: 1, kind: input, shape index: {}]
  %s2 = inlined_call_operand.vmem [shape: f32[10,1], index: 2, kind: input, shape index: {}]
  %s3 = inlined_call_operand.vmem [shape: f32[10,2], index: 3, kind: output, shape index: {}]
  %s4 = sld [smem:[#allocation0]]
  $region22: #{_lambda_.27} parent=0
    _
  %s6 = ssub.s32 1, %s4
  %s7 = scalar_select 0, %s6, %s4
  // Predicated region
  $region2: #{_lambda_.27} parent=0 // pred_check
    _
  $region3: #{_lambda_.27} parent=0 // pred_check_branch
    %9 = sbr.rel (0) target = $region5
  $region4: #{_lambda_.27} parent=0 // pred_region
    _
  $region5: #{_lambda_.27} parent=0 // pred_fallthru
    _
  // Predicated region
  $region6: #{_lambda_.27} parent=0 // pred_check
    _
  $region7: #{_lambda_.27} parent=0 // pred_check_branch
    %11 = sbr.rel (0) target = $region9
  $region8: #{_lambda_.27} parent=0 // pred_region
    _
  $region9: #{_lambda_.27} parent=0 // pred_fallthru
    _
  // Predicated region
  $region10: #{_lambda_.27} parent=0 // pred_check
    _
  $region11: #{_lambda_.27} parent=0 // pred_check_branch
    %13 = sbr.rel (0) target = $region13
  $region12: #{_lambda_.27} parent=0 // pred_region
    _
  $region13: #{_lambda_.27} parent=0 // pred_fallthru
    _
  %v14 = vld [vmem:[%s0] sm:$0x3]
  %v15 = vld [vmem:[%s0 + $0x2] sm:$0x3]
  %v16 = vld [vmem:[%s0 + $0x4] sm:$0x3]
  %v17 = vld [vmem:[%s0 + $0x6] sm:$0x3]
  %v18 = vld [vmem:[%s0 + $0x8] sm:$0x3]
  %v19 = vld [vmem:[%s0 + $0xa] sm:$0x3]
  %v20 = vld [vmem:[%s0 + $0xc] sm:$0x3]
  %v21 = vld [vmem:[%s0 + $0xe] sm:$0x3]
  %v22 = vld [vmem:[%s0 + $0x10] sm:$0x3]
  %v23 = vld [vmem:[%s0 + $0x12] sm:$0x3]
  %v24 = vld [vmem:[%s0 + $0x14] sm:$0x3]
  %v25 = vld [vmem:[%s0 + $0x16] sm:$0x3]
  %v26 = vld [vmem:[%s0 + $0x18] sm:$0x3]
  %v27 = vld [vmem:[%s0 + $0x1a] sm:$0x3]
  %v28 = vld [vmem:[%s0 + $0x1c] sm:$0x3]
  %v29 = vld [vmem:[%s0 + $0x1e] sm:$0x3]
  %v30 = vld [vmem:[%s0 + $0x20] sm:$0x3]
  %v31 = vld [vmem:[%s0 + $0x22] sm:$0x3]
  %v32 = vld [vmem:[%s0 + $0x24] sm:$0x3]
  %v33 = vld [vmem:[%s0 + $0x26] sm:$0x3]
  %v34 = vld [vmem:[%s0 + $0x28] sm:$0x3]
  %v35 = vld [vmem:[%s0 + $0x2a] sm:$0x3]
  %v36 = vld [vmem:[%s0 + $0x2c] sm:$0x3]
  %v37 = vld [vmem:[%s0 + $0x2e] sm:$0x3]
  %v38 = vld [vmem:[%s0 + $0x30] sm:$0x3]
  %v39 = vld [vmem:[%s0 + $0x32] sm:$0x3]
  %v40 = vld [vmem:[%s0 + $0x34] sm:$0x3]
  %v41 = vld [vmem:[%s0 + $0x36] sm:$0x3]
  %v42 = vld [vmem:[%s0 + $0x38] sm:$0x3]
  %v43 = vld [vmem:[%s0 + $0x3a] sm:$0x3]
  %v44 = vld [vmem:[%s0 + $0x3c] sm:$0x3]
  %v45 = vld [vmem:[%s0 + $0x3e] sm:$0x3]
  %v46 = vld [vmem:[%s0 + $0x40] sm:$0x3]
  %v47 = vld [vmem:[%s0 + $0x42] sm:$0x3]
  %v48 = vld [vmem:[%s0 + $0x44] sm:$0x3]
  %v49 = vld [vmem:[%s0 + $0x46] sm:$0x3]
  %v50 = vld [vmem:[%s0 + $0x48] sm:$0x3]
  %v51 = vld [vmem:[%s0 + $0x4a] sm:$0x3]
  %v52 = vld [vmem:[%s0 + $0x4c] sm:$0x3]
  %v53 = vld [vmem:[%s0 + $0x4e] sm:$0x3]
  %v54 = vld [vmem:[%s0 + $0x50] sm:$0x3]
  %v55 = vld [vmem:[%s0 + $0x52] sm:$0x3]
  %v56 = vld [vmem:[%s0 + $0x54] sm:$0x3]
  %v57 = vld [vmem:[%s0 + $0x56] sm:$0x3]
  %v58 = vld [vmem:[%s0 + $0x58] sm:$0x3]
  %v59 = vld [vmem:[%s0 + $0x5a] sm:$0x3]
  %v60 = vld [vmem:[%s0 + $0x5c] sm:$0x3]
  %v61 = vld [vmem:[%s0 + $0x5e] sm:$0x3]
  %v62 = vld [vmem:[%s0 + $0x60] sm:$0x3]
  %v63 = vld [vmem:[%s0 + $0x62] sm:$0x3]
  %v64 = vld [vmem:[%s0 + $0x64] sm:$0x3]
  %v65 = vld [vmem:[%s0 + $0x66] sm:$0x3]
  %v66 = vld [vmem:[%s0 + $0x68] sm:$0x3]
  %v67 = vld [vmem:[%s0 + $0x6a] sm:$0x3]
  %v68 = vld [vmem:[%s0 + $0x6c] sm:$0x3]
  %v69 = vld [vmem:[%s0 + $0x6e] sm:$0x3]
  %v70 = vld [vmem:[%s0 + $0x70] sm:$0x3]
  %v71 = vld [vmem:[%s0 + $0x72] sm:$0x3]
  %v72 = vld [vmem:[%s0 + $0x74] sm:$0x3]
  %v73 = vld [vmem:[%s0 + $0x76] sm:$0x3]
  %v74 = vld [vmem:[%s0 + $0x78] sm:$0x3]
  %v75 = vld [vmem:[%s0 + $0x7a] sm:$0x3]
  %v76 = vld [vmem:[%s0 + $0x7c] sm:$0x3]
  %v77 = vld [vmem:[%s0 + $0x7e] sm:$0x3]
  %vm78 = vcmask 123904
  %v79 = vsel %vm78, %v14, 0.0
  %80 = vadd.xlane.f32.xlu0 %v79
  %v81 = vpop.xlane.xlu0 %80
  %v82 = vsel %vm78, %v15, 0.0
  %83 = vadd.xlane.f32.xlu0 %v82
  %v84 = vpop.xlane.xlu0 %83
  %v85 = vsel %vm78, %v16, 0.0
  %86 = vadd.xlane.f32.xlu0 %v85
  %v87 = vpop.xlane.xlu0 %86
  %v88 = vsel %vm78, %v17, 0.0
  %89 = vadd.xlane.f32.xlu0 %v88
  %v90 = vpop.xlane.xlu0 %89
  %v91 = vsel %vm78, %v18, 0.0
  %92 = vadd.xlane.f32.xlu0 %v91
  %v93 = vpop.xlane.xlu0 %92
  %v94 = vsel %vm78, %v19, 0.0
  %95 = vadd.xlane.f32.xlu0 %v94
  %v96 = vpop.xlane.xlu0 %95
  %v97 = vsel %vm78, %v20, 0.0
  %98 = vadd.xlane.f32.xlu0 %v97
  %v99 = vpop.xlane.xlu0 %98
  %v100 = vsel %vm78, %v21, 0.0
  %101 = vadd.xlane.f32.xlu0 %v100
  %v102 = vpop.xlane.xlu0 %101
  %v103 = vsel %vm78, %v22, 0.0
  %104 = vadd.xlane.f32.xlu0 %v103
  %v105 = vpop.xlane.xlu0 %104
  %v106 = vsel %vm78, %v23, 0.0
  %107 = vadd.xlane.f32.xlu0 %v106
  %v108 = vpop.xlane.xlu0 %107
  %v109 = vsel %vm78, %v24, 0.0
  %110 = vadd.xlane.f32.xlu0 %v109
  %v111 = vpop.xlane.xlu0 %110
  %v112 = vsel %vm78, %v25, 0.0
  %113 = vadd.xlane.f32.xlu0 %v112
  %v114 = vpop.xlane.xlu0 %113
  %v115 = vsel %vm78, %v26, 0.0
  %116 = vadd.xlane.f32.xlu0 %v115
  %v117 = vpop.xlane.xlu0 %116
  %v118 = vsel %vm78, %v27, 0.0
  %119 = vadd.xlane.f32.xlu0 %v118
  %v120 = vpop.xlane.xlu0 %119
  %v121 = vsel %vm78, %v28, 0.0
  %122 = vadd.xlane.f32.xlu0 %v121
  %v123 = vpop.xlane.xlu0 %122
  %v124 = vsel %vm78, %v29, 0.0
  %125 = vadd.xlane.f32.xlu0 %v124
  %v126 = vpop.xlane.xlu0 %125
  %v127 = vsel %vm78, %v30, 0.0
  %128 = vadd.xlane.f32.xlu0 %v127
  %v129 = vpop.xlane.xlu0 %128
  %v130 = vsel %vm78, %v31, 0.0
  %131 = vadd.xlane.f32.xlu0 %v130
  %v132 = vpop.xlane.xlu0 %131
  %v133 = vsel %vm78, %v32, 0.0
  %134 = vadd.xlane.f32.xlu0 %v133
  %v135 = vpop.xlane.xlu0 %134
  %v136 = vsel %vm78, %v33, 0.0
  %137 = vadd.xlane.f32.xlu0 %v136
  %v138 = vpop.xlane.xlu0 %137
  %v139 = vsel %vm78, %v34, 0.0
  %140 = vadd.xlane.f32.xlu0 %v139
  %v141 = vpop.xlane.xlu0 %140
  %v142 = vsel %vm78, %v35, 0.0
  %143 = vadd.xlane.f32.xlu0 %v142
  %v144 = vpop.xlane.xlu0 %143
  %v145 = vsel %vm78, %v36, 0.0
  %146 = vadd.xlane.f32.xlu0 %v145
  %v147 = vpop.xlane.xlu0 %146
  %v148 = vsel %vm78, %v37, 0.0
  %149 = vadd.xlane.f32.xlu0 %v148
  %v150 = vpop.xlane.xlu0 %149
  %v151 = vsel %vm78, %v38, 0.0
  %152 = vadd.xlane.f32.xlu0 %v151
  %v153 = vpop.xlane.xlu0 %152
  %v154 = vsel %vm78, %v39, 0.0
  %155 = vadd.xlane.f32.xlu0 %v154
  %v156 = vpop.xlane.xlu0 %155
  %v157 = vsel %vm78, %v40, 0.0
  %158 = vadd.xlane.f32.xlu0 %v157
  %v159 = vpop.xlane.xlu0 %158
  %v160 = vsel %vm78, %v41, 0.0
  %161 = vadd.xlane.f32.xlu0 %v160
  %v162 = vpop.xlane.xlu0 %161
  %v163 = vsel %vm78, %v42, 0.0
  %164 = vadd.xlane.f32.xlu0 %v163
  %v165 = vpop.xlane.xlu0 %164
  %v166 = vsel %vm78, %v43, 0.0
  %167 = vadd.xlane.f32.xlu0 %v166
  %v168 = vpop.xlane.xlu0 %167
  %v169 = vsel %vm78, %v44, 0.0
  %170 = vadd.xlane.f32.xlu0 %v169
  %v171 = vpop.xlane.xlu0 %170
  %v172 = vsel %vm78, %v45, 0.0
  %173 = vadd.xlane.f32.xlu0 %v172
  %v174 = vpop.xlane.xlu0 %173
  %v175 = vsel %vm78, %v46, 0.0
  %176 = vadd.xlane.f32.xlu0 %v175
  %v177 = vpop.xlane.xlu0 %176
  %v178 = vsel %vm78, %v47, 0.0
  %179 = vadd.xlane.f32.xlu0 %v178
  %v180 = vpop.xlane.xlu0 %179
  %v181 = vsel %vm78, %v48, 0.0
  %182 = vadd.xlane.f32.xlu0 %v181
  %v183 = vpop.xlane.xlu0 %182
  %v184 = vsel %vm78, %v49, 0.0
  %185 = vadd.xlane.f32.xlu0 %v184
  %v186 = vpop.xlane.xlu0 %185
  %v187 = vsel %vm78, %v50, 0.0
  %188 = vadd.xlane.f32.xlu0 %v187
  %v189 = vpop.xlane.xlu0 %188
  %v190 = vsel %vm78, %v51, 0.0
  %191 = vadd.xlane.f32.xlu0 %v190
  %v192 = vpop.xlane.xlu0 %191
  %v193 = vsel %vm78, %v52, 0.0
  %194 = vadd.xlane.f32.xlu0 %v193
  %v195 = vpop.xlane.xlu0 %194
  %v196 = vsel %vm78, %v53, 0.0
  %197 = vadd.xlane.f32.xlu0 %v196
  %v198 = vpop.xlane.xlu0 %197
  %v199 = vsel %vm78, %v54, 0.0
  %200 = vadd.xlane.f32.xlu0 %v199
  %v201 = vpop.xlane.xlu0 %200
  %v202 = vsel %vm78, %v55, 0.0
  %203 = vadd.xlane.f32.xlu0 %v202
  %v204 = vpop.xlane.xlu0 %203
  %v205 = vsel %vm78, %v56, 0.0
  %206 = vadd.xlane.f32.xlu0 %v205
  %v207 = vpop.xlane.xlu0 %206
  %v208 = vsel %vm78, %v57, 0.0
  %209 = vadd.xlane.f32.xlu0 %v208
  %v210 = vpop.xlane.xlu0 %209
  %v211 = vsel %vm78, %v58, 0.0
  %212 = vadd.xlane.f32.xlu0 %v211
  %v213 = vpop.xlane.xlu0 %212
  %v214 = vsel %vm78, %v59, 0.0
  %215 = vadd.xlane.f32.xlu0 %v214
  %v216 = vpop.xlane.xlu0 %215
  %v217 = vsel %vm78, %v60, 0.0
  %218 = vadd.xlane.f32.xlu0 %v217
  %v219 = vpop.xlane.xlu0 %218
  %v220 = vsel %vm78, %v61, 0.0
  %221 = vadd.xlane.f32.xlu0 %v220
  %v222 = vpop.xlane.xlu0 %221
  %v223 = vsel %vm78, %v62, 0.0
  %224 = vadd.xlane.f32.xlu0 %v223
  %v225 = vpop.xlane.xlu0 %224
  %v226 = vsel %vm78, %v63, 0.0
  %227 = vadd.xlane.f32.xlu0 %v226
  %v228 = vpop.xlane.xlu0 %227
  %v229 = vsel %vm78, %v64, 0.0
  %230 = vadd.xlane.f32.xlu0 %v229
  %v231 = vpop.xlane.xlu0 %230
  %v232 = vsel %vm78, %v65, 0.0
  %233 = vadd.xlane.f32.xlu0 %v232
  %v234 = vpop.xlane.xlu0 %233
  %v235 = vsel %vm78, %v66, 0.0
  %236 = vadd.xlane.f32.xlu0 %v235
  %v237 = vpop.xlane.xlu0 %236
  %v238 = vsel %vm78, %v67, 0.0
  %239 = vadd.xlane.f32.xlu0 %v238
  %v240 = vpop.xlane.xlu0 %239
  %v241 = vsel %vm78, %v68, 0.0
  %242 = vadd.xlane.f32.xlu0 %v241
  %v243 = vpop.xlane.xlu0 %242
  %v244 = vsel %vm78, %v69, 0.0
  %245 = vadd.xlane.f32.xlu0 %v244
  %v246 = vpop.xlane.xlu0 %245
  %v247 = vsel %vm78, %v70, 0.0
  %248 = vadd.xlane.f32.xlu0 %v247
  %v249 = vpop.xlane.xlu0 %248
  %v250 = vsel %vm78, %v71, 0.0
  %251 = vadd.xlane.f32.xlu0 %v250
  %v252 = vpop.xlane.xlu0 %251
  %v253 = vsel %vm78, %v72, 0.0
  %254 = vadd.xlane.f32.xlu0 %v253
  %v255 = vpop.xlane.xlu0 %254
  %v256 = vsel %vm78, %v73, 0.0
  %257 = vadd.xlane.f32.xlu0 %v256
  %v258 = vpop.xlane.xlu0 %257
  %v259 = vsel %vm78, %v74, 0.0
  %260 = vadd.xlane.f32.xlu0 %v259
  %v261 = vpop.xlane.xlu0 %260
  %v262 = vsel %vm78, %v75, 0.0
  %263 = vadd.xlane.f32.xlu0 %v262
  %v264 = vpop.xlane.xlu0 %263
  %v265 = vsel %vm78, %v76, 0.0
  %266 = vadd.xlane.f32.xlu0 %v265
  %v267 = vpop.xlane.xlu0 %266
  %v268 = vsel %vm78, %v77, 0.0
  %269 = vadd.xlane.f32.xlu0 %v268
  %v270 = vpop.xlane.xlu0 %269
  %v271 = vrcp.pop 16.0
  %v272 = vmul.f32 16.0, %v271
  %v273 = vsub.f32 1.0, %v272
  %v274 = vmul.f32 %v271, %v273
  %v275 = vadd.f32 %v271, %v274
  %vm276 = vweird.f32 %v271
  %v277 = vsel %vm276, %v271, %v275
  %v278 = vmul.f32 %v81, %v277
  %v279 = vmul.f32 %v84, %v277
  %v280 = vmul.f32 %v87, %v277
  %v281 = vmul.f32 %v90, %v277
  %v282 = vmul.f32 %v93, %v277
  %v283 = vmul.f32 %v96, %v277
  %v284 = vmul.f32 %v99, %v277
  %v285 = vmul.f32 %v102, %v277
  %v286 = vmul.f32 %v105, %v277
  %v287 = vmul.f32 %v108, %v277
  %v288 = vmul.f32 %v111, %v277
  %v289 = vmul.f32 %v114, %v277
  %v290 = vmul.f32 %v117, %v277
  %v291 = vmul.f32 %v120, %v277
  %v292 = vmul.f32 %v123, %v277
  %v293 = vmul.f32 %v126, %v277
  %v294 = vmul.f32 %v129, %v277
  %v295 = vmul.f32 %v132, %v277
  %v296 = vmul.f32 %v135, %v277
  %v297 = vmul.f32 %v138, %v277
  %v298 = vmul.f32 %v141, %v277
  %v299 = vmul.f32 %v144, %v277
  %v300 = vmul.f32 %v147, %v277
  %v301 = vmul.f32 %v150, %v277
  %v302 = vmul.f32 %v153, %v277
  %v303 = vmul.f32 %v156, %v277
  %v304 = vmul.f32 %v159, %v277
  %v305 = vmul.f32 %v162, %v277
  %v306 = vmul.f32 %v165, %v277
  %v307 = vmul.f32 %v168, %v277
  %v308 = vmul.f32 %v171, %v277
  %v309 = vmul.f32 %v174, %v277
  %v310 = vmul.f32 %v177, %v277
  %v311 = vmul.f32 %v180, %v277
  %v312 = vmul.f32 %v183, %v277
  %v313 = vmul.f32 %v186, %v277
  %v314 = vmul.f32 %v189, %v277
  %v315 = vmul.f32 %v192, %v277
  %v316 = vmul.f32 %v195, %v277
  %v317 = vmul.f32 %v198, %v277
  %v318 = vmul.f32 %v201, %v277
  %v319 = vmul.f32 %v204, %v277
  %v320 = vmul.f32 %v207, %v277
  %v321 = vmul.f32 %v210, %v277
  %v322 = vmul.f32 %v213, %v277
  %v323 = vmul.f32 %v216, %v277
  %v324 = vmul.f32 %v219, %v277
  %v325 = vmul.f32 %v222, %v277
  %v326 = vmul.f32 %v225, %v277
  %v327 = vmul.f32 %v228, %v277
  %v328 = vmul.f32 %v231, %v277
  %v329 = vmul.f32 %v234, %v277
  %v330 = vmul.f32 %v237, %v277
  %v331 = vmul.f32 %v240, %v277
  %v332 = vmul.f32 %v243, %v277
  %v333 = vmul.f32 %v246, %v277
  %v334 = vmul.f32 %v249, %v277
  %v335 = vmul.f32 %v252, %v277
  %v336 = vmul.f32 %v255, %v277
  %v337 = vmul.f32 %v258, %v277
  %v338 = vmul.f32 %v261, %v277
  %v339 = vmul.f32 %v264, %v277
  %v340 = vmul.f32 %v267, %v277
  %v341 = vmul.f32 %v270, %v277
  %v342 = vld [vmem:[%s1] sm:$0xff]
  %v343 = vld [vmem:[%s1 + $0x8] sm:$0x3]
  %v344 = vld [vmem:[%s2] sm:$0xff]
  %v345 = vld [vmem:[%s2 + $0x8] sm:$0x3]
  %347 = vset.pattern.permute.xlu0 0
  %348 = vperm.xlu0 %347, %v344
  %v349 = vpop.permute.xlu0 %348
  %352 = vset.pattern.permute.xlu0 0
  %353 = vperm.xlu0 %352, %v345
  %v354 = vpop.permute.xlu0 %353
  %v420 = vlaneseq
  %v421 = vand.u32 %v420, 127
  %v422 = vperm.slane %v278, %v421
  %v423 = vperm.slane %v279, %v421
  %v424 = vperm.slane %v280, %v421
  %v425 = vperm.slane %v281, %v421
  %v426 = vperm.slane %v282, %v421
  %v427 = vperm.slane %v283, %v421
  %v428 = vperm.slane %v284, %v421
  %v429 = vperm.slane %v285, %v421
  %v430 = vperm.slane %v286, %v421
  %v431 = vperm.slane %v287, %v421
  %v432 = vperm.slane %v288, %v421
  %v433 = vperm.slane %v289, %v421
  %v434 = vperm.slane %v290, %v421
  %v435 = vperm.slane %v291, %v421
  %v436 = vperm.slane %v292, %v421
  %v437 = vperm.slane %v293, %v421
  %v438 = vperm.slane %v294, %v421
  %v439 = vperm.slane %v295, %v421
  %v440 = vperm.slane %v296, %v421
  %v441 = vperm.slane %v297, %v421
  %v442 = vperm.slane %v298, %v421
  %v443 = vperm.slane %v299, %v421
  %v444 = vperm.slane %v300, %v421
  %v445 = vperm.slane %v301, %v421
  %v446 = vperm.slane %v302, %v421
  %v447 = vperm.slane %v303, %v421
  %v448 = vperm.slane %v304, %v421
  %v449 = vperm.slane %v305, %v421
  %v450 = vperm.slane %v306, %v421
  %v451 = vperm.slane %v307, %v421
  %v452 = vperm.slane %v308, %v421
  %v453 = vperm.slane %v309, %v421
  %v454 = vperm.slane %v310, %v421
  %v455 = vperm.slane %v311, %v421
  %v456 = vperm.slane %v312, %v421
  %v457 = vperm.slane %v313, %v421
  %v458 = vperm.slane %v314, %v421
  %v459 = vperm.slane %v315, %v421
  %v460 = vperm.slane %v316, %v421
  %v461 = vperm.slane %v317, %v421
  %v462 = vperm.slane %v318, %v421
  %v463 = vperm.slane %v319, %v421
  %v464 = vperm.slane %v320, %v421
  %v465 = vperm.slane %v321, %v421
  %v466 = vperm.slane %v322, %v421
  %v467 = vperm.slane %v323, %v421
  %v468 = vperm.slane %v324, %v421
  %v469 = vperm.slane %v325, %v421
  %v470 = vperm.slane %v326, %v421
  %v471 = vperm.slane %v327, %v421
  %v472 = vperm.slane %v328, %v421
  %v473 = vperm.slane %v329, %v421
  %v474 = vperm.slane %v330, %v421
  %v475 = vperm.slane %v331, %v421
  %v476 = vperm.slane %v332, %v421
  %v477 = vperm.slane %v333, %v421
  %v478 = vperm.slane %v334, %v421
  %v479 = vperm.slane %v335, %v421
  %v480 = vperm.slane %v336, %v421
  %v481 = vperm.slane %v337, %v421
  %v482 = vperm.slane %v338, %v421
  %v483 = vperm.slane %v339, %v421
  %v484 = vperm.slane %v340, %v421
  %v485 = vperm.slane %v341, %v421
  %vm486 = vcmask 1041409
  %v487 = vsel %vm486, %v423, %v422
  %vm488 = vcmask 1042434
  %v489 = vsel %vm488, %v424, %v487
  %vm490 = vcmask 1043459
  %v491 = vsel %vm490, %v425, %v489
  %vm492 = vcmask 1044484
  %v493 = vsel %vm492, %v426, %v491
  %vm494 = vcmask 1045509
  %v495 = vsel %vm494, %v427, %v493
  %vm496 = vcmask 1046534
  %v497 = vsel %vm496, %v428, %v495
  %vm498 = vcmask 1047559
  %v499 = vsel %vm498, %v429, %v497
  %v500 = vsel %vm486, %v431, %v430
  %v501 = vsel %vm488, %v432, %v500
  %v502 = vsel %vm490, %v433, %v501
  %v503 = vsel %vm492, %v434, %v502
  %v504 = vsel %vm494, %v435, %v503
  %v505 = vsel %vm496, %v436, %v504
  %v506 = vsel %vm498, %v437, %v505
  %v507 = vsel %vm486, %v439, %v438
  %v508 = vsel %vm488, %v440, %v507
  %v509 = vsel %vm490, %v441, %v508
  %v510 = vsel %vm492, %v442, %v509
  %v511 = vsel %vm494, %v443, %v510
  %v512 = vsel %vm496, %v444, %v511
  %v513 = vsel %vm498, %v445, %v512
  %v514 = vsel %vm486, %v447, %v446
  %v515 = vsel %vm488, %v448, %v514
  %v516 = vsel %vm490, %v449, %v515
  %v517 = vsel %vm492, %v450, %v516
  %v518 = vsel %vm494, %v451, %v517
  %v519 = vsel %vm496, %v452, %v518
  %v520 = vsel %vm498, %v453, %v519
  %v521 = vsel %vm486, %v455, %v454
  %v522 = vsel %vm488, %v456, %v521
  %v523 = vsel %vm490, %v457, %v522
  %v524 = vsel %vm492, %v458, %v523
  %v525 = vsel %vm494, %v459, %v524
  %v526 = vsel %vm496, %v460, %v525
  %v527 = vsel %vm498, %v461, %v526
  %v528 = vsel %vm486, %v463, %v462
  %v529 = vsel %vm488, %v464, %v528
  %v530 = vsel %vm490, %v465, %v529
  %v531 = vsel %vm492, %v466, %v530
  %v532 = vsel %vm494, %v467, %v531
  %v533 = vsel %vm496, %v468, %v532
  %v534 = vsel %vm498, %v469, %v533
  %v535 = vsel %vm486, %v471, %v470
  %v536 = vsel %vm488, %v472, %v535
  %v537 = vsel %vm490, %v473, %v536
  %v538 = vsel %vm492, %v474, %v537
  %v539 = vsel %vm494, %v475, %v538
  %v540 = vsel %vm496, %v476, %v539
  %v541 = vsel %vm498, %v477, %v540
  %v542 = vsel %vm486, %v479, %v478
  %v543 = vsel %vm488, %v480, %v542
  %v544 = vsel %vm490, %v481, %v543
  %v545 = vsel %vm492, %v482, %v544
  %v546 = vsel %vm494, %v483, %v545
  %v547 = vsel %vm496, %v484, %v546
  %v548 = vsel %vm498, %v485, %v547
  %vm557 = vcmask 523264
  %v559 = vsel %vm557, %v342, 0
  %v562 = vsel %vm557, %v343, 0
  %564 = vmatpush.msra.mxu0 0.0
  %565 = vmatpush.msra.mxu0 0.0
  %566 = vmatpush.msra.mxu0 0.0
  %567 = vmatpush.msra.mxu0 0.0
  %568 = vmatpush.msra.mxu0 0.0
  %569 = vmatpush.msra.mxu0 0.0
  %570 = vmatpush.msra.mxu0 0.0
  %571 = vmatpush.msra.mxu0 0.0
  %572 = vmatpush.msra.mxu0 %v548
  %573 = vmatpush.msra.mxu0 %v541
  %574 = vmatpush.msra.mxu0 %v534
  %575 = vmatpush.msra.mxu0 %v527
  %576 = vmatpush.msra.mxu0 %v520
  %577 = vmatpush.msra.mxu0 %v513
  %578 = vmatpush.msra.mxu0 %v506
  %579 = vmatpush.msra.mxu0 %v499
  %580 = vmatmul.f32.gmra.mxu0 %v559
  %v581 = vpop.f32.mrf.mxu0
  %v582 = vadd.f32 %v349, %v581
  %583 = vmatmul.f32.gmra.mxu0 %v562
  %v584 = vpop.f32.mrf.mxu0
  %v585 = vadd.f32 %v354, %v584
  %586 = vdwg.mxu0
  %vm587 = vcmask 15360
  %588 = vst.msk [vmem:[%s3] sm:$0xff] %vm587, %v582
  %vm589 = vcmask 9216
  %590 = vst.msk [vmem:[%s3 + $0x8] sm:$0x3] %vm589, %v585
  // Predicated region
  $region14: #{_lambda_.27} parent=0 // pred_check
    _
  $region15: #{_lambda_.27} parent=0 // pred_check_branch
    %592 = sbr.rel (0) target = $region17
  $region16: #{_lambda_.27} parent=0 // pred_region
    _
  $region17: #{_lambda_.27} parent=0 // pred_fallthru
    _
  // Predicated region
  $region18: #{_lambda_.27} parent=0 // pred_check
    _
  $region19: #{_lambda_.27} parent=0 // pred_check_branch
    %594 = sbr.rel (0) target = $region21
  $region20: #{_lambda_.27} parent=0 // pred_region
    _
  $region21: #{_lambda_.27} parent=0 // pred_fallthru
    _

</llo_original>
